<compile_context>
chip_gen: v6e
topology: v6e:2x2x1
jax: 0.10.0
libtpu: 0.0.40
codegen_flags: <defaults>
</compile_context>

<pallas_src>
import math
from functools import partial

import jax
import jax.numpy as jnp
from jax.experimental import pallas as pl
from jax.experimental.pallas import tpu as pltpu

CP = 128          # padded channel width (lane-dense)
_VMEM_LIMIT = 32 * 1024 * 1024


# ----------------------------- helpers -------------------------------------

def _const_spec(shape):
    zeros = (0,) * len(shape)
    return pl.BlockSpec(shape, lambda i, _z=zeros: _z)


# -------------------- fused matmul (stem / downstream) ---------------------

def _mm_scale_act_kernel(x_ref, w_ref, s_ref, b_ref, o_ref, *, act):
    y = jnp.dot(x_ref[...], w_ref[...], preferred_element_type=jnp.float32)
    y = y * s_ref[...] + b_ref[...]
    if act == "relu":
        y = jnp.maximum(y, 0.0)
    o_ref[...] = y.astype(o_ref.dtype)


def matmul_scale_act(x, w, scale, shift, act="none"):
    """bf16 matmul + per-channel scale/shift (+ReLU), tiled over rows."""
    M, K = x.shape
    Nout = w.shape[1]
    TM = 64 if M % 64 == 0 else M
    return pl.pallas_call(
        partial(_mm_scale_act_kernel, act=act),
        out_shape=jax.ShapeDtypeStruct((M, Nout), jnp.bfloat16),
        grid=(M // TM,),
        in_specs=[pl.BlockSpec((TM, K), lambda i: (i, 0)),
                  _const_spec((K, Nout)),
                  _const_spec((1, Nout)),
                  _const_spec((1, Nout))],
        out_specs=pl.BlockSpec((TM, Nout), lambda i: (i, 0)),
        compiler_params=pltpu.CompilerParams(
            dimension_semantics=("parallel",),
            vmem_limit_bytes=_VMEM_LIMIT),
    )(x, w, scale, shift)


# ----------------------- fused MobileNet block ------------------------------

def _make_block_kernel(H, W, E, k):
    p = k // 2
    HW = H * W
    OFF = 8                        # zero lead rows in the flat padded scratch
    c0 = OFF + p * W               # start row of the real data

    def kernel(x_ref, w1_ref, s1_ref, b1_ref, w2_ref, b2_ref,
               sw1_ref, ss_ref, sb_ref, sw2_ref,
               w3_ref, s3_ref, b3_ref, o_ref, zpad_ref):
        x2d = x_ref[...]                                        # (HW, CP) bf16

        # ---- conv1 (1x1) + folded BN + SiLU (MXU, bf16 in / f32 acc) ------
        h = jnp.dot(x2d, w1_ref[...], preferred_element_type=jnp.float32)
        h = h * s1_ref[...] + b1_ref[...]
        h = h * jax.nn.sigmoid(h)                               # (HW, E) f32

        # ---- depthwise kxk, 'same' padding, + bias + SiLU ------------------
        # Flat layout: rows zero-padded in VMEM scratch; horizontal edge taps
        # are masked with a column mask -> no reshapes / strided gathers.
        zpad_ref[...] = jnp.zeros_like(zpad_ref)
        zpad_ref[c0:c0 + HW, :] = h
        col = jax.lax.broadcasted_iota(jnp.int32, (HW, 1), 0) % W
        wv = w2_ref[...]                                        # (k*k, 1, E)
        acc = jnp.zeros((HW, E), jnp.float32)
        for dy in range(k):
            for dx in range(k):
                start = OFF + dy * W + dx - p
                tap = zpad_ref[start:start + HW, :]
                if dx != p:
                    valid = (col >= p - dx) & (col < W + p - dx)
                    tap = jnp.where(valid, tap, 0.0)
                acc = acc + tap * wv[dy * k + dx]
        acc = acc + b2_ref[...]
        d = acc * jax.nn.sigmoid(acc)                           # (HW, E) f32

        # ---- Squeeze-Excite (pool -> 1x1 -> BN -> ReLU -> 1x1 -> hsigmoid) --
        mvec = jnp.mean(d, axis=0, keepdims=True)               # (1, E)
        se_h = jnp.dot(mvec.astype(jnp.bfloat16), sw1_ref[...],
                       preferred_element_type=jnp.float32)
        se_h = jnp.maximum(se_h * ss_ref[...] + sb_ref[...], 0.0)
        se_o = jnp.dot(se_h.astype(jnp.bfloat16), sw2_ref[...],
                       preferred_element_type=jnp.float32)
        gate = jnp.clip(se_o / 6.0 + 0.5, 0.0, 1.0)             # Hardsigmoid

        # ---- conv3 (1x1) + folded BN + skip + SiLU --------------------------
        dg = (d * gate).astype(jnp.bfloat16)
        y = jnp.dot(dg, w3_ref[...], preferred_element_type=jnp.float32)
        y = y * s3_ref[...] + b3_ref[...] + x2d.astype(jnp.float32)
        y = y * jax.nn.sigmoid(y)
        o_ref[...] = y.astype(jnp.bfloat16)

    return kernel


def mobilenet_block(x, bp, H, W, k):
    """x: (N, H*W, CP) bf16 -> (N, H*W, CP) bf16; one fused kernel per block."""
    N = x.shape[0]
    E = bp["w1"].shape[1]
    p = k // 2
    HW = H * W
    zrows = 8 + (H + 2 * p) * W + 8

    in_specs = [
        pl.BlockSpec((None, HW, CP), lambda i: (i, 0, 0)),   # x
        _const_spec((CP, E)),                                # w1
        _const_spec((1, E)), _const_spec((1, E)),            # bn1 scale/shift
        _const_spec((k * k, 1, E)), _const_spec((1, E)),     # dw weight / bias
        _const_spec((E, CP)),                                # se w1
        _const_spec((1, CP)), _const_spec((1, CP)),          # se bn scale/shift
        _const_spec((CP, E)),                                # se w2
        _const_spec((E, CP)),                                # w3
        _const_spec((1, CP)), _const_spec((1, CP)),          # bn3 scale/shift
    ]
    return pl.pallas_call(
        _make_block_kernel(H, W, E, k),
        out_shape=jax.ShapeDtypeStruct((N, HW, CP), jnp.bfloat16),
        grid=(N,),
        in_specs=in_specs,
        out_specs=pl.BlockSpec((None, HW, CP), lambda i: (i, 0, 0)),
        scratch_shapes=[pltpu.VMEM((zrows, E), jnp.float32)],
        compiler_params=pltpu.CompilerParams(
            dimension_semantics=("parallel",),
            vmem_limit_bytes=_VMEM_LIMIT),
    )(x, bp["w1"], bp["bn1_scale"], bp["bn1_shift"], bp["w2"], bp["b2"],
      bp["se_w1"], bp["se_s"], bp["se_b"], bp["se_w2"],
      bp["w3"], bp["bn3_scale"], bp["bn3_shift"])


# ------------------------------ head kernel --------------------------------

def _head_kernel(x_ref, w_ref, b_ref, o_ref):
    m = jnp.mean(x_ref[...].astype(jnp.float32), axis=1)        # (N, CP)
    o_ref[...] = (jnp.dot(m.astype(jnp.bfloat16), w_ref[...],
                          preferred_element_type=jnp.float32) + b_ref[...])


def pool_linear(x, w, b):
    N, HW, C = x.shape
    Nout = w.shape[1]
    return pl.pallas_call(
        _head_kernel,
        out_shape=jax.ShapeDtypeStruct((N, Nout), jnp.float32),
        grid=(1,),
        in_specs=[_const_spec((N, HW, C)),
                  _const_spec((C, Nout)),
                  _const_spec((1, Nout))],
        out_specs=_const_spec((N, Nout)),
    )(x, w, b)


# ------------------------------- JAX glue -----------------------------------

def im2col(x_nhwc, k, stride, pad):
    # Used only for the tiny stem / downstream stride-2 convs.
    x = jnp.pad(x_nhwc, ((0, 0), (pad, pad), (pad, pad), (0, 0)))
    N, Hp, Wp, C = x.shape
    Ho = (Hp - k) // stride + 1
    Wo = (Wp - k) // stride + 1
    cols = []
    for dy in range(k):
        for dx in range(k):
            cols.append(x[:, dy:dy + stride * Ho:stride, dx:dx + stride * Wo:stride, :])
    patches = jnp.stack(cols, axis=3)                     # (N, Ho, Wo, k*k, C)
    return patches.reshape(N * Ho * Wo, k * k * C), (N, Ho, Wo)


def downstream(x, H, W, w, b):
    # Downstream.forward discards the BatchNorm result; only the stride-2
    # RepUnit (deploy: conv + bias) is applied.
    N = x.shape[0]
    cols, (_, Ho, Wo) = im2col(x.reshape(N, H, W, CP), 3, 2, 1)
    ones = jnp.ones((1, CP), jnp.float32)
    y = matmul_scale_act(cols, w, ones, b, act="none")
    return y.reshape(N, Ho * Wo, CP), Ho, Wo


def init_params(key, num_blocks, num_classes=10, image_channels=3):
    keys = iter(jax.random.split(key, 1024))
    nk = lambda: next(keys)
    bn_scale = 1.0 / math.sqrt(1.0 + 1e-5)    # gamma=1, beta=0, mean=0, var=1

    def conv_w(k, cin, cout):
        std = math.sqrt(2.0 / (cout * k * k))             # kaiming fan_out
        return std * jax.random.normal(nk(), (k, k, cin, cout), jnp.float32)

    def pw_w(cin, cout):
        std = math.sqrt(2.0 / cout)
        return std * jax.random.normal(nk(), (cin, cout), jnp.float32)

    def dw_w(k, c):
        std = math.sqrt(2.0 / (k * k))
        return std * jax.random.normal(nk(), (k, k, c), jnp.float32)

    def bias(c):
        return 0.01 * jax.random.normal(nk(), (c,), jnp.float32)

    def pad2(w, rows, cols):
        return jnp.pad(w, ((0, rows - w.shape[0]), (0, cols - w.shape[1])))

    def bn_pair(c):
        return (jnp.full((1, c), bn_scale, jnp.float32),
                jnp.zeros((1, c), jnp.float32))

    p = {}
    p["stem_w"] = pad2(conv_w(3, image_channels, 32).reshape(9 * image_channels, 32),
                       9 * image_channels, CP).astype(jnp.bfloat16)
    p["stem_scale"], p["stem_shift"] = bn_pair(CP)

    def make_block(k, size):
        e = 4 * size
        ee = max(e // 4, 8)
        bp = {}
        bp["w1"] = pad2(pw_w(size, e), CP, e).astype(jnp.bfloat16)
        bp["bn1_scale"], bp["bn1_shift"] = bn_pair(e)
        bp["w2"] = dw_w(k, e).reshape(k * k, 1, e)        # RepUnit (deploy) dw weight
        bp["b2"] = bias(e).reshape(1, e)                  # RepUnit (deploy) bias
        bp["se_w1"] = pad2(pw_w(e, ee), e, CP).astype(jnp.bfloat16)
        bp["se_s"], bp["se_b"] = bn_pair(CP)
        bp["se_w2"] = pad2(pw_w(ee, e), CP, e).astype(jnp.bfloat16)
        bp["w3"] = pad2(pw_w(e, size), e, CP).astype(jnp.bfloat16)
        bp["bn3_scale"], bp["bn3_shift"] = bn_pair(CP)
        return bp

    p["layer1"] = [make_block(3, 32) for _ in range(num_blocks[0])]
    p["layer2"] = [make_block(5, 64) for _ in range(num_blocks[1])]
    p["layer3"] = [make_block(5, 96) for _ in range(num_blocks[2])]

    def down_w(cin, cout):
        w = conv_w(3, cin, cout)
        w = jnp.pad(w, ((0, 0), (0, 0), (0, CP - cin), (0, CP - cout)))
        return w.reshape(9 * CP, CP).astype(jnp.bfloat16)

    p["down1_w"] = down_w(32, 64)
    p["down1_b"] = pad2(bias(64).reshape(1, 64), 1, CP)
    p["down2_w"] = down_w(64, 96)
    p["down2_b"] = pad2(bias(96).reshape(1, 96), 1, CP)

    p["fc_w"] = pad2(0.001 * jax.random.normal(nk(), (96, num_classes), jnp.float32),
                     CP, CP).astype(jnp.bfloat16)
    p["fc_b"] = jnp.zeros((1, CP), jnp.float32)
    return p


def forward(params, x_nchw, *, num_classes):
    x = jnp.transpose(x_nchw, (0, 2, 3, 1)).astype(jnp.bfloat16)   # NCHW -> NHWC
    # Stem: 3x3 s2 conv (+ folded BN + ReLU) as a tiled fused matmul.
    cols, (N, H, W) = im2col(x, 3, 2, 1)
    a = matmul_scale_act(cols, params["stem_w"], params["stem_scale"],
                         params["stem_shift"], act="relu")
    a = a.reshape(N, H * W, CP)

    for bp in params["layer1"]:
        a = mobilenet_block(a, bp, H, W, 3)
    a, H, W = downstream(a, H, W, params["down1_w"], params["down1_b"])
    for bp in params["layer2"]:
        a = mobilenet_block(a, bp, H, W, 5)
    a, H, W = downstream(a, H, W, params["down2_w"], params["down2_b"])
    for bp in params["layer3"]:
        a = mobilenet_block(a, bp, H, W, 5)

    logits = pool_linear(a, params["fc_w"], params["fc_b"])
    return logits[:, :num_classes]


# --------------------------------- main --------------------------------------

if __name__ == "__main__":
    key = jax.random.PRNGKey(0)
    kp, kx = jax.random.split(key)

    num_blocks = [1, 1, 1]
    num_classes = 10
    params = init_params(kp, num_blocks, num_classes=num_classes, image_channels=3)

    x = jax.random.normal(kx, (2, 3, 16, 16), jnp.float32)   # NCHW like PyTorch

    fwd = jax.jit(partial(forward, num_classes=num_classes))
    logits = fwd(params, x)
    jax.block_until_ready(logits)

    assert logits.shape == (2, num_classes)
    assert bool(jnp.all(jnp.isfinite(logits)))
    print("KERNEL_OK")
</pallas_src>

<mosaic_0001>
module attributes {stable_mosaic.version = 11 : i64} {
  func.func @_mm_scale_act_kernel(%arg0: i32, %arg1: memref<64x27xbf16, #tpu.memory_space<vmem>>, %arg2: memref<27x128xbf16, #tpu.memory_space<vmem>>, %arg3: memref<1x128xf32, #tpu.memory_space<vmem>>, %arg4: memref<1x128xf32, #tpu.memory_space<vmem>>, %arg5: memref<64x128xbf16, #tpu.memory_space<vmem>>) attributes {dimension_semantics = [#tpu.dimension_semantics<parallel>], iteration_bounds = array<i64: 2>, scalar_prefetch = 0 : i64, scratch_operands = 0 : i64, tpu.core_type = #tpu.core_type<tc>, window_params = [{transform_indices = @transform_0, window_bounds = array<i64: 64, 27>}, {pipeline_mode = #tpu.pipeline_mode<synchronous>, transform_indices = @transform_1, window_bounds = array<i64: 27, 128>}, {pipeline_mode = #tpu.pipeline_mode<synchronous>, transform_indices = @transform_2, window_bounds = array<i64: 1, 128>}, {pipeline_mode = #tpu.pipeline_mode<synchronous>, transform_indices = @transform_3, window_bounds = array<i64: 1, 128>}, {transform_indices = @transform_4, window_bounds = array<i64: 64, 128>}]} {
    %c0 = arith.constant 0 : index
    %c0_0 = arith.constant 0 : index
    %0 = vector.load %arg1[%c0, %c0_0] : memref<64x27xbf16, #tpu.memory_space<vmem>>, vector<64x27xbf16>
    %c0_1 = arith.constant 0 : index
    %c0_2 = arith.constant 0 : index
    %1 = vector.load %arg2[%c0_1, %c0_2] : memref<27x128xbf16, #tpu.memory_space<vmem>>, vector<27x128xbf16>
    %cst = arith.constant dense<0.000000e+00> : vector<64x128xf32>
    %2 = tpu.matmul %0, %1, %cst {dimension_numbers = #tpu.dot_dimension_numbers<[1], [0], [0], [1], [0, 0, 1, 1], [], []>} : vector<64x27xbf16>, vector<27x128xbf16>, vector<64x128xf32> -> vector<64x128xf32>
    %c0_3 = arith.constant 0 : index
    %c0_4 = arith.constant 0 : index
    %3 = vector.load %arg3[%c0_3, %c0_4] : memref<1x128xf32, #tpu.memory_space<vmem>>, vector<1x128xf32>
    %4 = vector.broadcast %3 : vector<1x128xf32> to vector<64x128xf32>
    %5 = arith.mulf %2, %4 : vector<64x128xf32>
    %c0_5 = arith.constant 0 : index
    %c0_6 = arith.constant 0 : index
    %6 = vector.load %arg4[%c0_5, %c0_6] : memref<1x128xf32, #tpu.memory_space<vmem>>, vector<1x128xf32>
    %7 = vector.broadcast %6 : vector<1x128xf32> to vector<64x128xf32>
    %8 = arith.addf %5, %7 : vector<64x128xf32>
    %cst_7 = arith.constant 0.000000e+00 : f32
    %9 = vector.broadcast %cst_7 : f32 to vector<64x128xf32>
    %10 = arith.maximumf %8, %9 : vector<64x128xf32>
    %11 = arith.truncf %10 : vector<64x128xf32> to vector<64x128xbf16>
    %c0_8 = arith.constant 0 : index
    %c0_9 = arith.constant 0 : index
    %12 = vector.load %arg5[%c0_8, %c0_9] : memref<64x128xbf16, #tpu.memory_space<vmem>>, vector<64x128xbf16>
    tpu.vector_store %arg5[%c0_8, %c0_9], %11 {strides = array<i32>} : memref<64x128xbf16, #tpu.memory_space<vmem>>, vector<64x128xbf16>,
    return
  }
  func.func @transform_0(%arg0: i32) -> (i32, i32) {
    %c0_i32 = arith.constant 0 : i32
    %c0_i32_0 = arith.constant 0 : i32
    return %arg0, %c0_i32 : i32, i32
  }
  func.func @transform_1(%arg0: i32) -> (i32, i32) {
    %c0_i32 = arith.constant 0 : i32
    %c0_i32_0 = arith.constant 0 : i32
    %c0_i32_1 = arith.constant 0 : i32
    return %c0_i32, %c0_i32_0 : i32, i32
  }
  func.func @transform_2(%arg0: i32) -> (i32, i32) {
    %c0_i32 = arith.constant 0 : i32
    %c0_i32_0 = arith.constant 0 : i32
    %c0_i32_1 = arith.constant 0 : i32
    return %c0_i32, %c0_i32_0 : i32, i32
  }
  func.func @transform_3(%arg0: i32) -> (i32, i32) {
    %c0_i32 = arith.constant 0 : i32
    %c0_i32_0 = arith.constant 0 : i32
    %c0_i32_1 = arith.constant 0 : i32
    return %c0_i32, %c0_i32_0 : i32, i32
  }
  func.func @transform_4(%arg0: i32) -> (i32, i32) {
    %c0_i32 = arith.constant 0 : i32
    %c0_i32_0 = arith.constant 0 : i32
    return %arg0, %c0_i32 : i32, i32
  }
}

module attributes {stable_mosaic.version = 11 : i64} {
  func.func @kernel(%arg0: i32, %arg1: memref<1x64x128xbf16, #tpu.memory_space<vmem>>, %arg2: memref<128x128xbf16, #tpu.memory_space<vmem>>, %arg3: memref<1x128xf32, #tpu.memory_space<vmem>>, %arg4: memref<1x128xf32, #tpu.memory_space<vmem>>, %arg5: memref<9x1x128xf32, #tpu.memory_space<vmem>>, %arg6: memref<1x128xf32, #tpu.memory_space<vmem>>, %arg7: memref<128x128xbf16, #tpu.memory_space<vmem>>, %arg8: memref<1x128xf32, #tpu.memory_space<vmem>>, %arg9: memref<1x128xf32, #tpu.memory_space<vmem>>, %arg10: memref<128x128xbf16, #tpu.memory_space<vmem>>, %arg11: memref<128x128xbf16, #tpu.memory_space<vmem>>, %arg12: memref<1x128xf32, #tpu.memory_space<vmem>>, %arg13: memref<1x128xf32, #tpu.memory_space<vmem>>, %arg14: memref<1x64x128xbf16, #tpu.memory_space<vmem>>, %arg15: memref<96x128xf32, #tpu.memory_space<vmem>>) attributes {dimension_semantics = [#tpu.dimension_semantics<parallel>], iteration_bounds = array<i64: 2>, scalar_prefetch = 0 : i64, scratch_operands = 1 : i64, tpu.core_type = #tpu.core_type<tc>, window_params = [{transform_indices = @transform_0, window_bounds = array<i64: 1, 64, 128>}, {pipeline_mode = #tpu.pipeline_mode<synchronous>, transform_indices = @transform_1, window_bounds = array<i64: 128, 128>}, {pipeline_mode = #tpu.pipeline_mode<synchronous>, transform_indices = @transform_2, window_bounds = array<i64: 1, 128>}, {pipeline_mode = #tpu.pipeline_mode<synchronous>, transform_indices = @transform_3, window_bounds = array<i64: 1, 128>}, {pipeline_mode = #tpu.pipeline_mode<synchronous>, transform_indices = @transform_4, window_bounds = array<i64: 9, 1, 128>}, {pipeline_mode = #tpu.pipeline_mode<synchronous>, transform_indices = @transform_5, window_bounds = array<i64: 1, 128>}, {pipeline_mode = #tpu.pipeline_mode<synchronous>, transform_indices = @transform_6, window_bounds = array<i64: 128, 128>}, {pipeline_mode = #tpu.pipeline_mode<synchronous>, transform_indices = @transform_7, window_bounds = array<i64: 1, 128>}, {pipeline_mode = #tpu.pipeline_mode<synchronous>, transform_indices = @transform_8, window_bounds = array<i64: 1, 128>}, {pipeline_mode = #tpu.pipeline_mode<synchronous>, transform_indices = @transform_9, window_bounds = array<i64: 128, 128>}, {pipeline_mode = #tpu.pipeline_mode<synchronous>, transform_indices = @transform_10, window_bounds = array<i64: 128, 128>}, {pipeline_mode = #tpu.pipeline_mode<synchronous>, transform_indices = @transform_11, window_bounds = array<i64: 1, 128>}, {pipeline_mode = #tpu.pipeline_mode<synchronous>, transform_indices = @transform_12, window_bounds = array<i64: 1, 128>}, {transform_indices = @transform_13, window_bounds = array<i64: 1, 64, 128>}]} {
    %c0 = arith.constant 0 : index
    %c0_0 = arith.constant 0 : index
    %c0_1 = arith.constant 0 : index
    %0 = vector.load %arg1[%c0, %c0_0, %c0_1] : memref<1x64x128xbf16, #tpu.memory_space<vmem>>, vector<1x64x128xbf16>
    %1 = vector.shape_cast %0 : vector<1x64x128xbf16> to vector<64x128xbf16>
    %c0_2 = arith.constant 0 : index
    %c0_3 = arith.constant 0 : index
    %2 = vector.load %arg2[%c0_2, %c0_3] : memref<128x128xbf16, #tpu.memory_space<vmem>>, vector<128x128xbf16>
    %cst = arith.constant dense<0.000000e+00> : vector<64x128xf32>
    %3 = tpu.matmul %1, %2, %cst {dimension_numbers = #tpu.dot_dimension_numbers<[1], [0], [0], [1], [0, 0, 1, 1], [], []>} : vector<64x128xbf16>, vector<128x128xbf16>, vector<64x128xf32> -> vector<64x128xf32>
    %c0_4 = arith.constant 0 : index
    %c0_5 = arith.constant 0 : index
    %4 = vector.load %arg3[%c0_4, %c0_5] : memref<1x128xf32, #tpu.memory_space<vmem>>, vector<1x128xf32>
    %5 = vector.broadcast %4 : vector<1x128xf32> to vector<64x128xf32>
    %6 = arith.mulf %3, %5 : vector<64x128xf32>
    %c0_6 = arith.constant 0 : index
    %c0_7 = arith.constant 0 : index
    %7 = vector.load %arg4[%c0_6, %c0_7] : memref<1x128xf32, #tpu.memory_space<vmem>>, vector<1x128xf32>
    %8 = vector.broadcast %7 : vector<1x128xf32> to vector<64x128xf32>
    %9 = arith.addf %6, %8 : vector<64x128xf32>
    %10 = arith.negf %9 : vector<64x128xf32>
    %11 = math.exp %10 : vector<64x128xf32>
    %cst_8 = arith.constant 1.000000e+00 : f32
    %12 = vector.broadcast %cst_8 : f32 to vector<64x128xf32>
    %13 = arith.addf %12, %11 : vector<64x128xf32>
    %14 = arith.divf %12, %13 : vector<64x128xf32>
    %15 = arith.mulf %9, %14 : vector<64x128xf32>
    %cst_9 = arith.constant 0.000000e+00 : f32
    %16 = vector.broadcast %cst_9 : f32 to vector<96x128xf32>
    %c0_10 = arith.constant 0 : index
    %c0_11 = arith.constant 0 : index
    %17 = vector.load %arg15[%c0_10, %c0_11] : memref<96x128xf32, #tpu.memory_space<vmem>>, vector<96x128xf32>
    tpu.vector_store %arg15[%c0_10, %c0_11], %16 {strides = array<i32>} : memref<96x128xf32, #tpu.memory_space<vmem>>, vector<96x128xf32>,
    %c16 = arith.constant 16 : index
    %c0_12 = arith.constant 0 : index
    %18 = vector.load %arg15[%c16, %c0_12] : memref<96x128xf32, #tpu.memory_space<vmem>>, vector<64x128xf32>
    tpu.vector_store %arg15[%c16, %c0_12], %15 {strides = array<i32>} : memref<96x128xf32, #tpu.memory_space<vmem>>, vector<64x128xf32>,
    %19 = tpu.iota {dimensions = array<i32: 0>} : vector<64x1xi32>
    %c8_i32 = arith.constant 8 : i32
    %c0_i32 = arith.constant 0 : i32
    %20 = arith.cmpi eq, %c8_i32, %c0_i32 : i32
    %c1_i32 = arith.constant 1 : i32
    %21 = arith.select %20, %c1_i32, %c8_i32 : i32
    %22 = vector.broadcast %21 : i32 to vector<64x1xi32>
    %23 = arith.remsi %19, %22 : vector<64x1xi32>
    %c0_i32_13 = arith.constant 0 : i32
    %24 = vector.broadcast %c0_i32_13 : i32 to vector<64x1xi32>
    %25 = arith.cmpi ne, %23, %24 : vector<64x1xi32>
    %c0_i32_14 = arith.constant 0 : i32
    %26 = vector.broadcast %c0_i32_14 : i32 to vector<64x1xi32>
    %27 = arith.cmpi slt, %23, %26 : vector<64x1xi32>
    %c0_i32_15 = arith.constant 0 : i32
    %28 = arith.cmpi slt, %21, %c0_i32_15 : i32
    %29 = vector.broadcast %28 : i1 to vector<64x1xi1>
    %30 = vector.broadcast %29 : vector<64x1xi1> to vector<64x1xi1>
    %31 = arith.xori %27, %30 : vector<64x1xi1>
    %32 = arith.andi %31, %25 : vector<64x1xi1>
    %33 = vector.broadcast %21 : i32 to vector<64x1xi32>
    %34 = arith.addi %23, %33 : vector<64x1xi32>
    %35 = arith.select %32, %34, %23 : vector<64x1xi1>, vector<64x1xi32>
    %c0_16 = arith.constant 0 : index
    %c0_17 = arith.constant 0 : index
    %c0_18 = arith.constant 0 : index
    %36 = vector.load %arg5[%c0_16, %c0_17, %c0_18] : memref<9x1x128xf32, #tpu.memory_space<vmem>>, vector<9x1x128xf32>
    %cst_19 = arith.constant 0.000000e+00 : f32
    %37 = vector.broadcast %cst_19 : f32 to vector<64x128xf32>
    %c7 = arith.constant 7 : index
    %c0_20 = arith.constant 0 : index
    %38 = vector.load %arg15[%c7, %c0_20] : memref<96x128xf32, #tpu.memory_space<vmem>>, vector<64x128xf32>
    %c1_i32_21 = arith.constant 1 : i32
    %39 = vector.broadcast %c1_i32_21 : i32 to vector<64x1xi32>
    %40 = arith.cmpi sge, %35, %39 : vector<64x1xi32>
    %c9_i32 = arith.constant 9 : i32
    %41 = vector.broadcast %c9_i32 : i32 to vector<64x1xi32>
    %42 = arith.cmpi slt, %35, %41 : vector<64x1xi32>
    %43 = arith.andi %40, %42 : vector<64x1xi1>
    %cst_22 = arith.constant 0.000000e+00 : f32
    %44 = vector.shape_cast %43 : vector<64x1xi1> to vector<64x1xi1>
    %45 = vector.broadcast %44 : vector<64x1xi1> to vector<64x128xi1>
    %46 = vector.broadcast %cst_22 : f32 to vector<64x128xf32>
    %47 = arith.select %45, %38, %46 : vector<64x128xi1>, vector<64x128xf32>
    %48 = vector.extract_strided_slice %36 {offsets = [0, 0, 0], sizes = [1, 1, 128], strides = [1, 1, 1]} : vector<9x1x128xf32> to vector<1x1x128xf32>
    %49 = vector.shape_cast %48 : vector<1x1x128xf32> to vector<1x128xf32>
    %50 = vector.broadcast %49 : vector<1x128xf32> to vector<64x128xf32>
    %51 = arith.mulf %47, %50 : vector<64x128xf32>
    %52 = arith.addf %37, %51 : vector<64x128xf32>
    %c8 = arith.constant 8 : index
    %c0_23 = arith.constant 0 : index
    %53 = vector.load %arg15[%c8, %c0_23] : memref<96x128xf32, #tpu.memory_space<vmem>>, vector<64x128xf32>
    %54 = vector.extract_strided_slice %36 {offsets = [1, 0, 0], sizes = [1, 1, 128], strides = [1, 1, 1]} : vector<9x1x128xf32> to vector<1x1x128xf32>
    %55 = vector.shape_cast %54 : vector<1x1x128xf32> to vector<1x128xf32>
    %56 = vector.broadcast %55 : vector<1x128xf32> to vector<64x128xf32>
    %57 = arith.mulf %53, %56 : vector<64x128xf32>
    %58 = arith.addf %52, %57 : vector<64x128xf32>
    %c9 = arith.constant 9 : index
    %c0_24 = arith.constant 0 : index
    %59 = vector.load %arg15[%c9, %c0_24] : memref<96x128xf32, #tpu.memory_space<vmem>>, vector<64x128xf32>
    %c-1_i32 = arith.constant -1 : i32
    %60 = vector.broadcast %c-1_i32 : i32 to vector<64x1xi32>
    %61 = arith.cmpi sge, %35, %60 : vector<64x1xi32>
    %c7_i32 = arith.constant 7 : i32
    %62 = vector.broadcast %c7_i32 : i32 to vector<64x1xi32>
    %63 = arith.cmpi slt, %35, %62 : vector<64x1xi32>
    %64 = arith.andi %61, %63 : vector<64x1xi1>
    %cst_25 = arith.constant 0.000000e+00 : f32
    %65 = vector.shape_cast %64 : vector<64x1xi1> to vector<64x1xi1>
    %66 = vector.broadcast %65 : vector<64x1xi1> to vector<64x128xi1>
    %67 = vector.broadcast %cst_25 : f32 to vector<64x128xf32>
    %68 = arith.select %66, %59, %67 : vector<64x128xi1>, vector<64x128xf32>
    %69 = vector.extract_strided_slice %36 {offsets = [2, 0, 0], sizes = [1, 1, 128], strides = [1, 1, 1]} : vector<9x1x128xf32> to vector<1x1x128xf32>
    %70 = vector.shape_cast %69 : vector<1x1x128xf32> to vector<1x128xf32>
    %71 = vector.broadcast %70 : vector<1x128xf32> to vector<64x128xf32>
    %72 = arith.mulf %68, %71 : vector<64x128xf32>
    %73 = arith.addf %58, %72 : vector<64x128xf32>
    %c15 = arith.constant 15 : index
    %c0_26 = arith.constant 0 : index
    %74 = vector.load %arg15[%c15, %c0_26] : memref<96x128xf32, #tpu.memory_space<vmem>>, vector<64x128xf32>
    %c1_i32_27 = arith.constant 1 : i32
    %75 = vector.broadcast %c1_i32_27 : i32 to vector<64x1xi32>
    %76 = arith.cmpi sge, %35, %75 : vector<64x1xi32>
    %c9_i32_28 = arith.constant 9 : i32
    %77 = vector.broadcast %c9_i32_28 : i32 to vector<64x1xi32>
    %78 = arith.cmpi slt, %35, %77 : vector<64x1xi32>
    %79 = arith.andi %76, %78 : vector<64x1xi1>
    %cst_29 = arith.constant 0.000000e+00 : f32
    %80 = vector.shape_cast %79 : vector<64x1xi1> to vector<64x1xi1>
    %81 = vector.broadcast %80 : vector<64x1xi1> to vector<64x128xi1>
    %82 = vector.broadcast %cst_29 : f32 to vector<64x128xf32>
    %83 = arith.select %81, %74, %82 : vector<64x128xi1>, vector<64x128xf32>
    %84 = vector.extract_strided_slice %36 {offsets = [3, 0, 0], sizes = [1, 1, 128], strides = [1, 1, 1]} : vector<9x1x128xf32> to vector<1x1x128xf32>
    %85 = vector.shape_cast %84 : vector<1x1x128xf32> to vector<1x128xf32>
    %86 = vector.broadcast %85 : vector<1x128xf32> to vector<64x128xf32>
    %87 = arith.mulf %83, %86 : vector<64x128xf32>
    %88 = arith.addf %73, %87 : vector<64x128xf32>
    %c16_30 = arith.constant 16 : index
    %c0_31 = arith.constant 0 : index
    %89 = vector.load %arg15[%c16_30, %c0_31] : memref<96x128xf32, #tpu.memory_space<vmem>>, vector<64x128xf32>
    %90 = vector.extract_strided_slice %36 {offsets = [4, 0, 0], sizes = [1, 1, 128], strides = [1, 1, 1]} : vector<9x1x128xf32> to vector<1x1x128xf32>
    %91 = vector.shape_cast %90 : vector<1x1x128xf32> to vector<1x128xf32>
    %92 = vector.broadcast %91 : vector<1x128xf32> to vector<64x128xf32>
    %93 = arith.mulf %89, %92 : vector<64x128xf32>
    %94 = arith.addf %88, %93 : vector<64x128xf32>
    %c17 = arith.constant 17 : index
    %c0_32 = arith.constant 0 : index
    %95 = vector.load %arg15[%c17, %c0_32] : memref<96x128xf32, #tpu.memory_space<vmem>>, vector<64x128xf32>
    %c-1_i32_33 = arith.constant -1 : i32
    %96 = vector.broadcast %c-1_i32_33 : i32 to vector<64x1xi32>
    %97 = arith.cmpi sge, %35, %96 : vector<64x1xi32>
    %c7_i32_34 = arith.constant 7 : i32
    %98 = vector.broadcast %c7_i32_34 : i32 to vector<64x1xi32>
    %99 = arith.cmpi slt, %35, %98 : vector<64x1xi32>
    %100 = arith.andi %97, %99 : vector<64x1xi1>
    %cst_35 = arith.constant 0.000000e+00 : f32
    %101 = vector.shape_cast %100 : vector<64x1xi1> to vector<64x1xi1>
    %102 = vector.broadcast %101 : vector<64x1xi1> to vector<64x128xi1>
    %103 = vector.broadcast %cst_35 : f32 to vector<64x128xf32>
    %104 = arith.select %102, %95, %103 : vector<64x128xi1>, vector<64x128xf32>
    %105 = vector.extract_strided_slice %36 {offsets = [5, 0, 0], sizes = [1, 1, 128], strides = [1, 1, 1]} : vector<9x1x128xf32> to vector<1x1x128xf32>
    %106 = vector.shape_cast %105 : vector<1x1x128xf32> to vector<1x128xf32>
    %107 = vector.broadcast %106 : vector<1x128xf32> to vector<64x128xf32>
    %108 = arith.mulf %104, %107 : vector<64x128xf32>
    %109 = arith.addf %94, %108 : vector<64x128xf32>
    %c23 = arith.constant 23 : index
    %c0_36 = arith.constant 0 : index
    %110 = vector.load %arg15[%c23, %c0_36] : memref<96x128xf32, #tpu.memory_space<vmem>>, vector<64x128xf32>
    %c1_i32_37 = arith.constant 1 : i32
    %111 = vector.broadcast %c1_i32_37 : i32 to vector<64x1xi32>
    %112 = arith.cmpi sge, %35, %111 : vector<64x1xi32>
    %c9_i32_38 = arith.constant 9 : i32
    %113 = vector.broadcast %c9_i32_38 : i32 to vector<64x1xi32>
    %114 = arith.cmpi slt, %35, %113 : vector<64x1xi32>
    %115 = arith.andi %112, %114 : vector<64x1xi1>
    %cst_39 = arith.constant 0.000000e+00 : f32
    %116 = vector.shape_cast %115 : vector<64x1xi1> to vector<64x1xi1>
    %117 = vector.broadcast %116 : vector<64x1xi1> to vector<64x128xi1>
    %118 = vector.broadcast %cst_39 : f32 to vector<64x128xf32>
    %119 = arith.select %117, %110, %118 : vector<64x128xi1>, vector<64x128xf32>
    %120 = vector.extract_strided_slice %36 {offsets = [6, 0, 0], sizes = [1, 1, 128], strides = [1, 1, 1]} : vector<9x1x128xf32> to vector<1x1x128xf32>
    %121 = vector.shape_cast %120 : vector<1x1x128xf32> to vector<1x128xf32>
    %122 = vector.broadcast %121 : vector<1x128xf32> to vector<64x128xf32>
    %123 = arith.mulf %119, %122 : vector<64x128xf32>
    %124 = arith.addf %109, %123 : vector<64x128xf32>
    %c24 = arith.constant 24 : index
    %c0_40 = arith.constant 0 : index
    %125 = vector.load %arg15[%c24, %c0_40] : memref<96x128xf32, #tpu.memory_space<vmem>>, vector<64x128xf32>
    %126 = vector.extract_strided_slice %36 {offsets = [7, 0, 0], sizes = [1, 1, 128], strides = [1, 1, 1]} : vector<9x1x128xf32> to vector<1x1x128xf32>
    %127 = vector.shape_cast %126 : vector<1x1x128xf32> to vector<1x128xf32>
    %128 = vector.broadcast %127 : vector<1x128xf32> to vector<64x128xf32>
    %129 = arith.mulf %125, %128 : vector<64x128xf32>
    %130 = arith.addf %124, %129 : vector<64x128xf32>
    %c25 = arith.constant 25 : index
    %c0_41 = arith.constant 0 : index
    %131 = vector.load %arg15[%c25, %c0_41] : memref<96x128xf32, #tpu.memory_space<vmem>>, vector<64x128xf32>
    %c-1_i32_42 = arith.constant -1 : i32
    %132 = vector.broadcast %c-1_i32_42 : i32 to vector<64x1xi32>
    %133 = arith.cmpi sge, %35, %132 : vector<64x1xi32>
    %c7_i32_43 = arith.constant 7 : i32
    %134 = vector.broadcast %c7_i32_43 : i32 to vector<64x1xi32>
    %135 = arith.cmpi slt, %35, %134 : vector<64x1xi32>
    %136 = arith.andi %133, %135 : vector<64x1xi1>
    %cst_44 = arith.constant 0.000000e+00 : f32
    %137 = vector.shape_cast %136 : vector<64x1xi1> to vector<64x1xi1>
    %138 = vector.broadcast %137 : vector<64x1xi1> to vector<64x128xi1>
    %139 = vector.broadcast %cst_44 : f32 to vector<64x128xf32>
    %140 = arith.select %138, %131, %139 : vector<64x128xi1>, vector<64x128xf32>
    %141 = vector.extract_strided_slice %36 {offsets = [8, 0, 0], sizes = [1, 1, 128], strides = [1, 1, 1]} : vector<9x1x128xf32> to vector<1x1x128xf32>
    %142 = vector.shape_cast %141 : vector<1x1x128xf32> to vector<1x128xf32>
    %143 = vector.broadcast %142 : vector<1x128xf32> to vector<64x128xf32>
    %144 = arith.mulf %140, %143 : vector<64x128xf32>
    %145 = arith.addf %130, %144 : vector<64x128xf32>
    %c0_45 = arith.constant 0 : index
    %c0_46 = arith.constant 0 : index
    %146 = vector.load %arg6[%c0_45, %c0_46] : memref<1x128xf32, #tpu.memory_space<vmem>>, vector<1x128xf32>
    %147 = vector.broadcast %146 : vector<1x128xf32> to vector<64x128xf32>
    %148 = arith.addf %145, %147 : vector<64x128xf32>
    %149 = arith.negf %148 : vector<64x128xf32>
    %150 = math.exp %149 : vector<64x128xf32>
    %cst_47 = arith.constant 1.000000e+00 : f32
    %151 = vector.broadcast %cst_47 : f32 to vector<64x128xf32>
    %152 = arith.addf %151, %150 : vector<64x128xf32>
    %153 = arith.divf %151, %152 : vector<64x128xf32>
    %154 = arith.mulf %148, %153 : vector<64x128xf32>
    %cst_48 = arith.constant dense<0.000000e+00> : vector<128xf32>
    %155 = vector.multi_reduction <add>, %154, %cst_48 [0] : vector<64x128xf32> to vector<128xf32>
    %156 = vector.shape_cast %155 : vector<128xf32> to vector<1x128xf32>
    %cst_49 = arith.constant 6.400000e+01 : f32
    %157 = vector.broadcast %cst_49 : f32 to vector<1x128xf32>
    %158 = arith.divf %156, %157 : vector<1x128xf32>
    %159 = arith.truncf %158 : vector<1x128xf32> to vector<1x128xbf16>
    %c0_50 = arith.constant 0 : index
    %c0_51 = arith.constant 0 : index
    %160 = vector.load %arg7[%c0_50, %c0_51] : memref<128x128xbf16, #tpu.memory_space<vmem>>, vector<128x128xbf16>
    %cst_52 = arith.constant dense<0.000000e+00> : vector<1x128xf32>
    %161 = tpu.matmul %159, %160, %cst_52 {dimension_numbers = #tpu.dot_dimension_numbers<[1], [0], [0], [1], [0, 0, 1, 1], [], []>} : vector<1x128xbf16>, vector<128x128xbf16>, vector<1x128xf32> -> vector<1x128xf32>
    %c0_53 = arith.constant 0 : index
    %c0_54 = arith.constant 0 : index
    %162 = vector.load %arg8[%c0_53, %c0_54] : memref<1x128xf32, #tpu.memory_space<vmem>>, vector<1x128xf32>
    %163 = arith.mulf %161, %162 : vector<1x128xf32>
    %c0_55 = arith.constant 0 : index
    %c0_56 = arith.constant 0 : index
    %164 = vector.load %arg9[%c0_55, %c0_56] : memref<1x128xf32, #tpu.memory_space<vmem>>, vector<1x128xf32>
    %165 = arith.addf %163, %164 : vector<1x128xf32>
    %cst_57 = arith.constant 0.000000e+00 : f32
    %166 = vector.broadcast %cst_57 : f32 to vector<1x128xf32>
    %167 = arith.maximumf %165, %166 : vector<1x128xf32>
    %168 = arith.truncf %167 : vector<1x128xf32> to vector<1x128xbf16>
    %c0_58 = arith.constant 0 : index
    %c0_59 = arith.constant 0 : index
    %169 = vector.load %arg10[%c0_58, %c0_59] : memref<128x128xbf16, #tpu.memory_space<vmem>>, vector<128x128xbf16>
    %cst_60 = arith.constant dense<0.000000e+00> : vector<1x128xf32>
    %170 = tpu.matmul %168, %169, %cst_60 {dimension_numbers = #tpu.dot_dimension_numbers<[1], [0], [0], [1], [0, 0, 1, 1], [], []>} : vector<1x128xbf16>, vector<128x128xbf16>, vector<1x128xf32> -> vector<1x128xf32>
    %cst_61 = arith.constant 6.000000e+00 : f32
    %171 = vector.broadcast %cst_61 : f32 to vector<1x128xf32>
    %172 = arith.divf %170, %171 : vector<1x128xf32>
    %cst_62 = arith.constant 5.000000e-01 : f32
    %173 = vector.broadcast %cst_62 : f32 to vector<1x128xf32>
    %174 = arith.addf %172, %173 : vector<1x128xf32>
    %cst_63 = arith.constant 0.000000e+00 : f32
    %cst_64 = arith.constant 1.000000e+00 : f32
    %175 = vector.broadcast %cst_63 : f32 to vector<1x128xf32>
    %176 = arith.maximumf %175, %174 : vector<1x128xf32>
    %177 = vector.broadcast %cst_64 : f32 to vector<1x128xf32>
    %178 = arith.minimumf %177, %176 : vector<1x128xf32>
    %179 = vector.broadcast %178 : vector<1x128xf32> to vector<64x128xf32>
    %180 = arith.mulf %154, %179 : vector<64x128xf32>
    %181 = arith.truncf %180 : vector<64x128xf32> to vector<64x128xbf16>
    %c0_65 = arith.constant 0 : index
    %c0_66 = arith.constant 0 : index
    %182 = vector.load %arg11[%c0_65, %c0_66] : memref<128x128xbf16, #tpu.memory_space<vmem>>, vector<128x128xbf16>
    %cst_67 = arith.constant dense<0.000000e+00> : vector<64x128xf32>
    %183 = tpu.matmul %181, %182, %cst_67 {dimension_numbers = #tpu.dot_dimension_numbers<[1], [0], [0], [1], [0, 0, 1, 1], [], []>} : vector<64x128xbf16>, vector<128x128xbf16>, vector<64x128xf32> -> vector<64x128xf32>
    %c0_68 = arith.constant 0 : index
    %c0_69 = arith.constant 0 : index
    %184 = vector.load %arg12[%c0_68, %c0_69] : memref<1x128xf32, #tpu.memory_space<vmem>>, vector<1x128xf32>
    %185 = vector.broadcast %184 : vector<1x128xf32> to vector<64x128xf32>
    %186 = arith.mulf %183, %185 : vector<64x128xf32>
    %c0_70 = arith.constant 0 : index
    %c0_71 = arith.constant 0 : index
    %187 = vector.load %arg13[%c0_70, %c0_71] : memref<1x128xf32, #tpu.memory_space<vmem>>, vector<1x128xf32>
    %188 = vector.broadcast %187 : vector<1x128xf32> to vector<64x128xf32>
    %189 = arith.addf %186, %188 : vector<64x128xf32>
    %190 = arith.extf %1 : vector<64x128xbf16> to vector<64x128xf32>
    %191 = arith.addf %189, %190 : vector<64x128xf32>
    %192 = arith.negf %191 : vector<64x128xf32>
    %193 = math.exp %192 : vector<64x128xf32>
    %cst_72 = arith.constant 1.000000e+00 : f32
    %194 = vector.broadcast %cst_72 : f32 to vector<64x128xf32>
    %195 = arith.addf %194, %193 : vector<64x128xf32>
    %196 = arith.divf %194, %195 : vector<64x128xf32>
    %197 = arith.mulf %191, %196 : vector<64x128xf32>
    %198 = arith.truncf %197 : vector<64x128xf32> to vector<64x128xbf16>
    %c0_73 = arith.constant 0 : index
    %c0_74 = arith.constant 0 : index
    %c0_75 = arith.constant 0 : index
    %199 = vector.load %arg14[%c0_73, %c0_74, %c0_75] : memref<1x64x128xbf16, #tpu.memory_space<vmem>>, vector<1x64x128xbf16>
    %200 = vector.shape_cast %199 : vector<1x64x128xbf16> to vector<64x128xbf16>
    %201 = vector.shape_cast %198 : vector<64x128xbf16> to vector<1x64x128xbf16>
    tpu.vector_store %arg14[%c0_73, %c0_74, %c0_75], %201 {strides = array<i32>} : memref<1x64x128xbf16, #tpu.memory_space<vmem>>, vector<1x64x128xbf16>,
    return
  }
  func.func @transform_0(%arg0: i32) -> (i32, i32, i32) {
    %c0_i32 = arith.constant 0 : i32
    %c0_i32_0 = arith.constant 0 : i32
    %c0_i32_1 = arith.constant 0 : i32
    return %arg0, %c0_i32, %c0_i32_0 : i32, i32, i32
  }
  func.func @transform_1(%arg0: i32) -> (i32, i32) {
    %c0_i32 = arith.constant 0 : i32
    %c0_i32_0 = arith.constant 0 : i32
    %c0_i32_1 = arith.constant 0 : i32
    return %c0_i32, %c0_i32_0 : i32, i32
  }
  func.func @transform_2(%arg0: i32) -> (i32, i32) {
    %c0_i32 = arith.constant 0 : i32
    %c0_i32_0 = arith.constant 0 : i32
    %c0_i32_1 = arith.constant 0 : i32
    return %c0_i32, %c0_i32_0 : i32, i32
  }
  func.func @transform_3(%arg0: i32) -> (i32, i32) {
    %c0_i32 = arith.constant 0 : i32
    %c0_i32_0 = arith.constant 0 : i32
    %c0_i32_1 = arith.constant 0 : i32
    return %c0_i32, %c0_i32_0 : i32, i32
  }
  func.func @transform_4(%arg0: i32) -> (i32, i32, i32) {
    %c0_i32 = arith.constant 0 : i32
    %c0_i32_0 = arith.constant 0 : i32
    %c0_i32_1 = arith.constant 0 : i32
    %c0_i32_2 = arith.constant 0 : i32
    return %c0_i32, %c0_i32_0, %c0_i32_1 : i32, i32, i32
  }
  func.func @transform_5(%arg0: i32) -> (i32, i32) {
    %c0_i32 = arith.constant 0 : i32
    %c0_i32_0 = arith.constant 0 : i32
    %c0_i32_1 = arith.constant 0 : i32
    return %c0_i32, %c0_i32_0 : i32, i32
  }
  func.func @transform_6(%arg0: i32) -> (i32, i32) {
    %c0_i32 = arith.constant 0 : i32
    %c0_i32_0 = arith.constant 0 : i32
    %c0_i32_1 = arith.constant 0 : i32
    return %c0_i32, %c0_i32_0 : i32, i32
  }
  func.func @transform_7(%arg0: i32) -> (i32, i32) {
    %c0_i32 = arith.constant 0 : i32
    %c0_i32_0 = arith.constant 0 : i32
    %c0_i32_1 = arith.constant 0 : i32
    return %c0_i32, %c0_i32_0 : i32, i32
  }
  func.func @transform_8(%arg0: i32) -> (i32, i32) {
    %c0_i32 = arith.constant 0 : i32
    %c0_i32_0 = arith.constant 0 : i32
    %c0_i32_1 = arith.constant 0 : i32
    return %c0_i32, %c0_i32_0 : i32, i32
  }
  func.func @transform_9(%arg0: i32) -> (i32, i32) {
    %c0_i32 = arith.constant 0 : i32
    %c0_i32_0 = arith.constant 0 : i32
    %c0_i32_1 = arith.constant 0 : i32
    return %c0_i32, %c0_i32_0 : i32, i32
  }
  func.func @transform_10(%arg0: i32) -> (i32, i32) {
    %c0_i32 = arith.constant 0 : i32
    %c0_i32_0 = arith.constant 0 : i32
    %c0_i32_1 = arith.constant 0 : i32
    return %c0_i32, %c0_i32_0 : i32, i32
  }
  func.func @transform_11(%arg0: i32) -> (i32, i32) {
    %c0_i32 = arith.constant 0 : i32
    %c0_i32_0 = arith.constant 0 : i32
    %c0_i32_1 = arith.constant 0 : i32
    return %c0_i32, %c0_i32_0 : i32, i32
  }
  func.func @transform_12(%arg0: i32) -> (i32, i32) {
    %c0_i32 = arith.constant 0 : i32
    %c0_i32_0 = arith.constant 0 : i32
    %c0_i32_1 = arith.constant 0 : i32
    return %c0_i32, %c0_i32_0 : i32, i32
  }
  func.func @transform_13(%arg0: i32) -> (i32, i32, i32) {
    %c0_i32 = arith.constant 0 : i32
    %c0_i32_0 = arith.constant 0 : i32
    %c0_i32_1 = arith.constant 0 : i32
    return %arg0, %c0_i32, %c0_i32_0 : i32, i32, i32
  }
}

module attributes {stable_mosaic.version = 11 : i64} {
  func.func @_mm_scale_act_kernel(%arg0: i32, %arg1: memref<32x1152xbf16, #tpu.memory_space<vmem>>, %arg2: memref<1152x128xbf16, #tpu.memory_space<vmem>>, %arg3: memref<1x128xf32, #tpu.memory_space<vmem>>, %arg4: memref<1x128xf32, #tpu.memory_space<vmem>>, %arg5: memref<32x128xbf16, #tpu.memory_space<vmem>>) attributes {dimension_semantics = [#tpu.dimension_semantics<parallel>], iteration_bounds = array<i64: 1>, scalar_prefetch = 0 : i64, scratch_operands = 0 : i64, tpu.core_type = #tpu.core_type<tc>, window_params = [{transform_indices = @transform_0, window_bounds = array<i64: 32, 1152>}, {pipeline_mode = #tpu.pipeline_mode<synchronous>, transform_indices = @transform_1, window_bounds = array<i64: 1152, 128>}, {pipeline_mode = #tpu.pipeline_mode<synchronous>, transform_indices = @transform_2, window_bounds = array<i64: 1, 128>}, {pipeline_mode = #tpu.pipeline_mode<synchronous>, transform_indices = @transform_3, window_bounds = array<i64: 1, 128>}, {transform_indices = @transform_4, window_bounds = array<i64: 32, 128>}]} {
    %c0 = arith.constant 0 : index
    %c0_0 = arith.constant 0 : index
    %0 = vector.load %arg1[%c0, %c0_0] : memref<32x1152xbf16, #tpu.memory_space<vmem>>, vector<32x1152xbf16>
    %c0_1 = arith.constant 0 : index
    %c0_2 = arith.constant 0 : index
    %1 = vector.load %arg2[%c0_1, %c0_2] : memref<1152x128xbf16, #tpu.memory_space<vmem>>, vector<1152x128xbf16>
    %cst = arith.constant dense<0.000000e+00> : vector<32x128xf32>
    %2 = tpu.matmul %0, %1, %cst {dimension_numbers = #tpu.dot_dimension_numbers<[1], [0], [0], [1], [0, 0, 1, 1], [], []>} : vector<32x1152xbf16>, vector<1152x128xbf16>, vector<32x128xf32> -> vector<32x128xf32>
    %c0_3 = arith.constant 0 : index
    %c0_4 = arith.constant 0 : index
    %3 = vector.load %arg3[%c0_3, %c0_4] : memref<1x128xf32, #tpu.memory_space<vmem>>, vector<1x128xf32>
    %4 = vector.broadcast %3 : vector<1x128xf32> to vector<32x128xf32>
    %5 = arith.mulf %2, %4 : vector<32x128xf32>
    %c0_5 = arith.constant 0 : index
    %c0_6 = arith.constant 0 : index
    %6 = vector.load %arg4[%c0_5, %c0_6] : memref<1x128xf32, #tpu.memory_space<vmem>>, vector<1x128xf32>
    %7 = vector.broadcast %6 : vector<1x128xf32> to vector<32x128xf32>
    %8 = arith.addf %5, %7 : vector<32x128xf32>
    %9 = arith.truncf %8 : vector<32x128xf32> to vector<32x128xbf16>
    %c0_7 = arith.constant 0 : index
    %c0_8 = arith.constant 0 : index
    %10 = vector.load %arg5[%c0_7, %c0_8] : memref<32x128xbf16, #tpu.memory_space<vmem>>, vector<32x128xbf16>
    tpu.vector_store %arg5[%c0_7, %c0_8], %9 {strides = array<i32>} : memref<32x128xbf16, #tpu.memory_space<vmem>>, vector<32x128xbf16>,
    return
  }
  func.func @transform_0(%arg0: i32) -> (i32, i32) {
    %c0_i32 = arith.constant 0 : i32
    %c0_i32_0 = arith.constant 0 : i32
    return %arg0, %c0_i32 : i32, i32
  }
  func.func @transform_1(%arg0: i32) -> (i32, i32) {
    %c0_i32 = arith.constant 0 : i32
    %c0_i32_0 = arith.constant 0 : i32
    %c0_i32_1 = arith.constant 0 : i32
    return %c0_i32, %c0_i32_0 : i32, i32
  }
  func.func @transform_2(%arg0: i32) -> (i32, i32) {
    %c0_i32 = arith.constant 0 : i32
    %c0_i32_0 = arith.constant 0 : i32
    %c0_i32_1 = arith.constant 0 : i32
    return %c0_i32, %c0_i32_0 : i32, i32
  }
  func.func @transform_3(%arg0: i32) -> (i32, i32) {
    %c0_i32 = arith.constant 0 : i32
    %c0_i32_0 = arith.constant 0 : i32
    %c0_i32_1 = arith.constant 0 : i32
    return %c0_i32, %c0_i32_0 : i32, i32
  }
  func.func @transform_4(%arg0: i32) -> (i32, i32) {
    %c0_i32 = arith.constant 0 : i32
    %c0_i32_0 = arith.constant 0 : i32
    return %arg0, %c0_i32 : i32, i32
  }
}

module attributes {stable_mosaic.version = 11 : i64} {
  func.func @kernel(%arg0: i32, %arg1: memref<1x16x128xbf16, #tpu.memory_space<vmem>>, %arg2: memref<128x256xbf16, #tpu.memory_space<vmem>>, %arg3: memref<1x256xf32, #tpu.memory_space<vmem>>, %arg4: memref<1x256xf32, #tpu.memory_space<vmem>>, %arg5: memref<25x1x256xf32, #tpu.memory_space<vmem>>, %arg6: memref<1x256xf32, #tpu.memory_space<vmem>>, %arg7: memref<256x128xbf16, #tpu.memory_space<vmem>>, %arg8: memref<1x128xf32, #tpu.memory_space<vmem>>, %arg9: memref<1x128xf32, #tpu.memory_space<vmem>>, %arg10: memref<128x256xbf16, #tpu.memory_space<vmem>>, %arg11: memref<256x128xbf16, #tpu.memory_space<vmem>>, %arg12: memref<1x128xf32, #tpu.memory_space<vmem>>, %arg13: memref<1x128xf32, #tpu.memory_space<vmem>>, %arg14: memref<1x16x128xbf16, #tpu.memory_space<vmem>>, %arg15: memref<48x256xf32, #tpu.memory_space<vmem>>) attributes {dimension_semantics = [#tpu.dimension_semantics<parallel>], iteration_bounds = array<i64: 2>, scalar_prefetch = 0 : i64, scratch_operands = 1 : i64, tpu.core_type = #tpu.core_type<tc>, window_params = [{transform_indices = @transform_0, window_bounds = array<i64: 1, 16, 128>}, {pipeline_mode = #tpu.pipeline_mode<synchronous>, transform_indices = @transform_1, window_bounds = array<i64: 128, 256>}, {pipeline_mode = #tpu.pipeline_mode<synchronous>, transform_indices = @transform_2, window_bounds = array<i64: 1, 256>}, {pipeline_mode = #tpu.pipeline_mode<synchronous>, transform_indices = @transform_3, window_bounds = array<i64: 1, 256>}, {pipeline_mode = #tpu.pipeline_mode<synchronous>, transform_indices = @transform_4, window_bounds = array<i64: 25, 1, 256>}, {pipeline_mode = #tpu.pipeline_mode<synchronous>, transform_indices = @transform_5, window_bounds = array<i64: 1, 256>}, {pipeline_mode = #tpu.pipeline_mode<synchronous>, transform_indices = @transform_6, window_bounds = array<i64: 256, 128>}, {pipeline_mode = #tpu.pipeline_mode<synchronous>, transform_indices = @transform_7, window_bounds = array<i64: 1, 128>}, {pipeline_mode = #tpu.pipeline_mode<synchronous>, transform_indices = @transform_8, window_bounds = array<i64: 1, 128>}, {pipeline_mode = #tpu.pipeline_mode<synchronous>, transform_indices = @transform_9, window_bounds = array<i64: 128, 256>}, {pipeline_mode = #tpu.pipeline_mode<synchronous>, transform_indices = @transform_10, window_bounds = array<i64: 256, 128>}, {pipeline_mode = #tpu.pipeline_mode<synchronous>, transform_indices = @transform_11, window_bounds = array<i64: 1, 128>}, {pipeline_mode = #tpu.pipeline_mode<synchronous>, transform_indices = @transform_12, window_bounds = array<i64: 1, 128>}, {transform_indices = @transform_13, window_bounds = array<i64: 1, 16, 128>}]} {
    %c0 = arith.constant 0 : index
    %c0_0 = arith.constant 0 : index
    %c0_1 = arith.constant 0 : index
    %0 = vector.load %arg1[%c0, %c0_0, %c0_1] : memref<1x16x128xbf16, #tpu.memory_space<vmem>>, vector<1x16x128xbf16>
    %1 = vector.shape_cast %0 : vector<1x16x128xbf16> to vector<16x128xbf16>
    %c0_2 = arith.constant 0 : index
    %c0_3 = arith.constant 0 : index
    %2 = vector.load %arg2[%c0_2, %c0_3] : memref<128x256xbf16, #tpu.memory_space<vmem>>, vector<128x256xbf16>
    %cst = arith.constant dense<0.000000e+00> : vector<16x256xf32>
    %3 = tpu.matmul %1, %2, %cst {dimension_numbers = #tpu.dot_dimension_numbers<[1], [0], [0], [1], [0, 0, 1, 1], [], []>} : vector<16x128xbf16>, vector<128x256xbf16>, vector<16x256xf32> -> vector<16x256xf32>
    %c0_4 = arith.constant 0 : index
    %c0_5 = arith.constant 0 : index
    %4 = vector.load %arg3[%c0_4, %c0_5] : memref<1x256xf32, #tpu.memory_space<vmem>>, vector<1x256xf32>
    %5 = vector.broadcast %4 : vector<1x256xf32> to vector<16x256xf32>
    %6 = arith.mulf %3, %5 : vector<16x256xf32>
    %c0_6 = arith.constant 0 : index
    %c0_7 = arith.constant 0 : index
    %7 = vector.load %arg4[%c0_6, %c0_7] : memref<1x256xf32, #tpu.memory_space<vmem>>, vector<1x256xf32>
    %8 = vector.broadcast %7 : vector<1x256xf32> to vector<16x256xf32>
    %9 = arith.addf %6, %8 : vector<16x256xf32>
    %10 = arith.negf %9 : vector<16x256xf32>
    %11 = math.exp %10 : vector<16x256xf32>
    %cst_8 = arith.constant 1.000000e+00 : f32
    %12 = vector.broadcast %cst_8 : f32 to vector<16x256xf32>
    %13 = arith.addf %12, %11 : vector<16x256xf32>
    %14 = arith.divf %12, %13 : vector<16x256xf32>
    %15 = arith.mulf %9, %14 : vector<16x256xf32>
    %cst_9 = arith.constant 0.000000e+00 : f32
    %16 = vector.broadcast %cst_9 : f32 to vector<48x256xf32>
    %c0_10 = arith.constant 0 : index
    %c0_11 = arith.constant 0 : index
    %17 = vector.load %arg15[%c0_10, %c0_11] : memref<48x256xf32, #tpu.memory_space<vmem>>, vector<48x256xf32>
    tpu.vector_store %arg15[%c0_10, %c0_11], %16 {strides = array<i32>} : memref<48x256xf32, #tpu.memory_space<vmem>>, vector<48x256xf32>,
    %c16 = arith.constant 16 : index
    %c0_12 = arith.constant 0 : index
    %18 = vector.load %arg15[%c16, %c0_12] : memref<48x256xf32, #tpu.memory_space<vmem>>, vector<16x256xf32>
    tpu.vector_store %arg15[%c16, %c0_12], %15 {strides = array<i32>} : memref<48x256xf32, #tpu.memory_space<vmem>>, vector<16x256xf32>,
    %19 = tpu.iota {dimensions = array<i32: 0>} : vector<16x1xi32>
    %c4_i32 = arith.constant 4 : i32
    %c0_i32 = arith.constant 0 : i32
    %20 = arith.cmpi eq, %c4_i32, %c0_i32 : i32
    %c1_i32 = arith.constant 1 : i32
    %21 = arith.select %20, %c1_i32, %c4_i32 : i32
    %22 = vector.broadcast %21 : i32 to vector<16x1xi32>
    %23 = arith.remsi %19, %22 : vector<16x1xi32>
    %c0_i32_13 = arith.constant 0 : i32
    %24 = vector.broadcast %c0_i32_13 : i32 to vector<16x1xi32>
    %25 = arith.cmpi ne, %23, %24 : vector<16x1xi32>
    %c0_i32_14 = arith.constant 0 : i32
    %26 = vector.broadcast %c0_i32_14 : i32 to vector<16x1xi32>
    %27 = arith.cmpi slt, %23, %26 : vector<16x1xi32>
    %c0_i32_15 = arith.constant 0 : i32
    %28 = arith.cmpi slt, %21, %c0_i32_15 : i32
    %29 = vector.broadcast %28 : i1 to vector<16x1xi1>
    %30 = vector.broadcast %29 : vector<16x1xi1> to vector<16x1xi1>
    %31 = arith.xori %27, %30 : vector<16x1xi1>
    %32 = arith.andi %31, %25 : vector<16x1xi1>
    %33 = vector.broadcast %21 : i32 to vector<16x1xi32>
    %34 = arith.addi %23, %33 : vector<16x1xi32>
    %35 = arith.select %32, %34, %23 : vector<16x1xi1>, vector<16x1xi32>
    %c0_16 = arith.constant 0 : index
    %c0_17 = arith.constant 0 : index
    %c0_18 = arith.constant 0 : index
    %36 = vector.load %arg5[%c0_16, %c0_17, %c0_18] : memref<25x1x256xf32, #tpu.memory_space<vmem>>, vector<25x1x256xf32>
    %cst_19 = arith.constant 0.000000e+00 : f32
    %37 = vector.broadcast %cst_19 : f32 to vector<16x256xf32>
    %c6 = arith.constant 6 : index
    %c0_20 = arith.constant 0 : index
    %38 = vector.load %arg15[%c6, %c0_20] : memref<48x256xf32, #tpu.memory_space<vmem>>, vector<16x256xf32>
    %c2_i32 = arith.constant 2 : i32
    %39 = vector.broadcast %c2_i32 : i32 to vector<16x1xi32>
    %40 = arith.cmpi sge, %35, %39 : vector<16x1xi32>
    %c6_i32 = arith.constant 6 : i32
    %41 = vector.broadcast %c6_i32 : i32 to vector<16x1xi32>
    %42 = arith.cmpi slt, %35, %41 : vector<16x1xi32>
    %43 = arith.andi %40, %42 : vector<16x1xi1>
    %cst_21 = arith.constant 0.000000e+00 : f32
    %44 = vector.shape_cast %43 : vector<16x1xi1> to vector<16x1xi1>
    %45 = vector.broadcast %44 : vector<16x1xi1> to vector<16x256xi1>
    %46 = vector.broadcast %cst_21 : f32 to vector<16x256xf32>
    %47 = arith.select %45, %38, %46 : vector<16x256xi1>, vector<16x256xf32>
    %48 = vector.extract_strided_slice %36 {offsets = [0, 0, 0], sizes = [1, 1, 256], strides = [1, 1, 1]} : vector<25x1x256xf32> to vector<1x1x256xf32>
    %49 = vector.shape_cast %48 : vector<1x1x256xf32> to vector<1x256xf32>
    %50 = vector.broadcast %49 : vector<1x256xf32> to vector<16x256xf32>
    %51 = arith.mulf %47, %50 : vector<16x256xf32>
    %52 = arith.addf %37, %51 : vector<16x256xf32>
    %c7 = arith.constant 7 : index
    %c0_22 = arith.constant 0 : index
    %53 = vector.load %arg15[%c7, %c0_22] : memref<48x256xf32, #tpu.memory_space<vmem>>, vector<16x256xf32>
    %c1_i32_23 = arith.constant 1 : i32
    %54 = vector.broadcast %c1_i32_23 : i32 to vector<16x1xi32>
    %55 = arith.cmpi sge, %35, %54 : vector<16x1xi32>
    %c5_i32 = arith.constant 5 : i32
    %56 = vector.broadcast %c5_i32 : i32 to vector<16x1xi32>
    %57 = arith.cmpi slt, %35, %56 : vector<16x1xi32>
    %58 = arith.andi %55, %57 : vector<16x1xi1>
    %cst_24 = arith.constant 0.000000e+00 : f32
    %59 = vector.shape_cast %58 : vector<16x1xi1> to vector<16x1xi1>
    %60 = vector.broadcast %59 : vector<16x1xi1> to vector<16x256xi1>
    %61 = vector.broadcast %cst_24 : f32 to vector<16x256xf32>
    %62 = arith.select %60, %53, %61 : vector<16x256xi1>, vector<16x256xf32>
    %63 = vector.extract_strided_slice %36 {offsets = [1, 0, 0], sizes = [1, 1, 256], strides = [1, 1, 1]} : vector<25x1x256xf32> to vector<1x1x256xf32>
    %64 = vector.shape_cast %63 : vector<1x1x256xf32> to vector<1x256xf32>
    %65 = vector.broadcast %64 : vector<1x256xf32> to vector<16x256xf32>
    %66 = arith.mulf %62, %65 : vector<16x256xf32>
    %67 = arith.addf %52, %66 : vector<16x256xf32>
    %c8 = arith.constant 8 : index
    %c0_25 = arith.constant 0 : index
    %68 = vector.load %arg15[%c8, %c0_25] : memref<48x256xf32, #tpu.memory_space<vmem>>, vector<16x256xf32>
    %69 = vector.extract_strided_slice %36 {offsets = [2, 0, 0], sizes = [1, 1, 256], strides = [1, 1, 1]} : vector<25x1x256xf32> to vector<1x1x256xf32>
    %70 = vector.shape_cast %69 : vector<1x1x256xf32> to vector<1x256xf32>
    %71 = vector.broadcast %70 : vector<1x256xf32> to vector<16x256xf32>
    %72 = arith.mulf %68, %71 : vector<16x256xf32>
    %73 = arith.addf %67, %72 : vector<16x256xf32>
    %c9 = arith.constant 9 : index
    %c0_26 = arith.constant 0 : index
    %74 = vector.load %arg15[%c9, %c0_26] : memref<48x256xf32, #tpu.memory_space<vmem>>, vector<16x256xf32>
    %c-1_i32 = arith.constant -1 : i32
    %75 = vector.broadcast %c-1_i32 : i32 to vector<16x1xi32>
    %76 = arith.cmpi sge, %35, %75 : vector<16x1xi32>
    %c3_i32 = arith.constant 3 : i32
    %77 = vector.broadcast %c3_i32 : i32 to vector<16x1xi32>
    %78 = arith.cmpi slt, %35, %77 : vector<16x1xi32>
    %79 = arith.andi %76, %78 : vector<16x1xi1>
    %cst_27 = arith.constant 0.000000e+00 : f32
    %80 = vector.shape_cast %79 : vector<16x1xi1> to vector<16x1xi1>
    %81 = vector.broadcast %80 : vector<16x1xi1> to vector<16x256xi1>
    %82 = vector.broadcast %cst_27 : f32 to vector<16x256xf32>
    %83 = arith.select %81, %74, %82 : vector<16x256xi1>, vector<16x256xf32>
    %84 = vector.extract_strided_slice %36 {offsets = [3, 0, 0], sizes = [1, 1, 256], strides = [1, 1, 1]} : vector<25x1x256xf32> to vector<1x1x256xf32>
    %85 = vector.shape_cast %84 : vector<1x1x256xf32> to vector<1x256xf32>
    %86 = vector.broadcast %85 : vector<1x256xf32> to vector<16x256xf32>
    %87 = arith.mulf %83, %86 : vector<16x256xf32>
    %88 = arith.addf %73, %87 : vector<16x256xf32>
    %c10 = arith.constant 10 : index
    %c0_28 = arith.constant 0 : index
    %89 = vector.load %arg15[%c10, %c0_28] : memref<48x256xf32, #tpu.memory_space<vmem>>, vector<16x256xf32>
    %c-2_i32 = arith.constant -2 : i32
    %90 = vector.broadcast %c-2_i32 : i32 to vector<16x1xi32>
    %91 = arith.cmpi sge, %35, %90 : vector<16x1xi32>
    %c2_i32_29 = arith.constant 2 : i32
    %92 = vector.broadcast %c2_i32_29 : i32 to vector<16x1xi32>
    %93 = arith.cmpi slt, %35, %92 : vector<16x1xi32>
    %94 = arith.andi %91, %93 : vector<16x1xi1>
    %cst_30 = arith.constant 0.000000e+00 : f32
    %95 = vector.shape_cast %94 : vector<16x1xi1> to vector<16x1xi1>
    %96 = vector.broadcast %95 : vector<16x1xi1> to vector<16x256xi1>
    %97 = vector.broadcast %cst_30 : f32 to vector<16x256xf32>
    %98 = arith.select %96, %89, %97 : vector<16x256xi1>, vector<16x256xf32>
    %99 = vector.extract_strided_slice %36 {offsets = [4, 0, 0], sizes = [1, 1, 256], strides = [1, 1, 1]} : vector<25x1x256xf32> to vector<1x1x256xf32>
    %100 = vector.shape_cast %99 : vector<1x1x256xf32> to vector<1x256xf32>
    %101 = vector.broadcast %100 : vector<1x256xf32> to vector<16x256xf32>
    %102 = arith.mulf %98, %101 : vector<16x256xf32>
    %103 = arith.addf %88, %102 : vector<16x256xf32>
    %c10_31 = arith.constant 10 : index
    %c0_32 = arith.constant 0 : index
    %104 = vector.load %arg15[%c10_31, %c0_32] : memref<48x256xf32, #tpu.memory_space<vmem>>, vector<16x256xf32>
    %c2_i32_33 = arith.constant 2 : i32
    %105 = vector.broadcast %c2_i32_33 : i32 to vector<16x1xi32>
    %106 = arith.cmpi sge, %35, %105 : vector<16x1xi32>
    %c6_i32_34 = arith.constant 6 : i32
    %107 = vector.broadcast %c6_i32_34 : i32 to vector<16x1xi32>
    %108 = arith.cmpi slt, %35, %107 : vector<16x1xi32>
    %109 = arith.andi %106, %108 : vector<16x1xi1>
    %cst_35 = arith.constant 0.000000e+00 : f32
    %110 = vector.shape_cast %109 : vector<16x1xi1> to vector<16x1xi1>
    %111 = vector.broadcast %110 : vector<16x1xi1> to vector<16x256xi1>
    %112 = vector.broadcast %cst_35 : f32 to vector<16x256xf32>
    %113 = arith.select %111, %104, %112 : vector<16x256xi1>, vector<16x256xf32>
    %114 = vector.extract_strided_slice %36 {offsets = [5, 0, 0], sizes = [1, 1, 256], strides = [1, 1, 1]} : vector<25x1x256xf32> to vector<1x1x256xf32>
    %115 = vector.shape_cast %114 : vector<1x1x256xf32> to vector<1x256xf32>
    %116 = vector.broadcast %115 : vector<1x256xf32> to vector<16x256xf32>
    %117 = arith.mulf %113, %116 : vector<16x256xf32>
    %118 = arith.addf %103, %117 : vector<16x256xf32>
    %c11 = arith.constant 11 : index
    %c0_36 = arith.constant 0 : index
    %119 = vector.load %arg15[%c11, %c0_36] : memref<48x256xf32, #tpu.memory_space<vmem>>, vector<16x256xf32>
    %c1_i32_37 = arith.constant 1 : i32
    %120 = vector.broadcast %c1_i32_37 : i32 to vector<16x1xi32>
    %121 = arith.cmpi sge, %35, %120 : vector<16x1xi32>
    %c5_i32_38 = arith.constant 5 : i32
    %122 = vector.broadcast %c5_i32_38 : i32 to vector<16x1xi32>
    %123 = arith.cmpi slt, %35, %122 : vector<16x1xi32>
    %124 = arith.andi %121, %123 : vector<16x1xi1>
    %cst_39 = arith.constant 0.000000e+00 : f32
    %125 = vector.shape_cast %124 : vector<16x1xi1> to vector<16x1xi1>
    %126 = vector.broadcast %125 : vector<16x1xi1> to vector<16x256xi1>
    %127 = vector.broadcast %cst_39 : f32 to vector<16x256xf32>
    %128 = arith.select %126, %119, %127 : vector<16x256xi1>, vector<16x256xf32>
    %129 = vector.extract_strided_slice %36 {offsets = [6, 0, 0], sizes = [1, 1, 256], strides = [1, 1, 1]} : vector<25x1x256xf32> to vector<1x1x256xf32>
    %130 = vector.shape_cast %129 : vector<1x1x256xf32> to vector<1x256xf32>
    %131 = vector.broadcast %130 : vector<1x256xf32> to vector<16x256xf32>
    %132 = arith.mulf %128, %131 : vector<16x256xf32>
    %133 = arith.addf %118, %132 : vector<16x256xf32>
    %c12 = arith.constant 12 : index
    %c0_40 = arith.constant 0 : index
    %134 = vector.load %arg15[%c12, %c0_40] : memref<48x256xf32, #tpu.memory_space<vmem>>, vector<16x256xf32>
    %135 = vector.extract_strided_slice %36 {offsets = [7, 0, 0], sizes = [1, 1, 256], strides = [1, 1, 1]} : vector<25x1x256xf32> to vector<1x1x256xf32>
    %136 = vector.shape_cast %135 : vector<1x1x256xf32> to vector<1x256xf32>
    %137 = vector.broadcast %136 : vector<1x256xf32> to vector<16x256xf32>
    %138 = arith.mulf %134, %137 : vector<16x256xf32>
    %139 = arith.addf %133, %138 : vector<16x256xf32>
    %c13 = arith.constant 13 : index
    %c0_41 = arith.constant 0 : index
    %140 = vector.load %arg15[%c13, %c0_41] : memref<48x256xf32, #tpu.memory_space<vmem>>, vector<16x256xf32>
    %c-1_i32_42 = arith.constant -1 : i32
    %141 = vector.broadcast %c-1_i32_42 : i32 to vector<16x1xi32>
    %142 = arith.cmpi sge, %35, %141 : vector<16x1xi32>
    %c3_i32_43 = arith.constant 3 : i32
    %143 = vector.broadcast %c3_i32_43 : i32 to vector<16x1xi32>
    %144 = arith.cmpi slt, %35, %143 : vector<16x1xi32>
    %145 = arith.andi %142, %144 : vector<16x1xi1>
    %cst_44 = arith.constant 0.000000e+00 : f32
    %146 = vector.shape_cast %145 : vector<16x1xi1> to vector<16x1xi1>
    %147 = vector.broadcast %146 : vector<16x1xi1> to vector<16x256xi1>
    %148 = vector.broadcast %cst_44 : f32 to vector<16x256xf32>
    %149 = arith.select %147, %140, %148 : vector<16x256xi1>, vector<16x256xf32>
    %150 = vector.extract_strided_slice %36 {offsets = [8, 0, 0], sizes = [1, 1, 256], strides = [1, 1, 1]} : vector<25x1x256xf32> to vector<1x1x256xf32>
    %151 = vector.shape_cast %150 : vector<1x1x256xf32> to vector<1x256xf32>
    %152 = vector.broadcast %151 : vector<1x256xf32> to vector<16x256xf32>
    %153 = arith.mulf %149, %152 : vector<16x256xf32>
    %154 = arith.addf %139, %153 : vector<16x256xf32>
    %c14 = arith.constant 14 : index
    %c0_45 = arith.constant 0 : index
    %155 = vector.load %arg15[%c14, %c0_45] : memref<48x256xf32, #tpu.memory_space<vmem>>, vector<16x256xf32>
    %c-2_i32_46 = arith.constant -2 : i32
    %156 = vector.broadcast %c-2_i32_46 : i32 to vector<16x1xi32>
    %157 = arith.cmpi sge, %35, %156 : vector<16x1xi32>
    %c2_i32_47 = arith.constant 2 : i32
    %158 = vector.broadcast %c2_i32_47 : i32 to vector<16x1xi32>
    %159 = arith.cmpi slt, %35, %158 : vector<16x1xi32>
    %160 = arith.andi %157, %159 : vector<16x1xi1>
    %cst_48 = arith.constant 0.000000e+00 : f32
    %161 = vector.shape_cast %160 : vector<16x1xi1> to vector<16x1xi1>
    %162 = vector.broadcast %161 : vector<16x1xi1> to vector<16x256xi1>
    %163 = vector.broadcast %cst_48 : f32 to vector<16x256xf32>
    %164 = arith.select %162, %155, %163 : vector<16x256xi1>, vector<16x256xf32>
    %165 = vector.extract_strided_slice %36 {offsets = [9, 0, 0], sizes = [1, 1, 256], strides = [1, 1, 1]} : vector<25x1x256xf32> to vector<1x1x256xf32>
    %166 = vector.shape_cast %165 : vector<1x1x256xf32> to vector<1x256xf32>
    %167 = vector.broadcast %166 : vector<1x256xf32> to vector<16x256xf32>
    %168 = arith.mulf %164, %167 : vector<16x256xf32>
    %169 = arith.addf %154, %168 : vector<16x256xf32>
    %c14_49 = arith.constant 14 : index
    %c0_50 = arith.constant 0 : index
    %170 = vector.load %arg15[%c14_49, %c0_50] : memref<48x256xf32, #tpu.memory_space<vmem>>, vector<16x256xf32>
    %c2_i32_51 = arith.constant 2 : i32
    %171 = vector.broadcast %c2_i32_51 : i32 to vector<16x1xi32>
    %172 = arith.cmpi sge, %35, %171 : vector<16x1xi32>
    %c6_i32_52 = arith.constant 6 : i32
    %173 = vector.broadcast %c6_i32_52 : i32 to vector<16x1xi32>
    %174 = arith.cmpi slt, %35, %173 : vector<16x1xi32>
    %175 = arith.andi %172, %174 : vector<16x1xi1>
    %cst_53 = arith.constant 0.000000e+00 : f32
    %176 = vector.shape_cast %175 : vector<16x1xi1> to vector<16x1xi1>
    %177 = vector.broadcast %176 : vector<16x1xi1> to vector<16x256xi1>
    %178 = vector.broadcast %cst_53 : f32 to vector<16x256xf32>
    %179 = arith.select %177, %170, %178 : vector<16x256xi1>, vector<16x256xf32>
    %180 = vector.extract_strided_slice %36 {offsets = [10, 0, 0], sizes = [1, 1, 256], strides = [1, 1, 1]} : vector<25x1x256xf32> to vector<1x1x256xf32>
    %181 = vector.shape_cast %180 : vector<1x1x256xf32> to vector<1x256xf32>
    %182 = vector.broadcast %181 : vector<1x256xf32> to vector<16x256xf32>
    %183 = arith.mulf %179, %182 : vector<16x256xf32>
    %184 = arith.addf %169, %183 : vector<16x256xf32>
    %c15 = arith.constant 15 : index
    %c0_54 = arith.constant 0 : index
    %185 = vector.load %arg15[%c15, %c0_54] : memref<48x256xf32, #tpu.memory_space<vmem>>, vector<16x256xf32>
    %c1_i32_55 = arith.constant 1 : i32
    %186 = vector.broadcast %c1_i32_55 : i32 to vector<16x1xi32>
    %187 = arith.cmpi sge, %35, %186 : vector<16x1xi32>
    %c5_i32_56 = arith.constant 5 : i32
    %188 = vector.broadcast %c5_i32_56 : i32 to vector<16x1xi32>
    %189 = arith.cmpi slt, %35, %188 : vector<16x1xi32>
    %190 = arith.andi %187, %189 : vector<16x1xi1>
    %cst_57 = arith.constant 0.000000e+00 : f32
    %191 = vector.shape_cast %190 : vector<16x1xi1> to vector<16x1xi1>
    %192 = vector.broadcast %191 : vector<16x1xi1> to vector<16x256xi1>
    %193 = vector.broadcast %cst_57 : f32 to vector<16x256xf32>
    %194 = arith.select %192, %185, %193 : vector<16x256xi1>, vector<16x256xf32>
    %195 = vector.extract_strided_slice %36 {offsets = [11, 0, 0], sizes = [1, 1, 256], strides = [1, 1, 1]} : vector<25x1x256xf32> to vector<1x1x256xf32>
    %196 = vector.shape_cast %195 : vector<1x1x256xf32> to vector<1x256xf32>
    %197 = vector.broadcast %196 : vector<1x256xf32> to vector<16x256xf32>
    %198 = arith.mulf %194, %197 : vector<16x256xf32>
    %199 = arith.addf %184, %198 : vector<16x256xf32>
    %c16_58 = arith.constant 16 : index
    %c0_59 = arith.constant 0 : index
    %200 = vector.load %arg15[%c16_58, %c0_59] : memref<48x256xf32, #tpu.memory_space<vmem>>, vector<16x256xf32>
    %201 = vector.extract_strided_slice %36 {offsets = [12, 0, 0], sizes = [1, 1, 256], strides = [1, 1, 1]} : vector<25x1x256xf32> to vector<1x1x256xf32>
    %202 = vector.shape_cast %201 : vector<1x1x256xf32> to vector<1x256xf32>
    %203 = vector.broadcast %202 : vector<1x256xf32> to vector<16x256xf32>
    %204 = arith.mulf %200, %203 : vector<16x256xf32>
    %205 = arith.addf %199, %204 : vector<16x256xf32>
    %c17 = arith.constant 17 : index
    %c0_60 = arith.constant 0 : index
    %206 = vector.load %arg15[%c17, %c0_60] : memref<48x256xf32, #tpu.memory_space<vmem>>, vector<16x256xf32>
    %c-1_i32_61 = arith.constant -1 : i32
    %207 = vector.broadcast %c-1_i32_61 : i32 to vector<16x1xi32>
    %208 = arith.cmpi sge, %35, %207 : vector<16x1xi32>
    %c3_i32_62 = arith.constant 3 : i32
    %209 = vector.broadcast %c3_i32_62 : i32 to vector<16x1xi32>
    %210 = arith.cmpi slt, %35, %209 : vector<16x1xi32>
    %211 = arith.andi %208, %210 : vector<16x1xi1>
    %cst_63 = arith.constant 0.000000e+00 : f32
    %212 = vector.shape_cast %211 : vector<16x1xi1> to vector<16x1xi1>
    %213 = vector.broadcast %212 : vector<16x1xi1> to vector<16x256xi1>
    %214 = vector.broadcast %cst_63 : f32 to vector<16x256xf32>
    %215 = arith.select %213, %206, %214 : vector<16x256xi1>, vector<16x256xf32>
    %216 = vector.extract_strided_slice %36 {offsets = [13, 0, 0], sizes = [1, 1, 256], strides = [1, 1, 1]} : vector<25x1x256xf32> to vector<1x1x256xf32>
    %217 = vector.shape_cast %216 : vector<1x1x256xf32> to vector<1x256xf32>
    %218 = vector.broadcast %217 : vector<1x256xf32> to vector<16x256xf32>
    %219 = arith.mulf %215, %218 : vector<16x256xf32>
    %220 = arith.addf %205, %219 : vector<16x256xf32>
    %c18 = arith.constant 18 : index
    %c0_64 = arith.constant 0 : index
    %221 = vector.load %arg15[%c18, %c0_64] : memref<48x256xf32, #tpu.memory_space<vmem>>, vector<16x256xf32>
    %c-2_i32_65 = arith.constant -2 : i32
    %222 = vector.broadcast %c-2_i32_65 : i32 to vector<16x1xi32>
    %223 = arith.cmpi sge, %35, %222 : vector<16x1xi32>
    %c2_i32_66 = arith.constant 2 : i32
    %224 = vector.broadcast %c2_i32_66 : i32 to vector<16x1xi32>
    %225 = arith.cmpi slt, %35, %224 : vector<16x1xi32>
    %226 = arith.andi %223, %225 : vector<16x1xi1>
    %cst_67 = arith.constant 0.000000e+00 : f32
    %227 = vector.shape_cast %226 : vector<16x1xi1> to vector<16x1xi1>
    %228 = vector.broadcast %227 : vector<16x1xi1> to vector<16x256xi1>
    %229 = vector.broadcast %cst_67 : f32 to vector<16x256xf32>
    %230 = arith.select %228, %221, %229 : vector<16x256xi1>, vector<16x256xf32>
    %231 = vector.extract_strided_slice %36 {offsets = [14, 0, 0], sizes = [1, 1, 256], strides = [1, 1, 1]} : vector<25x1x256xf32> to vector<1x1x256xf32>
    %232 = vector.shape_cast %231 : vector<1x1x256xf32> to vector<1x256xf32>
    %233 = vector.broadcast %232 : vector<1x256xf32> to vector<16x256xf32>
    %234 = arith.mulf %230, %233 : vector<16x256xf32>
    %235 = arith.addf %220, %234 : vector<16x256xf32>
    %c18_68 = arith.constant 18 : index
    %c0_69 = arith.constant 0 : index
    %236 = vector.load %arg15[%c18_68, %c0_69] : memref<48x256xf32, #tpu.memory_space<vmem>>, vector<16x256xf32>
    %c2_i32_70 = arith.constant 2 : i32
    %237 = vector.broadcast %c2_i32_70 : i32 to vector<16x1xi32>
    %238 = arith.cmpi sge, %35, %237 : vector<16x1xi32>
    %c6_i32_71 = arith.constant 6 : i32
    %239 = vector.broadcast %c6_i32_71 : i32 to vector<16x1xi32>
    %240 = arith.cmpi slt, %35, %239 : vector<16x1xi32>
    %241 = arith.andi %238, %240 : vector<16x1xi1>
    %cst_72 = arith.constant 0.000000e+00 : f32
    %242 = vector.shape_cast %241 : vector<16x1xi1> to vector<16x1xi1>
    %243 = vector.broadcast %242 : vector<16x1xi1> to vector<16x256xi1>
    %244 = vector.broadcast %cst_72 : f32 to vector<16x256xf32>
    %245 = arith.select %243, %236, %244 : vector<16x256xi1>, vector<16x256xf32>
    %246 = vector.extract_strided_slice %36 {offsets = [15, 0, 0], sizes = [1, 1, 256], strides = [1, 1, 1]} : vector<25x1x256xf32> to vector<1x1x256xf32>
    %247 = vector.shape_cast %246 : vector<1x1x256xf32> to vector<1x256xf32>
    %248 = vector.broadcast %247 : vector<1x256xf32> to vector<16x256xf32>
    %249 = arith.mulf %245, %248 : vector<16x256xf32>
    %250 = arith.addf %235, %249 : vector<16x256xf32>
    %c19 = arith.constant 19 : index
    %c0_73 = arith.constant 0 : index
    %251 = vector.load %arg15[%c19, %c0_73] : memref<48x256xf32, #tpu.memory_space<vmem>>, vector<16x256xf32>
    %c1_i32_74 = arith.constant 1 : i32
    %252 = vector.broadcast %c1_i32_74 : i32 to vector<16x1xi32>
    %253 = arith.cmpi sge, %35, %252 : vector<16x1xi32>
    %c5_i32_75 = arith.constant 5 : i32
    %254 = vector.broadcast %c5_i32_75 : i32 to vector<16x1xi32>
    %255 = arith.cmpi slt, %35, %254 : vector<16x1xi32>
    %256 = arith.andi %253, %255 : vector<16x1xi1>
    %cst_76 = arith.constant 0.000000e+00 : f32
    %257 = vector.shape_cast %256 : vector<16x1xi1> to vector<16x1xi1>
    %258 = vector.broadcast %257 : vector<16x1xi1> to vector<16x256xi1>
    %259 = vector.broadcast %cst_76 : f32 to vector<16x256xf32>
    %260 = arith.select %258, %251, %259 : vector<16x256xi1>, vector<16x256xf32>
    %261 = vector.extract_strided_slice %36 {offsets = [16, 0, 0], sizes = [1, 1, 256], strides = [1, 1, 1]} : vector<25x1x256xf32> to vector<1x1x256xf32>
    %262 = vector.shape_cast %261 : vector<1x1x256xf32> to vector<1x256xf32>
    %263 = vector.broadcast %262 : vector<1x256xf32> to vector<16x256xf32>
    %264 = arith.mulf %260, %263 : vector<16x256xf32>
    %265 = arith.addf %250, %264 : vector<16x256xf32>
    %c20 = arith.constant 20 : index
    %c0_77 = arith.constant 0 : index
    %266 = vector.load %arg15[%c20, %c0_77] : memref<48x256xf32, #tpu.memory_space<vmem>>, vector<16x256xf32>
    %267 = vector.extract_strided_slice %36 {offsets = [17, 0, 0], sizes = [1, 1, 256], strides = [1, 1, 1]} : vector<25x1x256xf32> to vector<1x1x256xf32>
    %268 = vector.shape_cast %267 : vector<1x1x256xf32> to vector<1x256xf32>
    %269 = vector.broadcast %268 : vector<1x256xf32> to vector<16x256xf32>
    %270 = arith.mulf %266, %269 : vector<16x256xf32>
    %271 = arith.addf %265, %270 : vector<16x256xf32>
    %c21 = arith.constant 21 : index
    %c0_78 = arith.constant 0 : index
    %272 = vector.load %arg15[%c21, %c0_78] : memref<48x256xf32, #tpu.memory_space<vmem>>, vector<16x256xf32>
    %c-1_i32_79 = arith.constant -1 : i32
    %273 = vector.broadcast %c-1_i32_79 : i32 to vector<16x1xi32>
    %274 = arith.cmpi sge, %35, %273 : vector<16x1xi32>
    %c3_i32_80 = arith.constant 3 : i32
    %275 = vector.broadcast %c3_i32_80 : i32 to vector<16x1xi32>
    %276 = arith.cmpi slt, %35, %275 : vector<16x1xi32>
    %277 = arith.andi %274, %276 : vector<16x1xi1>
    %cst_81 = arith.constant 0.000000e+00 : f32
    %278 = vector.shape_cast %277 : vector<16x1xi1> to vector<16x1xi1>
    %279 = vector.broadcast %278 : vector<16x1xi1> to vector<16x256xi1>
    %280 = vector.broadcast %cst_81 : f32 to vector<16x256xf32>
    %281 = arith.select %279, %272, %280 : vector<16x256xi1>, vector<16x256xf32>
    %282 = vector.extract_strided_slice %36 {offsets = [18, 0, 0], sizes = [1, 1, 256], strides = [1, 1, 1]} : vector<25x1x256xf32> to vector<1x1x256xf32>
    %283 = vector.shape_cast %282 : vector<1x1x256xf32> to vector<1x256xf32>
    %284 = vector.broadcast %283 : vector<1x256xf32> to vector<16x256xf32>
    %285 = arith.mulf %281, %284 : vector<16x256xf32>
    %286 = arith.addf %271, %285 : vector<16x256xf32>
    %c22 = arith.constant 22 : index
    %c0_82 = arith.constant 0 : index
    %287 = vector.load %arg15[%c22, %c0_82] : memref<48x256xf32, #tpu.memory_space<vmem>>, vector<16x256xf32>
    %c-2_i32_83 = arith.constant -2 : i32
    %288 = vector.broadcast %c-2_i32_83 : i32 to vector<16x1xi32>
    %289 = arith.cmpi sge, %35, %288 : vector<16x1xi32>
    %c2_i32_84 = arith.constant 2 : i32
    %290 = vector.broadcast %c2_i32_84 : i32 to vector<16x1xi32>
    %291 = arith.cmpi slt, %35, %290 : vector<16x1xi32>
    %292 = arith.andi %289, %291 : vector<16x1xi1>
    %cst_85 = arith.constant 0.000000e+00 : f32
    %293 = vector.shape_cast %292 : vector<16x1xi1> to vector<16x1xi1>
    %294 = vector.broadcast %293 : vector<16x1xi1> to vector<16x256xi1>
    %295 = vector.broadcast %cst_85 : f32 to vector<16x256xf32>
    %296 = arith.select %294, %287, %295 : vector<16x256xi1>, vector<16x256xf32>
    %297 = vector.extract_strided_slice %36 {offsets = [19, 0, 0], sizes = [1, 1, 256], strides = [1, 1, 1]} : vector<25x1x256xf32> to vector<1x1x256xf32>
    %298 = vector.shape_cast %297 : vector<1x1x256xf32> to vector<1x256xf32>
    %299 = vector.broadcast %298 : vector<1x256xf32> to vector<16x256xf32>
    %300 = arith.mulf %296, %299 : vector<16x256xf32>
    %301 = arith.addf %286, %300 : vector<16x256xf32>
    %c22_86 = arith.constant 22 : index
    %c0_87 = arith.constant 0 : index
    %302 = vector.load %arg15[%c22_86, %c0_87] : memref<48x256xf32, #tpu.memory_space<vmem>>, vector<16x256xf32>
    %c2_i32_88 = arith.constant 2 : i32
    %303 = vector.broadcast %c2_i32_88 : i32 to vector<16x1xi32>
    %304 = arith.cmpi sge, %35, %303 : vector<16x1xi32>
    %c6_i32_89 = arith.constant 6 : i32
    %305 = vector.broadcast %c6_i32_89 : i32 to vector<16x1xi32>
    %306 = arith.cmpi slt, %35, %305 : vector<16x1xi32>
    %307 = arith.andi %304, %306 : vector<16x1xi1>
    %cst_90 = arith.constant 0.000000e+00 : f32
    %308 = vector.shape_cast %307 : vector<16x1xi1> to vector<16x1xi1>
    %309 = vector.broadcast %308 : vector<16x1xi1> to vector<16x256xi1>
    %310 = vector.broadcast %cst_90 : f32 to vector<16x256xf32>
    %311 = arith.select %309, %302, %310 : vector<16x256xi1>, vector<16x256xf32>
    %312 = vector.extract_strided_slice %36 {offsets = [20, 0, 0], sizes = [1, 1, 256], strides = [1, 1, 1]} : vector<25x1x256xf32> to vector<1x1x256xf32>
    %313 = vector.shape_cast %312 : vector<1x1x256xf32> to vector<1x256xf32>
    %314 = vector.broadcast %313 : vector<1x256xf32> to vector<16x256xf32>
    %315 = arith.mulf %311, %314 : vector<16x256xf32>
    %316 = arith.addf %301, %315 : vector<16x256xf32>
    %c23 = arith.constant 23 : index
    %c0_91 = arith.constant 0 : index
    %317 = vector.load %arg15[%c23, %c0_91] : memref<48x256xf32, #tpu.memory_space<vmem>>, vector<16x256xf32>
    %c1_i32_92 = arith.constant 1 : i32
    %318 = vector.broadcast %c1_i32_92 : i32 to vector<16x1xi32>
    %319 = arith.cmpi sge, %35, %318 : vector<16x1xi32>
    %c5_i32_93 = arith.constant 5 : i32
    %320 = vector.broadcast %c5_i32_93 : i32 to vector<16x1xi32>
    %321 = arith.cmpi slt, %35, %320 : vector<16x1xi32>
    %322 = arith.andi %319, %321 : vector<16x1xi1>
    %cst_94 = arith.constant 0.000000e+00 : f32
    %323 = vector.shape_cast %322 : vector<16x1xi1> to vector<16x1xi1>
    %324 = vector.broadcast %323 : vector<16x1xi1> to vector<16x256xi1>
    %325 = vector.broadcast %cst_94 : f32 to vector<16x256xf32>
    %326 = arith.select %324, %317, %325 : vector<16x256xi1>, vector<16x256xf32>
    %327 = vector.extract_strided_slice %36 {offsets = [21, 0, 0], sizes = [1, 1, 256], strides = [1, 1, 1]} : vector<25x1x256xf32> to vector<1x1x256xf32>
    %328 = vector.shape_cast %327 : vector<1x1x256xf32> to vector<1x256xf32>
    %329 = vector.broadcast %328 : vector<1x256xf32> to vector<16x256xf32>
    %330 = arith.mulf %326, %329 : vector<16x256xf32>
    %331 = arith.addf %316, %330 : vector<16x256xf32>
    %c24 = arith.constant 24 : index
    %c0_95 = arith.constant 0 : index
    %332 = vector.load %arg15[%c24, %c0_95] : memref<48x256xf32, #tpu.memory_space<vmem>>, vector<16x256xf32>
    %333 = vector.extract_strided_slice %36 {offsets = [22, 0, 0], sizes = [1, 1, 256], strides = [1, 1, 1]} : vector<25x1x256xf32> to vector<1x1x256xf32>
    %334 = vector.shape_cast %333 : vector<1x1x256xf32> to vector<1x256xf32>
    %335 = vector.broadcast %334 : vector<1x256xf32> to vector<16x256xf32>
    %336 = arith.mulf %332, %335 : vector<16x256xf32>
    %337 = arith.addf %331, %336 : vector<16x256xf32>
    %c25 = arith.constant 25 : index
    %c0_96 = arith.constant 0 : index
    %338 = vector.load %arg15[%c25, %c0_96] : memref<48x256xf32, #tpu.memory_space<vmem>>, vector<16x256xf32>
    %c-1_i32_97 = arith.constant -1 : i32
    %339 = vector.broadcast %c-1_i32_97 : i32 to vector<16x1xi32>
    %340 = arith.cmpi sge, %35, %339 : vector<16x1xi32>
    %c3_i32_98 = arith.constant 3 : i32
    %341 = vector.broadcast %c3_i32_98 : i32 to vector<16x1xi32>
    %342 = arith.cmpi slt, %35, %341 : vector<16x1xi32>
    %343 = arith.andi %340, %342 : vector<16x1xi1>
    %cst_99 = arith.constant 0.000000e+00 : f32
    %344 = vector.shape_cast %343 : vector<16x1xi1> to vector<16x1xi1>
    %345 = vector.broadcast %344 : vector<16x1xi1> to vector<16x256xi1>
    %346 = vector.broadcast %cst_99 : f32 to vector<16x256xf32>
    %347 = arith.select %345, %338, %346 : vector<16x256xi1>, vector<16x256xf32>
    %348 = vector.extract_strided_slice %36 {offsets = [23, 0, 0], sizes = [1, 1, 256], strides = [1, 1, 1]} : vector<25x1x256xf32> to vector<1x1x256xf32>
    %349 = vector.shape_cast %348 : vector<1x1x256xf32> to vector<1x256xf32>
    %350 = vector.broadcast %349 : vector<1x256xf32> to vector<16x256xf32>
    %351 = arith.mulf %347, %350 : vector<16x256xf32>
    %352 = arith.addf %337, %351 : vector<16x256xf32>
    %c26 = arith.constant 26 : index
    %c0_100 = arith.constant 0 : index
    %353 = vector.load %arg15[%c26, %c0_100] : memref<48x256xf32, #tpu.memory_space<vmem>>, vector<16x256xf32>
    %c-2_i32_101 = arith.constant -2 : i32
    %354 = vector.broadcast %c-2_i32_101 : i32 to vector<16x1xi32>
    %355 = arith.cmpi sge, %35, %354 : vector<16x1xi32>
    %c2_i32_102 = arith.constant 2 : i32
    %356 = vector.broadcast %c2_i32_102 : i32 to vector<16x1xi32>
    %357 = arith.cmpi slt, %35, %356 : vector<16x1xi32>
    %358 = arith.andi %355, %357 : vector<16x1xi1>
    %cst_103 = arith.constant 0.000000e+00 : f32
    %359 = vector.shape_cast %358 : vector<16x1xi1> to vector<16x1xi1>
    %360 = vector.broadcast %359 : vector<16x1xi1> to vector<16x256xi1>
    %361 = vector.broadcast %cst_103 : f32 to vector<16x256xf32>
    %362 = arith.select %360, %353, %361 : vector<16x256xi1>, vector<16x256xf32>
    %363 = vector.extract_strided_slice %36 {offsets = [24, 0, 0], sizes = [1, 1, 256], strides = [1, 1, 1]} : vector<25x1x256xf32> to vector<1x1x256xf32>
    %364 = vector.shape_cast %363 : vector<1x1x256xf32> to vector<1x256xf32>
    %365 = vector.broadcast %364 : vector<1x256xf32> to vector<16x256xf32>
    %366 = arith.mulf %362, %365 : vector<16x256xf32>
    %367 = arith.addf %352, %366 : vector<16x256xf32>
    %c0_104 = arith.constant 0 : index
    %c0_105 = arith.constant 0 : index
    %368 = vector.load %arg6[%c0_104, %c0_105] : memref<1x256xf32, #tpu.memory_space<vmem>>, vector<1x256xf32>
    %369 = vector.broadcast %368 : vector<1x256xf32> to vector<16x256xf32>
    %370 = arith.addf %367, %369 : vector<16x256xf32>
    %371 = arith.negf %370 : vector<16x256xf32>
    %372 = math.exp %371 : vector<16x256xf32>
    %cst_106 = arith.constant 1.000000e+00 : f32
    %373 = vector.broadcast %cst_106 : f32 to vector<16x256xf32>
    %374 = arith.addf %373, %372 : vector<16x256xf32>
    %375 = arith.divf %373, %374 : vector<16x256xf32>
    %376 = arith.mulf %370, %375 : vector<16x256xf32>
    %cst_107 = arith.constant dense<0.000000e+00> : vector<256xf32>
    %377 = vector.multi_reduction <add>, %376, %cst_107 [0] : vector<16x256xf32> to vector<256xf32>
    %378 = vector.shape_cast %377 : vector<256xf32> to vector<1x256xf32>
    %cst_108 = arith.constant 1.600000e+01 : f32
    %379 = vector.broadcast %cst_108 : f32 to vector<1x256xf32>
    %380 = arith.divf %378, %379 : vector<1x256xf32>
    %381 = arith.truncf %380 : vector<1x256xf32> to vector<1x256xbf16>
    %c0_109 = arith.constant 0 : index
    %c0_110 = arith.constant 0 : index
    %382 = vector.load %arg7[%c0_109, %c0_110] : memref<256x128xbf16, #tpu.memory_space<vmem>>, vector<256x128xbf16>
    %cst_111 = arith.constant dense<0.000000e+00> : vector<1x128xf32>
    %383 = tpu.matmul %381, %382, %cst_111 {dimension_numbers = #tpu.dot_dimension_numbers<[1], [0], [0], [1], [0, 0, 1, 1], [], []>} : vector<1x256xbf16>, vector<256x128xbf16>, vector<1x128xf32> -> vector<1x128xf32>
    %c0_112 = arith.constant 0 : index
    %c0_113 = arith.constant 0 : index
    %384 = vector.load %arg8[%c0_112, %c0_113] : memref<1x128xf32, #tpu.memory_space<vmem>>, vector<1x128xf32>
    %385 = arith.mulf %383, %384 : vector<1x128xf32>
    %c0_114 = arith.constant 0 : index
    %c0_115 = arith.constant 0 : index
    %386 = vector.load %arg9[%c0_114, %c0_115] : memref<1x128xf32, #tpu.memory_space<vmem>>, vector<1x128xf32>
    %387 = arith.addf %385, %386 : vector<1x128xf32>
    %cst_116 = arith.constant 0.000000e+00 : f32
    %388 = vector.broadcast %cst_116 : f32 to vector<1x128xf32>
    %389 = arith.maximumf %387, %388 : vector<1x128xf32>
    %390 = arith.truncf %389 : vector<1x128xf32> to vector<1x128xbf16>
    %c0_117 = arith.constant 0 : index
    %c0_118 = arith.constant 0 : index
    %391 = vector.load %arg10[%c0_117, %c0_118] : memref<128x256xbf16, #tpu.memory_space<vmem>>, vector<128x256xbf16>
    %cst_119 = arith.constant dense<0.000000e+00> : vector<1x256xf32>
    %392 = tpu.matmul %390, %391, %cst_119 {dimension_numbers = #tpu.dot_dimension_numbers<[1], [0], [0], [1], [0, 0, 1, 1], [], []>} : vector<1x128xbf16>, vector<128x256xbf16>, vector<1x256xf32> -> vector<1x256xf32>
    %cst_120 = arith.constant 6.000000e+00 : f32
    %393 = vector.broadcast %cst_120 : f32 to vector<1x256xf32>
    %394 = arith.divf %392, %393 : vector<1x256xf32>
    %cst_121 = arith.constant 5.000000e-01 : f32
    %395 = vector.broadcast %cst_121 : f32 to vector<1x256xf32>
    %396 = arith.addf %394, %395 : vector<1x256xf32>
    %cst_122 = arith.constant 0.000000e+00 : f32
    %cst_123 = arith.constant 1.000000e+00 : f32
    %397 = vector.broadcast %cst_122 : f32 to vector<1x256xf32>
    %398 = arith.maximumf %397, %396 : vector<1x256xf32>
    %399 = vector.broadcast %cst_123 : f32 to vector<1x256xf32>
    %400 = arith.minimumf %399, %398 : vector<1x256xf32>
    %401 = vector.broadcast %400 : vector<1x256xf32> to vector<16x256xf32>
    %402 = arith.mulf %376, %401 : vector<16x256xf32>
    %403 = arith.truncf %402 : vector<16x256xf32> to vector<16x256xbf16>
    %c0_124 = arith.constant 0 : index
    %c0_125 = arith.constant 0 : index
    %404 = vector.load %arg11[%c0_124, %c0_125] : memref<256x128xbf16, #tpu.memory_space<vmem>>, vector<256x128xbf16>
    %cst_126 = arith.constant dense<0.000000e+00> : vector<16x128xf32>
    %405 = tpu.matmul %403, %404, %cst_126 {dimension_numbers = #tpu.dot_dimension_numbers<[1], [0], [0], [1], [0, 0, 1, 1], [], []>} : vector<16x256xbf16>, vector<256x128xbf16>, vector<16x128xf32> -> vector<16x128xf32>
    %c0_127 = arith.constant 0 : index
    %c0_128 = arith.constant 0 : index
    %406 = vector.load %arg12[%c0_127, %c0_128] : memref<1x128xf32, #tpu.memory_space<vmem>>, vector<1x128xf32>
    %407 = vector.broadcast %406 : vector<1x128xf32> to vector<16x128xf32>
    %408 = arith.mulf %405, %407 : vector<16x128xf32>
    %c0_129 = arith.constant 0 : index
    %c0_130 = arith.constant 0 : index
    %409 = vector.load %arg13[%c0_129, %c0_130] : memref<1x128xf32, #tpu.memory_space<vmem>>, vector<1x128xf32>
    %410 = vector.broadcast %409 : vector<1x128xf32> to vector<16x128xf32>
    %411 = arith.addf %408, %410 : vector<16x128xf32>
    %412 = arith.extf %1 : vector<16x128xbf16> to vector<16x128xf32>
    %413 = arith.addf %411, %412 : vector<16x128xf32>
    %414 = arith.negf %413 : vector<16x128xf32>
    %415 = math.exp %414 : vector<16x128xf32>
    %cst_131 = arith.constant 1.000000e+00 : f32
    %416 = vector.broadcast %cst_131 : f32 to vector<16x128xf32>
    %417 = arith.addf %416, %415 : vector<16x128xf32>
    %418 = arith.divf %416, %417 : vector<16x128xf32>
    %419 = arith.mulf %413, %418 : vector<16x128xf32>
    %420 = arith.truncf %419 : vector<16x128xf32> to vector<16x128xbf16>
    %c0_132 = arith.constant 0 : index
    %c0_133 = arith.constant 0 : index
    %c0_134 = arith.constant 0 : index
    %421 = vector.load %arg14[%c0_132, %c0_133, %c0_134] : memref<1x16x128xbf16, #tpu.memory_space<vmem>>, vector<1x16x128xbf16>
    %422 = vector.shape_cast %421 : vector<1x16x128xbf16> to vector<16x128xbf16>
    %423 = vector.shape_cast %420 : vector<16x128xbf16> to vector<1x16x128xbf16>
    tpu.vector_store %arg14[%c0_132, %c0_133, %c0_134], %423 {strides = array<i32>} : memref<1x16x128xbf16, #tpu.memory_space<vmem>>, vector<1x16x128xbf16>,
    return
  }
  func.func @transform_0(%arg0: i32) -> (i32, i32, i32) {
    %c0_i32 = arith.constant 0 : i32
    %c0_i32_0 = arith.constant 0 : i32
    %c0_i32_1 = arith.constant 0 : i32
    return %arg0, %c0_i32, %c0_i32_0 : i32, i32, i32
  }
  func.func @transform_1(%arg0: i32) -> (i32, i32) {
    %c0_i32 = arith.constant 0 : i32
    %c0_i32_0 = arith.constant 0 : i32
    %c0_i32_1 = arith.constant 0 : i32
    return %c0_i32, %c0_i32_0 : i32, i32
  }
  func.func @transform_2(%arg0: i32) -> (i32, i32) {
    %c0_i32 = arith.constant 0 : i32
    %c0_i32_0 = arith.constant 0 : i32
    %c0_i32_1 = arith.constant 0 : i32
    return %c0_i32, %c0_i32_0 : i32, i32
  }
  func.func @transform_3(%arg0: i32) -> (i32, i32) {
    %c0_i32 = arith.constant 0 : i32
    %c0_i32_0 = arith.constant 0 : i32
    %c0_i32_1 = arith.constant 0 : i32
    return %c0_i32, %c0_i32_0 : i32, i32
  }
  func.func @transform_4(%arg0: i32) -> (i32, i32, i32) {
    %c0_i32 = arith.constant 0 : i32
    %c0_i32_0 = arith.constant 0 : i32
    %c0_i32_1 = arith.constant 0 : i32
    %c0_i32_2 = arith.constant 0 : i32
    return %c0_i32, %c0_i32_0, %c0_i32_1 : i32, i32, i32
  }
  func.func @transform_5(%arg0: i32) -> (i32, i32) {
    %c0_i32 = arith.constant 0 : i32
    %c0_i32_0 = arith.constant 0 : i32
    %c0_i32_1 = arith.constant 0 : i32
    return %c0_i32, %c0_i32_0 : i32, i32
  }
  func.func @transform_6(%arg0: i32) -> (i32, i32) {
    %c0_i32 = arith.constant 0 : i32
    %c0_i32_0 = arith.constant 0 : i32
    %c0_i32_1 = arith.constant 0 : i32
    return %c0_i32, %c0_i32_0 : i32, i32
  }
  func.func @transform_7(%arg0: i32) -> (i32, i32) {
    %c0_i32 = arith.constant 0 : i32
    %c0_i32_0 = arith.constant 0 : i32
    %c0_i32_1 = arith.constant 0 : i32
    return %c0_i32, %c0_i32_0 : i32, i32
  }
  func.func @transform_8(%arg0: i32) -> (i32, i32) {
    %c0_i32 = arith.constant 0 : i32
    %c0_i32_0 = arith.constant 0 : i32
    %c0_i32_1 = arith.constant 0 : i32
    return %c0_i32, %c0_i32_0 : i32, i32
  }
  func.func @transform_9(%arg0: i32) -> (i32, i32) {
    %c0_i32 = arith.constant 0 : i32
    %c0_i32_0 = arith.constant 0 : i32
    %c0_i32_1 = arith.constant 0 : i32
    return %c0_i32, %c0_i32_0 : i32, i32
  }
  func.func @transform_10(%arg0: i32) -> (i32, i32) {
    %c0_i32 = arith.constant 0 : i32
    %c0_i32_0 = arith.constant 0 : i32
    %c0_i32_1 = arith.constant 0 : i32
    return %c0_i32, %c0_i32_0 : i32, i32
  }
  func.func @transform_11(%arg0: i32) -> (i32, i32) {
    %c0_i32 = arith.constant 0 : i32
    %c0_i32_0 = arith.constant 0 : i32
    %c0_i32_1 = arith.constant 0 : i32
    return %c0_i32, %c0_i32_0 : i32, i32
  }
  func.func @transform_12(%arg0: i32) -> (i32, i32) {
    %c0_i32 = arith.constant 0 : i32
    %c0_i32_0 = arith.constant 0 : i32
    %c0_i32_1 = arith.constant 0 : i32
    return %c0_i32, %c0_i32_0 : i32, i32
  }
  func.func @transform_13(%arg0: i32) -> (i32, i32, i32) {
    %c0_i32 = arith.constant 0 : i32
    %c0_i32_0 = arith.constant 0 : i32
    %c0_i32_1 = arith.constant 0 : i32
    return %arg0, %c0_i32, %c0_i32_0 : i32, i32, i32
  }
}

module attributes {stable_mosaic.version = 11 : i64} {
  func.func @kernel(%arg0: i32, %arg1: memref<1x4x128xbf16, #tpu.memory_space<vmem>>, %arg2: memref<128x384xbf16, #tpu.memory_space<vmem>>, %arg3: memref<1x384xf32, #tpu.memory_space<vmem>>, %arg4: memref<1x384xf32, #tpu.memory_space<vmem>>, %arg5: memref<25x1x384xf32, #tpu.memory_space<vmem>>, %arg6: memref<1x384xf32, #tpu.memory_space<vmem>>, %arg7: memref<384x128xbf16, #tpu.memory_space<vmem>>, %arg8: memref<1x128xf32, #tpu.memory_space<vmem>>, %arg9: memref<1x128xf32, #tpu.memory_space<vmem>>, %arg10: memref<128x384xbf16, #tpu.memory_space<vmem>>, %arg11: memref<384x128xbf16, #tpu.memory_space<vmem>>, %arg12: memref<1x128xf32, #tpu.memory_space<vmem>>, %arg13: memref<1x128xf32, #tpu.memory_space<vmem>>, %arg14: memref<1x4x128xbf16, #tpu.memory_space<vmem>>, %arg15: memref<28x384xf32, #tpu.memory_space<vmem>>) attributes {dimension_semantics = [#tpu.dimension_semantics<parallel>], iteration_bounds = array<i64: 2>, scalar_prefetch = 0 : i64, scratch_operands = 1 : i64, tpu.core_type = #tpu.core_type<tc>, window_params = [{transform_indices = @transform_0, window_bounds = array<i64: 1, 4, 128>}, {pipeline_mode = #tpu.pipeline_mode<synchronous>, transform_indices = @transform_1, window_bounds = array<i64: 128, 384>}, {pipeline_mode = #tpu.pipeline_mode<synchronous>, transform_indices = @transform_2, window_bounds = array<i64: 1, 384>}, {pipeline_mode = #tpu.pipeline_mode<synchronous>, transform_indices = @transform_3, window_bounds = array<i64: 1, 384>}, {pipeline_mode = #tpu.pipeline_mode<synchronous>, transform_indices = @transform_4, window_bounds = array<i64: 25, 1, 384>}, {pipeline_mode = #tpu.pipeline_mode<synchronous>, transform_indices = @transform_5, window_bounds = array<i64: 1, 384>}, {pipeline_mode = #tpu.pipeline_mode<synchronous>, transform_indices = @transform_6, window_bounds = array<i64: 384, 128>}, {pipeline_mode = #tpu.pipeline_mode<synchronous>, transform_indices = @transform_7, window_bounds = array<i64: 1, 128>}, {pipeline_mode = #tpu.pipeline_mode<synchronous>, transform_indices = @transform_8, window_bounds = array<i64: 1, 128>}, {pipeline_mode = #tpu.pipeline_mode<synchronous>, transform_indices = @transform_9, window_bounds = array<i64: 128, 384>}, {pipeline_mode = #tpu.pipeline_mode<synchronous>, transform_indices = @transform_10, window_bounds = array<i64: 384, 128>}, {pipeline_mode = #tpu.pipeline_mode<synchronous>, transform_indices = @transform_11, window_bounds = array<i64: 1, 128>}, {pipeline_mode = #tpu.pipeline_mode<synchronous>, transform_indices = @transform_12, window_bounds = array<i64: 1, 128>}, {transform_indices = @transform_13, window_bounds = array<i64: 1, 4, 128>}]} {
    %c0 = arith.constant 0 : index
    %c0_0 = arith.constant 0 : index
    %c0_1 = arith.constant 0 : index
    %0 = vector.load %arg1[%c0, %c0_0, %c0_1] : memref<1x4x128xbf16, #tpu.memory_space<vmem>>, vector<1x4x128xbf16>
    %1 = vector.shape_cast %0 : vector<1x4x128xbf16> to vector<4x128xbf16>
    %c0_2 = arith.constant 0 : index
    %c0_3 = arith.constant 0 : index
    %2 = vector.load %arg2[%c0_2, %c0_3] : memref<128x384xbf16, #tpu.memory_space<vmem>>, vector<128x384xbf16>
    %cst = arith.constant dense<0.000000e+00> : vector<4x384xf32>
    %3 = tpu.matmul %1, %2, %cst {dimension_numbers = #tpu.dot_dimension_numbers<[1], [0], [0], [1], [0, 0, 1, 1], [], []>} : vector<4x128xbf16>, vector<128x384xbf16>, vector<4x384xf32> -> vector<4x384xf32>
    %c0_4 = arith.constant 0 : index
    %c0_5 = arith.constant 0 : index
    %4 = vector.load %arg3[%c0_4, %c0_5] : memref<1x384xf32, #tpu.memory_space<vmem>>, vector<1x384xf32>
    %5 = vector.broadcast %4 : vector<1x384xf32> to vector<4x384xf32>
    %6 = arith.mulf %3, %5 : vector<4x384xf32>
    %c0_6 = arith.constant 0 : index
    %c0_7 = arith.constant 0 : index
    %7 = vector.load %arg4[%c0_6, %c0_7] : memref<1x384xf32, #tpu.memory_space<vmem>>, vector<1x384xf32>
    %8 = vector.broadcast %7 : vector<1x384xf32> to vector<4x384xf32>
    %9 = arith.addf %6, %8 : vector<4x384xf32>
    %10 = arith.negf %9 : vector<4x384xf32>
    %11 = math.exp %10 : vector<4x384xf32>
    %cst_8 = arith.constant 1.000000e+00 : f32
    %12 = vector.broadcast %cst_8 : f32 to vector<4x384xf32>
    %13 = arith.addf %12, %11 : vector<4x384xf32>
    %14 = arith.divf %12, %13 : vector<4x384xf32>
    %15 = arith.mulf %9, %14 : vector<4x384xf32>
    %cst_9 = arith.constant 0.000000e+00 : f32
    %16 = vector.broadcast %cst_9 : f32 to vector<28x384xf32>
    %c0_10 = arith.constant 0 : index
    %c0_11 = arith.constant 0 : index
    %17 = vector.load %arg15[%c0_10, %c0_11] : memref<28x384xf32, #tpu.memory_space<vmem>>, vector<28x384xf32>
    tpu.vector_store %arg15[%c0_10, %c0_11], %16 {strides = array<i32>} : memref<28x384xf32, #tpu.memory_space<vmem>>, vector<28x384xf32>,
    %c12 = arith.constant 12 : index
    %c0_12 = arith.constant 0 : index
    %18 = vector.load %arg15[%c12, %c0_12] : memref<28x384xf32, #tpu.memory_space<vmem>>, vector<4x384xf32>
    tpu.vector_store %arg15[%c12, %c0_12], %15 {strides = array<i32>} : memref<28x384xf32, #tpu.memory_space<vmem>>, vector<4x384xf32>,
    %19 = tpu.iota {dimensions = array<i32: 0>} : vector<4x1xi32>
    %c2_i32 = arith.constant 2 : i32
    %c0_i32 = arith.constant 0 : i32
    %20 = arith.cmpi eq, %c2_i32, %c0_i32 : i32
    %c1_i32 = arith.constant 1 : i32
    %21 = arith.select %20, %c1_i32, %c2_i32 : i32
    %22 = vector.broadcast %21 : i32 to vector<4x1xi32>
    %23 = arith.remsi %19, %22 : vector<4x1xi32>
    %c0_i32_13 = arith.constant 0 : i32
    %24 = vector.broadcast %c0_i32_13 : i32 to vector<4x1xi32>
    %25 = arith.cmpi ne, %23, %24 : vector<4x1xi32>
    %c0_i32_14 = arith.constant 0 : i32
    %26 = vector.broadcast %c0_i32_14 : i32 to vector<4x1xi32>
    %27 = arith.cmpi slt, %23, %26 : vector<4x1xi32>
    %c0_i32_15 = arith.constant 0 : i32
    %28 = arith.cmpi slt, %21, %c0_i32_15 : i32
    %29 = vector.broadcast %28 : i1 to vector<4x1xi1>
    %30 = vector.broadcast %29 : vector<4x1xi1> to vector<4x1xi1>
    %31 = arith.xori %27, %30 : vector<4x1xi1>
    %32 = arith.andi %31, %25 : vector<4x1xi1>
    %33 = vector.broadcast %21 : i32 to vector<4x1xi32>
    %34 = arith.addi %23, %33 : vector<4x1xi32>
    %35 = arith.select %32, %34, %23 : vector<4x1xi1>, vector<4x1xi32>
    %c0_16 = arith.constant 0 : index
    %c0_17 = arith.constant 0 : index
    %c0_18 = arith.constant 0 : index
    %36 = vector.load %arg5[%c0_16, %c0_17, %c0_18] : memref<25x1x384xf32, #tpu.memory_space<vmem>>, vector<25x1x384xf32>
    %cst_19 = arith.constant 0.000000e+00 : f32
    %37 = vector.broadcast %cst_19 : f32 to vector<4x384xf32>
    %c6 = arith.constant 6 : index
    %c0_20 = arith.constant 0 : index
    %38 = vector.load %arg15[%c6, %c0_20] : memref<28x384xf32, #tpu.memory_space<vmem>>, vector<4x384xf32>
    %c2_i32_21 = arith.constant 2 : i32
    %39 = vector.broadcast %c2_i32_21 : i32 to vector<4x1xi32>
    %40 = arith.cmpi sge, %35, %39 : vector<4x1xi32>
    %c4_i32 = arith.constant 4 : i32
    %41 = vector.broadcast %c4_i32 : i32 to vector<4x1xi32>
    %42 = arith.cmpi slt, %35, %41 : vector<4x1xi32>
    %43 = arith.andi %40, %42 : vector<4x1xi1>
    %cst_22 = arith.constant 0.000000e+00 : f32
    %44 = vector.shape_cast %43 : vector<4x1xi1> to vector<4x1xi1>
    %45 = vector.broadcast %44 : vector<4x1xi1> to vector<4x384xi1>
    %46 = vector.broadcast %cst_22 : f32 to vector<4x384xf32>
    %47 = arith.select %45, %38, %46 : vector<4x384xi1>, vector<4x384xf32>
    %48 = vector.extract_strided_slice %36 {offsets = [0, 0, 0], sizes = [1, 1, 384], strides = [1, 1, 1]} : vector<25x1x384xf32> to vector<1x1x384xf32>
    %49 = vector.shape_cast %48 : vector<1x1x384xf32> to vector<1x384xf32>
    %50 = vector.broadcast %49 : vector<1x384xf32> to vector<4x384xf32>
    %51 = arith.mulf %47, %50 : vector<4x384xf32>
    %52 = arith.addf %37, %51 : vector<4x384xf32>
    %c7 = arith.constant 7 : index
    %c0_23 = arith.constant 0 : index
    %53 = vector.load %arg15[%c7, %c0_23] : memref<28x384xf32, #tpu.memory_space<vmem>>, vector<4x384xf32>
    %c1_i32_24 = arith.constant 1 : i32
    %54 = vector.broadcast %c1_i32_24 : i32 to vector<4x1xi32>
    %55 = arith.cmpi sge, %35, %54 : vector<4x1xi32>
    %c3_i32 = arith.constant 3 : i32
    %56 = vector.broadcast %c3_i32 : i32 to vector<4x1xi32>
    %57 = arith.cmpi slt, %35, %56 : vector<4x1xi32>
    %58 = arith.andi %55, %57 : vector<4x1xi1>
    %cst_25 = arith.constant 0.000000e+00 : f32
    %59 = vector.shape_cast %58 : vector<4x1xi1> to vector<4x1xi1>
    %60 = vector.broadcast %59 : vector<4x1xi1> to vector<4x384xi1>
    %61 = vector.broadcast %cst_25 : f32 to vector<4x384xf32>
    %62 = arith.select %60, %53, %61 : vector<4x384xi1>, vector<4x384xf32>
    %63 = vector.extract_strided_slice %36 {offsets = [1, 0, 0], sizes = [1, 1, 384], strides = [1, 1, 1]} : vector<25x1x384xf32> to vector<1x1x384xf32>
    %64 = vector.shape_cast %63 : vector<1x1x384xf32> to vector<1x384xf32>
    %65 = vector.broadcast %64 : vector<1x384xf32> to vector<4x384xf32>
    %66 = arith.mulf %62, %65 : vector<4x384xf32>
    %67 = arith.addf %52, %66 : vector<4x384xf32>
    %c8 = arith.constant 8 : index
    %c0_26 = arith.constant 0 : index
    %68 = vector.load %arg15[%c8, %c0_26] : memref<28x384xf32, #tpu.memory_space<vmem>>, vector<4x384xf32>
    %69 = vector.extract_strided_slice %36 {offsets = [2, 0, 0], sizes = [1, 1, 384], strides = [1, 1, 1]} : vector<25x1x384xf32> to vector<1x1x384xf32>
    %70 = vector.shape_cast %69 : vector<1x1x384xf32> to vector<1x384xf32>
    %71 = vector.broadcast %70 : vector<1x384xf32> to vector<4x384xf32>
    %72 = arith.mulf %68, %71 : vector<4x384xf32>
    %73 = arith.addf %67, %72 : vector<4x384xf32>
    %c9 = arith.constant 9 : index
    %c0_27 = arith.constant 0 : index
    %74 = vector.load %arg15[%c9, %c0_27] : memref<28x384xf32, #tpu.memory_space<vmem>>, vector<4x384xf32>
    %c-1_i32 = arith.constant -1 : i32
    %75 = vector.broadcast %c-1_i32 : i32 to vector<4x1xi32>
    %76 = arith.cmpi sge, %35, %75 : vector<4x1xi32>
    %c1_i32_28 = arith.constant 1 : i32
    %77 = vector.broadcast %c1_i32_28 : i32 to vector<4x1xi32>
    %78 = arith.cmpi slt, %35, %77 : vector<4x1xi32>
    %79 = arith.andi %76, %78 : vector<4x1xi1>
    %cst_29 = arith.constant 0.000000e+00 : f32
    %80 = vector.shape_cast %79 : vector<4x1xi1> to vector<4x1xi1>
    %81 = vector.broadcast %80 : vector<4x1xi1> to vector<4x384xi1>
    %82 = vector.broadcast %cst_29 : f32 to vector<4x384xf32>
    %83 = arith.select %81, %74, %82 : vector<4x384xi1>, vector<4x384xf32>
    %84 = vector.extract_strided_slice %36 {offsets = [3, 0, 0], sizes = [1, 1, 384], strides = [1, 1, 1]} : vector<25x1x384xf32> to vector<1x1x384xf32>
    %85 = vector.shape_cast %84 : vector<1x1x384xf32> to vector<1x384xf32>
    %86 = vector.broadcast %85 : vector<1x384xf32> to vector<4x384xf32>
    %87 = arith.mulf %83, %86 : vector<4x384xf32>
    %88 = arith.addf %73, %87 : vector<4x384xf32>
    %c10 = arith.constant 10 : index
    %c0_30 = arith.constant 0 : index
    %89 = vector.load %arg15[%c10, %c0_30] : memref<28x384xf32, #tpu.memory_space<vmem>>, vector<4x384xf32>
    %c-2_i32 = arith.constant -2 : i32
    %90 = vector.broadcast %c-2_i32 : i32 to vector<4x1xi32>
    %91 = arith.cmpi sge, %35, %90 : vector<4x1xi32>
    %c0_i32_31 = arith.constant 0 : i32
    %92 = vector.broadcast %c0_i32_31 : i32 to vector<4x1xi32>
    %93 = arith.cmpi slt, %35, %92 : vector<4x1xi32>
    %94 = arith.andi %91, %93 : vector<4x1xi1>
    %cst_32 = arith.constant 0.000000e+00 : f32
    %95 = vector.shape_cast %94 : vector<4x1xi1> to vector<4x1xi1>
    %96 = vector.broadcast %95 : vector<4x1xi1> to vector<4x384xi1>
    %97 = vector.broadcast %cst_32 : f32 to vector<4x384xf32>
    %98 = arith.select %96, %89, %97 : vector<4x384xi1>, vector<4x384xf32>
    %99 = vector.extract_strided_slice %36 {offsets = [4, 0, 0], sizes = [1, 1, 384], strides = [1, 1, 1]} : vector<25x1x384xf32> to vector<1x1x384xf32>
    %100 = vector.shape_cast %99 : vector<1x1x384xf32> to vector<1x384xf32>
    %101 = vector.broadcast %100 : vector<1x384xf32> to vector<4x384xf32>
    %102 = arith.mulf %98, %101 : vector<4x384xf32>
    %103 = arith.addf %88, %102 : vector<4x384xf32>
    %c8_33 = arith.constant 8 : index
    %c0_34 = arith.constant 0 : index
    %104 = vector.load %arg15[%c8_33, %c0_34] : memref<28x384xf32, #tpu.memory_space<vmem>>, vector<4x384xf32>
    %c2_i32_35 = arith.constant 2 : i32
    %105 = vector.broadcast %c2_i32_35 : i32 to vector<4x1xi32>
    %106 = arith.cmpi sge, %35, %105 : vector<4x1xi32>
    %c4_i32_36 = arith.constant 4 : i32
    %107 = vector.broadcast %c4_i32_36 : i32 to vector<4x1xi32>
    %108 = arith.cmpi slt, %35, %107 : vector<4x1xi32>
    %109 = arith.andi %106, %108 : vector<4x1xi1>
    %cst_37 = arith.constant 0.000000e+00 : f32
    %110 = vector.shape_cast %109 : vector<4x1xi1> to vector<4x1xi1>
    %111 = vector.broadcast %110 : vector<4x1xi1> to vector<4x384xi1>
    %112 = vector.broadcast %cst_37 : f32 to vector<4x384xf32>
    %113 = arith.select %111, %104, %112 : vector<4x384xi1>, vector<4x384xf32>
    %114 = vector.extract_strided_slice %36 {offsets = [5, 0, 0], sizes = [1, 1, 384], strides = [1, 1, 1]} : vector<25x1x384xf32> to vector<1x1x384xf32>
    %115 = vector.shape_cast %114 : vector<1x1x384xf32> to vector<1x384xf32>
    %116 = vector.broadcast %115 : vector<1x384xf32> to vector<4x384xf32>
    %117 = arith.mulf %113, %116 : vector<4x384xf32>
    %118 = arith.addf %103, %117 : vector<4x384xf32>
    %c9_38 = arith.constant 9 : index
    %c0_39 = arith.constant 0 : index
    %119 = vector.load %arg15[%c9_38, %c0_39] : memref<28x384xf32, #tpu.memory_space<vmem>>, vector<4x384xf32>
    %c1_i32_40 = arith.constant 1 : i32
    %120 = vector.broadcast %c1_i32_40 : i32 to vector<4x1xi32>
    %121 = arith.cmpi sge, %35, %120 : vector<4x1xi32>
    %c3_i32_41 = arith.constant 3 : i32
    %122 = vector.broadcast %c3_i32_41 : i32 to vector<4x1xi32>
    %123 = arith.cmpi slt, %35, %122 : vector<4x1xi32>
    %124 = arith.andi %121, %123 : vector<4x1xi1>
    %cst_42 = arith.constant 0.000000e+00 : f32
    %125 = vector.shape_cast %124 : vector<4x1xi1> to vector<4x1xi1>
    %126 = vector.broadcast %125 : vector<4x1xi1> to vector<4x384xi1>
    %127 = vector.broadcast %cst_42 : f32 to vector<4x384xf32>
    %128 = arith.select %126, %119, %127 : vector<4x384xi1>, vector<4x384xf32>
    %129 = vector.extract_strided_slice %36 {offsets = [6, 0, 0], sizes = [1, 1, 384], strides = [1, 1, 1]} : vector<25x1x384xf32> to vector<1x1x384xf32>
    %130 = vector.shape_cast %129 : vector<1x1x384xf32> to vector<1x384xf32>
    %131 = vector.broadcast %130 : vector<1x384xf32> to vector<4x384xf32>
    %132 = arith.mulf %128, %131 : vector<4x384xf32>
    %133 = arith.addf %118, %132 : vector<4x384xf32>
    %c10_43 = arith.constant 10 : index
    %c0_44 = arith.constant 0 : index
    %134 = vector.load %arg15[%c10_43, %c0_44] : memref<28x384xf32, #tpu.memory_space<vmem>>, vector<4x384xf32>
    %135 = vector.extract_strided_slice %36 {offsets = [7, 0, 0], sizes = [1, 1, 384], strides = [1, 1, 1]} : vector<25x1x384xf32> to vector<1x1x384xf32>
    %136 = vector.shape_cast %135 : vector<1x1x384xf32> to vector<1x384xf32>
    %137 = vector.broadcast %136 : vector<1x384xf32> to vector<4x384xf32>
    %138 = arith.mulf %134, %137 : vector<4x384xf32>
    %139 = arith.addf %133, %138 : vector<4x384xf32>
    %c11 = arith.constant 11 : index
    %c0_45 = arith.constant 0 : index
    %140 = vector.load %arg15[%c11, %c0_45] : memref<28x384xf32, #tpu.memory_space<vmem>>, vector<4x384xf32>
    %c-1_i32_46 = arith.constant -1 : i32
    %141 = vector.broadcast %c-1_i32_46 : i32 to vector<4x1xi32>
    %142 = arith.cmpi sge, %35, %141 : vector<4x1xi32>
    %c1_i32_47 = arith.constant 1 : i32
    %143 = vector.broadcast %c1_i32_47 : i32 to vector<4x1xi32>
    %144 = arith.cmpi slt, %35, %143 : vector<4x1xi32>
    %145 = arith.andi %142, %144 : vector<4x1xi1>
    %cst_48 = arith.constant 0.000000e+00 : f32
    %146 = vector.shape_cast %145 : vector<4x1xi1> to vector<4x1xi1>
    %147 = vector.broadcast %146 : vector<4x1xi1> to vector<4x384xi1>
    %148 = vector.broadcast %cst_48 : f32 to vector<4x384xf32>
    %149 = arith.select %147, %140, %148 : vector<4x384xi1>, vector<4x384xf32>
    %150 = vector.extract_strided_slice %36 {offsets = [8, 0, 0], sizes = [1, 1, 384], strides = [1, 1, 1]} : vector<25x1x384xf32> to vector<1x1x384xf32>
    %151 = vector.shape_cast %150 : vector<1x1x384xf32> to vector<1x384xf32>
    %152 = vector.broadcast %151 : vector<1x384xf32> to vector<4x384xf32>
    %153 = arith.mulf %149, %152 : vector<4x384xf32>
    %154 = arith.addf %139, %153 : vector<4x384xf32>
    %c12_49 = arith.constant 12 : index
    %c0_50 = arith.constant 0 : index
    %155 = vector.load %arg15[%c12_49, %c0_50] : memref<28x384xf32, #tpu.memory_space<vmem>>, vector<4x384xf32>
    %c-2_i32_51 = arith.constant -2 : i32
    %156 = vector.broadcast %c-2_i32_51 : i32 to vector<4x1xi32>
    %157 = arith.cmpi sge, %35, %156 : vector<4x1xi32>
    %c0_i32_52 = arith.constant 0 : i32
    %158 = vector.broadcast %c0_i32_52 : i32 to vector<4x1xi32>
    %159 = arith.cmpi slt, %35, %158 : vector<4x1xi32>
    %160 = arith.andi %157, %159 : vector<4x1xi1>
    %cst_53 = arith.constant 0.000000e+00 : f32
    %161 = vector.shape_cast %160 : vector<4x1xi1> to vector<4x1xi1>
    %162 = vector.broadcast %161 : vector<4x1xi1> to vector<4x384xi1>
    %163 = vector.broadcast %cst_53 : f32 to vector<4x384xf32>
    %164 = arith.select %162, %155, %163 : vector<4x384xi1>, vector<4x384xf32>
    %165 = vector.extract_strided_slice %36 {offsets = [9, 0, 0], sizes = [1, 1, 384], strides = [1, 1, 1]} : vector<25x1x384xf32> to vector<1x1x384xf32>
    %166 = vector.shape_cast %165 : vector<1x1x384xf32> to vector<1x384xf32>
    %167 = vector.broadcast %166 : vector<1x384xf32> to vector<4x384xf32>
    %168 = arith.mulf %164, %167 : vector<4x384xf32>
    %169 = arith.addf %154, %168 : vector<4x384xf32>
    %c10_54 = arith.constant 10 : index
    %c0_55 = arith.constant 0 : index
    %170 = vector.load %arg15[%c10_54, %c0_55] : memref<28x384xf32, #tpu.memory_space<vmem>>, vector<4x384xf32>
    %c2_i32_56 = arith.constant 2 : i32
    %171 = vector.broadcast %c2_i32_56 : i32 to vector<4x1xi32>
    %172 = arith.cmpi sge, %35, %171 : vector<4x1xi32>
    %c4_i32_57 = arith.constant 4 : i32
    %173 = vector.broadcast %c4_i32_57 : i32 to vector<4x1xi32>
    %174 = arith.cmpi slt, %35, %173 : vector<4x1xi32>
    %175 = arith.andi %172, %174 : vector<4x1xi1>
    %cst_58 = arith.constant 0.000000e+00 : f32
    %176 = vector.shape_cast %175 : vector<4x1xi1> to vector<4x1xi1>
    %177 = vector.broadcast %176 : vector<4x1xi1> to vector<4x384xi1>
    %178 = vector.broadcast %cst_58 : f32 to vector<4x384xf32>
    %179 = arith.select %177, %170, %178 : vector<4x384xi1>, vector<4x384xf32>
    %180 = vector.extract_strided_slice %36 {offsets = [10, 0, 0], sizes = [1, 1, 384], strides = [1, 1, 1]} : vector<25x1x384xf32> to vector<1x1x384xf32>
    %181 = vector.shape_cast %180 : vector<1x1x384xf32> to vector<1x384xf32>
    %182 = vector.broadcast %181 : vector<1x384xf32> to vector<4x384xf32>
    %183 = arith.mulf %179, %182 : vector<4x384xf32>
    %184 = arith.addf %169, %183 : vector<4x384xf32>
    %c11_59 = arith.constant 11 : index
    %c0_60 = arith.constant 0 : index
    %185 = vector.load %arg15[%c11_59, %c0_60] : memref<28x384xf32, #tpu.memory_space<vmem>>, vector<4x384xf32>
    %c1_i32_61 = arith.constant 1 : i32
    %186 = vector.broadcast %c1_i32_61 : i32 to vector<4x1xi32>
    %187 = arith.cmpi sge, %35, %186 : vector<4x1xi32>
    %c3_i32_62 = arith.constant 3 : i32
    %188 = vector.broadcast %c3_i32_62 : i32 to vector<4x1xi32>
    %189 = arith.cmpi slt, %35, %188 : vector<4x1xi32>
    %190 = arith.andi %187, %189 : vector<4x1xi1>
    %cst_63 = arith.constant 0.000000e+00 : f32
    %191 = vector.shape_cast %190 : vector<4x1xi1> to vector<4x1xi1>
    %192 = vector.broadcast %191 : vector<4x1xi1> to vector<4x384xi1>
    %193 = vector.broadcast %cst_63 : f32 to vector<4x384xf32>
    %194 = arith.select %192, %185, %193 : vector<4x384xi1>, vector<4x384xf32>
    %195 = vector.extract_strided_slice %36 {offsets = [11, 0, 0], sizes = [1, 1, 384], strides = [1, 1, 1]} : vector<25x1x384xf32> to vector<1x1x384xf32>
    %196 = vector.shape_cast %195 : vector<1x1x384xf32> to vector<1x384xf32>
    %197 = vector.broadcast %196 : vector<1x384xf32> to vector<4x384xf32>
    %198 = arith.mulf %194, %197 : vector<4x384xf32>
    %199 = arith.addf %184, %198 : vector<4x384xf32>
    %c12_64 = arith.constant 12 : index
    %c0_65 = arith.constant 0 : index
    %200 = vector.load %arg15[%c12_64, %c0_65] : memref<28x384xf32, #tpu.memory_space<vmem>>, vector<4x384xf32>
    %201 = vector.extract_strided_slice %36 {offsets = [12, 0, 0], sizes = [1, 1, 384], strides = [1, 1, 1]} : vector<25x1x384xf32> to vector<1x1x384xf32>
    %202 = vector.shape_cast %201 : vector<1x1x384xf32> to vector<1x384xf32>
    %203 = vector.broadcast %202 : vector<1x384xf32> to vector<4x384xf32>
    %204 = arith.mulf %200, %203 : vector<4x384xf32>
    %205 = arith.addf %199, %204 : vector<4x384xf32>
    %c13 = arith.constant 13 : index
    %c0_66 = arith.constant 0 : index
    %206 = vector.load %arg15[%c13, %c0_66] : memref<28x384xf32, #tpu.memory_space<vmem>>, vector<4x384xf32>
    %c-1_i32_67 = arith.constant -1 : i32
    %207 = vector.broadcast %c-1_i32_67 : i32 to vector<4x1xi32>
    %208 = arith.cmpi sge, %35, %207 : vector<4x1xi32>
    %c1_i32_68 = arith.constant 1 : i32
    %209 = vector.broadcast %c1_i32_68 : i32 to vector<4x1xi32>
    %210 = arith.cmpi slt, %35, %209 : vector<4x1xi32>
    %211 = arith.andi %208, %210 : vector<4x1xi1>
    %cst_69 = arith.constant 0.000000e+00 : f32
    %212 = vector.shape_cast %211 : vector<4x1xi1> to vector<4x1xi1>
    %213 = vector.broadcast %212 : vector<4x1xi1> to vector<4x384xi1>
    %214 = vector.broadcast %cst_69 : f32 to vector<4x384xf32>
    %215 = arith.select %213, %206, %214 : vector<4x384xi1>, vector<4x384xf32>
    %216 = vector.extract_strided_slice %36 {offsets = [13, 0, 0], sizes = [1, 1, 384], strides = [1, 1, 1]} : vector<25x1x384xf32> to vector<1x1x384xf32>
    %217 = vector.shape_cast %216 : vector<1x1x384xf32> to vector<1x384xf32>
    %218 = vector.broadcast %217 : vector<1x384xf32> to vector<4x384xf32>
    %219 = arith.mulf %215, %218 : vector<4x384xf32>
    %220 = arith.addf %205, %219 : vector<4x384xf32>
    %c14 = arith.constant 14 : index
    %c0_70 = arith.constant 0 : index
    %221 = vector.load %arg15[%c14, %c0_70] : memref<28x384xf32, #tpu.memory_space<vmem>>, vector<4x384xf32>
    %c-2_i32_71 = arith.constant -2 : i32
    %222 = vector.broadcast %c-2_i32_71 : i32 to vector<4x1xi32>
    %223 = arith.cmpi sge, %35, %222 : vector<4x1xi32>
    %c0_i32_72 = arith.constant 0 : i32
    %224 = vector.broadcast %c0_i32_72 : i32 to vector<4x1xi32>
    %225 = arith.cmpi slt, %35, %224 : vector<4x1xi32>
    %226 = arith.andi %223, %225 : vector<4x1xi1>
    %cst_73 = arith.constant 0.000000e+00 : f32
    %227 = vector.shape_cast %226 : vector<4x1xi1> to vector<4x1xi1>
    %228 = vector.broadcast %227 : vector<4x1xi1> to vector<4x384xi1>
    %229 = vector.broadcast %cst_73 : f32 to vector<4x384xf32>
    %230 = arith.select %228, %221, %229 : vector<4x384xi1>, vector<4x384xf32>
    %231 = vector.extract_strided_slice %36 {offsets = [14, 0, 0], sizes = [1, 1, 384], strides = [1, 1, 1]} : vector<25x1x384xf32> to vector<1x1x384xf32>
    %232 = vector.shape_cast %231 : vector<1x1x384xf32> to vector<1x384xf32>
    %233 = vector.broadcast %232 : vector<1x384xf32> to vector<4x384xf32>
    %234 = arith.mulf %230, %233 : vector<4x384xf32>
    %235 = arith.addf %220, %234 : vector<4x384xf32>
    %c12_74 = arith.constant 12 : index
    %c0_75 = arith.constant 0 : index
    %236 = vector.load %arg15[%c12_74, %c0_75] : memref<28x384xf32, #tpu.memory_space<vmem>>, vector<4x384xf32>
    %c2_i32_76 = arith.constant 2 : i32
    %237 = vector.broadcast %c2_i32_76 : i32 to vector<4x1xi32>
    %238 = arith.cmpi sge, %35, %237 : vector<4x1xi32>
    %c4_i32_77 = arith.constant 4 : i32
    %239 = vector.broadcast %c4_i32_77 : i32 to vector<4x1xi32>
    %240 = arith.cmpi slt, %35, %239 : vector<4x1xi32>
    %241 = arith.andi %238, %240 : vector<4x1xi1>
    %cst_78 = arith.constant 0.000000e+00 : f32
    %242 = vector.shape_cast %241 : vector<4x1xi1> to vector<4x1xi1>
    %243 = vector.broadcast %242 : vector<4x1xi1> to vector<4x384xi1>
    %244 = vector.broadcast %cst_78 : f32 to vector<4x384xf32>
    %245 = arith.select %243, %236, %244 : vector<4x384xi1>, vector<4x384xf32>
    %246 = vector.extract_strided_slice %36 {offsets = [15, 0, 0], sizes = [1, 1, 384], strides = [1, 1, 1]} : vector<25x1x384xf32> to vector<1x1x384xf32>
    %247 = vector.shape_cast %246 : vector<1x1x384xf32> to vector<1x384xf32>
    %248 = vector.broadcast %247 : vector<1x384xf32> to vector<4x384xf32>
    %249 = arith.mulf %245, %248 : vector<4x384xf32>
    %250 = arith.addf %235, %249 : vector<4x384xf32>
    %c13_79 = arith.constant 13 : index
    %c0_80 = arith.constant 0 : index
    %251 = vector.load %arg15[%c13_79, %c0_80] : memref<28x384xf32, #tpu.memory_space<vmem>>, vector<4x384xf32>
    %c1_i32_81 = arith.constant 1 : i32
    %252 = vector.broadcast %c1_i32_81 : i32 to vector<4x1xi32>
    %253 = arith.cmpi sge, %35, %252 : vector<4x1xi32>
    %c3_i32_82 = arith.constant 3 : i32
    %254 = vector.broadcast %c3_i32_82 : i32 to vector<4x1xi32>
    %255 = arith.cmpi slt, %35, %254 : vector<4x1xi32>
    %256 = arith.andi %253, %255 : vector<4x1xi1>
    %cst_83 = arith.constant 0.000000e+00 : f32
    %257 = vector.shape_cast %256 : vector<4x1xi1> to vector<4x1xi1>
    %258 = vector.broadcast %257 : vector<4x1xi1> to vector<4x384xi1>
    %259 = vector.broadcast %cst_83 : f32 to vector<4x384xf32>
    %260 = arith.select %258, %251, %259 : vector<4x384xi1>, vector<4x384xf32>
    %261 = vector.extract_strided_slice %36 {offsets = [16, 0, 0], sizes = [1, 1, 384], strides = [1, 1, 1]} : vector<25x1x384xf32> to vector<1x1x384xf32>
    %262 = vector.shape_cast %261 : vector<1x1x384xf32> to vector<1x384xf32>
    %263 = vector.broadcast %262 : vector<1x384xf32> to vector<4x384xf32>
    %264 = arith.mulf %260, %263 : vector<4x384xf32>
    %265 = arith.addf %250, %264 : vector<4x384xf32>
    %c14_84 = arith.constant 14 : index
    %c0_85 = arith.constant 0 : index
    %266 = vector.load %arg15[%c14_84, %c0_85] : memref<28x384xf32, #tpu.memory_space<vmem>>, vector<4x384xf32>
    %267 = vector.extract_strided_slice %36 {offsets = [17, 0, 0], sizes = [1, 1, 384], strides = [1, 1, 1]} : vector<25x1x384xf32> to vector<1x1x384xf32>
    %268 = vector.shape_cast %267 : vector<1x1x384xf32> to vector<1x384xf32>
    %269 = vector.broadcast %268 : vector<1x384xf32> to vector<4x384xf32>
    %270 = arith.mulf %266, %269 : vector<4x384xf32>
    %271 = arith.addf %265, %270 : vector<4x384xf32>
    %c15 = arith.constant 15 : index
    %c0_86 = arith.constant 0 : index
    %272 = vector.load %arg15[%c15, %c0_86] : memref<28x384xf32, #tpu.memory_space<vmem>>, vector<4x384xf32>
    %c-1_i32_87 = arith.constant -1 : i32
    %273 = vector.broadcast %c-1_i32_87 : i32 to vector<4x1xi32>
    %274 = arith.cmpi sge, %35, %273 : vector<4x1xi32>
    %c1_i32_88 = arith.constant 1 : i32
    %275 = vector.broadcast %c1_i32_88 : i32 to vector<4x1xi32>
    %276 = arith.cmpi slt, %35, %275 : vector<4x1xi32>
    %277 = arith.andi %274, %276 : vector<4x1xi1>
    %cst_89 = arith.constant 0.000000e+00 : f32
    %278 = vector.shape_cast %277 : vector<4x1xi1> to vector<4x1xi1>
    %279 = vector.broadcast %278 : vector<4x1xi1> to vector<4x384xi1>
    %280 = vector.broadcast %cst_89 : f32 to vector<4x384xf32>
    %281 = arith.select %279, %272, %280 : vector<4x384xi1>, vector<4x384xf32>
    %282 = vector.extract_strided_slice %36 {offsets = [18, 0, 0], sizes = [1, 1, 384], strides = [1, 1, 1]} : vector<25x1x384xf32> to vector<1x1x384xf32>
    %283 = vector.shape_cast %282 : vector<1x1x384xf32> to vector<1x384xf32>
    %284 = vector.broadcast %283 : vector<1x384xf32> to vector<4x384xf32>
    %285 = arith.mulf %281, %284 : vector<4x384xf32>
    %286 = arith.addf %271, %285 : vector<4x384xf32>
    %c16 = arith.constant 16 : index
    %c0_90 = arith.constant 0 : index
    %287 = vector.load %arg15[%c16, %c0_90] : memref<28x384xf32, #tpu.memory_space<vmem>>, vector<4x384xf32>
    %c-2_i32_91 = arith.constant -2 : i32
    %288 = vector.broadcast %c-2_i32_91 : i32 to vector<4x1xi32>
    %289 = arith.cmpi sge, %35, %288 : vector<4x1xi32>
    %c0_i32_92 = arith.constant 0 : i32
    %290 = vector.broadcast %c0_i32_92 : i32 to vector<4x1xi32>
    %291 = arith.cmpi slt, %35, %290 : vector<4x1xi32>
    %292 = arith.andi %289, %291 : vector<4x1xi1>
    %cst_93 = arith.constant 0.000000e+00 : f32
    %293 = vector.shape_cast %292 : vector<4x1xi1> to vector<4x1xi1>
    %294 = vector.broadcast %293 : vector<4x1xi1> to vector<4x384xi1>
    %295 = vector.broadcast %cst_93 : f32 to vector<4x384xf32>
    %296 = arith.select %294, %287, %295 : vector<4x384xi1>, vector<4x384xf32>
    %297 = vector.extract_strided_slice %36 {offsets = [19, 0, 0], sizes = [1, 1, 384], strides = [1, 1, 1]} : vector<25x1x384xf32> to vector<1x1x384xf32>
    %298 = vector.shape_cast %297 : vector<1x1x384xf32> to vector<1x384xf32>
    %299 = vector.broadcast %298 : vector<1x384xf32> to vector<4x384xf32>
    %300 = arith.mulf %296, %299 : vector<4x384xf32>
    %301 = arith.addf %286, %300 : vector<4x384xf32>
    %c14_94 = arith.constant 14 : index
    %c0_95 = arith.constant 0 : index
    %302 = vector.load %arg15[%c14_94, %c0_95] : memref<28x384xf32, #tpu.memory_space<vmem>>, vector<4x384xf32>
    %c2_i32_96 = arith.constant 2 : i32
    %303 = vector.broadcast %c2_i32_96 : i32 to vector<4x1xi32>
    %304 = arith.cmpi sge, %35, %303 : vector<4x1xi32>
    %c4_i32_97 = arith.constant 4 : i32
    %305 = vector.broadcast %c4_i32_97 : i32 to vector<4x1xi32>
    %306 = arith.cmpi slt, %35, %305 : vector<4x1xi32>
    %307 = arith.andi %304, %306 : vector<4x1xi1>
    %cst_98 = arith.constant 0.000000e+00 : f32
    %308 = vector.shape_cast %307 : vector<4x1xi1> to vector<4x1xi1>
    %309 = vector.broadcast %308 : vector<4x1xi1> to vector<4x384xi1>
    %310 = vector.broadcast %cst_98 : f32 to vector<4x384xf32>
    %311 = arith.select %309, %302, %310 : vector<4x384xi1>, vector<4x384xf32>
    %312 = vector.extract_strided_slice %36 {offsets = [20, 0, 0], sizes = [1, 1, 384], strides = [1, 1, 1]} : vector<25x1x384xf32> to vector<1x1x384xf32>
    %313 = vector.shape_cast %312 : vector<1x1x384xf32> to vector<1x384xf32>
    %314 = vector.broadcast %313 : vector<1x384xf32> to vector<4x384xf32>
    %315 = arith.mulf %311, %314 : vector<4x384xf32>
    %316 = arith.addf %301, %315 : vector<4x384xf32>
    %c15_99 = arith.constant 15 : index
    %c0_100 = arith.constant 0 : index
    %317 = vector.load %arg15[%c15_99, %c0_100] : memref<28x384xf32, #tpu.memory_space<vmem>>, vector<4x384xf32>
    %c1_i32_101 = arith.constant 1 : i32
    %318 = vector.broadcast %c1_i32_101 : i32 to vector<4x1xi32>
    %319 = arith.cmpi sge, %35, %318 : vector<4x1xi32>
    %c3_i32_102 = arith.constant 3 : i32
    %320 = vector.broadcast %c3_i32_102 : i32 to vector<4x1xi32>
    %321 = arith.cmpi slt, %35, %320 : vector<4x1xi32>
    %322 = arith.andi %319, %321 : vector<4x1xi1>
    %cst_103 = arith.constant 0.000000e+00 : f32
    %323 = vector.shape_cast %322 : vector<4x1xi1> to vector<4x1xi1>
    %324 = vector.broadcast %323 : vector<4x1xi1> to vector<4x384xi1>
    %325 = vector.broadcast %cst_103 : f32 to vector<4x384xf32>
    %326 = arith.select %324, %317, %325 : vector<4x384xi1>, vector<4x384xf32>
    %327 = vector.extract_strided_slice %36 {offsets = [21, 0, 0], sizes = [1, 1, 384], strides = [1, 1, 1]} : vector<25x1x384xf32> to vector<1x1x384xf32>
    %328 = vector.shape_cast %327 : vector<1x1x384xf32> to vector<1x384xf32>
    %329 = vector.broadcast %328 : vector<1x384xf32> to vector<4x384xf32>
    %330 = arith.mulf %326, %329 : vector<4x384xf32>
    %331 = arith.addf %316, %330 : vector<4x384xf32>
    %c16_104 = arith.constant 16 : index
    %c0_105 = arith.constant 0 : index
    %332 = vector.load %arg15[%c16_104, %c0_105] : memref<28x384xf32, #tpu.memory_space<vmem>>, vector<4x384xf32>
    %333 = vector.extract_strided_slice %36 {offsets = [22, 0, 0], sizes = [1, 1, 384], strides = [1, 1, 1]} : vector<25x1x384xf32> to vector<1x1x384xf32>
    %334 = vector.shape_cast %333 : vector<1x1x384xf32> to vector<1x384xf32>
    %335 = vector.broadcast %334 : vector<1x384xf32> to vector<4x384xf32>
    %336 = arith.mulf %332, %335 : vector<4x384xf32>
    %337 = arith.addf %331, %336 : vector<4x384xf32>
    %c17 = arith.constant 17 : index
    %c0_106 = arith.constant 0 : index
    %338 = vector.load %arg15[%c17, %c0_106] : memref<28x384xf32, #tpu.memory_space<vmem>>, vector<4x384xf32>
    %c-1_i32_107 = arith.constant -1 : i32
    %339 = vector.broadcast %c-1_i32_107 : i32 to vector<4x1xi32>
    %340 = arith.cmpi sge, %35, %339 : vector<4x1xi32>
    %c1_i32_108 = arith.constant 1 : i32
    %341 = vector.broadcast %c1_i32_108 : i32 to vector<4x1xi32>
    %342 = arith.cmpi slt, %35, %341 : vector<4x1xi32>
    %343 = arith.andi %340, %342 : vector<4x1xi1>
    %cst_109 = arith.constant 0.000000e+00 : f32
    %344 = vector.shape_cast %343 : vector<4x1xi1> to vector<4x1xi1>
    %345 = vector.broadcast %344 : vector<4x1xi1> to vector<4x384xi1>
    %346 = vector.broadcast %cst_109 : f32 to vector<4x384xf32>
    %347 = arith.select %345, %338, %346 : vector<4x384xi1>, vector<4x384xf32>
    %348 = vector.extract_strided_slice %36 {offsets = [23, 0, 0], sizes = [1, 1, 384], strides = [1, 1, 1]} : vector<25x1x384xf32> to vector<1x1x384xf32>
    %349 = vector.shape_cast %348 : vector<1x1x384xf32> to vector<1x384xf32>
    %350 = vector.broadcast %349 : vector<1x384xf32> to vector<4x384xf32>
    %351 = arith.mulf %347, %350 : vector<4x384xf32>
    %352 = arith.addf %337, %351 : vector<4x384xf32>
    %c18 = arith.constant 18 : index
    %c0_110 = arith.constant 0 : index
    %353 = vector.load %arg15[%c18, %c0_110] : memref<28x384xf32, #tpu.memory_space<vmem>>, vector<4x384xf32>
    %c-2_i32_111 = arith.constant -2 : i32
    %354 = vector.broadcast %c-2_i32_111 : i32 to vector<4x1xi32>
    %355 = arith.cmpi sge, %35, %354 : vector<4x1xi32>
    %c0_i32_112 = arith.constant 0 : i32
    %356 = vector.broadcast %c0_i32_112 : i32 to vector<4x1xi32>
    %357 = arith.cmpi slt, %35, %356 : vector<4x1xi32>
    %358 = arith.andi %355, %357 : vector<4x1xi1>
    %cst_113 = arith.constant 0.000000e+00 : f32
    %359 = vector.shape_cast %358 : vector<4x1xi1> to vector<4x1xi1>
    %360 = vector.broadcast %359 : vector<4x1xi1> to vector<4x384xi1>
    %361 = vector.broadcast %cst_113 : f32 to vector<4x384xf32>
    %362 = arith.select %360, %353, %361 : vector<4x384xi1>, vector<4x384xf32>
    %363 = vector.extract_strided_slice %36 {offsets = [24, 0, 0], sizes = [1, 1, 384], strides = [1, 1, 1]} : vector<25x1x384xf32> to vector<1x1x384xf32>
    %364 = vector.shape_cast %363 : vector<1x1x384xf32> to vector<1x384xf32>
    %365 = vector.broadcast %364 : vector<1x384xf32> to vector<4x384xf32>
    %366 = arith.mulf %362, %365 : vector<4x384xf32>
    %367 = arith.addf %352, %366 : vector<4x384xf32>
    %c0_114 = arith.constant 0 : index
    %c0_115 = arith.constant 0 : index
    %368 = vector.load %arg6[%c0_114, %c0_115] : memref<1x384xf32, #tpu.memory_space<vmem>>, vector<1x384xf32>
    %369 = vector.broadcast %368 : vector<1x384xf32> to vector<4x384xf32>
    %370 = arith.addf %367, %369 : vector<4x384xf32>
    %371 = arith.negf %370 : vector<4x384xf32>
    %372 = math.exp %371 : vector<4x384xf32>
    %cst_116 = arith.constant 1.000000e+00 : f32
    %373 = vector.broadcast %cst_116 : f32 to vector<4x384xf32>
    %374 = arith.addf %373, %372 : vector<4x384xf32>
    %375 = arith.divf %373, %374 : vector<4x384xf32>
    %376 = arith.mulf %370, %375 : vector<4x384xf32>
    %cst_117 = arith.constant dense<0.000000e+00> : vector<384xf32>
    %377 = vector.multi_reduction <add>, %376, %cst_117 [0] : vector<4x384xf32> to vector<384xf32>
    %378 = vector.shape_cast %377 : vector<384xf32> to vector<1x384xf32>
    %cst_118 = arith.constant 4.000000e+00 : f32
    %379 = vector.broadcast %cst_118 : f32 to vector<1x384xf32>
    %380 = arith.divf %378, %379 : vector<1x384xf32>
    %381 = arith.truncf %380 : vector<1x384xf32> to vector<1x384xbf16>
    %c0_119 = arith.constant 0 : index
    %c0_120 = arith.constant 0 : index
    %382 = vector.load %arg7[%c0_119, %c0_120] : memref<384x128xbf16, #tpu.memory_space<vmem>>, vector<384x128xbf16>
    %cst_121 = arith.constant dense<0.000000e+00> : vector<1x128xf32>
    %383 = tpu.matmul %381, %382, %cst_121 {dimension_numbers = #tpu.dot_dimension_numbers<[1], [0], [0], [1], [0, 0, 1, 1], [], []>} : vector<1x384xbf16>, vector<384x128xbf16>, vector<1x128xf32> -> vector<1x128xf32>
    %c0_122 = arith.constant 0 : index
    %c0_123 = arith.constant 0 : index
    %384 = vector.load %arg8[%c0_122, %c0_123] : memref<1x128xf32, #tpu.memory_space<vmem>>, vector<1x128xf32>
    %385 = arith.mulf %383, %384 : vector<1x128xf32>
    %c0_124 = arith.constant 0 : index
    %c0_125 = arith.constant 0 : index
    %386 = vector.load %arg9[%c0_124, %c0_125] : memref<1x128xf32, #tpu.memory_space<vmem>>, vector<1x128xf32>
    %387 = arith.addf %385, %386 : vector<1x128xf32>
    %cst_126 = arith.constant 0.000000e+00 : f32
    %388 = vector.broadcast %cst_126 : f32 to vector<1x128xf32>
    %389 = arith.maximumf %387, %388 : vector<1x128xf32>
    %390 = arith.truncf %389 : vector<1x128xf32> to vector<1x128xbf16>
    %c0_127 = arith.constant 0 : index
    %c0_128 = arith.constant 0 : index
    %391 = vector.load %arg10[%c0_127, %c0_128] : memref<128x384xbf16, #tpu.memory_space<vmem>>, vector<128x384xbf16>
    %cst_129 = arith.constant dense<0.000000e+00> : vector<1x384xf32>
    %392 = tpu.matmul %390, %391, %cst_129 {dimension_numbers = #tpu.dot_dimension_numbers<[1], [0], [0], [1], [0, 0, 1, 1], [], []>} : vector<1x128xbf16>, vector<128x384xbf16>, vector<1x384xf32> -> vector<1x384xf32>
    %cst_130 = arith.constant 6.000000e+00 : f32
    %393 = vector.broadcast %cst_130 : f32 to vector<1x384xf32>
    %394 = arith.divf %392, %393 : vector<1x384xf32>
    %cst_131 = arith.constant 5.000000e-01 : f32
    %395 = vector.broadcast %cst_131 : f32 to vector<1x384xf32>
    %396 = arith.addf %394, %395 : vector<1x384xf32>
    %cst_132 = arith.constant 0.000000e+00 : f32
    %cst_133 = arith.constant 1.000000e+00 : f32
    %397 = vector.broadcast %cst_132 : f32 to vector<1x384xf32>
    %398 = arith.maximumf %397, %396 : vector<1x384xf32>
    %399 = vector.broadcast %cst_133 : f32 to vector<1x384xf32>
    %400 = arith.minimumf %399, %398 : vector<1x384xf32>
    %401 = vector.broadcast %400 : vector<1x384xf32> to vector<4x384xf32>
    %402 = arith.mulf %376, %401 : vector<4x384xf32>
    %403 = arith.truncf %402 : vector<4x384xf32> to vector<4x384xbf16>
    %c0_134 = arith.constant 0 : index
    %c0_135 = arith.constant 0 : index
    %404 = vector.load %arg11[%c0_134, %c0_135] : memref<384x128xbf16, #tpu.memory_space<vmem>>, vector<384x128xbf16>
    %cst_136 = arith.constant dense<0.000000e+00> : vector<4x128xf32>
    %405 = tpu.matmul %403, %404, %cst_136 {dimension_numbers = #tpu.dot_dimension_numbers<[1], [0], [0], [1], [0, 0, 1, 1], [], []>} : vector<4x384xbf16>, vector<384x128xbf16>, vector<4x128xf32> -> vector<4x128xf32>
    %c0_137 = arith.constant 0 : index
    %c0_138 = arith.constant 0 : index
    %406 = vector.load %arg12[%c0_137, %c0_138] : memref<1x128xf32, #tpu.memory_space<vmem>>, vector<1x128xf32>
    %407 = vector.broadcast %406 : vector<1x128xf32> to vector<4x128xf32>
    %408 = arith.mulf %405, %407 : vector<4x128xf32>
    %c0_139 = arith.constant 0 : index
    %c0_140 = arith.constant 0 : index
    %409 = vector.load %arg13[%c0_139, %c0_140] : memref<1x128xf32, #tpu.memory_space<vmem>>, vector<1x128xf32>
    %410 = vector.broadcast %409 : vector<1x128xf32> to vector<4x128xf32>
    %411 = arith.addf %408, %410 : vector<4x128xf32>
    %412 = arith.extf %1 : vector<4x128xbf16> to vector<4x128xf32>
    %413 = arith.addf %411, %412 : vector<4x128xf32>
    %414 = arith.negf %413 : vector<4x128xf32>
    %415 = math.exp %414 : vector<4x128xf32>
    %cst_141 = arith.constant 1.000000e+00 : f32
    %416 = vector.broadcast %cst_141 : f32 to vector<4x128xf32>
    %417 = arith.addf %416, %415 : vector<4x128xf32>
    %418 = arith.divf %416, %417 : vector<4x128xf32>
    %419 = arith.mulf %413, %418 : vector<4x128xf32>
    %420 = arith.truncf %419 : vector<4x128xf32> to vector<4x128xbf16>
    %c0_142 = arith.constant 0 : index
    %c0_143 = arith.constant 0 : index
    %c0_144 = arith.constant 0 : index
    %421 = vector.load %arg14[%c0_142, %c0_143, %c0_144] : memref<1x4x128xbf16, #tpu.memory_space<vmem>>, vector<1x4x128xbf16>
    %422 = vector.shape_cast %421 : vector<1x4x128xbf16> to vector<4x128xbf16>
    %423 = vector.shape_cast %420 : vector<4x128xbf16> to vector<1x4x128xbf16>
    tpu.vector_store %arg14[%c0_142, %c0_143, %c0_144], %423 {strides = array<i32>} : memref<1x4x128xbf16, #tpu.memory_space<vmem>>, vector<1x4x128xbf16>,
    return
  }
  func.func @transform_0(%arg0: i32) -> (i32, i32, i32) {
    %c0_i32 = arith.constant 0 : i32
    %c0_i32_0 = arith.constant 0 : i32
    %c0_i32_1 = arith.constant 0 : i32
    return %arg0, %c0_i32, %c0_i32_0 : i32, i32, i32
  }
  func.func @transform_1(%arg0: i32) -> (i32, i32) {
    %c0_i32 = arith.constant 0 : i32
    %c0_i32_0 = arith.constant 0 : i32
    %c0_i32_1 = arith.constant 0 : i32
    return %c0_i32, %c0_i32_0 : i32, i32
  }
  func.func @transform_2(%arg0: i32) -> (i32, i32) {
    %c0_i32 = arith.constant 0 : i32
    %c0_i32_0 = arith.constant 0 : i32
    %c0_i32_1 = arith.constant 0 : i32
    return %c0_i32, %c0_i32_0 : i32, i32
  }
  func.func @transform_3(%arg0: i32) -> (i32, i32) {
    %c0_i32 = arith.constant 0 : i32
    %c0_i32_0 = arith.constant 0 : i32
    %c0_i32_1 = arith.constant 0 : i32
    return %c0_i32, %c0_i32_0 : i32, i32
  }
  func.func @transform_4(%arg0: i32) -> (i32, i32, i32) {
    %c0_i32 = arith.constant 0 : i32
    %c0_i32_0 = arith.constant 0 : i32
    %c0_i32_1 = arith.constant 0 : i32
    %c0_i32_2 = arith.constant 0 : i32
    return %c0_i32, %c0_i32_0, %c0_i32_1 : i32, i32, i32
  }
  func.func @transform_5(%arg0: i32) -> (i32, i32) {
    %c0_i32 = arith.constant 0 : i32
    %c0_i32_0 = arith.constant 0 : i32
    %c0_i32_1 = arith.constant 0 : i32
    return %c0_i32, %c0_i32_0 : i32, i32
  }
  func.func @transform_6(%arg0: i32) -> (i32, i32) {
    %c0_i32 = arith.constant 0 : i32
    %c0_i32_0 = arith.constant 0 : i32
    %c0_i32_1 = arith.constant 0 : i32
    return %c0_i32, %c0_i32_0 : i32, i32
  }
  func.func @transform_7(%arg0: i32) -> (i32, i32) {
    %c0_i32 = arith.constant 0 : i32
    %c0_i32_0 = arith.constant 0 : i32
    %c0_i32_1 = arith.constant 0 : i32
    return %c0_i32, %c0_i32_0 : i32, i32
  }
  func.func @transform_8(%arg0: i32) -> (i32, i32) {
    %c0_i32 = arith.constant 0 : i32
    %c0_i32_0 = arith.constant 0 : i32
    %c0_i32_1 = arith.constant 0 : i32
    return %c0_i32, %c0_i32_0 : i32, i32
  }
  func.func @transform_9(%arg0: i32) -> (i32, i32) {
    %c0_i32 = arith.constant 0 : i32
    %c0_i32_0 = arith.constant 0 : i32
    %c0_i32_1 = arith.constant 0 : i32
    return %c0_i32, %c0_i32_0 : i32, i32
  }
  func.func @transform_10(%arg0: i32) -> (i32, i32) {
    %c0_i32 = arith.constant 0 : i32
    %c0_i32_0 = arith.constant 0 : i32
    %c0_i32_1 = arith.constant 0 : i32
    return %c0_i32, %c0_i32_0 : i32, i32
  }
  func.func @transform_11(%arg0: i32) -> (i32, i32) {
    %c0_i32 = arith.constant 0 : i32
    %c0_i32_0 = arith.constant 0 : i32
    %c0_i32_1 = arith.constant 0 : i32
    return %c0_i32, %c0_i32_0 : i32, i32
  }
  func.func @transform_12(%arg0: i32) -> (i32, i32) {
    %c0_i32 = arith.constant 0 : i32
    %c0_i32_0 = arith.constant 0 : i32
    %c0_i32_1 = arith.constant 0 : i32
    return %c0_i32, %c0_i32_0 : i32, i32
  }
  func.func @transform_13(%arg0: i32) -> (i32, i32, i32) {
    %c0_i32 = arith.constant 0 : i32
    %c0_i32_0 = arith.constant 0 : i32
    %c0_i32_1 = arith.constant 0 : i32
    return %arg0, %c0_i32, %c0_i32_0 : i32, i32, i32
  }
}

module attributes {stable_mosaic.version = 11 : i64} {
  func.func @_head_kernel(%arg0: i32, %arg1: memref<2x4x128xbf16, #tpu.memory_space<vmem>>, %arg2: memref<128x128xbf16, #tpu.memory_space<vmem>>, %arg3: memref<1x128xf32, #tpu.memory_space<vmem>>, %arg4: memref<2x128xf32, #tpu.memory_space<vmem>>) attributes {dimension_semantics = [#tpu.dimension_semantics<arbitrary>], iteration_bounds = array<i64: 1>, scalar_prefetch = 0 : i64, scratch_operands = 0 : i64, tpu.core_type = #tpu.core_type<tc>, window_params = [{pipeline_mode = #tpu.pipeline_mode<synchronous>, transform_indices = @transform_0, window_bounds = array<i64: 2, 4, 128>}, {pipeline_mode = #tpu.pipeline_mode<synchronous>, transform_indices = @transform_1, window_bounds = array<i64: 128, 128>}, {pipeline_mode = #tpu.pipeline_mode<synchronous>, transform_indices = @transform_2, window_bounds = array<i64: 1, 128>}, {pipeline_mode = #tpu.pipeline_mode<synchronous>, transform_indices = @transform_3, window_bounds = array<i64: 2, 128>}]} {
    %c0 = arith.constant 0 : index
    %c0_0 = arith.constant 0 : index
    %c0_1 = arith.constant 0 : index
    %0 = vector.load %arg1[%c0, %c0_0, %c0_1] : memref<2x4x128xbf16, #tpu.memory_space<vmem>>, vector<2x4x128xbf16>
    %1 = arith.extf %0 : vector<2x4x128xbf16> to vector<2x4x128xf32>
    %cst = arith.constant dense<0.000000e+00> : vector<2x128xf32>
    %2 = vector.multi_reduction <add>, %1, %cst [1] : vector<2x4x128xf32> to vector<2x128xf32>
    %cst_2 = arith.constant 4.000000e+00 : f32
    %3 = vector.broadcast %cst_2 : f32 to vector<2x128xf32>
    %4 = arith.divf %2, %3 : vector<2x128xf32>
    %5 = arith.truncf %4 : vector<2x128xf32> to vector<2x128xbf16>
    %c0_3 = arith.constant 0 : index
    %c0_4 = arith.constant 0 : index
    %6 = vector.load %arg2[%c0_3, %c0_4] : memref<128x128xbf16, #tpu.memory_space<vmem>>, vector<128x128xbf16>
    %cst_5 = arith.constant dense<0.000000e+00> : vector<2x128xf32>
    %7 = tpu.matmul %5, %6, %cst_5 {dimension_numbers = #tpu.dot_dimension_numbers<[1], [0], [0], [1], [0, 0, 1, 1], [], []>} : vector<2x128xbf16>, vector<128x128xbf16>, vector<2x128xf32> -> vector<2x128xf32>
    %c0_6 = arith.constant 0 : index
    %c0_7 = arith.constant 0 : index
    %8 = vector.load %arg3[%c0_6, %c0_7] : memref<1x128xf32, #tpu.memory_space<vmem>>, vector<1x128xf32>
    %9 = vector.broadcast %8 : vector<1x128xf32> to vector<2x128xf32>
    %10 = arith.addf %7, %9 : vector<2x128xf32>
    %c0_8 = arith.constant 0 : index
    %c0_9 = arith.constant 0 : index
    %11 = vector.load %arg4[%c0_8, %c0_9] : memref<2x128xf32, #tpu.memory_space<vmem>>, vector<2x128xf32>
    tpu.vector_store %arg4[%c0_8, %c0_9], %10 {strides = array<i32>} : memref<2x128xf32, #tpu.memory_space<vmem>>, vector<2x128xf32>,
    return
  }
  func.func @transform_0(%arg0: i32) -> (i32, i32, i32) {
    %c0_i32 = arith.constant 0 : i32
    %c0_i32_0 = arith.constant 0 : i32
    %c0_i32_1 = arith.constant 0 : i32
    %c0_i32_2 = arith.constant 0 : i32
    return %c0_i32, %c0_i32_0, %c0_i32_1 : i32, i32, i32
  }
  func.func @transform_1(%arg0: i32) -> (i32, i32) {
    %c0_i32 = arith.constant 0 : i32
    %c0_i32_0 = arith.constant 0 : i32
    %c0_i32_1 = arith.constant 0 : i32
    return %c0_i32, %c0_i32_0 : i32, i32
  }
  func.func @transform_2(%arg0: i32) -> (i32, i32) {
    %c0_i32 = arith.constant 0 : i32
    %c0_i32_0 = arith.constant 0 : i32
    %c0_i32_1 = arith.constant 0 : i32
    return %c0_i32, %c0_i32_0 : i32, i32
  }
  func.func @transform_3(%arg0: i32) -> (i32, i32) {
    %c0_i32 = arith.constant 0 : i32
    %c0_i32_0 = arith.constant 0 : i32
    %c0_i32_1 = arith.constant 0 : i32
    return %c0_i32, %c0_i32_0 : i32, i32
  }
}

module attributes {stable_mosaic.version = 11 : i64} {
  func.func @_mm_scale_act_kernel(%arg0: i32, %arg1: memref<8x1152xbf16, #tpu.memory_space<vmem>>, %arg2: memref<1152x128xbf16, #tpu.memory_space<vmem>>, %arg3: memref<1x128xf32, #tpu.memory_space<vmem>>, %arg4: memref<1x128xf32, #tpu.memory_space<vmem>>, %arg5: memref<8x128xbf16, #tpu.memory_space<vmem>>) attributes {dimension_semantics = [#tpu.dimension_semantics<parallel>], iteration_bounds = array<i64: 1>, scalar_prefetch = 0 : i64, scratch_operands = 0 : i64, tpu.core_type = #tpu.core_type<tc>, window_params = [{transform_indices = @transform_0, window_bounds = array<i64: 8, 1152>}, {pipeline_mode = #tpu.pipeline_mode<synchronous>, transform_indices = @transform_1, window_bounds = array<i64: 1152, 128>}, {pipeline_mode = #tpu.pipeline_mode<synchronous>, transform_indices = @transform_2, window_bounds = array<i64: 1, 128>}, {pipeline_mode = #tpu.pipeline_mode<synchronous>, transform_indices = @transform_3, window_bounds = array<i64: 1, 128>}, {transform_indices = @transform_4, window_bounds = array<i64: 8, 128>}]} {
    %c0 = arith.constant 0 : index
    %c0_0 = arith.constant 0 : index
    %0 = vector.load %arg1[%c0, %c0_0] : memref<8x1152xbf16, #tpu.memory_space<vmem>>, vector<8x1152xbf16>
    %c0_1 = arith.constant 0 : index
    %c0_2 = arith.constant 0 : index
    %1 = vector.load %arg2[%c0_1, %c0_2] : memref<1152x128xbf16, #tpu.memory_space<vmem>>, vector<1152x128xbf16>
    %cst = arith.constant dense<0.000000e+00> : vector<8x128xf32>
    %2 = tpu.matmul %0, %1, %cst {dimension_numbers = #tpu.dot_dimension_numbers<[1], [0], [0], [1], [0, 0, 1, 1], [], []>} : vector<8x1152xbf16>, vector<1152x128xbf16>, vector<8x128xf32> -> vector<8x128xf32>
    %c0_3 = arith.constant 0 : index
    %c0_4 = arith.constant 0 : index
    %3 = vector.load %arg3[%c0_3, %c0_4] : memref<1x128xf32, #tpu.memory_space<vmem>>, vector<1x128xf32>
    %4 = vector.broadcast %3 : vector<1x128xf32> to vector<8x128xf32>
    %5 = arith.mulf %2, %4 : vector<8x128xf32>
    %c0_5 = arith.constant 0 : index
    %c0_6 = arith.constant 0 : index
    %6 = vector.load %arg4[%c0_5, %c0_6] : memref<1x128xf32, #tpu.memory_space<vmem>>, vector<1x128xf32>
    %7 = vector.broadcast %6 : vector<1x128xf32> to vector<8x128xf32>
    %8 = arith.addf %5, %7 : vector<8x128xf32>
    %9 = arith.truncf %8 : vector<8x128xf32> to vector<8x128xbf16>
    %c0_7 = arith.constant 0 : index
    %c0_8 = arith.constant 0 : index
    %10 = vector.load %arg5[%c0_7, %c0_8] : memref<8x128xbf16, #tpu.memory_space<vmem>>, vector<8x128xbf16>
    tpu.vector_store %arg5[%c0_7, %c0_8], %9 {strides = array<i32>} : memref<8x128xbf16, #tpu.memory_space<vmem>>, vector<8x128xbf16>,
    return
  }
  func.func @transform_0(%arg0: i32) -> (i32, i32) {
    %c0_i32 = arith.constant 0 : i32
    %c0_i32_0 = arith.constant 0 : i32
    return %arg0, %c0_i32 : i32, i32
  }
  func.func @transform_1(%arg0: i32) -> (i32, i32) {
    %c0_i32 = arith.constant 0 : i32
    %c0_i32_0 = arith.constant 0 : i32
    %c0_i32_1 = arith.constant 0 : i32
    return %c0_i32, %c0_i32_0 : i32, i32
  }
  func.func @transform_2(%arg0: i32) -> (i32, i32) {
    %c0_i32 = arith.constant 0 : i32
    %c0_i32_0 = arith.constant 0 : i32
    %c0_i32_1 = arith.constant 0 : i32
    return %c0_i32, %c0_i32_0 : i32, i32
  }
  func.func @transform_3(%arg0: i32) -> (i32, i32) {
    %c0_i32 = arith.constant 0 : i32
    %c0_i32_0 = arith.constant 0 : i32
    %c0_i32_1 = arith.constant 0 : i32
    return %c0_i32, %c0_i32_0 : i32, i32
  }
  func.func @transform_4(%arg0: i32) -> (i32, i32) {
    %c0_i32 = arith.constant 0 : i32
    %c0_i32_0 = arith.constant 0 : i32
    return %arg0, %c0_i32 : i32, i32
  }
}

</mosaic_0001>

<llo_original>
// kernel: forward.7
$region0: #{forward.7}
  #allocation0 [shape = 'u32[]', space=smem, size = 0x4, offset = 0x4, fixed_abs, tag = 'smem constant byte address 0x4 - core index']
  #allocation1 [shape = 'u32[144,128]{1,0:T(1,128)}', space=vmem, size = 0x12000, scoped, tag = 'internal scratch']
  %s0 = inlined_call_operand.vmem [shape: bf16[128,27], index: 0, kind: input, shape index: {}]
  %s1 = inlined_call_operand.vmem [shape: bf16[27,128], index: 1, kind: input, shape index: {}]
  %s2 = inlined_call_operand.vmem [shape: f32[1,128], index: 2, kind: input, shape index: {}]
  %s3 = inlined_call_operand.vmem [shape: f32[1,128], index: 3, kind: input, shape index: {}]
  %s4 = inlined_call_operand.vmem [shape: bf16[128,128], index: 4, kind: output, shape index: {}]
  %s5 = sld [smem:[#allocation0]]
  $region49: #{forward.7} parent=0
    _
  %s7 = ssub.s32 1, %s5
  %s8 = scalar_select 0, %s7, %s5
  loop: start=0, step=1, limit=4
  $region2: #{forward.7} parent=0 // loop_pre_header
    _
  $region3: #{forward.7} parent=0 // loop_header
    %s10 = sphi 0, %s14
    %p11 = scmp.ge.s32.totalorder %s10, 4
    %s20 = sphi 0, %s22
    %s23 = sphi 0, %s20
    %s24 = sphi 0, %s23
    %s40 = sphi 0, %s24
    %s44 = sphi 0, %s44
    %s46 = sphi 0, %s44
    %s47 = sphi 0, %s46
    %s61 = sphi 0, %s47
    %s65 = sphi 0, %s65
    %s67 = sphi 0, %s65
    %s68 = sphi 0, %s67
    %s82 = sphi 0, %s68
    %s86 = sphi 0, %s86
    %s88 = sphi 0, %s86
    %s89 = sphi 0, %s88
    %s103 = sphi 0, %s89
    %s109 = sphi 0, %s111
    %s112 = sphi 0, %s109
    %s113 = sphi 0, %s112
    %s129 = sphi 0, %s113
  $region4: #{forward.7} parent=0 // loop_header_branch
    %13 = sbr.rel (%p11) target = $region8
  $region5: #{forward.7} parent=0 // loop_body
    %s15 = ssub.s32 %s10, 1
    %s16 = ssub.s32 %s10, 2
    %s17 = sadd.s32 %s10, 1
    %s18 = ssub.s32 %s10, %s17
    %p19 = scmp.eq.s32.totalorder %s18, 0
    %s21 = sadd.s32 %s20, 1
    %s22 = scalar_select %p19, %s20, %s21
    %p25 = pneg %p19
    %p26 = scmp.eq.s32.totalorder %s10, 1
    %p27 = por %p25, %p26
    %p28 = scmp.ne.s32.totalorder %s20, %s23
    %p29 = scmp.eq.s32.totalorder %s10, 0
    %p30 = por %p28, %p29
    %p31 = scmp.ne.s32.totalorder %s20, %s23
    %p32 = scmp.eq.s32.totalorder %s15, 1
    %p33 = por %p31, %p32
    %p34 = scmp.ne.s32.totalorder %s23, %s24
    %p35 = scmp.eq.s32.totalorder %s15, 0
    %p36 = por %p34, %p35
    %p37 = scmp.ne.s32.totalorder %s23, %s24
    %p38 = scmp.eq.s32.totalorder %s16, 1
    %p39 = por %p37, %p38
    %p41 = scmp.ne.s32.totalorder %s24, %s40
    %p42 = scmp.eq.s32.totalorder %s16, 0
    %p43 = por %p41, %p42
    %s45 = sadd.s32 %s44, 1
    %p48 = scmp.eq.s32.totalorder %s10, 1
    %p49 = scmp.ne.s32.totalorder %s44, %s46
    %p50 = scmp.eq.s32.totalorder %s10, 0
    %p51 = por %p49, %p50
    %p52 = scmp.ne.s32.totalorder %s44, %s46
    %p53 = scmp.eq.s32.totalorder %s15, 1
    %p54 = por %p52, %p53
    %p55 = scmp.ne.s32.totalorder %s46, %s47
    %p56 = scmp.eq.s32.totalorder %s15, 0
    %p57 = por %p55, %p56
    %p58 = scmp.ne.s32.totalorder %s46, %s47
    %p59 = scmp.eq.s32.totalorder %s16, 1
    %p60 = por %p58, %p59
    %p62 = scmp.ne.s32.totalorder %s47, %s61
    %p63 = scmp.eq.s32.totalorder %s16, 0
    %p64 = por %p62, %p63
    %s66 = sadd.s32 %s65, 1
    %p69 = scmp.eq.s32.totalorder %s10, 1
    %p70 = scmp.ne.s32.totalorder %s65, %s67
    %p71 = scmp.eq.s32.totalorder %s10, 0
    %p72 = por %p70, %p71
    %p73 = scmp.ne.s32.totalorder %s65, %s67
    %p74 = scmp.eq.s32.totalorder %s15, 1
    %p75 = por %p73, %p74
    %p76 = scmp.ne.s32.totalorder %s67, %s68
    %p77 = scmp.eq.s32.totalorder %s15, 0
    %p78 = por %p76, %p77
    %p79 = scmp.ne.s32.totalorder %s67, %s68
    %p80 = scmp.eq.s32.totalorder %s16, 1
    %p81 = por %p79, %p80
    %p83 = scmp.ne.s32.totalorder %s68, %s82
    %p84 = scmp.eq.s32.totalorder %s16, 0
    %p85 = por %p83, %p84
    %s87 = sadd.s32 %s86, 1
    %p90 = scmp.eq.s32.totalorder %s10, 1
    %p91 = scmp.ne.s32.totalorder %s86, %s88
    %p92 = scmp.eq.s32.totalorder %s10, 0
    %p93 = por %p91, %p92
    %p94 = scmp.ne.s32.totalorder %s86, %s88
    %p95 = scmp.eq.s32.totalorder %s15, 1
    %p96 = por %p94, %p95
    %p97 = scmp.ne.s32.totalorder %s88, %s89
    %p98 = scmp.eq.s32.totalorder %s15, 0
    %p99 = por %p97, %p98
    %p100 = scmp.ne.s32.totalorder %s88, %s89
    %p101 = scmp.eq.s32.totalorder %s16, 1
    %p102 = por %p100, %p101
    %p104 = scmp.ne.s32.totalorder %s89, %s103
    %p105 = scmp.eq.s32.totalorder %s16, 0
    %p106 = por %p104, %p105
    %s107 = ssub.s32 %s10, %s17
    %p108 = scmp.eq.s32.totalorder %s107, 0
    %s110 = sadd.s32 %s109, 1
    %s111 = scalar_select %p108, %s109, %s110
    %p114 = pneg %p108
    %p115 = scmp.eq.s32.totalorder %s10, 1
    %p116 = por %p114, %p115
    %p117 = scmp.ne.s32.totalorder %s109, %s112
    %p118 = scmp.eq.s32.totalorder %s10, 0
    %p119 = por %p117, %p118
    %p120 = scmp.ne.s32.totalorder %s109, %s112
    %p121 = scmp.eq.s32.totalorder %s15, 1
    %p122 = por %p120, %p121
    %p123 = scmp.ne.s32.totalorder %s112, %s113
    %p124 = scmp.eq.s32.totalorder %s15, 0
    %p125 = por %p123, %p124
    %p126 = scmp.ne.s32.totalorder %s112, %s113
    %p127 = scmp.eq.s32.totalorder %s16, 1
    %p128 = por %p126, %p127
    %p130 = scmp.ne.s32.totalorder %s113, %s129
    %p131 = scmp.eq.s32.totalorder %s16, 0
    %p132 = por %p130, %p131
    %p133 = scmp.le.s32.totalorder 1, %s10
    %p134 = scmp.lt.s32.totalorder %s10, 3
    %p135 = pnand %p133, %p134
    %p136 = pneg %p135
    // Predicated region
    $region9: #{forward.7} parent=5 // pred_check
      _
    $region10: #{forward.7} parent=5 // pred_check_branch
      %138 = sbr.rel (%p135) target = $region12
    $region11: #{forward.7} parent=5 // pred_region
      %s139 = ssub.s32 %s10, 1
      // Predicated region
      $region13: #{forward.7} parent=11 // pred_check
        %p140 = pneg %p57
      $region14: #{forward.7} parent=11 // pred_check_branch
        %142 = sbr.rel (%p140) target = $region16
      $region15: #{forward.7} parent=11 // pred_region
        _
      $region16: #{forward.7} parent=11 // pred_fallthru
        _
      // Predicated region
      $region17: #{forward.7} parent=11 // pred_check
        %p143 = pneg %p78
      $region18: #{forward.7} parent=11 // pred_check_branch
        %145 = sbr.rel (%p143) target = $region20
      $region19: #{forward.7} parent=11 // pred_region
        _
      $region20: #{forward.7} parent=11 // pred_fallthru
        _
      // Predicated region
      $region21: #{forward.7} parent=11 // pred_check
        %p146 = pneg %p99
      $region22: #{forward.7} parent=11 // pred_check_branch
        %148 = sbr.rel (%p146) target = $region24
      $region23: #{forward.7} parent=11 // pred_region
        _
      $region24: #{forward.7} parent=11 // pred_fallthru
        _
    $region12: #{forward.7} parent=5 // pred_fallthru
      _
    %p149 = scmp.lt.s32.totalorder %s10, 2
    // Predicated region
    $region25: #{forward.7} parent=5 // pred_check
      %p150 = pneg %p149
    $region26: #{forward.7} parent=5 // pred_check_branch
      %152 = sbr.rel (%p150) target = $region28
    $region27: #{forward.7} parent=5 // pred_region
      // Predicated region
      $region29: #{forward.7} parent=27 // pred_check
        %p153 = pneg %p30
      $region30: #{forward.7} parent=27 // pred_check_branch
        %155 = sbr.rel (%p153) target = $region32
      $region31: #{forward.7} parent=27 // pred_region
        %s156 = smul.u32 8, %s10
        %p157 = scmp.lt.s32.totalorder %s156, 15
        %s158 = scalar_select %p157, %s156, 15
        %s159 = smul.addr %s158, 4
        %s160 = scalar_lea.vmem %s0, %s159
        %s161 = smul.u32 8, %s10
      $region32: #{forward.7} parent=27 // pred_fallthru
        _
    $region28: #{forward.7} parent=5 // pred_fallthru
      _
    %p162 = scmp.le.s32.totalorder 1, %s10
    %p163 = scmp.lt.s32.totalorder %s10, 3
    %p164 = pnand %p162, %p163
    %p165 = pneg %p164
    // Predicated region
    $region33: #{forward.7} parent=5 // pred_check
      _
    $region34: #{forward.7} parent=5 // pred_check_branch
      %167 = sbr.rel (%p164) target = $region36
    $region35: #{forward.7} parent=5 // pred_region
      %s168 = ssub.s32 %s10, 1
      %s169 = smul.u32 8, %s15
      %p170 = scmp.lt.s32.totalorder %s169, 15
      %s171 = scalar_select %p170, %s169, 15
      %s172 = smul.addr %s171, 4
      %s173 = scalar_lea.vmem %s0, %s172
      %p174 = pneg %p36
      %p175 = pneg %p33
      %p176 = pneg %p57
      %p177 = pneg %p54
      %p178 = pneg %p78
      %p179 = pneg %p75
      %p180 = pneg %p99
      %p181 = pneg %p96
      %p182 = pneg %p125
      %p183 = pneg %p122
      %s184 = smul.u32 8, %s15
      %p185 = scmp.lt.s32.totalorder %s184, 15
      %s186 = scalar_select %p185, %s184, 15
      %s187 = smul.addr %s186, 4
      %s188 = scalar_lea.vmem %s4, %s187
      %s189 = smul.u32 8, %s15
      %p190 = scmp.lt.s32.totalorder %s189, 15
      %s191 = scalar_select %p190, %s189, 15
      %s192 = smul.addr %s191, 4
      %s193 = scalar_lea.vmem %s0, %s192
      %s194 = smul.u32 8, %s15
      %s195 = smul.u32 8, %s15
      %p196 = scmp.lt.s32.totalorder %s195, 15
      %s197 = scalar_select %p196, %s195, 15
      %s198 = smul.addr %s197, 4
      %s199 = scalar_lea.vmem %s4, %s198
      %s200 = smul.u32 8, %s15
      %v202 = vld [vmem:[%s193] sm:$0xf]
      %v203 = vld [vmem:[%s193 + $0x4] sm:$0xf]
      %v204 = vld [vmem:[%s193 + $0x8] sm:$0xf]
      %v205 = vld [vmem:[%s193 + $0xc] sm:$0xf]
      %v206 = vld [vmem:[%s193 + $0x10] sm:$0xf]
      %v207 = vld [vmem:[%s193 + $0x14] sm:$0xf]
      %v208 = vld [vmem:[%s193 + $0x18] sm:$0xf]
      %v209 = vld [vmem:[%s193 + $0x1c] sm:$0xf]
      %v210 = vld [vmem:[%s1] sm:$0xf]
      %v211 = vld [vmem:[%s1 + $0x4] sm:$0xf]
      %v212 = vld [vmem:[%s1 + $0x8] sm:$0xf]
      %v213 = vld [vmem:[%s1 + $0xc] sm:$0x3]
      %v222 = vunpack.c.l.b16 %v202
      %v223 = vunpack.c.l.b16 %v203
      %v224 = vunpack.c.l.b16 %v204
      %v225 = vunpack.c.l.b16 %v205
      %v226 = vunpack.c.l.b16 %v206
      %v227 = vunpack.c.l.b16 %v207
      %v228 = vunpack.c.l.b16 %v208
      %v229 = vunpack.c.l.b16 %v209
      %v230 = vpack.c.b16 %v223, %v222
      %v231 = vpack.c.b16 %v225, %v224
      %v232 = vpack.c.b16 %v227, %v226
      %v233 = vpack.c.b16 %v229, %v228
      %v238 = vunpack.c.l.b16 %v210
      %v239 = vunpack.c.l.b16 %v211
      %v240 = vunpack.c.l.b16 %v212
      %v241 = vunpack.c.l.b16 %v213
      %v242 = vpack.c.b16 %v239, %v238
      %v243 = vpack.c.b16 %v241, %v240
      %vm245 = vcmask 220160
      %v247 = vsel %vm245, %v230, 0
      %v250 = vsel %vm245, %v231, 0
      %v253 = vsel %vm245, %v232, 0
      %v256 = vsel %vm245, %v233, 0
      %vm258 = vcmask 1044480
      %vm259 = vcmask 1045504
      %v260 = vsel %vm258, 4294967295, 65535
      %v261 = vsel %vm259, %v260, 0
      %v263 = vand.u32 %v243, %v261
      %265 = vmatprep.subr.bf16.mxu0 0
      %266 = vmatpush1.bf16.msra.mxu0 0
      %267 = vmatprep.subr.bf16.mxu0 0
      %268 = vmatpush1.bf16.msra.mxu0 0
      %269 = vmatprep.subr.bf16.mxu0 0
      %270 = vmatpush1.bf16.msra.mxu0 0
      %271 = vmatprep.subr.bf16.mxu0 0
      %272 = vmatpush1.bf16.msra.mxu0 0
      %273 = vmatprep.subr.bf16.mxu0 0
      %274 = vmatpush1.bf16.msra.mxu0 0
      %275 = vmatprep.subr.bf16.mxu0 0
      %276 = vmatpush1.bf16.msra.mxu0 0
      %277 = vmatprep.subr.bf16.mxu0 0
      %278 = vmatpush1.bf16.msra.mxu0 %v263
      %279 = vmatprep.subr.bf16.mxu0 0
      %280 = vmatpush1.bf16.msra.mxu0 %v242
      %281 = vmatprep.subr.bf16.mxu0 0
      %282 = vmatpush2.bf16.msra.mxu0 0
      %283 = vmatprep.subr.bf16.mxu0 0
      %284 = vmatpush2.bf16.msra.mxu0 0
      %285 = vmatprep.subr.bf16.mxu0 0
      %286 = vmatpush2.bf16.msra.mxu0 0
      %287 = vmatprep.subr.bf16.mxu0 0
      %288 = vmatpush2.bf16.msra.mxu0 0
      %289 = vmatprep.subr.bf16.mxu0 0
      %290 = vmatpush2.bf16.msra.mxu0 0
      %291 = vmatprep.subr.bf16.mxu0 0
      %292 = vmatpush2.bf16.msra.mxu0 0
      %293 = vmatprep.subr.bf16.mxu0 0
      %294 = vmatpush2.bf16.msra.mxu0 0
      %295 = vmatprep.subr.bf16.mxu0 0
      %296 = vmatpush2.bf16.msra.mxu0 0
      %297 = vmatprep.mubr.bf16.mxu0 0
      %298 = vmatmul.mubr.bf16.gmra.mxu0 %v247
      %v299 = vpop.f32.mrf.mxu0
      %v300 = vadd.f32 0.0, %v299
      %v301 = vpop.f32.mrf.mxu0
      %v302 = vpop.f32.mrf.mxu0
      %v303 = vadd.f32 0.0, %v302
      %v304 = vpop.f32.mrf.mxu0
      %305 = vmatprep.mubr.bf16.mxu0 0
      %306 = vmatmul.mubr.bf16.gmra.mxu0 %v250
      %v307 = vpop.f32.mrf.mxu0
      %v308 = vadd.f32 0.0, %v307
      %v309 = vpop.f32.mrf.mxu0
      %v310 = vpop.f32.mrf.mxu0
      %v311 = vadd.f32 0.0, %v310
      %v312 = vpop.f32.mrf.mxu0
      %313 = vmatprep.mubr.bf16.mxu0 0
      %314 = vmatmul.mubr.bf16.gmra.mxu0 %v253
      %v315 = vpop.f32.mrf.mxu0
      %v316 = vadd.f32 0.0, %v315
      %v317 = vpop.f32.mrf.mxu0
      %v318 = vpop.f32.mrf.mxu0
      %v319 = vadd.f32 0.0, %v318
      %v320 = vpop.f32.mrf.mxu0
      %321 = vmatprep.mubr.bf16.mxu0 0
      %322 = vmatmul.mubr.bf16.gmra.mxu0 %v256
      %v323 = vpop.f32.mrf.mxu0
      %v324 = vadd.f32 0.0, %v323
      %v325 = vpop.f32.mrf.mxu0
      %v326 = vpop.f32.mrf.mxu0
      %v327 = vadd.f32 0.0, %v326
      %v328 = vpop.f32.mrf.mxu0
      %329 = vdwg.mxu0
      %v330 = vld [vmem:[%s2] sm:$0x1]
      %v332 = vlaneseq
      %v333 = vshrl.u32 %v332, 7
      %v334 = vsub.s32 0, %v333
      %v335 = vrot.slane %v330, %v334
      %v337 = vmul.f32 %v300, %v335
      %v338 = vmul.f32 %v303, %v335
      %v339 = vmul.f32 %v308, %v335
      %v340 = vmul.f32 %v311, %v335
      %v341 = vmul.f32 %v316, %v335
      %v342 = vmul.f32 %v319, %v335
      %v343 = vmul.f32 %v324, %v335
      %v344 = vmul.f32 %v327, %v335
      %v345 = vld [vmem:[%s3] sm:$0x1]
      %v347 = vlaneseq
      %v348 = vshrl.u32 %v347, 7
      %v349 = vsub.s32 0, %v348
      %v350 = vrot.slane %v345, %v349
      %v352 = vadd.f32 %v337, %v350
      %v353 = vadd.f32 %v338, %v350
      %v354 = vadd.f32 %v339, %v350
      %v355 = vadd.f32 %v340, %v350
      %v356 = vadd.f32 %v341, %v350
      %v357 = vadd.f32 %v342, %v350
      %v358 = vadd.f32 %v343, %v350
      %v359 = vadd.f32 %v344, %v350
      %v360 = vmax.f32 %v352, 0.0
      %v361 = vmax.f32 %v353, 0.0
      %v362 = vmax.f32 %v354, 0.0
      %v363 = vmax.f32 %v355, 0.0
      %v364 = vmax.f32 %v356, 0.0
      %v365 = vmax.f32 %v357, 0.0
      %v366 = vmax.f32 %v358, 0.0
      %v367 = vmax.f32 %v359, 0.0
      %v368 = vpack.c.bf16 %v361, %v360
      %v369 = vpack.c.bf16 %v363, %v362
      %v370 = vpack.c.bf16 %v365, %v364
      %v371 = vpack.c.bf16 %v367, %v366
      %v376 = vunpack.c.l.b16 %v368
      %v377 = vunpack.c.h.b16 %v368
      %v378 = vunpack.c.l.b16 %v369
      %v379 = vunpack.c.h.b16 %v369
      %v380 = vunpack.c.l.b16 %v370
      %v381 = vunpack.c.h.b16 %v370
      %v382 = vunpack.c.l.b16 %v371
      %v383 = vunpack.c.h.b16 %v371
      %v384 = vpack.c.b16 %v376, %v376
      %v385 = vpack.c.b16 %v377, %v377
      %v386 = vpack.c.b16 %v378, %v378
      %v387 = vpack.c.b16 %v379, %v379
      %v388 = vpack.c.b16 %v380, %v380
      %v389 = vpack.c.b16 %v381, %v381
      %v390 = vpack.c.b16 %v382, %v382
      %v391 = vpack.c.b16 %v383, %v383
      %400 = vst [vmem:[%s199] sm:$0xf] %v384
      %401 = vst [vmem:[%s199 + $0x4] sm:$0xf] %v385
      %402 = vst [vmem:[%s199 + $0x8] sm:$0xf] %v386
      %403 = vst [vmem:[%s199 + $0xc] sm:$0xf] %v387
      %404 = vst [vmem:[%s199 + $0x10] sm:$0xf] %v388
      %405 = vst [vmem:[%s199 + $0x14] sm:$0xf] %v389
      %406 = vst [vmem:[%s199 + $0x18] sm:$0xf] %v390
      %407 = vst [vmem:[%s199 + $0x1c] sm:$0xf] %v391
      %s408 = smul.u32 8, %s15
      %p409 = scmp.lt.s32.totalorder %s408, 15
      %s410 = scalar_select %p409, %s408, 15
      %s411 = smul.addr %s410, 4
      %s412 = scalar_lea.vmem %s4, %s411
      // Predicated region
      $region37: #{forward.7} parent=35 // pred_check
        %p413 = pneg %p122
      $region38: #{forward.7} parent=35 // pred_check_branch
        %415 = sbr.rel (%p413) target = $region40
      $region39: #{forward.7} parent=35 // pred_region
        %s416 = smul.u32 8, %s15
      $region40: #{forward.7} parent=35 // pred_fallthru
        _
    $region36: #{forward.7} parent=5 // pred_fallthru
      _
    %p417 = scmp.le.s32.totalorder 2, %s10
    // Predicated region
    $region41: #{forward.7} parent=5 // pred_check
      %p418 = pneg %p417
    $region42: #{forward.7} parent=5 // pred_check_branch
      %420 = sbr.rel (%p418) target = $region44
    $region43: #{forward.7} parent=5 // pred_region
      %s421 = ssub.s32 %s10, 2
      // Predicated region
      $region45: #{forward.7} parent=43 // pred_check
        %p422 = pneg %p128
      $region46: #{forward.7} parent=43 // pred_check_branch
        %424 = sbr.rel (%p422) target = $region48
      $region47: #{forward.7} parent=43 // pred_region
        %s425 = smul.u32 8, %s16
        %p426 = scmp.lt.s32.totalorder %s425, 15
        %s427 = scalar_select %p426, %s425, 15
        %s428 = smul.addr %s427, 4
        %s429 = scalar_lea.vmem %s4, %s428
      $region48: #{forward.7} parent=43 // pred_fallthru
        _
    $region44: #{forward.7} parent=5 // pred_fallthru
      _
  $region6: #{forward.7} parent=0 // loop_footer
    %s14 = sadd.s32 1, %s10
  $region7: #{forward.7} parent=0 // loop_footer_branch
    %9 = sbr.rel target = $region3
  $region8: #{forward.7} parent=0 // loop_exit
    _

// kernel: forward.8
$region0: #{forward.8}
  #allocation0 [shape = 'u32[]', space=smem, size = 0x4, offset = 0x4, fixed_abs, tag = 'smem constant byte address 0x4 - core index']
  #allocation1 [shape = 'u32[144,128]{1,0:T(1,128)}', space=vmem, size = 0x12000, scoped, tag = 'internal scratch']
  #allocation2 [shape = 'f32[96,128]{1,0:T(8,128)}', space=vmem, size = 0xc000, scoped, tag = 'scratch operand']
  %s0 = inlined_call_operand.vmem [shape: bf16[2,64,128], index: 0, kind: input, shape index: {}]
  %s1 = inlined_call_operand.vmem [shape: bf16[128,128], index: 1, kind: input, shape index: {}]
  %s2 = inlined_call_operand.vmem [shape: f32[1,128], index: 2, kind: input, shape index: {}]
  %s3 = inlined_call_operand.vmem [shape: f32[1,128], index: 3, kind: input, shape index: {}]
  %s4 = inlined_call_operand.vmem [shape: f32[9,1,128], index: 4, kind: input, shape index: {}]
  %s5 = inlined_call_operand.vmem [shape: f32[1,128], index: 5, kind: input, shape index: {}]
  %s6 = inlined_call_operand.vmem [shape: bf16[128,128], index: 6, kind: input, shape index: {}]
  %s7 = inlined_call_operand.vmem [shape: f32[1,128], index: 7, kind: input, shape index: {}]
  %s8 = inlined_call_operand.vmem [shape: f32[1,128], index: 8, kind: input, shape index: {}]
  %s9 = inlined_call_operand.vmem [shape: bf16[128,128], index: 9, kind: input, shape index: {}]
  %s10 = inlined_call_operand.vmem [shape: bf16[128,128], index: 10, kind: input, shape index: {}]
  %s11 = inlined_call_operand.vmem [shape: f32[1,128], index: 11, kind: input, shape index: {}]
  %s12 = inlined_call_operand.vmem [shape: f32[1,128], index: 12, kind: input, shape index: {}]
  %s13 = inlined_call_operand.vmem [shape: bf16[2,64,128], index: 13, kind: output, shape index: {}]
  %s14 = sld [smem:[#allocation0]]
  $region85: #{forward.8} parent=0
    _
  %s16 = ssub.s32 1, %s14
  %s17 = scalar_select 0, %s16, %s14
  loop: start=0, step=1, limit=4
  $region2: #{forward.8} parent=0 // loop_pre_header
    _
  $region3: #{forward.8} parent=0 // loop_header
    %s19 = sphi 0, %s23
    %p20 = scmp.ge.s32.totalorder %s19, 4
    %s29 = sphi 0, %s31
    %s32 = sphi 0, %s29
    %s33 = sphi 0, %s32
    %s49 = sphi 0, %s33
    %s53 = sphi 0, %s53
    %s55 = sphi 0, %s53
    %s56 = sphi 0, %s55
    %s70 = sphi 0, %s56
    %s74 = sphi 0, %s74
    %s76 = sphi 0, %s74
    %s77 = sphi 0, %s76
    %s91 = sphi 0, %s77
    %s95 = sphi 0, %s95
    %s97 = sphi 0, %s95
    %s98 = sphi 0, %s97
    %s112 = sphi 0, %s98
    %s116 = sphi 0, %s116
    %s118 = sphi 0, %s116
    %s119 = sphi 0, %s118
    %s133 = sphi 0, %s119
    %s137 = sphi 0, %s137
    %s139 = sphi 0, %s137
    %s140 = sphi 0, %s139
    %s154 = sphi 0, %s140
    %s158 = sphi 0, %s158
    %s160 = sphi 0, %s158
    %s161 = sphi 0, %s160
    %s175 = sphi 0, %s161
    %s179 = sphi 0, %s179
    %s181 = sphi 0, %s179
    %s182 = sphi 0, %s181
    %s196 = sphi 0, %s182
    %s200 = sphi 0, %s200
    %s202 = sphi 0, %s200
    %s203 = sphi 0, %s202
    %s217 = sphi 0, %s203
    %s221 = sphi 0, %s221
    %s223 = sphi 0, %s221
    %s224 = sphi 0, %s223
    %s238 = sphi 0, %s224
    %s242 = sphi 0, %s242
    %s244 = sphi 0, %s242
    %s245 = sphi 0, %s244
    %s259 = sphi 0, %s245
    %s263 = sphi 0, %s263
    %s265 = sphi 0, %s263
    %s266 = sphi 0, %s265
    %s280 = sphi 0, %s266
    %s284 = sphi 0, %s284
    %s286 = sphi 0, %s284
    %s287 = sphi 0, %s286
    %s301 = sphi 0, %s287
    %s307 = sphi 0, %s309
    %s310 = sphi 0, %s307
    %s311 = sphi 0, %s310
    %s327 = sphi 0, %s311
  $region4: #{forward.8} parent=0 // loop_header_branch
    %22 = sbr.rel (%p20) target = $region8
  $region5: #{forward.8} parent=0 // loop_body
    %s24 = ssub.s32 %s19, 1
    %s25 = ssub.s32 %s19, 2
    %s26 = sadd.s32 %s19, 1
    %s27 = ssub.s32 %s19, %s26
    %p28 = scmp.eq.s32.totalorder %s27, 0
    %s30 = sadd.s32 %s29, 1
    %s31 = scalar_select %p28, %s29, %s30
    %p34 = pneg %p28
    %p35 = scmp.eq.s32.totalorder %s19, 1
    %p36 = por %p34, %p35
    %p37 = scmp.ne.s32.totalorder %s29, %s32
    %p38 = scmp.eq.s32.totalorder %s19, 0
    %p39 = por %p37, %p38
    %p40 = scmp.ne.s32.totalorder %s29, %s32
    %p41 = scmp.eq.s32.totalorder %s24, 1
    %p42 = por %p40, %p41
    %p43 = scmp.ne.s32.totalorder %s32, %s33
    %p44 = scmp.eq.s32.totalorder %s24, 0
    %p45 = por %p43, %p44
    %p46 = scmp.ne.s32.totalorder %s32, %s33
    %p47 = scmp.eq.s32.totalorder %s25, 1
    %p48 = por %p46, %p47
    %p50 = scmp.ne.s32.totalorder %s33, %s49
    %p51 = scmp.eq.s32.totalorder %s25, 0
    %p52 = por %p50, %p51
    %s54 = sadd.s32 %s53, 1
    %p57 = scmp.eq.s32.totalorder %s19, 1
    %p58 = scmp.ne.s32.totalorder %s53, %s55
    %p59 = scmp.eq.s32.totalorder %s19, 0
    %p60 = por %p58, %p59
    %p61 = scmp.ne.s32.totalorder %s53, %s55
    %p62 = scmp.eq.s32.totalorder %s24, 1
    %p63 = por %p61, %p62
    %p64 = scmp.ne.s32.totalorder %s55, %s56
    %p65 = scmp.eq.s32.totalorder %s24, 0
    %p66 = por %p64, %p65
    %p67 = scmp.ne.s32.totalorder %s55, %s56
    %p68 = scmp.eq.s32.totalorder %s25, 1
    %p69 = por %p67, %p68
    %p71 = scmp.ne.s32.totalorder %s56, %s70
    %p72 = scmp.eq.s32.totalorder %s25, 0
    %p73 = por %p71, %p72
    %s75 = sadd.s32 %s74, 1
    %p78 = scmp.eq.s32.totalorder %s19, 1
    %p79 = scmp.ne.s32.totalorder %s74, %s76
    %p80 = scmp.eq.s32.totalorder %s19, 0
    %p81 = por %p79, %p80
    %p82 = scmp.ne.s32.totalorder %s74, %s76
    %p83 = scmp.eq.s32.totalorder %s24, 1
    %p84 = por %p82, %p83
    %p85 = scmp.ne.s32.totalorder %s76, %s77
    %p86 = scmp.eq.s32.totalorder %s24, 0
    %p87 = por %p85, %p86
    %p88 = scmp.ne.s32.totalorder %s76, %s77
    %p89 = scmp.eq.s32.totalorder %s25, 1
    %p90 = por %p88, %p89
    %p92 = scmp.ne.s32.totalorder %s77, %s91
    %p93 = scmp.eq.s32.totalorder %s25, 0
    %p94 = por %p92, %p93
    %s96 = sadd.s32 %s95, 1
    %p99 = scmp.eq.s32.totalorder %s19, 1
    %p100 = scmp.ne.s32.totalorder %s95, %s97
    %p101 = scmp.eq.s32.totalorder %s19, 0
    %p102 = por %p100, %p101
    %p103 = scmp.ne.s32.totalorder %s95, %s97
    %p104 = scmp.eq.s32.totalorder %s24, 1
    %p105 = por %p103, %p104
    %p106 = scmp.ne.s32.totalorder %s97, %s98
    %p107 = scmp.eq.s32.totalorder %s24, 0
    %p108 = por %p106, %p107
    %p109 = scmp.ne.s32.totalorder %s97, %s98
    %p110 = scmp.eq.s32.totalorder %s25, 1
    %p111 = por %p109, %p110
    %p113 = scmp.ne.s32.totalorder %s98, %s112
    %p114 = scmp.eq.s32.totalorder %s25, 0
    %p115 = por %p113, %p114
    %s117 = sadd.s32 %s116, 1
    %p120 = scmp.eq.s32.totalorder %s19, 1
    %p121 = scmp.ne.s32.totalorder %s116, %s118
    %p122 = scmp.eq.s32.totalorder %s19, 0
    %p123 = por %p121, %p122
    %p124 = scmp.ne.s32.totalorder %s116, %s118
    %p125 = scmp.eq.s32.totalorder %s24, 1
    %p126 = por %p124, %p125
    %p127 = scmp.ne.s32.totalorder %s118, %s119
    %p128 = scmp.eq.s32.totalorder %s24, 0
    %p129 = por %p127, %p128
    %p130 = scmp.ne.s32.totalorder %s118, %s119
    %p131 = scmp.eq.s32.totalorder %s25, 1
    %p132 = por %p130, %p131
    %p134 = scmp.ne.s32.totalorder %s119, %s133
    %p135 = scmp.eq.s32.totalorder %s25, 0
    %p136 = por %p134, %p135
    %s138 = sadd.s32 %s137, 1
    %p141 = scmp.eq.s32.totalorder %s19, 1
    %p142 = scmp.ne.s32.totalorder %s137, %s139
    %p143 = scmp.eq.s32.totalorder %s19, 0
    %p144 = por %p142, %p143
    %p145 = scmp.ne.s32.totalorder %s137, %s139
    %p146 = scmp.eq.s32.totalorder %s24, 1
    %p147 = por %p145, %p146
    %p148 = scmp.ne.s32.totalorder %s139, %s140
    %p149 = scmp.eq.s32.totalorder %s24, 0
    %p150 = por %p148, %p149
    %p151 = scmp.ne.s32.totalorder %s139, %s140
    %p152 = scmp.eq.s32.totalorder %s25, 1
    %p153 = por %p151, %p152
    %p155 = scmp.ne.s32.totalorder %s140, %s154
    %p156 = scmp.eq.s32.totalorder %s25, 0
    %p157 = por %p155, %p156
    %s159 = sadd.s32 %s158, 1
    %p162 = scmp.eq.s32.totalorder %s19, 1
    %p163 = scmp.ne.s32.totalorder %s158, %s160
    %p164 = scmp.eq.s32.totalorder %s19, 0
    %p165 = por %p163, %p164
    %p166 = scmp.ne.s32.totalorder %s158, %s160
    %p167 = scmp.eq.s32.totalorder %s24, 1
    %p168 = por %p166, %p167
    %p169 = scmp.ne.s32.totalorder %s160, %s161
    %p170 = scmp.eq.s32.totalorder %s24, 0
    %p171 = por %p169, %p170
    %p172 = scmp.ne.s32.totalorder %s160, %s161
    %p173 = scmp.eq.s32.totalorder %s25, 1
    %p174 = por %p172, %p173
    %p176 = scmp.ne.s32.totalorder %s161, %s175
    %p177 = scmp.eq.s32.totalorder %s25, 0
    %p178 = por %p176, %p177
    %s180 = sadd.s32 %s179, 1
    %p183 = scmp.eq.s32.totalorder %s19, 1
    %p184 = scmp.ne.s32.totalorder %s179, %s181
    %p185 = scmp.eq.s32.totalorder %s19, 0
    %p186 = por %p184, %p185
    %p187 = scmp.ne.s32.totalorder %s179, %s181
    %p188 = scmp.eq.s32.totalorder %s24, 1
    %p189 = por %p187, %p188
    %p190 = scmp.ne.s32.totalorder %s181, %s182
    %p191 = scmp.eq.s32.totalorder %s24, 0
    %p192 = por %p190, %p191
    %p193 = scmp.ne.s32.totalorder %s181, %s182
    %p194 = scmp.eq.s32.totalorder %s25, 1
    %p195 = por %p193, %p194
    %p197 = scmp.ne.s32.totalorder %s182, %s196
    %p198 = scmp.eq.s32.totalorder %s25, 0
    %p199 = por %p197, %p198
    %s201 = sadd.s32 %s200, 1
    %p204 = scmp.eq.s32.totalorder %s19, 1
    %p205 = scmp.ne.s32.totalorder %s200, %s202
    %p206 = scmp.eq.s32.totalorder %s19, 0
    %p207 = por %p205, %p206
    %p208 = scmp.ne.s32.totalorder %s200, %s202
    %p209 = scmp.eq.s32.totalorder %s24, 1
    %p210 = por %p208, %p209
    %p211 = scmp.ne.s32.totalorder %s202, %s203
    %p212 = scmp.eq.s32.totalorder %s24, 0
    %p213 = por %p211, %p212
    %p214 = scmp.ne.s32.totalorder %s202, %s203
    %p215 = scmp.eq.s32.totalorder %s25, 1
    %p216 = por %p214, %p215
    %p218 = scmp.ne.s32.totalorder %s203, %s217
    %p219 = scmp.eq.s32.totalorder %s25, 0
    %p220 = por %p218, %p219
    %s222 = sadd.s32 %s221, 1
    %p225 = scmp.eq.s32.totalorder %s19, 1
    %p226 = scmp.ne.s32.totalorder %s221, %s223
    %p227 = scmp.eq.s32.totalorder %s19, 0
    %p228 = por %p226, %p227
    %p229 = scmp.ne.s32.totalorder %s221, %s223
    %p230 = scmp.eq.s32.totalorder %s24, 1
    %p231 = por %p229, %p230
    %p232 = scmp.ne.s32.totalorder %s223, %s224
    %p233 = scmp.eq.s32.totalorder %s24, 0
    %p234 = por %p232, %p233
    %p235 = scmp.ne.s32.totalorder %s223, %s224
    %p236 = scmp.eq.s32.totalorder %s25, 1
    %p237 = por %p235, %p236
    %p239 = scmp.ne.s32.totalorder %s224, %s238
    %p240 = scmp.eq.s32.totalorder %s25, 0
    %p241 = por %p239, %p240
    %s243 = sadd.s32 %s242, 1
    %p246 = scmp.eq.s32.totalorder %s19, 1
    %p247 = scmp.ne.s32.totalorder %s242, %s244
    %p248 = scmp.eq.s32.totalorder %s19, 0
    %p249 = por %p247, %p248
    %p250 = scmp.ne.s32.totalorder %s242, %s244
    %p251 = scmp.eq.s32.totalorder %s24, 1
    %p252 = por %p250, %p251
    %p253 = scmp.ne.s32.totalorder %s244, %s245
    %p254 = scmp.eq.s32.totalorder %s24, 0
    %p255 = por %p253, %p254
    %p256 = scmp.ne.s32.totalorder %s244, %s245
    %p257 = scmp.eq.s32.totalorder %s25, 1
    %p258 = por %p256, %p257
    %p260 = scmp.ne.s32.totalorder %s245, %s259
    %p261 = scmp.eq.s32.totalorder %s25, 0
    %p262 = por %p260, %p261
    %s264 = sadd.s32 %s263, 1
    %p267 = scmp.eq.s32.totalorder %s19, 1
    %p268 = scmp.ne.s32.totalorder %s263, %s265
    %p269 = scmp.eq.s32.totalorder %s19, 0
    %p270 = por %p268, %p269
    %p271 = scmp.ne.s32.totalorder %s263, %s265
    %p272 = scmp.eq.s32.totalorder %s24, 1
    %p273 = por %p271, %p272
    %p274 = scmp.ne.s32.totalorder %s265, %s266
    %p275 = scmp.eq.s32.totalorder %s24, 0
    %p276 = por %p274, %p275
    %p277 = scmp.ne.s32.totalorder %s265, %s266
    %p278 = scmp.eq.s32.totalorder %s25, 1
    %p279 = por %p277, %p278
    %p281 = scmp.ne.s32.totalorder %s266, %s280
    %p282 = scmp.eq.s32.totalorder %s25, 0
    %p283 = por %p281, %p282
    %s285 = sadd.s32 %s284, 1
    %p288 = scmp.eq.s32.totalorder %s19, 1
    %p289 = scmp.ne.s32.totalorder %s284, %s286
    %p290 = scmp.eq.s32.totalorder %s19, 0
    %p291 = por %p289, %p290
    %p292 = scmp.ne.s32.totalorder %s284, %s286
    %p293 = scmp.eq.s32.totalorder %s24, 1
    %p294 = por %p292, %p293
    %p295 = scmp.ne.s32.totalorder %s286, %s287
    %p296 = scmp.eq.s32.totalorder %s24, 0
    %p297 = por %p295, %p296
    %p298 = scmp.ne.s32.totalorder %s286, %s287
    %p299 = scmp.eq.s32.totalorder %s25, 1
    %p300 = por %p298, %p299
    %p302 = scmp.ne.s32.totalorder %s287, %s301
    %p303 = scmp.eq.s32.totalorder %s25, 0
    %p304 = por %p302, %p303
    %s305 = ssub.s32 %s19, %s26
    %p306 = scmp.eq.s32.totalorder %s305, 0
    %s308 = sadd.s32 %s307, 1
    %s309 = scalar_select %p306, %s307, %s308
    %p312 = pneg %p306
    %p313 = scmp.eq.s32.totalorder %s19, 1
    %p314 = por %p312, %p313
    %p315 = scmp.ne.s32.totalorder %s307, %s310
    %p316 = scmp.eq.s32.totalorder %s19, 0
    %p317 = por %p315, %p316
    %p318 = scmp.ne.s32.totalorder %s307, %s310
    %p319 = scmp.eq.s32.totalorder %s24, 1
    %p320 = por %p318, %p319
    %p321 = scmp.ne.s32.totalorder %s310, %s311
    %p322 = scmp.eq.s32.totalorder %s24, 0
    %p323 = por %p321, %p322
    %p324 = scmp.ne.s32.totalorder %s310, %s311
    %p325 = scmp.eq.s32.totalorder %s25, 1
    %p326 = por %p324, %p325
    %p328 = scmp.ne.s32.totalorder %s311, %s327
    %p329 = scmp.eq.s32.totalorder %s25, 0
    %p330 = por %p328, %p329
    %p331 = scmp.le.s32.totalorder 1, %s19
    %p332 = scmp.lt.s32.totalorder %s19, 3
    %p333 = pnand %p331, %p332
    %p334 = pneg %p333
    // Predicated region
    $region9: #{forward.8} parent=5 // pred_check
      _
    $region10: #{forward.8} parent=5 // pred_check_branch
      %336 = sbr.rel (%p333) target = $region12
    $region11: #{forward.8} parent=5 // pred_region
      %s337 = ssub.s32 %s19, 1
      // Predicated region
      $region13: #{forward.8} parent=11 // pred_check
        %p338 = pneg %p66
      $region14: #{forward.8} parent=11 // pred_check_branch
        %340 = sbr.rel (%p338) target = $region16
      $region15: #{forward.8} parent=11 // pred_region
        _
      $region16: #{forward.8} parent=11 // pred_fallthru
        _
      // Predicated region
      $region17: #{forward.8} parent=11 // pred_check
        %p341 = pneg %p87
      $region18: #{forward.8} parent=11 // pred_check_branch
        %343 = sbr.rel (%p341) target = $region20
      $region19: #{forward.8} parent=11 // pred_region
        _
      $region20: #{forward.8} parent=11 // pred_fallthru
        _
      // Predicated region
      $region21: #{forward.8} parent=11 // pred_check
        %p344 = pneg %p108
      $region22: #{forward.8} parent=11 // pred_check_branch
        %346 = sbr.rel (%p344) target = $region24
      $region23: #{forward.8} parent=11 // pred_region
        _
      $region24: #{forward.8} parent=11 // pred_fallthru
        _
      // Predicated region
      $region25: #{forward.8} parent=11 // pred_check
        %p347 = pneg %p129
      $region26: #{forward.8} parent=11 // pred_check_branch
        %349 = sbr.rel (%p347) target = $region28
      $region27: #{forward.8} parent=11 // pred_region
        _
      $region28: #{forward.8} parent=11 // pred_fallthru
        _
      // Predicated region
      $region29: #{forward.8} parent=11 // pred_check
        %p350 = pneg %p150
      $region30: #{forward.8} parent=11 // pred_check_branch
        %352 = sbr.rel (%p350) target = $region32
      $region31: #{forward.8} parent=11 // pred_region
        _
      $region32: #{forward.8} parent=11 // pred_fallthru
        _
      // Predicated region
      $region33: #{forward.8} parent=11 // pred_check
        %p353 = pneg %p171
      $region34: #{forward.8} parent=11 // pred_check_branch
        %355 = sbr.rel (%p353) target = $region36
      $region35: #{forward.8} parent=11 // pred_region
        _
      $region36: #{forward.8} parent=11 // pred_fallthru
        _
      // Predicated region
      $region37: #{forward.8} parent=11 // pred_check
        %p356 = pneg %p192
      $region38: #{forward.8} parent=11 // pred_check_branch
        %358 = sbr.rel (%p356) target = $region40
      $region39: #{forward.8} parent=11 // pred_region
        _
      $region40: #{forward.8} parent=11 // pred_fallthru
        _
      // Predicated region
      $region41: #{forward.8} parent=11 // pred_check
        %p359 = pneg %p213
      $region42: #{forward.8} parent=11 // pred_check_branch
        %361 = sbr.rel (%p359) target = $region44
      $region43: #{forward.8} parent=11 // pred_region
        _
      $region44: #{forward.8} parent=11 // pred_fallthru
        _
      // Predicated region
      $region45: #{forward.8} parent=11 // pred_check
        %p362 = pneg %p234
      $region46: #{forward.8} parent=11 // pred_check_branch
        %364 = sbr.rel (%p362) target = $region48
      $region47: #{forward.8} parent=11 // pred_region
        _
      $region48: #{forward.8} parent=11 // pred_fallthru
        _
      // Predicated region
      $region49: #{forward.8} parent=11 // pred_check
        %p365 = pneg %p255
      $region50: #{forward.8} parent=11 // pred_check_branch
        %367 = sbr.rel (%p365) target = $region52
      $region51: #{forward.8} parent=11 // pred_region
        _
      $region52: #{forward.8} parent=11 // pred_fallthru
        _
      // Predicated region
      $region53: #{forward.8} parent=11 // pred_check
        %p368 = pneg %p276
      $region54: #{forward.8} parent=11 // pred_check_branch
        %370 = sbr.rel (%p368) target = $region56
      $region55: #{forward.8} parent=11 // pred_region
        _
      $region56: #{forward.8} parent=11 // pred_fallthru
        _
      // Predicated region
      $region57: #{forward.8} parent=11 // pred_check
        %p371 = pneg %p297
      $region58: #{forward.8} parent=11 // pred_check_branch
        %373 = sbr.rel (%p371) target = $region60
      $region59: #{forward.8} parent=11 // pred_region
        _
      $region60: #{forward.8} parent=11 // pred_fallthru
        _
    $region12: #{forward.8} parent=5 // pred_fallthru
      _
    %p374 = scmp.lt.s32.totalorder %s19, 2
    // Predicated region
    $region61: #{forward.8} parent=5 // pred_check
      %p375 = pneg %p374
    $region62: #{forward.8} parent=5 // pred_check_branch
      %377 = sbr.rel (%p375) target = $region64
    $region63: #{forward.8} parent=5 // pred_region
      // Predicated region
      $region65: #{forward.8} parent=63 // pred_check
        %p378 = pneg %p39
      $region66: #{forward.8} parent=63 // pred_check_branch
        %380 = sbr.rel (%p378) target = $region68
      $region67: #{forward.8} parent=63 // pred_region
        %p381 = scmp.lt.s32.totalorder %s19, 1
        %s382 = scalar_select %p381, %s19, 1
        %s383 = smul.addr %s382, 8
        %s384 = smul.addr %s383, 4
        %s385 = scalar_lea.vmem %s0, %s384
      $region68: #{forward.8} parent=63 // pred_fallthru
        _
    $region64: #{forward.8} parent=5 // pred_fallthru
      _
    %p386 = scmp.le.s32.totalorder 1, %s19
    %p387 = scmp.lt.s32.totalorder %s19, 3
    %p388 = pnand %p386, %p387
    %p389 = pneg %p388
    // Predicated region
    $region69: #{forward.8} parent=5 // pred_check
      _
    $region70: #{forward.8} parent=5 // pred_check_branch
      %391 = sbr.rel (%p388) target = $region72
    $region71: #{forward.8} parent=5 // pred_region
      %s392 = ssub.s32 %s19, 1
      %p393 = scmp.lt.s32.totalorder %s24, 1
      %s394 = scalar_select %p393, %s24, 1
      %s395 = smul.addr %s394, 8
      %s396 = smul.addr %s395, 4
      %s397 = scalar_lea.vmem %s0, %s396
      %p398 = pneg %p45
      %p399 = pneg %p42
      %p400 = pneg %p66
      %p401 = pneg %p63
      %p402 = pneg %p87
      %p403 = pneg %p84
      %p404 = pneg %p108
      %p405 = pneg %p105
      %p406 = pneg %p129
      %p407 = pneg %p126
      %p408 = pneg %p150
      %p409 = pneg %p147
      %p410 = pneg %p171
      %p411 = pneg %p168
      %p412 = pneg %p192
      %p413 = pneg %p189
      %p414 = pneg %p213
      %p415 = pneg %p210
      %p416 = pneg %p234
      %p417 = pneg %p231
      %p418 = pneg %p255
      %p419 = pneg %p252
      %p420 = pneg %p276
      %p421 = pneg %p273
      %p422 = pneg %p297
      %p423 = pneg %p294
      %p424 = pneg %p323
      %p425 = pneg %p320
      %p426 = scmp.lt.s32.totalorder %s24, 1
      %s427 = scalar_select %p426, %s24, 1
      %s428 = smul.addr %s427, 8
      %s429 = smul.addr %s428, 4
      %s430 = scalar_lea.vmem %s13, %s429
      %p431 = scmp.lt.s32.totalorder %s24, 1
      %s432 = scalar_select %p431, %s24, 1
      %s433 = smul.addr %s432, 8
      %s434 = smul.addr %s433, 4
      %s435 = scalar_lea.vmem %s0, %s434
      %p436 = scmp.lt.s32.totalorder %s24, 1
      %s437 = scalar_select %p436, %s24, 1
      %s438 = smul.addr %s437, 8
      %s439 = smul.addr %s438, 4
      %s440 = scalar_lea.vmem %s13, %s439
      %v442 = vld [vmem:[%s435] sm:$0xf]
      %v443 = vld [vmem:[%s435 + $0x4] sm:$0xf]
      %v444 = vld [vmem:[%s435 + $0x8] sm:$0xf]
      %v445 = vld [vmem:[%s435 + $0xc] sm:$0xf]
      %v446 = vld [vmem:[%s435 + $0x10] sm:$0xf]
      %v447 = vld [vmem:[%s435 + $0x14] sm:$0xf]
      %v448 = vld [vmem:[%s435 + $0x18] sm:$0xf]
      %v449 = vld [vmem:[%s435 + $0x1c] sm:$0xf]
      %v450 = vld [vmem:[%s1] sm:$0xf]
      %v451 = vld [vmem:[%s1 + $0x4] sm:$0xf]
      %v452 = vld [vmem:[%s1 + $0x8] sm:$0xf]
      %v453 = vld [vmem:[%s1 + $0xc] sm:$0xf]
      %v454 = vld [vmem:[%s1 + $0x10] sm:$0xf]
      %v455 = vld [vmem:[%s1 + $0x14] sm:$0xf]
      %v456 = vld [vmem:[%s1 + $0x18] sm:$0xf]
      %v457 = vld [vmem:[%s1 + $0x1c] sm:$0xf]
      %v458 = vld [vmem:[%s1 + $0x20] sm:$0xf]
      %v459 = vld [vmem:[%s1 + $0x24] sm:$0xf]
      %v460 = vld [vmem:[%s1 + $0x28] sm:$0xf]
      %v461 = vld [vmem:[%s1 + $0x2c] sm:$0xf]
      %v462 = vld [vmem:[%s1 + $0x30] sm:$0xf]
      %v463 = vld [vmem:[%s1 + $0x34] sm:$0xf]
      %v464 = vld [vmem:[%s1 + $0x38] sm:$0xf]
      %v465 = vld [vmem:[%s1 + $0x3c] sm:$0xf]
      %v474 = vunpack.c.l.b16 %v442
      %v475 = vunpack.c.l.b16 %v443
      %v476 = vunpack.c.l.b16 %v444
      %v477 = vunpack.c.l.b16 %v445
      %v478 = vunpack.c.l.b16 %v446
      %v479 = vunpack.c.l.b16 %v447
      %v480 = vunpack.c.l.b16 %v448
      %v481 = vunpack.c.l.b16 %v449
      %v482 = vpack.c.b16 %v475, %v474
      %v483 = vpack.c.b16 %v477, %v476
      %v484 = vpack.c.b16 %v479, %v478
      %v485 = vpack.c.b16 %v481, %v480
      %v506 = vunpack.c.l.b16 %v450
      %v507 = vunpack.c.l.b16 %v451
      %v508 = vunpack.c.l.b16 %v452
      %v509 = vunpack.c.l.b16 %v453
      %v510 = vunpack.c.l.b16 %v454
      %v511 = vunpack.c.l.b16 %v455
      %v512 = vunpack.c.l.b16 %v456
      %v513 = vunpack.c.l.b16 %v457
      %v514 = vunpack.c.l.b16 %v458
      %v515 = vunpack.c.l.b16 %v459
      %v516 = vunpack.c.l.b16 %v460
      %v517 = vunpack.c.l.b16 %v461
      %v518 = vunpack.c.l.b16 %v462
      %v519 = vunpack.c.l.b16 %v463
      %v520 = vunpack.c.l.b16 %v464
      %v521 = vunpack.c.l.b16 %v465
      %v522 = vpack.c.b16 %v507, %v506
      %v523 = vpack.c.b16 %v509, %v508
      %v524 = vpack.c.b16 %v511, %v510
      %v525 = vpack.c.b16 %v513, %v512
      %v526 = vpack.c.b16 %v515, %v514
      %v527 = vpack.c.b16 %v517, %v516
      %v528 = vpack.c.b16 %v519, %v518
      %v529 = vpack.c.b16 %v521, %v520
      %538 = vmatprep.subr.bf16.mxu0 0
      %539 = vmatpush1.bf16.msra.mxu0 %v529
      %540 = vmatprep.subr.bf16.mxu0 0
      %541 = vmatpush1.bf16.msra.mxu0 %v528
      %542 = vmatprep.subr.bf16.mxu0 0
      %543 = vmatpush1.bf16.msra.mxu0 %v527
      %544 = vmatprep.subr.bf16.mxu0 0
      %545 = vmatpush1.bf16.msra.mxu0 %v526
      %546 = vmatprep.subr.bf16.mxu0 0
      %547 = vmatpush1.bf16.msra.mxu0 %v525
      %548 = vmatprep.subr.bf16.mxu0 0
      %549 = vmatpush1.bf16.msra.mxu0 %v524
      %550 = vmatprep.subr.bf16.mxu0 0
      %551 = vmatpush1.bf16.msra.mxu0 %v523
      %552 = vmatprep.subr.bf16.mxu0 0
      %553 = vmatpush1.bf16.msra.mxu0 %v522
      %554 = vmatprep.subr.bf16.mxu0 0
      %555 = vmatpush2.bf16.msra.mxu0 0
      %556 = vmatprep.subr.bf16.mxu0 0
      %557 = vmatpush2.bf16.msra.mxu0 0
      %558 = vmatprep.subr.bf16.mxu0 0
      %559 = vmatpush2.bf16.msra.mxu0 0
      %560 = vmatprep.subr.bf16.mxu0 0
      %561 = vmatpush2.bf16.msra.mxu0 0
      %562 = vmatprep.subr.bf16.mxu0 0
      %563 = vmatpush2.bf16.msra.mxu0 0
      %564 = vmatprep.subr.bf16.mxu0 0
      %565 = vmatpush2.bf16.msra.mxu0 0
      %566 = vmatprep.subr.bf16.mxu0 0
      %567 = vmatpush2.bf16.msra.mxu0 0
      %568 = vmatprep.subr.bf16.mxu0 0
      %569 = vmatpush2.bf16.msra.mxu0 0
      %570 = vmatprep.mubr.bf16.mxu0 0
      %571 = vmatmul.mubr.bf16.gmra.mxu0 %v482
      %v572 = vpop.f32.mrf.mxu0
      %v573 = vadd.f32 0.0, %v572
      %v574 = vpop.f32.mrf.mxu0
      %v575 = vpop.f32.mrf.mxu0
      %v576 = vadd.f32 0.0, %v575
      %v577 = vpop.f32.mrf.mxu0
      %578 = vmatprep.mubr.bf16.mxu0 0
      %579 = vmatmul.mubr.bf16.gmra.mxu0 %v483
      %v580 = vpop.f32.mrf.mxu0
      %v581 = vadd.f32 0.0, %v580
      %v582 = vpop.f32.mrf.mxu0
      %v583 = vpop.f32.mrf.mxu0
      %v584 = vadd.f32 0.0, %v583
      %v585 = vpop.f32.mrf.mxu0
      %586 = vmatprep.mubr.bf16.mxu0 0
      %587 = vmatmul.mubr.bf16.gmra.mxu0 %v484
      %v588 = vpop.f32.mrf.mxu0
      %v589 = vadd.f32 0.0, %v588
      %v590 = vpop.f32.mrf.mxu0
      %v591 = vpop.f32.mrf.mxu0
      %v592 = vadd.f32 0.0, %v591
      %v593 = vpop.f32.mrf.mxu0
      %594 = vmatprep.mubr.bf16.mxu0 0
      %595 = vmatmul.mubr.bf16.gmra.mxu0 %v485
      %v596 = vpop.f32.mrf.mxu0
      %v597 = vadd.f32 0.0, %v596
      %v598 = vpop.f32.mrf.mxu0
      %v599 = vpop.f32.mrf.mxu0
      %v600 = vadd.f32 0.0, %v599
      %v601 = vpop.f32.mrf.mxu0
      %602 = vdwg.mxu0
      %v603 = vld [vmem:[%s2] sm:$0x1]
      %v605 = vlaneseq
      %v606 = vshrl.u32 %v605, 7
      %v607 = vsub.s32 0, %v606
      %v608 = vrot.slane %v603, %v607
      %v610 = vmul.f32 %v573, %v608
      %v611 = vmul.f32 %v576, %v608
      %v612 = vmul.f32 %v581, %v608
      %v613 = vmul.f32 %v584, %v608
      %v614 = vmul.f32 %v589, %v608
      %v615 = vmul.f32 %v592, %v608
      %v616 = vmul.f32 %v597, %v608
      %v617 = vmul.f32 %v600, %v608
      %v618 = vld [vmem:[%s3] sm:$0x1]
      %v620 = vlaneseq
      %v621 = vshrl.u32 %v620, 7
      %v622 = vsub.s32 0, %v621
      %v623 = vrot.slane %v618, %v622
      %v625 = vadd.f32 %v610, %v623
      %v626 = vadd.f32 %v611, %v623
      %v627 = vadd.f32 %v612, %v623
      %v628 = vadd.f32 %v613, %v623
      %v629 = vadd.f32 %v614, %v623
      %v630 = vadd.f32 %v615, %v623
      %v631 = vadd.f32 %v616, %v623
      %v632 = vadd.f32 %v617, %v623
      %v633 = vxor.u32 %v625, 2147483648
      %v634 = vxor.u32 %v626, 2147483648
      %v635 = vxor.u32 %v627, 2147483648
      %v636 = vxor.u32 %v628, 2147483648
      %v637 = vxor.u32 %v629, 2147483648
      %v638 = vxor.u32 %v630, 2147483648
      %v639 = vxor.u32 %v631, 2147483648
      %v640 = vxor.u32 %v632, 2147483648
      %v641 = vmul.f32 %v633, 1.442695
      %v642 = vpow.pop %v641
      %v643 = vmul.f32 %v634, 1.442695
      %v644 = vpow.pop %v643
      %v645 = vmul.f32 %v635, 1.442695
      %v646 = vpow.pop %v645
      %v647 = vmul.f32 %v636, 1.442695
      %v648 = vpow.pop %v647
      %v649 = vmul.f32 %v637, 1.442695
      %v650 = vpow.pop %v649
      %v651 = vmul.f32 %v638, 1.442695
      %v652 = vpow.pop %v651
      %v653 = vmul.f32 %v639, 1.442695
      %v654 = vpow.pop %v653
      %v655 = vmul.f32 %v640, 1.442695
      %v656 = vpow.pop %v655
      %v657 = vadd.f32 %v642, 1.0
      %v658 = vadd.f32 %v644, 1.0
      %v659 = vadd.f32 %v646, 1.0
      %v660 = vadd.f32 %v648, 1.0
      %v661 = vadd.f32 %v650, 1.0
      %v662 = vadd.f32 %v652, 1.0
      %v663 = vadd.f32 %v654, 1.0
      %v664 = vadd.f32 %v656, 1.0
      %v665 = vrcp.pop %v657
      %v666 = vmul.f32 1.0, %v665
      %v667 = vrcp.pop %v658
      %v668 = vmul.f32 1.0, %v667
      %v669 = vrcp.pop %v659
      %v670 = vmul.f32 1.0, %v669
      %v671 = vrcp.pop %v660
      %v672 = vmul.f32 1.0, %v671
      %v673 = vrcp.pop %v661
      %v674 = vmul.f32 1.0, %v673
      %v675 = vrcp.pop %v662
      %v676 = vmul.f32 1.0, %v675
      %v677 = vrcp.pop %v663
      %v678 = vmul.f32 1.0, %v677
      %v679 = vrcp.pop %v664
      %v680 = vmul.f32 1.0, %v679
      %v681 = vmul.f32 %v625, %v666
      %v682 = vmul.f32 %v626, %v668
      %v683 = vmul.f32 %v627, %v670
      %v684 = vmul.f32 %v628, %v672
      %v685 = vmul.f32 %v629, %v674
      %v686 = vmul.f32 %v630, %v676
      %v687 = vmul.f32 %v631, %v678
      %v688 = vmul.f32 %v632, %v680
      %689 = vst [vmem:[#allocation2] sm:$0xff] 0.0
      %690 = vst [vmem:[#allocation2 + $0x8] sm:$0xff] 0.0
      %691 = vst [vmem:[#allocation2 + $0x10] sm:$0xff] 0.0
      %692 = vst [vmem:[#allocation2 + $0x18] sm:$0xff] 0.0
      %693 = vst [vmem:[#allocation2 + $0x20] sm:$0xff] 0.0
      %694 = vst [vmem:[#allocation2 + $0x28] sm:$0xff] 0.0
      %695 = vst [vmem:[#allocation2 + $0x30] sm:$0xff] 0.0
      %696 = vst [vmem:[#allocation2 + $0x38] sm:$0xff] 0.0
      %697 = vst [vmem:[#allocation2 + $0x40] sm:$0xff] 0.0
      %698 = vst [vmem:[#allocation2 + $0x48] sm:$0xff] 0.0
      %699 = vst [vmem:[#allocation2 + $0x50] sm:$0xff] 0.0
      %700 = vst [vmem:[#allocation2 + $0x58] sm:$0xff] 0.0
      %701 = vst [vmem:[#allocation2 + $0x10] sm:$0xff] %v681
      %702 = vst [vmem:[#allocation2 + $0x18] sm:$0xff] %v682
      %703 = vst [vmem:[#allocation2 + $0x20] sm:$0xff] %v683
      %704 = vst [vmem:[#allocation2 + $0x28] sm:$0xff] %v684
      %705 = vst [vmem:[#allocation2 + $0x30] sm:$0xff] %v685
      %706 = vst [vmem:[#allocation2 + $0x38] sm:$0xff] %v686
      %707 = vst [vmem:[#allocation2 + $0x40] sm:$0xff] %v687
      %708 = vst [vmem:[#allocation2 + $0x48] sm:$0xff] %v688
      %v709 = vlaneseq
      %v710 = vshrl.u32 %v709, 7
      %v711 = vadd.s32 %v710, 8
      %v712 = vadd.s32 %v710, 16
      %v713 = vadd.s32 %v710, 24
      %v714 = vadd.s32 %v710, 32
      %v715 = vadd.s32 %v710, 40
      %v716 = vadd.s32 %v710, 48
      %v717 = vadd.s32 %v710, 56
      %vm718 = vcmp.lt.s32.totalorder %v710, 0
      %v719 = vsub.s32 0, %v710
      %v720 = vsel %vm718, %v719, %v710
      %v721 = vshrl.u32 %v720, 3
      %v722 = vand.u32 %v720, 7
      %v723 = vsub.s32 0, %v722
      %v724 = vsel %vm718, %v723, %v722
      %vm725 = vcmp.lt.s32.totalorder %v711, 0
      %v726 = vsub.s32 0, %v711
      %v727 = vsel %vm725, %v726, %v711
      %v728 = vshrl.u32 %v727, 3
      %v729 = vand.u32 %v727, 7
      %v730 = vsub.s32 0, %v729
      %v731 = vsel %vm725, %v730, %v729
      %vm732 = vcmp.lt.s32.totalorder %v712, 0
      %v733 = vsub.s32 0, %v712
      %v734 = vsel %vm732, %v733, %v712
      %v735 = vshrl.u32 %v734, 3
      %v736 = vand.u32 %v734, 7
      %v737 = vsub.s32 0, %v736
      %v738 = vsel %vm732, %v737, %v736
      %vm739 = vcmp.lt.s32.totalorder %v713, 0
      %v740 = vsub.s32 0, %v713
      %v741 = vsel %vm739, %v740, %v713
      %v742 = vshrl.u32 %v741, 3
      %v743 = vand.u32 %v741, 7
      %v744 = vsub.s32 0, %v743
      %v745 = vsel %vm739, %v744, %v743
      %vm746 = vcmp.lt.s32.totalorder %v714, 0
      %v747 = vsub.s32 0, %v714
      %v748 = vsel %vm746, %v747, %v714
      %v749 = vshrl.u32 %v748, 3
      %v750 = vand.u32 %v748, 7
      %v751 = vsub.s32 0, %v750
      %v752 = vsel %vm746, %v751, %v750
      %vm753 = vcmp.lt.s32.totalorder %v715, 0
      %v754 = vsub.s32 0, %v715
      %v755 = vsel %vm753, %v754, %v715
      %v756 = vshrl.u32 %v755, 3
      %v757 = vand.u32 %v755, 7
      %v758 = vsub.s32 0, %v757
      %v759 = vsel %vm753, %v758, %v757
      %vm760 = vcmp.lt.s32.totalorder %v716, 0
      %v761 = vsub.s32 0, %v716
      %v762 = vsel %vm760, %v761, %v716
      %v763 = vshrl.u32 %v762, 3
      %v764 = vand.u32 %v762, 7
      %v765 = vsub.s32 0, %v764
      %v766 = vsel %vm760, %v765, %v764
      %vm767 = vcmp.lt.s32.totalorder %v717, 0
      %v768 = vsub.s32 0, %v717
      %v769 = vsel %vm767, %v768, %v717
      %v770 = vshrl.u32 %v769, 3
      %v771 = vand.u32 %v769, 7
      %v772 = vsub.s32 0, %v771
      %v773 = vsel %vm767, %v772, %v771
      %vm774 = vcmp.ne.s32.totalorder %v724, 0
      %vm775 = vcmp.ne.s32.totalorder %v731, 0
      %vm776 = vcmp.ne.s32.totalorder %v738, 0
      %vm777 = vcmp.ne.s32.totalorder %v745, 0
      %vm778 = vcmp.ne.s32.totalorder %v752, 0
      %vm779 = vcmp.ne.s32.totalorder %v759, 0
      %vm780 = vcmp.ne.s32.totalorder %v766, 0
      %vm781 = vcmp.ne.s32.totalorder %v773, 0
      %vm782 = vcmp.lt.s32.totalorder %v724, 0
      %vm783 = vcmp.lt.s32.totalorder %v731, 0
      %vm784 = vcmp.lt.s32.totalorder %v738, 0
      %vm785 = vcmp.lt.s32.totalorder %v745, 0
      %vm786 = vcmp.lt.s32.totalorder %v752, 0
      %vm787 = vcmp.lt.s32.totalorder %v759, 0
      %vm788 = vcmp.lt.s32.totalorder %v766, 0
      %vm789 = vcmp.lt.s32.totalorder %v773, 0
      %vm790 = vmand %vm782, %vm774
      %vm791 = vmand %vm783, %vm775
      %vm792 = vmand %vm784, %vm776
      %vm793 = vmand %vm785, %vm777
      %vm794 = vmand %vm786, %vm778
      %vm795 = vmand %vm787, %vm779
      %vm796 = vmand %vm788, %vm780
      %vm797 = vmand %vm789, %vm781
      %v798 = vadd.s32 %v724, 8
      %v799 = vadd.s32 %v731, 8
      %v800 = vadd.s32 %v738, 8
      %v801 = vadd.s32 %v745, 8
      %v802 = vadd.s32 %v752, 8
      %v803 = vadd.s32 %v759, 8
      %v804 = vadd.s32 %v766, 8
      %v805 = vadd.s32 %v773, 8
      %v806 = vsel %vm790, %v798, %v724
      %v807 = vsel %vm791, %v799, %v731
      %v808 = vsel %vm792, %v800, %v738
      %v809 = vsel %vm793, %v801, %v745
      %v810 = vsel %vm794, %v802, %v752
      %v811 = vsel %vm795, %v803, %v759
      %v812 = vsel %vm796, %v804, %v766
      %v813 = vsel %vm797, %v805, %v773
      %v814 = vld [vmem:[%s4] sm:$0x1]
      %v815 = vld [vmem:[%s4 + $0x1] sm:$0x1]
      %v816 = vld [vmem:[%s4 + $0x2] sm:$0x1]
      %v817 = vld [vmem:[%s4 + $0x3] sm:$0x1]
      %v818 = vld [vmem:[%s4 + $0x4] sm:$0x1]
      %v819 = vld [vmem:[%s4 + $0x5] sm:$0x1]
      %v820 = vld [vmem:[%s4 + $0x6] sm:$0x1]
      %v821 = vld [vmem:[%s4 + $0x7] sm:$0x1]
      %v822 = vld [vmem:[%s4 + $0x8] sm:$0x1]
      %v823 = vld [vmem:[#allocation2 + $0x7] sm:$0xff]
      %v824 = vld [vmem:[#allocation2 + $0xf] sm:$0xff]
      %v825 = vld [vmem:[#allocation2 + $0x17] sm:$0xff]
      %v826 = vld [vmem:[#allocation2 + $0x1f] sm:$0xff]
      %v827 = vld [vmem:[#allocation2 + $0x27] sm:$0xff]
      %v828 = vld [vmem:[#allocation2 + $0x2f] sm:$0xff]
      %v829 = vld [vmem:[#allocation2 + $0x37] sm:$0xff]
      %v830 = vld [vmem:[#allocation2 + $0x3f] sm:$0xff]
      %vm831 = vcmp.ge.s32.totalorder %v806, 1
      %vm832 = vcmp.ge.s32.totalorder %v807, 1
      %vm833 = vcmp.ge.s32.totalorder %v808, 1
      %vm834 = vcmp.ge.s32.totalorder %v809, 1
      %vm835 = vcmp.ge.s32.totalorder %v810, 1
      %vm836 = vcmp.ge.s32.totalorder %v811, 1
      %vm837 = vcmp.ge.s32.totalorder %v812, 1
      %vm838 = vcmp.ge.s32.totalorder %v813, 1
      %vm839 = vcmp.lt.s32.totalorder %v806, 9
      %vm840 = vcmp.lt.s32.totalorder %v807, 9
      %vm841 = vcmp.lt.s32.totalorder %v808, 9
      %vm842 = vcmp.lt.s32.totalorder %v809, 9
      %vm843 = vcmp.lt.s32.totalorder %v810, 9
      %vm844 = vcmp.lt.s32.totalorder %v811, 9
      %vm845 = vcmp.lt.s32.totalorder %v812, 9
      %vm846 = vcmp.lt.s32.totalorder %v813, 9
      %vm847 = vmand %vm831, %vm839
      %vm848 = vmand %vm832, %vm840
      %vm849 = vmand %vm833, %vm841
      %vm850 = vmand %vm834, %vm842
      %vm851 = vmand %vm835, %vm843
      %vm852 = vmand %vm836, %vm844
      %vm853 = vmand %vm837, %vm845
      %vm854 = vmand %vm838, %vm846
      %v855 = vsel %vm847, 1, 0
      %v856 = vsel %vm848, 1, 0
      %v857 = vsel %vm849, 1, 0
      %v858 = vsel %vm850, 1, 0
      %v859 = vsel %vm851, 1, 0
      %v860 = vsel %vm852, 1, 0
      %v861 = vsel %vm853, 1, 0
      %v862 = vsel %vm854, 1, 0
      %vm863 = vcmp.eq.s32.totalorder %v855, 1
      %vm864 = vcmp.eq.s32.totalorder %v856, 1
      %vm865 = vcmp.eq.s32.totalorder %v857, 1
      %vm866 = vcmp.eq.s32.totalorder %v858, 1
      %vm867 = vcmp.eq.s32.totalorder %v859, 1
      %vm868 = vcmp.eq.s32.totalorder %v860, 1
      %vm869 = vcmp.eq.s32.totalorder %v861, 1
      %vm870 = vcmp.eq.s32.totalorder %v862, 1
      %v871 = vsel %vm863, %v823, 0.0
      %v872 = vsel %vm864, %v824, 0.0
      %v873 = vsel %vm865, %v825, 0.0
      %v874 = vsel %vm866, %v826, 0.0
      %v875 = vsel %vm867, %v827, 0.0
      %v876 = vsel %vm868, %v828, 0.0
      %v877 = vsel %vm869, %v829, 0.0
      %v878 = vsel %vm870, %v830, 0.0
      %v880 = vlaneseq
      %v881 = vshrl.u32 %v880, 7
      %v882 = vsub.s32 0, %v881
      %v883 = vrot.slane %v814, %v882
      %v885 = vmul.f32 %v871, %v883
      %v886 = vmul.f32 %v872, %v883
      %v887 = vmul.f32 %v873, %v883
      %v888 = vmul.f32 %v874, %v883
      %v889 = vmul.f32 %v875, %v883
      %v890 = vmul.f32 %v876, %v883
      %v891 = vmul.f32 %v877, %v883
      %v892 = vmul.f32 %v878, %v883
      %v893 = vadd.f32 %v885, 0.0
      %v894 = vadd.f32 %v886, 0.0
      %v895 = vadd.f32 %v887, 0.0
      %v896 = vadd.f32 %v888, 0.0
      %v897 = vadd.f32 %v889, 0.0
      %v898 = vadd.f32 %v890, 0.0
      %v899 = vadd.f32 %v891, 0.0
      %v900 = vadd.f32 %v892, 0.0
      %v901 = vld [vmem:[#allocation2 + $0x8] sm:$0xff]
      %v902 = vld [vmem:[#allocation2 + $0x10] sm:$0xff]
      %v903 = vld [vmem:[#allocation2 + $0x18] sm:$0xff]
      %v904 = vld [vmem:[#allocation2 + $0x20] sm:$0xff]
      %v905 = vld [vmem:[#allocation2 + $0x28] sm:$0xff]
      %v906 = vld [vmem:[#allocation2 + $0x30] sm:$0xff]
      %v907 = vld [vmem:[#allocation2 + $0x38] sm:$0xff]
      %v908 = vld [vmem:[#allocation2 + $0x40] sm:$0xff]
      %v910 = vlaneseq
      %v911 = vshrl.u32 %v910, 7
      %v912 = vsub.s32 0, %v911
      %v913 = vrot.slane %v815, %v912
      %v915 = vmul.f32 %v901, %v913
      %v916 = vmul.f32 %v902, %v913
      %v917 = vmul.f32 %v903, %v913
      %v918 = vmul.f32 %v904, %v913
      %v919 = vmul.f32 %v905, %v913
      %v920 = vmul.f32 %v906, %v913
      %v921 = vmul.f32 %v907, %v913
      %v922 = vmul.f32 %v908, %v913
      %v923 = vadd.f32 %v893, %v915
      %v924 = vadd.f32 %v894, %v916
      %v925 = vadd.f32 %v895, %v917
      %v926 = vadd.f32 %v896, %v918
      %v927 = vadd.f32 %v897, %v919
      %v928 = vadd.f32 %v898, %v920
      %v929 = vadd.f32 %v899, %v921
      %v930 = vadd.f32 %v900, %v922
      %v931 = vld [vmem:[#allocation2 + $0x9] sm:$0xff]
      %v932 = vld [vmem:[#allocation2 + $0x11] sm:$0xff]
      %v933 = vld [vmem:[#allocation2 + $0x19] sm:$0xff]
      %v934 = vld [vmem:[#allocation2 + $0x21] sm:$0xff]
      %v935 = vld [vmem:[#allocation2 + $0x29] sm:$0xff]
      %v936 = vld [vmem:[#allocation2 + $0x31] sm:$0xff]
      %v937 = vld [vmem:[#allocation2 + $0x39] sm:$0xff]
      %v938 = vld [vmem:[#allocation2 + $0x41] sm:$0xff]
      %vm939 = vcmp.ge.s32.totalorder %v806, 4294967295
      %vm940 = vcmp.ge.s32.totalorder %v807, 4294967295
      %vm941 = vcmp.ge.s32.totalorder %v808, 4294967295
      %vm942 = vcmp.ge.s32.totalorder %v809, 4294967295
      %vm943 = vcmp.ge.s32.totalorder %v810, 4294967295
      %vm944 = vcmp.ge.s32.totalorder %v811, 4294967295
      %vm945 = vcmp.ge.s32.totalorder %v812, 4294967295
      %vm946 = vcmp.ge.s32.totalorder %v813, 4294967295
      %vm947 = vcmp.lt.s32.totalorder %v806, 7
      %vm948 = vcmp.lt.s32.totalorder %v807, 7
      %vm949 = vcmp.lt.s32.totalorder %v808, 7
      %vm950 = vcmp.lt.s32.totalorder %v809, 7
      %vm951 = vcmp.lt.s32.totalorder %v810, 7
      %vm952 = vcmp.lt.s32.totalorder %v811, 7
      %vm953 = vcmp.lt.s32.totalorder %v812, 7
      %vm954 = vcmp.lt.s32.totalorder %v813, 7
      %vm955 = vmand %vm939, %vm947
      %vm956 = vmand %vm940, %vm948
      %vm957 = vmand %vm941, %vm949
      %vm958 = vmand %vm942, %vm950
      %vm959 = vmand %vm943, %vm951
      %vm960 = vmand %vm944, %vm952
      %vm961 = vmand %vm945, %vm953
      %vm962 = vmand %vm946, %vm954
      %v963 = vsel %vm955, 1, 0
      %v964 = vsel %vm956, 1, 0
      %v965 = vsel %vm957, 1, 0
      %v966 = vsel %vm958, 1, 0
      %v967 = vsel %vm959, 1, 0
      %v968 = vsel %vm960, 1, 0
      %v969 = vsel %vm961, 1, 0
      %v970 = vsel %vm962, 1, 0
      %vm971 = vcmp.eq.s32.totalorder %v963, 1
      %vm972 = vcmp.eq.s32.totalorder %v964, 1
      %vm973 = vcmp.eq.s32.totalorder %v965, 1
      %vm974 = vcmp.eq.s32.totalorder %v966, 1
      %vm975 = vcmp.eq.s32.totalorder %v967, 1
      %vm976 = vcmp.eq.s32.totalorder %v968, 1
      %vm977 = vcmp.eq.s32.totalorder %v969, 1
      %vm978 = vcmp.eq.s32.totalorder %v970, 1
      %v979 = vsel %vm971, %v931, 0.0
      %v980 = vsel %vm972, %v932, 0.0
      %v981 = vsel %vm973, %v933, 0.0
      %v982 = vsel %vm974, %v934, 0.0
      %v983 = vsel %vm975, %v935, 0.0
      %v984 = vsel %vm976, %v936, 0.0
      %v985 = vsel %vm977, %v937, 0.0
      %v986 = vsel %vm978, %v938, 0.0
      %v988 = vlaneseq
      %v989 = vshrl.u32 %v988, 7
      %v990 = vsub.s32 0, %v989
      %v991 = vrot.slane %v816, %v990
      %v993 = vmul.f32 %v979, %v991
      %v994 = vmul.f32 %v980, %v991
      %v995 = vmul.f32 %v981, %v991
      %v996 = vmul.f32 %v982, %v991
      %v997 = vmul.f32 %v983, %v991
      %v998 = vmul.f32 %v984, %v991
      %v999 = vmul.f32 %v985, %v991
      %v1000 = vmul.f32 %v986, %v991
      %v1001 = vadd.f32 %v923, %v993
      %v1002 = vadd.f32 %v924, %v994
      %v1003 = vadd.f32 %v925, %v995
      %v1004 = vadd.f32 %v926, %v996
      %v1005 = vadd.f32 %v927, %v997
      %v1006 = vadd.f32 %v928, %v998
      %v1007 = vadd.f32 %v929, %v999
      %v1008 = vadd.f32 %v930, %v1000
      %v1009 = vld [vmem:[#allocation2 + $0x47] sm:$0xff]
      %v1010 = vsel %vm863, %v824, 0.0
      %v1011 = vsel %vm864, %v825, 0.0
      %v1012 = vsel %vm865, %v826, 0.0
      %v1013 = vsel %vm866, %v827, 0.0
      %v1014 = vsel %vm867, %v828, 0.0
      %v1015 = vsel %vm868, %v829, 0.0
      %v1016 = vsel %vm869, %v830, 0.0
      %v1017 = vsel %vm870, %v1009, 0.0
      %v1019 = vlaneseq
      %v1020 = vshrl.u32 %v1019, 7
      %v1021 = vsub.s32 0, %v1020
      %v1022 = vrot.slane %v817, %v1021
      %v1024 = vmul.f32 %v1010, %v1022
      %v1025 = vmul.f32 %v1011, %v1022
      %v1026 = vmul.f32 %v1012, %v1022
      %v1027 = vmul.f32 %v1013, %v1022
      %v1028 = vmul.f32 %v1014, %v1022
      %v1029 = vmul.f32 %v1015, %v1022
      %v1030 = vmul.f32 %v1016, %v1022
      %v1031 = vmul.f32 %v1017, %v1022
      %v1032 = vadd.f32 %v1001, %v1024
      %v1033 = vadd.f32 %v1002, %v1025
      %v1034 = vadd.f32 %v1003, %v1026
      %v1035 = vadd.f32 %v1004, %v1027
      %v1036 = vadd.f32 %v1005, %v1028
      %v1037 = vadd.f32 %v1006, %v1029
      %v1038 = vadd.f32 %v1007, %v1030
      %v1039 = vadd.f32 %v1008, %v1031
      %v1040 = vld [vmem:[#allocation2 + $0x48] sm:$0xff]
      %v1042 = vlaneseq
      %v1043 = vshrl.u32 %v1042, 7
      %v1044 = vsub.s32 0, %v1043
      %v1045 = vrot.slane %v818, %v1044
      %v1047 = vmul.f32 %v902, %v1045
      %v1048 = vmul.f32 %v903, %v1045
      %v1049 = vmul.f32 %v904, %v1045
      %v1050 = vmul.f32 %v905, %v1045
      %v1051 = vmul.f32 %v906, %v1045
      %v1052 = vmul.f32 %v907, %v1045
      %v1053 = vmul.f32 %v908, %v1045
      %v1054 = vmul.f32 %v1040, %v1045
      %v1055 = vadd.f32 %v1032, %v1047
      %v1056 = vadd.f32 %v1033, %v1048
      %v1057 = vadd.f32 %v1034, %v1049
      %v1058 = vadd.f32 %v1035, %v1050
      %v1059 = vadd.f32 %v1036, %v1051
      %v1060 = vadd.f32 %v1037, %v1052
      %v1061 = vadd.f32 %v1038, %v1053
      %v1062 = vadd.f32 %v1039, %v1054
      %v1063 = vld [vmem:[#allocation2 + $0x49] sm:$0xff]
      %v1064 = vsel %vm971, %v932, 0.0
      %v1065 = vsel %vm972, %v933, 0.0
      %v1066 = vsel %vm973, %v934, 0.0
      %v1067 = vsel %vm974, %v935, 0.0
      %v1068 = vsel %vm975, %v936, 0.0
      %v1069 = vsel %vm976, %v937, 0.0
      %v1070 = vsel %vm977, %v938, 0.0
      %v1071 = vsel %vm978, %v1063, 0.0
      %v1073 = vlaneseq
      %v1074 = vshrl.u32 %v1073, 7
      %v1075 = vsub.s32 0, %v1074
      %v1076 = vrot.slane %v819, %v1075
      %v1078 = vmul.f32 %v1064, %v1076
      %v1079 = vmul.f32 %v1065, %v1076
      %v1080 = vmul.f32 %v1066, %v1076
      %v1081 = vmul.f32 %v1067, %v1076
      %v1082 = vmul.f32 %v1068, %v1076
      %v1083 = vmul.f32 %v1069, %v1076
      %v1084 = vmul.f32 %v1070, %v1076
      %v1085 = vmul.f32 %v1071, %v1076
      %v1086 = vadd.f32 %v1055, %v1078
      %v1087 = vadd.f32 %v1056, %v1079
      %v1088 = vadd.f32 %v1057, %v1080
      %v1089 = vadd.f32 %v1058, %v1081
      %v1090 = vadd.f32 %v1059, %v1082
      %v1091 = vadd.f32 %v1060, %v1083
      %v1092 = vadd.f32 %v1061, %v1084
      %v1093 = vadd.f32 %v1062, %v1085
      %v1094 = vld [vmem:[#allocation2 + $0x4f] sm:$0xff]
      %v1095 = vsel %vm863, %v825, 0.0
      %v1096 = vsel %vm864, %v826, 0.0
      %v1097 = vsel %vm865, %v827, 0.0
      %v1098 = vsel %vm866, %v828, 0.0
      %v1099 = vsel %vm867, %v829, 0.0
      %v1100 = vsel %vm868, %v830, 0.0
      %v1101 = vsel %vm869, %v1009, 0.0
      %v1102 = vsel %vm870, %v1094, 0.0
      %v1104 = vlaneseq
      %v1105 = vshrl.u32 %v1104, 7
      %v1106 = vsub.s32 0, %v1105
      %v1107 = vrot.slane %v820, %v1106
      %v1109 = vmul.f32 %v1095, %v1107
      %v1110 = vmul.f32 %v1096, %v1107
      %v1111 = vmul.f32 %v1097, %v1107
      %v1112 = vmul.f32 %v1098, %v1107
      %v1113 = vmul.f32 %v1099, %v1107
      %v1114 = vmul.f32 %v1100, %v1107
      %v1115 = vmul.f32 %v1101, %v1107
      %v1116 = vmul.f32 %v1102, %v1107
      %v1117 = vadd.f32 %v1086, %v1109
      %v1118 = vadd.f32 %v1087, %v1110
      %v1119 = vadd.f32 %v1088, %v1111
      %v1120 = vadd.f32 %v1089, %v1112
      %v1121 = vadd.f32 %v1090, %v1113
      %v1122 = vadd.f32 %v1091, %v1114
      %v1123 = vadd.f32 %v1092, %v1115
      %v1124 = vadd.f32 %v1093, %v1116
      %v1125 = vld [vmem:[#allocation2 + $0x50] sm:$0xff]
      %v1127 = vlaneseq
      %v1128 = vshrl.u32 %v1127, 7
      %v1129 = vsub.s32 0, %v1128
      %v1130 = vrot.slane %v821, %v1129
      %v1132 = vmul.f32 %v903, %v1130
      %v1133 = vmul.f32 %v904, %v1130
      %v1134 = vmul.f32 %v905, %v1130
      %v1135 = vmul.f32 %v906, %v1130
      %v1136 = vmul.f32 %v907, %v1130
      %v1137 = vmul.f32 %v908, %v1130
      %v1138 = vmul.f32 %v1040, %v1130
      %v1139 = vmul.f32 %v1125, %v1130
      %v1140 = vadd.f32 %v1117, %v1132
      %v1141 = vadd.f32 %v1118, %v1133
      %v1142 = vadd.f32 %v1119, %v1134
      %v1143 = vadd.f32 %v1120, %v1135
      %v1144 = vadd.f32 %v1121, %v1136
      %v1145 = vadd.f32 %v1122, %v1137
      %v1146 = vadd.f32 %v1123, %v1138
      %v1147 = vadd.f32 %v1124, %v1139
      %v1148 = vld [vmem:[#allocation2 + $0x51] sm:$0xff]
      %v1149 = vsel %vm971, %v933, 0.0
      %v1150 = vsel %vm972, %v934, 0.0
      %v1151 = vsel %vm973, %v935, 0.0
      %v1152 = vsel %vm974, %v936, 0.0
      %v1153 = vsel %vm975, %v937, 0.0
      %v1154 = vsel %vm976, %v938, 0.0
      %v1155 = vsel %vm977, %v1063, 0.0
      %v1156 = vsel %vm978, %v1148, 0.0
      %v1158 = vlaneseq
      %v1159 = vshrl.u32 %v1158, 7
      %v1160 = vsub.s32 0, %v1159
      %v1161 = vrot.slane %v822, %v1160
      %v1163 = vmul.f32 %v1149, %v1161
      %v1164 = vmul.f32 %v1150, %v1161
      %v1165 = vmul.f32 %v1151, %v1161
      %v1166 = vmul.f32 %v1152, %v1161
      %v1167 = vmul.f32 %v1153, %v1161
      %v1168 = vmul.f32 %v1154, %v1161
      %v1169 = vmul.f32 %v1155, %v1161
      %v1170 = vmul.f32 %v1156, %v1161
      %v1171 = vadd.f32 %v1140, %v1163
      %v1172 = vadd.f32 %v1141, %v1164
      %v1173 = vadd.f32 %v1142, %v1165
      %v1174 = vadd.f32 %v1143, %v1166
      %v1175 = vadd.f32 %v1144, %v1167
      %v1176 = vadd.f32 %v1145, %v1168
      %v1177 = vadd.f32 %v1146, %v1169
      %v1178 = vadd.f32 %v1147, %v1170
      %v1179 = vld [vmem:[%s5] sm:$0x1]
      %v1181 = vlaneseq
      %v1182 = vshrl.u32 %v1181, 7
      %v1183 = vsub.s32 0, %v1182
      %v1184 = vrot.slane %v1179, %v1183
      %v1186 = vadd.f32 %v1171, %v1184
      %v1187 = vadd.f32 %v1172, %v1184
      %v1188 = vadd.f32 %v1173, %v1184
      %v1189 = vadd.f32 %v1174, %v1184
      %v1190 = vadd.f32 %v1175, %v1184
      %v1191 = vadd.f32 %v1176, %v1184
      %v1192 = vadd.f32 %v1177, %v1184
      %v1193 = vadd.f32 %v1178, %v1184
      %v1194 = vxor.u32 %v1186, 2147483648
      %v1195 = vxor.u32 %v1187, 2147483648
      %v1196 = vxor.u32 %v1188, 2147483648
      %v1197 = vxor.u32 %v1189, 2147483648
      %v1198 = vxor.u32 %v1190, 2147483648
      %v1199 = vxor.u32 %v1191, 2147483648
      %v1200 = vxor.u32 %v1192, 2147483648
      %v1201 = vxor.u32 %v1193, 2147483648
      %v1202 = vmul.f32 %v1194, 1.442695
      %v1203 = vpow.pop %v1202
      %v1204 = vmul.f32 %v1195, 1.442695
      %v1205 = vpow.pop %v1204
      %v1206 = vmul.f32 %v1196, 1.442695
      %v1207 = vpow.pop %v1206
      %v1208 = vmul.f32 %v1197, 1.442695
      %v1209 = vpow.pop %v1208
      %v1210 = vmul.f32 %v1198, 1.442695
      %v1211 = vpow.pop %v1210
      %v1212 = vmul.f32 %v1199, 1.442695
      %v1213 = vpow.pop %v1212
      %v1214 = vmul.f32 %v1200, 1.442695
      %v1215 = vpow.pop %v1214
      %v1216 = vmul.f32 %v1201, 1.442695
      %v1217 = vpow.pop %v1216
      %v1218 = vadd.f32 %v1203, 1.0
      %v1219 = vadd.f32 %v1205, 1.0
      %v1220 = vadd.f32 %v1207, 1.0
      %v1221 = vadd.f32 %v1209, 1.0
      %v1222 = vadd.f32 %v1211, 1.0
      %v1223 = vadd.f32 %v1213, 1.0
      %v1224 = vadd.f32 %v1215, 1.0
      %v1225 = vadd.f32 %v1217, 1.0
      %v1226 = vrcp.pop %v1218
      %v1227 = vmul.f32 1.0, %v1226
      %v1228 = vrcp.pop %v1219
      %v1229 = vmul.f32 1.0, %v1228
      %v1230 = vrcp.pop %v1220
      %v1231 = vmul.f32 1.0, %v1230
      %v1232 = vrcp.pop %v1221
      %v1233 = vmul.f32 1.0, %v1232
      %v1234 = vrcp.pop %v1222
      %v1235 = vmul.f32 1.0, %v1234
      %v1236 = vrcp.pop %v1223
      %v1237 = vmul.f32 1.0, %v1236
      %v1238 = vrcp.pop %v1224
      %v1239 = vmul.f32 1.0, %v1238
      %v1240 = vrcp.pop %v1225
      %v1241 = vmul.f32 1.0, %v1240
      %v1242 = vmul.f32 %v1186, %v1227
      %v1243 = vmul.f32 %v1187, %v1229
      %v1244 = vmul.f32 %v1188, %v1231
      %v1245 = vmul.f32 %v1189, %v1233
      %v1246 = vmul.f32 %v1190, %v1235
      %v1247 = vmul.f32 %v1191, %v1237
      %v1248 = vmul.f32 %v1192, %v1239
      %v1249 = vmul.f32 %v1193, %v1241
      %v1250 = vadd.f32 %v1242, %v1243
      %v1251 = vadd.f32 %v1250, %v1244
      %v1252 = vadd.f32 %v1251, %v1245
      %v1253 = vadd.f32 %v1252, %v1246
      %v1254 = vadd.f32 %v1253, %v1247
      %v1255 = vadd.f32 %v1254, %v1248
      %v1256 = vadd.f32 %v1255, %v1249
      %v1257 = vrot.slane %v1256, 4
      %v1258 = vadd.f32 %v1256, %v1257
      %v1259 = vrot.slane %v1258, 2
      %v1260 = vadd.f32 %v1258, %v1259
      %v1261 = vrot.slane %v1260, 1
      %v1262 = vadd.f32 %v1260, %v1261
      %v1263 = vrcp.pop 64.0
      %v1264 = vmul.f32 %v1262, %v1263
      %v1265 = vpack.c.bf16 %v1264, %v1264
      %v1266 = vld [vmem:[%s6] sm:$0xf]
      %v1267 = vld [vmem:[%s6 + $0x4] sm:$0xf]
      %v1268 = vld [vmem:[%s6 + $0x8] sm:$0xf]
      %v1269 = vld [vmem:[%s6 + $0xc] sm:$0xf]
      %v1270 = vld [vmem:[%s6 + $0x10] sm:$0xf]
      %v1271 = vld [vmem:[%s6 + $0x14] sm:$0xf]
      %v1272 = vld [vmem:[%s6 + $0x18] sm:$0xf]
      %v1273 = vld [vmem:[%s6 + $0x1c] sm:$0xf]
      %v1274 = vld [vmem:[%s6 + $0x20] sm:$0xf]
      %v1275 = vld [vmem:[%s6 + $0x24] sm:$0xf]
      %v1276 = vld [vmem:[%s6 + $0x28] sm:$0xf]
      %v1277 = vld [vmem:[%s6 + $0x2c] sm:$0xf]
      %v1278 = vld [vmem:[%s6 + $0x30] sm:$0xf]
      %v1279 = vld [vmem:[%s6 + $0x34] sm:$0xf]
      %v1280 = vld [vmem:[%s6 + $0x38] sm:$0xf]
      %v1281 = vld [vmem:[%s6 + $0x3c] sm:$0xf]
      %v1298 = vunpack.c.l.b16 %v1266
      %v1299 = vunpack.c.l.b16 %v1267
      %v1300 = vunpack.c.l.b16 %v1268
      %v1301 = vunpack.c.l.b16 %v1269
      %v1302 = vunpack.c.l.b16 %v1270
      %v1303 = vunpack.c.l.b16 %v1271
      %v1304 = vunpack.c.l.b16 %v1272
      %v1305 = vunpack.c.l.b16 %v1273
      %v1306 = vunpack.c.l.b16 %v1274
      %v1307 = vunpack.c.l.b16 %v1275
      %v1308 = vunpack.c.l.b16 %v1276
      %v1309 = vunpack.c.l.b16 %v1277
      %v1310 = vunpack.c.l.b16 %v1278
      %v1311 = vunpack.c.l.b16 %v1279
      %v1312 = vunpack.c.l.b16 %v1280
      %v1313 = vunpack.c.l.b16 %v1281
      %v1314 = vpack.c.b16 %v1299, %v1298
      %v1315 = vpack.c.b16 %v1301, %v1300
      %v1316 = vpack.c.b16 %v1303, %v1302
      %v1317 = vpack.c.b16 %v1305, %v1304
      %v1318 = vpack.c.b16 %v1307, %v1306
      %v1319 = vpack.c.b16 %v1309, %v1308
      %v1320 = vpack.c.b16 %v1311, %v1310
      %v1321 = vpack.c.b16 %v1313, %v1312
      %1330 = vmatprep.subr.bf16.mxu0 0
      %1331 = vmatpush1.bf16.msra.mxu0 %v1321
      %1332 = vmatprep.subr.bf16.mxu0 0
      %1333 = vmatpush1.bf16.msra.mxu0 %v1320
      %1334 = vmatprep.subr.bf16.mxu0 0
      %1335 = vmatpush1.bf16.msra.mxu0 %v1319
      %1336 = vmatprep.subr.bf16.mxu0 0
      %1337 = vmatpush1.bf16.msra.mxu0 %v1318
      %1338 = vmatprep.subr.bf16.mxu0 0
      %1339 = vmatpush1.bf16.msra.mxu0 %v1317
      %1340 = vmatprep.subr.bf16.mxu0 0
      %1341 = vmatpush1.bf16.msra.mxu0 %v1316
      %1342 = vmatprep.subr.bf16.mxu0 0
      %1343 = vmatpush1.bf16.msra.mxu0 %v1315
      %1344 = vmatprep.subr.bf16.mxu0 0
      %1345 = vmatpush1.bf16.msra.mxu0 %v1314
      %1346 = vmatprep.subr.bf16.mxu0 0
      %1347 = vmatpush2.bf16.msra.mxu0 0
      %1348 = vmatprep.subr.bf16.mxu0 0
      %1349 = vmatpush2.bf16.msra.mxu0 0
      %1350 = vmatprep.subr.bf16.mxu0 0
      %1351 = vmatpush2.bf16.msra.mxu0 0
      %1352 = vmatprep.subr.bf16.mxu0 0
      %1353 = vmatpush2.bf16.msra.mxu0 0
      %1354 = vmatprep.subr.bf16.mxu0 0
      %1355 = vmatpush2.bf16.msra.mxu0 0
      %1356 = vmatprep.subr.bf16.mxu0 0
      %1357 = vmatpush2.bf16.msra.mxu0 0
      %1358 = vmatprep.subr.bf16.mxu0 0
      %1359 = vmatpush2.bf16.msra.mxu0 0
      %1360 = vmatprep.subr.bf16.mxu0 0
      %1361 = vmatpush2.bf16.msra.mxu0 0
      %1362 = vmatprep.mubr.bf16.mxu0 0
      %1363 = vmatmul.mubr.bf16.gmra.mxu0 %v1265
      %v1364 = vpop.f32.mrf.mxu0
      %v1365 = vadd.f32 0.0, %v1364
      %v1366 = vpop.f32.mrf.mxu0
      %v1367 = vpop.f32.mrf.mxu0
      %v1368 = vpop.f32.mrf.mxu0
      %1369 = vdwg.mxu0
      %v1370 = vld [vmem:[%s7] sm:$0x1]
      %v1371 = vmul.f32 %v1365, %v1370
      %v1372 = vld [vmem:[%s8] sm:$0x1]
      %v1373 = vadd.f32 %v1371, %v1372
      %v1374 = vmax.f32 %v1373, 0.0
      %v1375 = vpack.c.bf16 %v1374, %v1374
      %v1376 = vld [vmem:[%s9] sm:$0xf]
      %v1377 = vld [vmem:[%s9 + $0x4] sm:$0xf]
      %v1378 = vld [vmem:[%s9 + $0x8] sm:$0xf]
      %v1379 = vld [vmem:[%s9 + $0xc] sm:$0xf]
      %v1380 = vld [vmem:[%s9 + $0x10] sm:$0xf]
      %v1381 = vld [vmem:[%s9 + $0x14] sm:$0xf]
      %v1382 = vld [vmem:[%s9 + $0x18] sm:$0xf]
      %v1383 = vld [vmem:[%s9 + $0x1c] sm:$0xf]
      %v1384 = vld [vmem:[%s9 + $0x20] sm:$0xf]
      %v1385 = vld [vmem:[%s9 + $0x24] sm:$0xf]
      %v1386 = vld [vmem:[%s9 + $0x28] sm:$0xf]
      %v1387 = vld [vmem:[%s9 + $0x2c] sm:$0xf]
      %v1388 = vld [vmem:[%s9 + $0x30] sm:$0xf]
      %v1389 = vld [vmem:[%s9 + $0x34] sm:$0xf]
      %v1390 = vld [vmem:[%s9 + $0x38] sm:$0xf]
      %v1391 = vld [vmem:[%s9 + $0x3c] sm:$0xf]
      %v1408 = vunpack.c.l.b16 %v1376
      %v1409 = vunpack.c.l.b16 %v1377
      %v1410 = vunpack.c.l.b16 %v1378
      %v1411 = vunpack.c.l.b16 %v1379
      %v1412 = vunpack.c.l.b16 %v1380
      %v1413 = vunpack.c.l.b16 %v1381
      %v1414 = vunpack.c.l.b16 %v1382
      %v1415 = vunpack.c.l.b16 %v1383
      %v1416 = vunpack.c.l.b16 %v1384
      %v1417 = vunpack.c.l.b16 %v1385
      %v1418 = vunpack.c.l.b16 %v1386
      %v1419 = vunpack.c.l.b16 %v1387
      %v1420 = vunpack.c.l.b16 %v1388
      %v1421 = vunpack.c.l.b16 %v1389
      %v1422 = vunpack.c.l.b16 %v1390
      %v1423 = vunpack.c.l.b16 %v1391
      %v1424 = vpack.c.b16 %v1409, %v1408
      %v1425 = vpack.c.b16 %v1411, %v1410
      %v1426 = vpack.c.b16 %v1413, %v1412
      %v1427 = vpack.c.b16 %v1415, %v1414
      %v1428 = vpack.c.b16 %v1417, %v1416
      %v1429 = vpack.c.b16 %v1419, %v1418
      %v1430 = vpack.c.b16 %v1421, %v1420
      %v1431 = vpack.c.b16 %v1423, %v1422
      %1440 = vmatprep.subr.bf16.mxu0 0
      %1441 = vmatpush1.bf16.msra.mxu0 %v1431
      %1442 = vmatprep.subr.bf16.mxu0 0
      %1443 = vmatpush1.bf16.msra.mxu0 %v1430
      %1444 = vmatprep.subr.bf16.mxu0 0
      %1445 = vmatpush1.bf16.msra.mxu0 %v1429
      %1446 = vmatprep.subr.bf16.mxu0 0
      %1447 = vmatpush1.bf16.msra.mxu0 %v1428
      %1448 = vmatprep.subr.bf16.mxu0 0
      %1449 = vmatpush1.bf16.msra.mxu0 %v1427
      %1450 = vmatprep.subr.bf16.mxu0 0
      %1451 = vmatpush1.bf16.msra.mxu0 %v1426
      %1452 = vmatprep.subr.bf16.mxu0 0
      %1453 = vmatpush1.bf16.msra.mxu0 %v1425
      %1454 = vmatprep.subr.bf16.mxu0 0
      %1455 = vmatpush1.bf16.msra.mxu0 %v1424
      %1456 = vmatprep.subr.bf16.mxu0 0
      %1457 = vmatpush2.bf16.msra.mxu0 0
      %1458 = vmatprep.subr.bf16.mxu0 0
      %1459 = vmatpush2.bf16.msra.mxu0 0
      %1460 = vmatprep.subr.bf16.mxu0 0
      %1461 = vmatpush2.bf16.msra.mxu0 0
      %1462 = vmatprep.subr.bf16.mxu0 0
      %1463 = vmatpush2.bf16.msra.mxu0 0
      %1464 = vmatprep.subr.bf16.mxu0 0
      %1465 = vmatpush2.bf16.msra.mxu0 0
      %1466 = vmatprep.subr.bf16.mxu0 0
      %1467 = vmatpush2.bf16.msra.mxu0 0
      %1468 = vmatprep.subr.bf16.mxu0 0
      %1469 = vmatpush2.bf16.msra.mxu0 0
      %1470 = vmatprep.subr.bf16.mxu0 0
      %1471 = vmatpush2.bf16.msra.mxu0 0
      %1472 = vmatprep.mubr.bf16.mxu0 0
      %1473 = vmatmul.mubr.bf16.gmra.mxu0 %v1375
      %v1474 = vpop.f32.mrf.mxu0
      %v1475 = vadd.f32 0.0, %v1474
      %v1476 = vpop.f32.mrf.mxu0
      %v1477 = vpop.f32.mrf.mxu0
      %v1478 = vpop.f32.mrf.mxu0
      %1479 = vdwg.mxu0
      %v1480 = vrcp.pop 6.0
      %v1481 = vmul.f32 %v1475, %v1480
      %v1482 = vadd.f32 %v1481, 0.5
      %v1483 = vmax.f32 %v1482, 0.0
      %v1484 = vmin.f32 %v1483, 1.0
      %v1485 = vlaneseq
      %v1486 = vshrl.u32 %v1485, 7
      %v1487 = vsub.s32 0, %v1486
      %v1488 = vrot.slane %v1484, %v1487
      %v1489 = vmul.f32 %v1242, %v1488
      %v1490 = vmul.f32 %v1243, %v1488
      %v1491 = vmul.f32 %v1244, %v1488
      %v1492 = vmul.f32 %v1245, %v1488
      %v1493 = vmul.f32 %v1246, %v1488
      %v1494 = vmul.f32 %v1247, %v1488
      %v1495 = vmul.f32 %v1248, %v1488
      %v1496 = vmul.f32 %v1249, %v1488
      %v1497 = vpack.c.bf16 %v1490, %v1489
      %v1498 = vpack.c.bf16 %v1492, %v1491
      %v1499 = vpack.c.bf16 %v1494, %v1493
      %v1500 = vpack.c.bf16 %v1496, %v1495
      %v1501 = vld [vmem:[%s10] sm:$0xf]
      %v1502 = vld [vmem:[%s10 + $0x4] sm:$0xf]
      %v1503 = vld [vmem:[%s10 + $0x8] sm:$0xf]
      %v1504 = vld [vmem:[%s10 + $0xc] sm:$0xf]
      %v1505 = vld [vmem:[%s10 + $0x10] sm:$0xf]
      %v1506 = vld [vmem:[%s10 + $0x14] sm:$0xf]
      %v1507 = vld [vmem:[%s10 + $0x18] sm:$0xf]
      %v1508 = vld [vmem:[%s10 + $0x1c] sm:$0xf]
      %v1509 = vld [vmem:[%s10 + $0x20] sm:$0xf]
      %v1510 = vld [vmem:[%s10 + $0x24] sm:$0xf]
      %v1511 = vld [vmem:[%s10 + $0x28] sm:$0xf]
      %v1512 = vld [vmem:[%s10 + $0x2c] sm:$0xf]
      %v1513 = vld [vmem:[%s10 + $0x30] sm:$0xf]
      %v1514 = vld [vmem:[%s10 + $0x34] sm:$0xf]
      %v1515 = vld [vmem:[%s10 + $0x38] sm:$0xf]
      %v1516 = vld [vmem:[%s10 + $0x3c] sm:$0xf]
      %v1533 = vunpack.c.l.b16 %v1501
      %v1534 = vunpack.c.l.b16 %v1502
      %v1535 = vunpack.c.l.b16 %v1503
      %v1536 = vunpack.c.l.b16 %v1504
      %v1537 = vunpack.c.l.b16 %v1505
      %v1538 = vunpack.c.l.b16 %v1506
      %v1539 = vunpack.c.l.b16 %v1507
      %v1540 = vunpack.c.l.b16 %v1508
      %v1541 = vunpack.c.l.b16 %v1509
      %v1542 = vunpack.c.l.b16 %v1510
      %v1543 = vunpack.c.l.b16 %v1511
      %v1544 = vunpack.c.l.b16 %v1512
      %v1545 = vunpack.c.l.b16 %v1513
      %v1546 = vunpack.c.l.b16 %v1514
      %v1547 = vunpack.c.l.b16 %v1515
      %v1548 = vunpack.c.l.b16 %v1516
      %v1549 = vpack.c.b16 %v1534, %v1533
      %v1550 = vpack.c.b16 %v1536, %v1535
      %v1551 = vpack.c.b16 %v1538, %v1537
      %v1552 = vpack.c.b16 %v1540, %v1539
      %v1553 = vpack.c.b16 %v1542, %v1541
      %v1554 = vpack.c.b16 %v1544, %v1543
      %v1555 = vpack.c.b16 %v1546, %v1545
      %v1556 = vpack.c.b16 %v1548, %v1547
      %1565 = vmatprep.subr.bf16.mxu0 0
      %1566 = vmatpush1.bf16.msra.mxu0 %v1556
      %1567 = vmatprep.subr.bf16.mxu0 0
      %1568 = vmatpush1.bf16.msra.mxu0 %v1555
      %1569 = vmatprep.subr.bf16.mxu0 0
      %1570 = vmatpush1.bf16.msra.mxu0 %v1554
      %1571 = vmatprep.subr.bf16.mxu0 0
      %1572 = vmatpush1.bf16.msra.mxu0 %v1553
      %1573 = vmatprep.subr.bf16.mxu0 0
      %1574 = vmatpush1.bf16.msra.mxu0 %v1552
      %1575 = vmatprep.subr.bf16.mxu0 0
      %1576 = vmatpush1.bf16.msra.mxu0 %v1551
      %1577 = vmatprep.subr.bf16.mxu0 0
      %1578 = vmatpush1.bf16.msra.mxu0 %v1550
      %1579 = vmatprep.subr.bf16.mxu0 0
      %1580 = vmatpush1.bf16.msra.mxu0 %v1549
      %1581 = vmatprep.subr.bf16.mxu0 0
      %1582 = vmatpush2.bf16.msra.mxu0 0
      %1583 = vmatprep.subr.bf16.mxu0 0
      %1584 = vmatpush2.bf16.msra.mxu0 0
      %1585 = vmatprep.subr.bf16.mxu0 0
      %1586 = vmatpush2.bf16.msra.mxu0 0
      %1587 = vmatprep.subr.bf16.mxu0 0
      %1588 = vmatpush2.bf16.msra.mxu0 0
      %1589 = vmatprep.subr.bf16.mxu0 0
      %1590 = vmatpush2.bf16.msra.mxu0 0
      %1591 = vmatprep.subr.bf16.mxu0 0
      %1592 = vmatpush2.bf16.msra.mxu0 0
      %1593 = vmatprep.subr.bf16.mxu0 0
      %1594 = vmatpush2.bf16.msra.mxu0 0
      %1595 = vmatprep.subr.bf16.mxu0 0
      %1596 = vmatpush2.bf16.msra.mxu0 0
      %1597 = vmatprep.mubr.bf16.mxu0 0
      %1598 = vmatmul.mubr.bf16.gmra.mxu0 %v1497
      %v1599 = vpop.f32.mrf.mxu0
      %v1600 = vadd.f32 0.0, %v1599
      %v1601 = vpop.f32.mrf.mxu0
      %v1602 = vpop.f32.mrf.mxu0
      %v1603 = vadd.f32 0.0, %v1602
      %v1604 = vpop.f32.mrf.mxu0
      %1605 = vmatprep.mubr.bf16.mxu0 0
      %1606 = vmatmul.mubr.bf16.gmra.mxu0 %v1498
      %v1607 = vpop.f32.mrf.mxu0
      %v1608 = vadd.f32 0.0, %v1607
      %v1609 = vpop.f32.mrf.mxu0
      %v1610 = vpop.f32.mrf.mxu0
      %v1611 = vadd.f32 0.0, %v1610
      %v1612 = vpop.f32.mrf.mxu0
      %1613 = vmatprep.mubr.bf16.mxu0 0
      %1614 = vmatmul.mubr.bf16.gmra.mxu0 %v1499
      %v1615 = vpop.f32.mrf.mxu0
      %v1616 = vadd.f32 0.0, %v1615
      %v1617 = vpop.f32.mrf.mxu0
      %v1618 = vpop.f32.mrf.mxu0
      %v1619 = vadd.f32 0.0, %v1618
      %v1620 = vpop.f32.mrf.mxu0
      %1621 = vmatprep.mubr.bf16.mxu0 0
      %1622 = vmatmul.mubr.bf16.gmra.mxu0 %v1500
      %v1623 = vpop.f32.mrf.mxu0
      %v1624 = vadd.f32 0.0, %v1623
      %v1625 = vpop.f32.mrf.mxu0
      %v1626 = vpop.f32.mrf.mxu0
      %v1627 = vadd.f32 0.0, %v1626
      %v1628 = vpop.f32.mrf.mxu0
      %1629 = vdwg.mxu0
      %v1630 = vld [vmem:[%s11] sm:$0x1]
      %v1632 = vlaneseq
      %v1633 = vshrl.u32 %v1632, 7
      %v1634 = vsub.s32 0, %v1633
      %v1635 = vrot.slane %v1630, %v1634
      %v1637 = vmul.f32 %v1600, %v1635
      %v1638 = vmul.f32 %v1603, %v1635
      %v1639 = vmul.f32 %v1608, %v1635
      %v1640 = vmul.f32 %v1611, %v1635
      %v1641 = vmul.f32 %v1616, %v1635
      %v1642 = vmul.f32 %v1619, %v1635
      %v1643 = vmul.f32 %v1624, %v1635
      %v1644 = vmul.f32 %v1627, %v1635
      %v1645 = vld [vmem:[%s12] sm:$0x1]
      %v1647 = vlaneseq
      %v1648 = vshrl.u32 %v1647, 7
      %v1649 = vsub.s32 0, %v1648
      %v1650 = vrot.slane %v1645, %v1649
      %v1652 = vadd.f32 %v1637, %v1650
      %v1653 = vadd.f32 %v1638, %v1650
      %v1654 = vadd.f32 %v1639, %v1650
      %v1655 = vadd.f32 %v1640, %v1650
      %v1656 = vadd.f32 %v1641, %v1650
      %v1657 = vadd.f32 %v1642, %v1650
      %v1658 = vadd.f32 %v1643, %v1650
      %v1659 = vadd.f32 %v1644, %v1650
      %v1660 = vunpack.c.l.bf16 %v442
      %v1661 = vunpack.c.l.bf16 %v443
      %v1662 = vunpack.c.l.bf16 %v444
      %v1663 = vunpack.c.l.bf16 %v445
      %v1664 = vunpack.c.l.bf16 %v446
      %v1665 = vunpack.c.l.bf16 %v447
      %v1666 = vunpack.c.l.bf16 %v448
      %v1667 = vunpack.c.l.bf16 %v449
      %v1668 = vadd.f32 %v1652, %v1660
      %v1669 = vadd.f32 %v1653, %v1661
      %v1670 = vadd.f32 %v1654, %v1662
      %v1671 = vadd.f32 %v1655, %v1663
      %v1672 = vadd.f32 %v1656, %v1664
      %v1673 = vadd.f32 %v1657, %v1665
      %v1674 = vadd.f32 %v1658, %v1666
      %v1675 = vadd.f32 %v1659, %v1667
      %v1676 = vxor.u32 %v1668, 2147483648
      %v1677 = vxor.u32 %v1669, 2147483648
      %v1678 = vxor.u32 %v1670, 2147483648
      %v1679 = vxor.u32 %v1671, 2147483648
      %v1680 = vxor.u32 %v1672, 2147483648
      %v1681 = vxor.u32 %v1673, 2147483648
      %v1682 = vxor.u32 %v1674, 2147483648
      %v1683 = vxor.u32 %v1675, 2147483648
      %v1684 = vmul.f32 %v1676, 1.442695
      %v1685 = vpow.pop %v1684
      %v1686 = vmul.f32 %v1677, 1.442695
      %v1687 = vpow.pop %v1686
      %v1688 = vmul.f32 %v1678, 1.442695
      %v1689 = vpow.pop %v1688
      %v1690 = vmul.f32 %v1679, 1.442695
      %v1691 = vpow.pop %v1690
      %v1692 = vmul.f32 %v1680, 1.442695
      %v1693 = vpow.pop %v1692
      %v1694 = vmul.f32 %v1681, 1.442695
      %v1695 = vpow.pop %v1694
      %v1696 = vmul.f32 %v1682, 1.442695
      %v1697 = vpow.pop %v1696
      %v1698 = vmul.f32 %v1683, 1.442695
      %v1699 = vpow.pop %v1698
      %v1700 = vadd.f32 %v1685, 1.0
      %v1701 = vadd.f32 %v1687, 1.0
      %v1702 = vadd.f32 %v1689, 1.0
      %v1703 = vadd.f32 %v1691, 1.0
      %v1704 = vadd.f32 %v1693, 1.0
      %v1705 = vadd.f32 %v1695, 1.0
      %v1706 = vadd.f32 %v1697, 1.0
      %v1707 = vadd.f32 %v1699, 1.0
      %v1708 = vrcp.pop %v1700
      %v1709 = vmul.f32 1.0, %v1708
      %v1710 = vrcp.pop %v1701
      %v1711 = vmul.f32 1.0, %v1710
      %v1712 = vrcp.pop %v1702
      %v1713 = vmul.f32 1.0, %v1712
      %v1714 = vrcp.pop %v1703
      %v1715 = vmul.f32 1.0, %v1714
      %v1716 = vrcp.pop %v1704
      %v1717 = vmul.f32 1.0, %v1716
      %v1718 = vrcp.pop %v1705
      %v1719 = vmul.f32 1.0, %v1718
      %v1720 = vrcp.pop %v1706
      %v1721 = vmul.f32 1.0, %v1720
      %v1722 = vrcp.pop %v1707
      %v1723 = vmul.f32 1.0, %v1722
      %v1724 = vmul.f32 %v1668, %v1709
      %v1725 = vmul.f32 %v1669, %v1711
      %v1726 = vmul.f32 %v1670, %v1713
      %v1727 = vmul.f32 %v1671, %v1715
      %v1728 = vmul.f32 %v1672, %v1717
      %v1729 = vmul.f32 %v1673, %v1719
      %v1730 = vmul.f32 %v1674, %v1721
      %v1731 = vmul.f32 %v1675, %v1723
      %v1732 = vpack.c.bf16 %v1725, %v1724
      %v1733 = vpack.c.bf16 %v1727, %v1726
      %v1734 = vpack.c.bf16 %v1729, %v1728
      %v1735 = vpack.c.bf16 %v1731, %v1730
      %v1740 = vunpack.c.l.b16 %v1732
      %v1741 = vunpack.c.h.b16 %v1732
      %v1742 = vunpack.c.l.b16 %v1733
      %v1743 = vunpack.c.h.b16 %v1733
      %v1744 = vunpack.c.l.b16 %v1734
      %v1745 = vunpack.c.h.b16 %v1734
      %v1746 = vunpack.c.l.b16 %v1735
      %v1747 = vunpack.c.h.b16 %v1735
      %v1748 = vpack.c.b16 %v1740, %v1740
      %v1749 = vpack.c.b16 %v1741, %v1741
      %v1750 = vpack.c.b16 %v1742, %v1742
      %v1751 = vpack.c.b16 %v1743, %v1743
      %v1752 = vpack.c.b16 %v1744, %v1744
      %v1753 = vpack.c.b16 %v1745, %v1745
      %v1754 = vpack.c.b16 %v1746, %v1746
      %v1755 = vpack.c.b16 %v1747, %v1747
      %1764 = vst [vmem:[%s440] sm:$0xf] %v1748
      %1765 = vst [vmem:[%s440 + $0x4] sm:$0xf] %v1749
      %1766 = vst [vmem:[%s440 + $0x8] sm:$0xf] %v1750
      %1767 = vst [vmem:[%s440 + $0xc] sm:$0xf] %v1751
      %1768 = vst [vmem:[%s440 + $0x10] sm:$0xf] %v1752
      %1769 = vst [vmem:[%s440 + $0x14] sm:$0xf] %v1753
      %1770 = vst [vmem:[%s440 + $0x18] sm:$0xf] %v1754
      %1771 = vst [vmem:[%s440 + $0x1c] sm:$0xf] %v1755
      %p1772 = scmp.lt.s32.totalorder %s24, 1
      %s1773 = scalar_select %p1772, %s24, 1
      %s1774 = smul.addr %s1773, 8
      %s1775 = smul.addr %s1774, 4
      %s1776 = scalar_lea.vmem %s13, %s1775
      // Predicated region
      $region73: #{forward.8} parent=71 // pred_check
        %p1777 = pneg %p320
      $region74: #{forward.8} parent=71 // pred_check_branch
        %1779 = sbr.rel (%p1777) target = $region76
      $region75: #{forward.8} parent=71 // pred_region
        _
      $region76: #{forward.8} parent=71 // pred_fallthru
        _
    $region72: #{forward.8} parent=5 // pred_fallthru
      _
    %p1780 = scmp.le.s32.totalorder 2, %s19
    // Predicated region
    $region77: #{forward.8} parent=5 // pred_check
      %p1781 = pneg %p1780
    $region78: #{forward.8} parent=5 // pred_check_branch
      %1783 = sbr.rel (%p1781) target = $region80
    $region79: #{forward.8} parent=5 // pred_region
      %s1784 = ssub.s32 %s19, 2
      // Predicated region
      $region81: #{forward.8} parent=79 // pred_check
        %p1785 = pneg %p326
      $region82: #{forward.8} parent=79 // pred_check_branch
        %1787 = sbr.rel (%p1785) target = $region84
      $region83: #{forward.8} parent=79 // pred_region
        %p1788 = scmp.lt.s32.totalorder %s25, 1
        %s1789 = scalar_select %p1788, %s25, 1
        %s1790 = smul.addr %s1789, 8
        %s1791 = smul.addr %s1790, 4
        %s1792 = scalar_lea.vmem %s13, %s1791
      $region84: #{forward.8} parent=79 // pred_fallthru
        _
    $region80: #{forward.8} parent=5 // pred_fallthru
      _
  $region6: #{forward.8} parent=0 // loop_footer
    %s23 = sadd.s32 1, %s19
  $region7: #{forward.8} parent=0 // loop_footer_branch
    %18 = sbr.rel target = $region3
  $region8: #{forward.8} parent=0 // loop_exit
    _

// kernel: forward.9
$region0: #{forward.9}
  #allocation0 [shape = 'u32[]', space=smem, size = 0x4, offset = 0x4, fixed_abs, tag = 'smem constant byte address 0x4 - core index']
  #allocation1 [shape = 'u32[144,128]{1,0:T(1,128)}', space=vmem, size = 0x12000, scoped, tag = 'internal scratch']
  %s0 = inlined_call_operand.vmem [shape: bf16[32,1152], index: 0, kind: input, shape index: {}]
  %s1 = inlined_call_operand.vmem [shape: bf16[1152,128], index: 1, kind: input, shape index: {}]
  %s2 = inlined_call_operand.vmem [shape: f32[1,128], index: 2, kind: input, shape index: {}]
  %s3 = inlined_call_operand.vmem [shape: f32[1,128], index: 3, kind: input, shape index: {}]
  %s4 = inlined_call_operand.vmem [shape: bf16[32,128], index: 4, kind: output, shape index: {}]
  %s5 = sld [smem:[#allocation0]]
  $region26: #{forward.9} parent=0
    _
  %s7 = ssub.s32 1, %s5
  %s8 = scalar_select 0, %s7, %s5
  // Predicated region
  $region2: #{forward.9} parent=0 // pred_check
    _
  $region3: #{forward.9} parent=0 // pred_check_branch
    %10 = sbr.rel (0) target = $region5
  $region4: #{forward.9} parent=0 // pred_region
    _
  $region5: #{forward.9} parent=0 // pred_fallthru
    _
  // Predicated region
  $region6: #{forward.9} parent=0 // pred_check
    _
  $region7: #{forward.9} parent=0 // pred_check_branch
    %12 = sbr.rel (0) target = $region9
  $region8: #{forward.9} parent=0 // pred_region
    _
  $region9: #{forward.9} parent=0 // pred_fallthru
    _
  // Predicated region
  $region10: #{forward.9} parent=0 // pred_check
    _
  $region11: #{forward.9} parent=0 // pred_check_branch
    %14 = sbr.rel (0) target = $region13
  $region12: #{forward.9} parent=0 // pred_region
    _
  $region13: #{forward.9} parent=0 // pred_fallthru
    _
  // Predicated region
  $region14: #{forward.9} parent=0 // pred_check
    _
  $region15: #{forward.9} parent=0 // pred_check_branch
    %16 = sbr.rel (0) target = $region17
  $region16: #{forward.9} parent=0 // pred_region
    _
  $region17: #{forward.9} parent=0 // pred_fallthru
    _
  %v18 = vld [vmem:[%s0] sm:$0xff]
  %v19 = vld [vmem:[%s0 + $0x8] sm:$0xff]
  %v20 = vld [vmem:[%s0 + $0x10] sm:$0xff]
  %v21 = vld [vmem:[%s0 + $0x18] sm:$0xff]
  %v22 = vld [vmem:[%s0 + $0x20] sm:$0xf]
  %v23 = vld [vmem:[%s0 + $0x24] sm:$0xff]
  %v24 = vld [vmem:[%s0 + $0x2c] sm:$0xff]
  %v25 = vld [vmem:[%s0 + $0x34] sm:$0xff]
  %v26 = vld [vmem:[%s0 + $0x3c] sm:$0xff]
  %v27 = vld [vmem:[%s0 + $0x44] sm:$0xf]
  %v28 = vld [vmem:[%s0 + $0x48] sm:$0xff]
  %v29 = vld [vmem:[%s0 + $0x50] sm:$0xff]
  %v30 = vld [vmem:[%s0 + $0x58] sm:$0xff]
  %v31 = vld [vmem:[%s0 + $0x60] sm:$0xff]
  %v32 = vld [vmem:[%s0 + $0x68] sm:$0xf]
  %v33 = vld [vmem:[%s0 + $0x6c] sm:$0xff]
  %v34 = vld [vmem:[%s0 + $0x74] sm:$0xff]
  %v35 = vld [vmem:[%s0 + $0x7c] sm:$0xff]
  %v36 = vld [vmem:[%s0 + $0x84] sm:$0xff]
  %v37 = vld [vmem:[%s0 + $0x8c] sm:$0xf]
  %v38 = vld [vmem:[%s1] sm:$0xf]
  %v39 = vld [vmem:[%s1 + $0x4] sm:$0xf]
  %v40 = vld [vmem:[%s1 + $0x8] sm:$0xf]
  %v41 = vld [vmem:[%s1 + $0xc] sm:$0xf]
  %v42 = vld [vmem:[%s1 + $0x10] sm:$0xf]
  %v43 = vld [vmem:[%s1 + $0x14] sm:$0xf]
  %v44 = vld [vmem:[%s1 + $0x18] sm:$0xf]
  %v45 = vld [vmem:[%s1 + $0x1c] sm:$0xf]
  %v46 = vld [vmem:[%s1 + $0x20] sm:$0xf]
  %v47 = vld [vmem:[%s1 + $0x24] sm:$0xf]
  %v48 = vld [vmem:[%s1 + $0x28] sm:$0xf]
  %v49 = vld [vmem:[%s1 + $0x2c] sm:$0xf]
  %v50 = vld [vmem:[%s1 + $0x30] sm:$0xf]
  %v51 = vld [vmem:[%s1 + $0x34] sm:$0xf]
  %v52 = vld [vmem:[%s1 + $0x38] sm:$0xf]
  %v53 = vld [vmem:[%s1 + $0x3c] sm:$0xf]
  %v54 = vld [vmem:[%s1 + $0x40] sm:$0xf]
  %v55 = vld [vmem:[%s1 + $0x44] sm:$0xf]
  %v56 = vld [vmem:[%s1 + $0x48] sm:$0xf]
  %v57 = vld [vmem:[%s1 + $0x4c] sm:$0xf]
  %v58 = vld [vmem:[%s1 + $0x50] sm:$0xf]
  %v59 = vld [vmem:[%s1 + $0x54] sm:$0xf]
  %v60 = vld [vmem:[%s1 + $0x58] sm:$0xf]
  %v61 = vld [vmem:[%s1 + $0x5c] sm:$0xf]
  %v62 = vld [vmem:[%s1 + $0x60] sm:$0xf]
  %v63 = vld [vmem:[%s1 + $0x64] sm:$0xf]
  %v64 = vld [vmem:[%s1 + $0x68] sm:$0xf]
  %v65 = vld [vmem:[%s1 + $0x6c] sm:$0xf]
  %v66 = vld [vmem:[%s1 + $0x70] sm:$0xf]
  %v67 = vld [vmem:[%s1 + $0x74] sm:$0xf]
  %v68 = vld [vmem:[%s1 + $0x78] sm:$0xf]
  %v69 = vld [vmem:[%s1 + $0x7c] sm:$0xf]
  %v70 = vld [vmem:[%s1 + $0x80] sm:$0xf]
  %v71 = vld [vmem:[%s1 + $0x84] sm:$0xf]
  %v72 = vld [vmem:[%s1 + $0x88] sm:$0xf]
  %v73 = vld [vmem:[%s1 + $0x8c] sm:$0xf]
  %v74 = vld [vmem:[%s1 + $0x90] sm:$0xf]
  %v75 = vld [vmem:[%s1 + $0x94] sm:$0xf]
  %v76 = vld [vmem:[%s1 + $0x98] sm:$0xf]
  %v77 = vld [vmem:[%s1 + $0x9c] sm:$0xf]
  %v78 = vld [vmem:[%s1 + $0xa0] sm:$0xf]
  %v79 = vld [vmem:[%s1 + $0xa4] sm:$0xf]
  %v80 = vld [vmem:[%s1 + $0xa8] sm:$0xf]
  %v81 = vld [vmem:[%s1 + $0xac] sm:$0xf]
  %v82 = vld [vmem:[%s1 + $0xb0] sm:$0xf]
  %v83 = vld [vmem:[%s1 + $0xb4] sm:$0xf]
  %v84 = vld [vmem:[%s1 + $0xb8] sm:$0xf]
  %v85 = vld [vmem:[%s1 + $0xbc] sm:$0xf]
  %v86 = vld [vmem:[%s1 + $0xc0] sm:$0xf]
  %v87 = vld [vmem:[%s1 + $0xc4] sm:$0xf]
  %v88 = vld [vmem:[%s1 + $0xc8] sm:$0xf]
  %v89 = vld [vmem:[%s1 + $0xcc] sm:$0xf]
  %v90 = vld [vmem:[%s1 + $0xd0] sm:$0xf]
  %v91 = vld [vmem:[%s1 + $0xd4] sm:$0xf]
  %v92 = vld [vmem:[%s1 + $0xd8] sm:$0xf]
  %v93 = vld [vmem:[%s1 + $0xdc] sm:$0xf]
  %v94 = vld [vmem:[%s1 + $0xe0] sm:$0xf]
  %v95 = vld [vmem:[%s1 + $0xe4] sm:$0xf]
  %v96 = vld [vmem:[%s1 + $0xe8] sm:$0xf]
  %v97 = vld [vmem:[%s1 + $0xec] sm:$0xf]
  %v98 = vld [vmem:[%s1 + $0xf0] sm:$0xf]
  %v99 = vld [vmem:[%s1 + $0xf4] sm:$0xf]
  %v100 = vld [vmem:[%s1 + $0xf8] sm:$0xf]
  %v101 = vld [vmem:[%s1 + $0xfc] sm:$0xf]
  %v102 = vld [vmem:[%s1 + $0x100] sm:$0xf]
  %v103 = vld [vmem:[%s1 + $0x104] sm:$0xf]
  %v104 = vld [vmem:[%s1 + $0x108] sm:$0xf]
  %v105 = vld [vmem:[%s1 + $0x10c] sm:$0xf]
  %v106 = vld [vmem:[%s1 + $0x110] sm:$0xf]
  %v107 = vld [vmem:[%s1 + $0x114] sm:$0xf]
  %v108 = vld [vmem:[%s1 + $0x118] sm:$0xf]
  %v109 = vld [vmem:[%s1 + $0x11c] sm:$0xf]
  %v110 = vld [vmem:[%s1 + $0x120] sm:$0xf]
  %v111 = vld [vmem:[%s1 + $0x124] sm:$0xf]
  %v112 = vld [vmem:[%s1 + $0x128] sm:$0xf]
  %v113 = vld [vmem:[%s1 + $0x12c] sm:$0xf]
  %v114 = vld [vmem:[%s1 + $0x130] sm:$0xf]
  %v115 = vld [vmem:[%s1 + $0x134] sm:$0xf]
  %v116 = vld [vmem:[%s1 + $0x138] sm:$0xf]
  %v117 = vld [vmem:[%s1 + $0x13c] sm:$0xf]
  %v118 = vld [vmem:[%s1 + $0x140] sm:$0xf]
  %v119 = vld [vmem:[%s1 + $0x144] sm:$0xf]
  %v120 = vld [vmem:[%s1 + $0x148] sm:$0xf]
  %v121 = vld [vmem:[%s1 + $0x14c] sm:$0xf]
  %v122 = vld [vmem:[%s1 + $0x150] sm:$0xf]
  %v123 = vld [vmem:[%s1 + $0x154] sm:$0xf]
  %v124 = vld [vmem:[%s1 + $0x158] sm:$0xf]
  %v125 = vld [vmem:[%s1 + $0x15c] sm:$0xf]
  %v126 = vld [vmem:[%s1 + $0x160] sm:$0xf]
  %v127 = vld [vmem:[%s1 + $0x164] sm:$0xf]
  %v128 = vld [vmem:[%s1 + $0x168] sm:$0xf]
  %v129 = vld [vmem:[%s1 + $0x16c] sm:$0xf]
  %v130 = vld [vmem:[%s1 + $0x170] sm:$0xf]
  %v131 = vld [vmem:[%s1 + $0x174] sm:$0xf]
  %v132 = vld [vmem:[%s1 + $0x178] sm:$0xf]
  %v133 = vld [vmem:[%s1 + $0x17c] sm:$0xf]
  %v134 = vld [vmem:[%s1 + $0x180] sm:$0xf]
  %v135 = vld [vmem:[%s1 + $0x184] sm:$0xf]
  %v136 = vld [vmem:[%s1 + $0x188] sm:$0xf]
  %v137 = vld [vmem:[%s1 + $0x18c] sm:$0xf]
  %v138 = vld [vmem:[%s1 + $0x190] sm:$0xf]
  %v139 = vld [vmem:[%s1 + $0x194] sm:$0xf]
  %v140 = vld [vmem:[%s1 + $0x198] sm:$0xf]
  %v141 = vld [vmem:[%s1 + $0x19c] sm:$0xf]
  %v142 = vld [vmem:[%s1 + $0x1a0] sm:$0xf]
  %v143 = vld [vmem:[%s1 + $0x1a4] sm:$0xf]
  %v144 = vld [vmem:[%s1 + $0x1a8] sm:$0xf]
  %v145 = vld [vmem:[%s1 + $0x1ac] sm:$0xf]
  %v146 = vld [vmem:[%s1 + $0x1b0] sm:$0xf]
  %v147 = vld [vmem:[%s1 + $0x1b4] sm:$0xf]
  %v148 = vld [vmem:[%s1 + $0x1b8] sm:$0xf]
  %v149 = vld [vmem:[%s1 + $0x1bc] sm:$0xf]
  %v150 = vld [vmem:[%s1 + $0x1c0] sm:$0xf]
  %v151 = vld [vmem:[%s1 + $0x1c4] sm:$0xf]
  %v152 = vld [vmem:[%s1 + $0x1c8] sm:$0xf]
  %v153 = vld [vmem:[%s1 + $0x1cc] sm:$0xf]
  %v154 = vld [vmem:[%s1 + $0x1d0] sm:$0xf]
  %v155 = vld [vmem:[%s1 + $0x1d4] sm:$0xf]
  %v156 = vld [vmem:[%s1 + $0x1d8] sm:$0xf]
  %v157 = vld [vmem:[%s1 + $0x1dc] sm:$0xf]
  %v158 = vld [vmem:[%s1 + $0x1e0] sm:$0xf]
  %v159 = vld [vmem:[%s1 + $0x1e4] sm:$0xf]
  %v160 = vld [vmem:[%s1 + $0x1e8] sm:$0xf]
  %v161 = vld [vmem:[%s1 + $0x1ec] sm:$0xf]
  %v162 = vld [vmem:[%s1 + $0x1f0] sm:$0xf]
  %v163 = vld [vmem:[%s1 + $0x1f4] sm:$0xf]
  %v164 = vld [vmem:[%s1 + $0x1f8] sm:$0xf]
  %v165 = vld [vmem:[%s1 + $0x1fc] sm:$0xf]
  %v166 = vld [vmem:[%s1 + $0x200] sm:$0xf]
  %v167 = vld [vmem:[%s1 + $0x204] sm:$0xf]
  %v168 = vld [vmem:[%s1 + $0x208] sm:$0xf]
  %v169 = vld [vmem:[%s1 + $0x20c] sm:$0xf]
  %v170 = vld [vmem:[%s1 + $0x210] sm:$0xf]
  %v171 = vld [vmem:[%s1 + $0x214] sm:$0xf]
  %v172 = vld [vmem:[%s1 + $0x218] sm:$0xf]
  %v173 = vld [vmem:[%s1 + $0x21c] sm:$0xf]
  %v174 = vld [vmem:[%s1 + $0x220] sm:$0xf]
  %v175 = vld [vmem:[%s1 + $0x224] sm:$0xf]
  %v176 = vld [vmem:[%s1 + $0x228] sm:$0xf]
  %v177 = vld [vmem:[%s1 + $0x22c] sm:$0xf]
  %v178 = vld [vmem:[%s1 + $0x230] sm:$0xf]
  %v179 = vld [vmem:[%s1 + $0x234] sm:$0xf]
  %v180 = vld [vmem:[%s1 + $0x238] sm:$0xf]
  %v181 = vld [vmem:[%s1 + $0x23c] sm:$0xf]
  %v202 = vunpack.c.l.b16 %v18
  %v203 = vunpack.c.h.b16 %v18
  %v204 = vunpack.c.l.b16 %v19
  %v205 = vunpack.c.h.b16 %v19
  %v206 = vunpack.c.l.b16 %v20
  %v207 = vunpack.c.h.b16 %v20
  %v208 = vunpack.c.l.b16 %v21
  %v209 = vunpack.c.h.b16 %v21
  %v210 = vunpack.c.l.b16 %v22
  %v211 = vunpack.c.l.b16 %v23
  %v212 = vunpack.c.h.b16 %v23
  %v213 = vunpack.c.l.b16 %v24
  %v214 = vunpack.c.h.b16 %v24
  %v215 = vunpack.c.l.b16 %v25
  %v216 = vunpack.c.h.b16 %v25
  %v217 = vunpack.c.l.b16 %v26
  %v218 = vunpack.c.h.b16 %v26
  %v219 = vunpack.c.l.b16 %v27
  %v220 = vunpack.c.l.b16 %v28
  %v221 = vunpack.c.h.b16 %v28
  %v222 = vunpack.c.l.b16 %v29
  %v223 = vunpack.c.h.b16 %v29
  %v224 = vunpack.c.l.b16 %v30
  %v225 = vunpack.c.h.b16 %v30
  %v226 = vunpack.c.l.b16 %v31
  %v227 = vunpack.c.h.b16 %v31
  %v228 = vunpack.c.l.b16 %v32
  %v229 = vunpack.c.l.b16 %v33
  %v230 = vunpack.c.h.b16 %v33
  %v231 = vunpack.c.l.b16 %v34
  %v232 = vunpack.c.h.b16 %v34
  %v233 = vunpack.c.l.b16 %v35
  %v234 = vunpack.c.h.b16 %v35
  %v235 = vunpack.c.l.b16 %v36
  %v236 = vunpack.c.h.b16 %v36
  %v237 = vunpack.c.l.b16 %v37
  %v238 = vpack.c.b16 %v211, %v202
  %v239 = vpack.c.b16 %v212, %v203
  %v240 = vpack.c.b16 %v213, %v204
  %v241 = vpack.c.b16 %v214, %v205
  %v242 = vpack.c.b16 %v215, %v206
  %v243 = vpack.c.b16 %v216, %v207
  %v244 = vpack.c.b16 %v217, %v208
  %v245 = vpack.c.b16 %v218, %v209
  %v246 = vpack.c.b16 %v219, %v210
  %v247 = vpack.c.b16 %v229, %v220
  %v248 = vpack.c.b16 %v230, %v221
  %v249 = vpack.c.b16 %v231, %v222
  %v250 = vpack.c.b16 %v232, %v223
  %v251 = vpack.c.b16 %v233, %v224
  %v252 = vpack.c.b16 %v234, %v225
  %v253 = vpack.c.b16 %v235, %v226
  %v254 = vpack.c.b16 %v236, %v227
  %v255 = vpack.c.b16 %v237, %v228
  %v418 = vunpack.c.l.b16 %v38
  %v419 = vunpack.c.l.b16 %v39
  %v420 = vunpack.c.l.b16 %v40
  %v421 = vunpack.c.l.b16 %v41
  %v422 = vunpack.c.l.b16 %v42
  %v423 = vunpack.c.l.b16 %v43
  %v424 = vunpack.c.l.b16 %v44
  %v425 = vunpack.c.l.b16 %v45
  %v426 = vunpack.c.l.b16 %v46
  %v427 = vunpack.c.l.b16 %v47
  %v428 = vunpack.c.l.b16 %v48
  %v429 = vunpack.c.l.b16 %v49
  %v430 = vunpack.c.l.b16 %v50
  %v431 = vunpack.c.l.b16 %v51
  %v432 = vunpack.c.l.b16 %v52
  %v433 = vunpack.c.l.b16 %v53
  %v434 = vunpack.c.l.b16 %v54
  %v435 = vunpack.c.l.b16 %v55
  %v436 = vunpack.c.l.b16 %v56
  %v437 = vunpack.c.l.b16 %v57
  %v438 = vunpack.c.l.b16 %v58
  %v439 = vunpack.c.l.b16 %v59
  %v440 = vunpack.c.l.b16 %v60
  %v441 = vunpack.c.l.b16 %v61
  %v442 = vunpack.c.l.b16 %v62
  %v443 = vunpack.c.l.b16 %v63
  %v444 = vunpack.c.l.b16 %v64
  %v445 = vunpack.c.l.b16 %v65
  %v446 = vunpack.c.l.b16 %v66
  %v447 = vunpack.c.l.b16 %v67
  %v448 = vunpack.c.l.b16 %v68
  %v449 = vunpack.c.l.b16 %v69
  %v450 = vunpack.c.l.b16 %v70
  %v451 = vunpack.c.l.b16 %v71
  %v452 = vunpack.c.l.b16 %v72
  %v453 = vunpack.c.l.b16 %v73
  %v454 = vunpack.c.l.b16 %v74
  %v455 = vunpack.c.l.b16 %v75
  %v456 = vunpack.c.l.b16 %v76
  %v457 = vunpack.c.l.b16 %v77
  %v458 = vunpack.c.l.b16 %v78
  %v459 = vunpack.c.l.b16 %v79
  %v460 = vunpack.c.l.b16 %v80
  %v461 = vunpack.c.l.b16 %v81
  %v462 = vunpack.c.l.b16 %v82
  %v463 = vunpack.c.l.b16 %v83
  %v464 = vunpack.c.l.b16 %v84
  %v465 = vunpack.c.l.b16 %v85
  %v466 = vunpack.c.l.b16 %v86
  %v467 = vunpack.c.l.b16 %v87
  %v468 = vunpack.c.l.b16 %v88
  %v469 = vunpack.c.l.b16 %v89
  %v470 = vunpack.c.l.b16 %v90
  %v471 = vunpack.c.l.b16 %v91
  %v472 = vunpack.c.l.b16 %v92
  %v473 = vunpack.c.l.b16 %v93
  %v474 = vunpack.c.l.b16 %v94
  %v475 = vunpack.c.l.b16 %v95
  %v476 = vunpack.c.l.b16 %v96
  %v477 = vunpack.c.l.b16 %v97
  %v478 = vunpack.c.l.b16 %v98
  %v479 = vunpack.c.l.b16 %v99
  %v480 = vunpack.c.l.b16 %v100
  %v481 = vunpack.c.l.b16 %v101
  %v482 = vunpack.c.l.b16 %v102
  %v483 = vunpack.c.l.b16 %v103
  %v484 = vunpack.c.l.b16 %v104
  %v485 = vunpack.c.l.b16 %v105
  %v486 = vunpack.c.l.b16 %v106
  %v487 = vunpack.c.l.b16 %v107
  %v488 = vunpack.c.l.b16 %v108
  %v489 = vunpack.c.l.b16 %v109
  %v490 = vunpack.c.l.b16 %v110
  %v491 = vunpack.c.l.b16 %v111
  %v492 = vunpack.c.l.b16 %v112
  %v493 = vunpack.c.l.b16 %v113
  %v494 = vunpack.c.l.b16 %v114
  %v495 = vunpack.c.l.b16 %v115
  %v496 = vunpack.c.l.b16 %v116
  %v497 = vunpack.c.l.b16 %v117
  %v498 = vunpack.c.l.b16 %v118
  %v499 = vunpack.c.l.b16 %v119
  %v500 = vunpack.c.l.b16 %v120
  %v501 = vunpack.c.l.b16 %v121
  %v502 = vunpack.c.l.b16 %v122
  %v503 = vunpack.c.l.b16 %v123
  %v504 = vunpack.c.l.b16 %v124
  %v505 = vunpack.c.l.b16 %v125
  %v506 = vunpack.c.l.b16 %v126
  %v507 = vunpack.c.l.b16 %v127
  %v508 = vunpack.c.l.b16 %v128
  %v509 = vunpack.c.l.b16 %v129
  %v510 = vunpack.c.l.b16 %v130
  %v511 = vunpack.c.l.b16 %v131
  %v512 = vunpack.c.l.b16 %v132
  %v513 = vunpack.c.l.b16 %v133
  %v514 = vunpack.c.l.b16 %v134
  %v515 = vunpack.c.l.b16 %v135
  %v516 = vunpack.c.l.b16 %v136
  %v517 = vunpack.c.l.b16 %v137
  %v518 = vunpack.c.l.b16 %v138
  %v519 = vunpack.c.l.b16 %v139
  %v520 = vunpack.c.l.b16 %v140
  %v521 = vunpack.c.l.b16 %v141
  %v522 = vunpack.c.l.b16 %v142
  %v523 = vunpack.c.l.b16 %v143
  %v524 = vunpack.c.l.b16 %v144
  %v525 = vunpack.c.l.b16 %v145
  %v526 = vunpack.c.l.b16 %v146
  %v527 = vunpack.c.l.b16 %v147
  %v528 = vunpack.c.l.b16 %v148
  %v529 = vunpack.c.l.b16 %v149
  %v530 = vunpack.c.l.b16 %v150
  %v531 = vunpack.c.l.b16 %v151
  %v532 = vunpack.c.l.b16 %v152
  %v533 = vunpack.c.l.b16 %v153
  %v534 = vunpack.c.l.b16 %v154
  %v535 = vunpack.c.l.b16 %v155
  %v536 = vunpack.c.l.b16 %v156
  %v537 = vunpack.c.l.b16 %v157
  %v538 = vunpack.c.l.b16 %v158
  %v539 = vunpack.c.l.b16 %v159
  %v540 = vunpack.c.l.b16 %v160
  %v541 = vunpack.c.l.b16 %v161
  %v542 = vunpack.c.l.b16 %v162
  %v543 = vunpack.c.l.b16 %v163
  %v544 = vunpack.c.l.b16 %v164
  %v545 = vunpack.c.l.b16 %v165
  %v546 = vunpack.c.l.b16 %v166
  %v547 = vunpack.c.l.b16 %v167
  %v548 = vunpack.c.l.b16 %v168
  %v549 = vunpack.c.l.b16 %v169
  %v550 = vunpack.c.l.b16 %v170
  %v551 = vunpack.c.l.b16 %v171
  %v552 = vunpack.c.l.b16 %v172
  %v553 = vunpack.c.l.b16 %v173
  %v554 = vunpack.c.l.b16 %v174
  %v555 = vunpack.c.l.b16 %v175
  %v556 = vunpack.c.l.b16 %v176
  %v557 = vunpack.c.l.b16 %v177
  %v558 = vunpack.c.l.b16 %v178
  %v559 = vunpack.c.l.b16 %v179
  %v560 = vunpack.c.l.b16 %v180
  %v561 = vunpack.c.l.b16 %v181
  %v562 = vpack.c.b16 %v419, %v418
  %v563 = vpack.c.b16 %v421, %v420
  %v564 = vpack.c.b16 %v423, %v422
  %v565 = vpack.c.b16 %v425, %v424
  %v566 = vpack.c.b16 %v427, %v426
  %v567 = vpack.c.b16 %v429, %v428
  %v568 = vpack.c.b16 %v431, %v430
  %v569 = vpack.c.b16 %v433, %v432
  %v570 = vpack.c.b16 %v435, %v434
  %v571 = vpack.c.b16 %v437, %v436
  %v572 = vpack.c.b16 %v439, %v438
  %v573 = vpack.c.b16 %v441, %v440
  %v574 = vpack.c.b16 %v443, %v442
  %v575 = vpack.c.b16 %v445, %v444
  %v576 = vpack.c.b16 %v447, %v446
  %v577 = vpack.c.b16 %v449, %v448
  %v578 = vpack.c.b16 %v451, %v450
  %v579 = vpack.c.b16 %v453, %v452
  %v580 = vpack.c.b16 %v455, %v454
  %v581 = vpack.c.b16 %v457, %v456
  %v582 = vpack.c.b16 %v459, %v458
  %v583 = vpack.c.b16 %v461, %v460
  %v584 = vpack.c.b16 %v463, %v462
  %v585 = vpack.c.b16 %v465, %v464
  %v586 = vpack.c.b16 %v467, %v466
  %v587 = vpack.c.b16 %v469, %v468
  %v588 = vpack.c.b16 %v471, %v470
  %v589 = vpack.c.b16 %v473, %v472
  %v590 = vpack.c.b16 %v475, %v474
  %v591 = vpack.c.b16 %v477, %v476
  %v592 = vpack.c.b16 %v479, %v478
  %v593 = vpack.c.b16 %v481, %v480
  %v594 = vpack.c.b16 %v483, %v482
  %v595 = vpack.c.b16 %v485, %v484
  %v596 = vpack.c.b16 %v487, %v486
  %v597 = vpack.c.b16 %v489, %v488
  %v598 = vpack.c.b16 %v491, %v490
  %v599 = vpack.c.b16 %v493, %v492
  %v600 = vpack.c.b16 %v495, %v494
  %v601 = vpack.c.b16 %v497, %v496
  %v602 = vpack.c.b16 %v499, %v498
  %v603 = vpack.c.b16 %v501, %v500
  %v604 = vpack.c.b16 %v503, %v502
  %v605 = vpack.c.b16 %v505, %v504
  %v606 = vpack.c.b16 %v507, %v506
  %v607 = vpack.c.b16 %v509, %v508
  %v608 = vpack.c.b16 %v511, %v510
  %v609 = vpack.c.b16 %v513, %v512
  %v610 = vpack.c.b16 %v515, %v514
  %v611 = vpack.c.b16 %v517, %v516
  %v612 = vpack.c.b16 %v519, %v518
  %v613 = vpack.c.b16 %v521, %v520
  %v614 = vpack.c.b16 %v523, %v522
  %v615 = vpack.c.b16 %v525, %v524
  %v616 = vpack.c.b16 %v527, %v526
  %v617 = vpack.c.b16 %v529, %v528
  %v618 = vpack.c.b16 %v531, %v530
  %v619 = vpack.c.b16 %v533, %v532
  %v620 = vpack.c.b16 %v535, %v534
  %v621 = vpack.c.b16 %v537, %v536
  %v622 = vpack.c.b16 %v539, %v538
  %v623 = vpack.c.b16 %v541, %v540
  %v624 = vpack.c.b16 %v543, %v542
  %v625 = vpack.c.b16 %v545, %v544
  %v626 = vpack.c.b16 %v547, %v546
  %v627 = vpack.c.b16 %v549, %v548
  %v628 = vpack.c.b16 %v551, %v550
  %v629 = vpack.c.b16 %v553, %v552
  %v630 = vpack.c.b16 %v555, %v554
  %v631 = vpack.c.b16 %v557, %v556
  %v632 = vpack.c.b16 %v559, %v558
  %v633 = vpack.c.b16 %v561, %v560
  %706 = vmatprep.subr.bf16.mxu0 0
  %707 = vmatpush1.bf16.msra.mxu0 %v569
  %708 = vmatprep.subr.bf16.mxu0 0
  %709 = vmatpush1.bf16.msra.mxu0 %v568
  %710 = vmatprep.subr.bf16.mxu0 0
  %711 = vmatpush1.bf16.msra.mxu0 %v567
  %712 = vmatprep.subr.bf16.mxu0 0
  %713 = vmatpush1.bf16.msra.mxu0 %v566
  %714 = vmatprep.subr.bf16.mxu0 0
  %715 = vmatpush1.bf16.msra.mxu0 %v565
  %716 = vmatprep.subr.bf16.mxu0 0
  %717 = vmatpush1.bf16.msra.mxu0 %v564
  %718 = vmatprep.subr.bf16.mxu0 0
  %719 = vmatpush1.bf16.msra.mxu0 %v563
  %720 = vmatprep.subr.bf16.mxu0 0
  %721 = vmatpush1.bf16.msra.mxu0 %v562
  %722 = vmatprep.subr.bf16.mxu0 0
  %723 = vmatpush2.bf16.msra.mxu0 %v577
  %724 = vmatprep.subr.bf16.mxu0 0
  %725 = vmatpush2.bf16.msra.mxu0 %v576
  %726 = vmatprep.subr.bf16.mxu0 0
  %727 = vmatpush2.bf16.msra.mxu0 %v575
  %728 = vmatprep.subr.bf16.mxu0 0
  %729 = vmatpush2.bf16.msra.mxu0 %v574
  %730 = vmatprep.subr.bf16.mxu0 0
  %731 = vmatpush2.bf16.msra.mxu0 %v573
  %732 = vmatprep.subr.bf16.mxu0 0
  %733 = vmatpush2.bf16.msra.mxu0 %v572
  %734 = vmatprep.subr.bf16.mxu0 0
  %735 = vmatpush2.bf16.msra.mxu0 %v571
  %736 = vmatprep.subr.bf16.mxu0 0
  %737 = vmatpush2.bf16.msra.mxu0 %v570
  %738 = vmatprep.mubr.bf16.mxu0 %v239
  %739 = vmatmul.mubr.bf16.gmra.mxu0 %v238
  %v740 = vpop.f32.mrf.mxu0
  %v741 = vadd.f32 0.0, %v740
  %v742 = vpop.f32.mrf.mxu0
  %v743 = vpop.f32.mrf.mxu0
  %v744 = vadd.f32 0.0, %v743
  %v745 = vpop.f32.mrf.mxu0
  %746 = vmatprep.mubr.bf16.mxu0 %v248
  %747 = vmatmul.mubr.bf16.gmra.mxu0 %v247
  %v748 = vpop.f32.mrf.mxu0
  %v749 = vadd.f32 0.0, %v748
  %v750 = vpop.f32.mrf.mxu0
  %v751 = vpop.f32.mrf.mxu0
  %v752 = vadd.f32 0.0, %v751
  %v753 = vpop.f32.mrf.mxu0
  %754 = vdwg.mxu0
  %755 = vmatprep.subr.bf16.mxu0 0
  %756 = vmatpush1.bf16.msra.mxu0 %v585
  %757 = vmatprep.subr.bf16.mxu0 0
  %758 = vmatpush1.bf16.msra.mxu0 %v584
  %759 = vmatprep.subr.bf16.mxu0 0
  %760 = vmatpush1.bf16.msra.mxu0 %v583
  %761 = vmatprep.subr.bf16.mxu0 0
  %762 = vmatpush1.bf16.msra.mxu0 %v582
  %763 = vmatprep.subr.bf16.mxu0 0
  %764 = vmatpush1.bf16.msra.mxu0 %v581
  %765 = vmatprep.subr.bf16.mxu0 0
  %766 = vmatpush1.bf16.msra.mxu0 %v580
  %767 = vmatprep.subr.bf16.mxu0 0
  %768 = vmatpush1.bf16.msra.mxu0 %v579
  %769 = vmatprep.subr.bf16.mxu0 0
  %770 = vmatpush1.bf16.msra.mxu0 %v578
  %771 = vmatprep.subr.bf16.mxu0 0
  %772 = vmatpush2.bf16.msra.mxu0 %v593
  %773 = vmatprep.subr.bf16.mxu0 0
  %774 = vmatpush2.bf16.msra.mxu0 %v592
  %775 = vmatprep.subr.bf16.mxu0 0
  %776 = vmatpush2.bf16.msra.mxu0 %v591
  %777 = vmatprep.subr.bf16.mxu0 0
  %778 = vmatpush2.bf16.msra.mxu0 %v590
  %779 = vmatprep.subr.bf16.mxu0 0
  %780 = vmatpush2.bf16.msra.mxu0 %v589
  %781 = vmatprep.subr.bf16.mxu0 0
  %782 = vmatpush2.bf16.msra.mxu0 %v588
  %783 = vmatprep.subr.bf16.mxu0 0
  %784 = vmatpush2.bf16.msra.mxu0 %v587
  %785 = vmatprep.subr.bf16.mxu0 0
  %786 = vmatpush2.bf16.msra.mxu0 %v586
  %787 = vmatprep.mubr.bf16.mxu0 %v241
  %788 = vmatmul.mubr.bf16.gmra.mxu0 %v240
  %v789 = vpop.f32.mrf.mxu0
  %v790 = vadd.f32 %v741, %v789
  %v791 = vpop.f32.mrf.mxu0
  %v792 = vpop.f32.mrf.mxu0
  %v793 = vadd.f32 %v744, %v792
  %v794 = vpop.f32.mrf.mxu0
  %795 = vmatprep.mubr.bf16.mxu0 %v250
  %796 = vmatmul.mubr.bf16.gmra.mxu0 %v249
  %v797 = vpop.f32.mrf.mxu0
  %v798 = vadd.f32 %v749, %v797
  %v799 = vpop.f32.mrf.mxu0
  %v800 = vpop.f32.mrf.mxu0
  %v801 = vadd.f32 %v752, %v800
  %v802 = vpop.f32.mrf.mxu0
  %803 = vdwg.mxu0
  %804 = vmatprep.subr.bf16.mxu0 0
  %805 = vmatpush1.bf16.msra.mxu0 %v601
  %806 = vmatprep.subr.bf16.mxu0 0
  %807 = vmatpush1.bf16.msra.mxu0 %v600
  %808 = vmatprep.subr.bf16.mxu0 0
  %809 = vmatpush1.bf16.msra.mxu0 %v599
  %810 = vmatprep.subr.bf16.mxu0 0
  %811 = vmatpush1.bf16.msra.mxu0 %v598
  %812 = vmatprep.subr.bf16.mxu0 0
  %813 = vmatpush1.bf16.msra.mxu0 %v597
  %814 = vmatprep.subr.bf16.mxu0 0
  %815 = vmatpush1.bf16.msra.mxu0 %v596
  %816 = vmatprep.subr.bf16.mxu0 0
  %817 = vmatpush1.bf16.msra.mxu0 %v595
  %818 = vmatprep.subr.bf16.mxu0 0
  %819 = vmatpush1.bf16.msra.mxu0 %v594
  %820 = vmatprep.subr.bf16.mxu0 0
  %821 = vmatpush2.bf16.msra.mxu0 %v609
  %822 = vmatprep.subr.bf16.mxu0 0
  %823 = vmatpush2.bf16.msra.mxu0 %v608
  %824 = vmatprep.subr.bf16.mxu0 0
  %825 = vmatpush2.bf16.msra.mxu0 %v607
  %826 = vmatprep.subr.bf16.mxu0 0
  %827 = vmatpush2.bf16.msra.mxu0 %v606
  %828 = vmatprep.subr.bf16.mxu0 0
  %829 = vmatpush2.bf16.msra.mxu0 %v605
  %830 = vmatprep.subr.bf16.mxu0 0
  %831 = vmatpush2.bf16.msra.mxu0 %v604
  %832 = vmatprep.subr.bf16.mxu0 0
  %833 = vmatpush2.bf16.msra.mxu0 %v603
  %834 = vmatprep.subr.bf16.mxu0 0
  %835 = vmatpush2.bf16.msra.mxu0 %v602
  %836 = vmatprep.mubr.bf16.mxu0 %v243
  %837 = vmatmul.mubr.bf16.gmra.mxu0 %v242
  %v838 = vpop.f32.mrf.mxu0
  %v839 = vadd.f32 %v790, %v838
  %v840 = vpop.f32.mrf.mxu0
  %v841 = vpop.f32.mrf.mxu0
  %v842 = vadd.f32 %v793, %v841
  %v843 = vpop.f32.mrf.mxu0
  %844 = vmatprep.mubr.bf16.mxu0 %v252
  %845 = vmatmul.mubr.bf16.gmra.mxu0 %v251
  %v846 = vpop.f32.mrf.mxu0
  %v847 = vadd.f32 %v798, %v846
  %v848 = vpop.f32.mrf.mxu0
  %v849 = vpop.f32.mrf.mxu0
  %v850 = vadd.f32 %v801, %v849
  %v851 = vpop.f32.mrf.mxu0
  %852 = vdwg.mxu0
  %853 = vmatprep.subr.bf16.mxu0 0
  %854 = vmatpush1.bf16.msra.mxu0 %v617
  %855 = vmatprep.subr.bf16.mxu0 0
  %856 = vmatpush1.bf16.msra.mxu0 %v616
  %857 = vmatprep.subr.bf16.mxu0 0
  %858 = vmatpush1.bf16.msra.mxu0 %v615
  %859 = vmatprep.subr.bf16.mxu0 0
  %860 = vmatpush1.bf16.msra.mxu0 %v614
  %861 = vmatprep.subr.bf16.mxu0 0
  %862 = vmatpush1.bf16.msra.mxu0 %v613
  %863 = vmatprep.subr.bf16.mxu0 0
  %864 = vmatpush1.bf16.msra.mxu0 %v612
  %865 = vmatprep.subr.bf16.mxu0 0
  %866 = vmatpush1.bf16.msra.mxu0 %v611
  %867 = vmatprep.subr.bf16.mxu0 0
  %868 = vmatpush1.bf16.msra.mxu0 %v610
  %869 = vmatprep.subr.bf16.mxu0 0
  %870 = vmatpush2.bf16.msra.mxu0 %v625
  %871 = vmatprep.subr.bf16.mxu0 0
  %872 = vmatpush2.bf16.msra.mxu0 %v624
  %873 = vmatprep.subr.bf16.mxu0 0
  %874 = vmatpush2.bf16.msra.mxu0 %v623
  %875 = vmatprep.subr.bf16.mxu0 0
  %876 = vmatpush2.bf16.msra.mxu0 %v622
  %877 = vmatprep.subr.bf16.mxu0 0
  %878 = vmatpush2.bf16.msra.mxu0 %v621
  %879 = vmatprep.subr.bf16.mxu0 0
  %880 = vmatpush2.bf16.msra.mxu0 %v620
  %881 = vmatprep.subr.bf16.mxu0 0
  %882 = vmatpush2.bf16.msra.mxu0 %v619
  %883 = vmatprep.subr.bf16.mxu0 0
  %884 = vmatpush2.bf16.msra.mxu0 %v618
  %885 = vmatprep.mubr.bf16.mxu0 %v245
  %886 = vmatmul.mubr.bf16.gmra.mxu0 %v244
  %v887 = vpop.f32.mrf.mxu0
  %v888 = vadd.f32 %v839, %v887
  %v889 = vpop.f32.mrf.mxu0
  %v890 = vpop.f32.mrf.mxu0
  %v891 = vadd.f32 %v842, %v890
  %v892 = vpop.f32.mrf.mxu0
  %893 = vmatprep.mubr.bf16.mxu0 %v254
  %894 = vmatmul.mubr.bf16.gmra.mxu0 %v253
  %v895 = vpop.f32.mrf.mxu0
  %v896 = vadd.f32 %v847, %v895
  %v897 = vpop.f32.mrf.mxu0
  %v898 = vpop.f32.mrf.mxu0
  %v899 = vadd.f32 %v850, %v898
  %v900 = vpop.f32.mrf.mxu0
  %901 = vdwg.mxu0
  %902 = vmatprep.subr.bf16.mxu0 0
  %903 = vmatpush1.bf16.msra.mxu0 %v633
  %904 = vmatprep.subr.bf16.mxu0 0
  %905 = vmatpush1.bf16.msra.mxu0 %v632
  %906 = vmatprep.subr.bf16.mxu0 0
  %907 = vmatpush1.bf16.msra.mxu0 %v631
  %908 = vmatprep.subr.bf16.mxu0 0
  %909 = vmatpush1.bf16.msra.mxu0 %v630
  %910 = vmatprep.subr.bf16.mxu0 0
  %911 = vmatpush1.bf16.msra.mxu0 %v629
  %912 = vmatprep.subr.bf16.mxu0 0
  %913 = vmatpush1.bf16.msra.mxu0 %v628
  %914 = vmatprep.subr.bf16.mxu0 0
  %915 = vmatpush1.bf16.msra.mxu0 %v627
  %916 = vmatprep.subr.bf16.mxu0 0
  %917 = vmatpush1.bf16.msra.mxu0 %v626
  %918 = vmatprep.subr.bf16.mxu0 0
  %919 = vmatpush2.bf16.msra.mxu0 0
  %920 = vmatprep.subr.bf16.mxu0 0
  %921 = vmatpush2.bf16.msra.mxu0 0
  %922 = vmatprep.subr.bf16.mxu0 0
  %923 = vmatpush2.bf16.msra.mxu0 0
  %924 = vmatprep.subr.bf16.mxu0 0
  %925 = vmatpush2.bf16.msra.mxu0 0
  %926 = vmatprep.subr.bf16.mxu0 0
  %927 = vmatpush2.bf16.msra.mxu0 0
  %928 = vmatprep.subr.bf16.mxu0 0
  %929 = vmatpush2.bf16.msra.mxu0 0
  %930 = vmatprep.subr.bf16.mxu0 0
  %931 = vmatpush2.bf16.msra.mxu0 0
  %932 = vmatprep.subr.bf16.mxu0 0
  %933 = vmatpush2.bf16.msra.mxu0 0
  %934 = vmatprep.mubr.bf16.mxu0 0
  %935 = vmatmul.mubr.bf16.gmra.mxu0 %v246
  %v936 = vpop.f32.mrf.mxu0
  %v937 = vadd.f32 %v888, %v936
  %v938 = vpop.f32.mrf.mxu0
  %v939 = vpop.f32.mrf.mxu0
  %v940 = vadd.f32 %v891, %v939
  %v941 = vpop.f32.mrf.mxu0
  %942 = vmatprep.mubr.bf16.mxu0 0
  %943 = vmatmul.mubr.bf16.gmra.mxu0 %v255
  %v944 = vpop.f32.mrf.mxu0
  %v945 = vadd.f32 %v896, %v944
  %v946 = vpop.f32.mrf.mxu0
  %v947 = vpop.f32.mrf.mxu0
  %v948 = vadd.f32 %v899, %v947
  %v949 = vpop.f32.mrf.mxu0
  %950 = vdwg.mxu0
  %v951 = vld [vmem:[%s2] sm:$0x1]
  %v953 = vlaneseq
  %v954 = vshrl.u32 %v953, 7
  %v955 = vsub.s32 0, %v954
  %v956 = vrot.slane %v951, %v955
  %v958 = vmul.f32 %v937, %v956
  %v959 = vmul.f32 %v940, %v956
  %v960 = vmul.f32 %v945, %v956
  %v961 = vmul.f32 %v948, %v956
  %v962 = vld [vmem:[%s3] sm:$0x1]
  %v964 = vlaneseq
  %v965 = vshrl.u32 %v964, 7
  %v966 = vsub.s32 0, %v965
  %v967 = vrot.slane %v962, %v966
  %v969 = vadd.f32 %v958, %v967
  %v970 = vadd.f32 %v959, %v967
  %v971 = vadd.f32 %v960, %v967
  %v972 = vadd.f32 %v961, %v967
  %v973 = vpack.c.bf16 %v970, %v969
  %v974 = vpack.c.bf16 %v972, %v971
  %v977 = vunpack.c.l.b16 %v973
  %v978 = vunpack.c.h.b16 %v973
  %v979 = vunpack.c.l.b16 %v974
  %v980 = vunpack.c.h.b16 %v974
  %v981 = vpack.c.b16 %v977, %v977
  %v982 = vpack.c.b16 %v978, %v978
  %v983 = vpack.c.b16 %v979, %v979
  %v984 = vpack.c.b16 %v980, %v980
  %989 = vst [vmem:[%s4] sm:$0xf] %v981
  %990 = vst [vmem:[%s4 + $0x4] sm:$0xf] %v982
  %991 = vst [vmem:[%s4 + $0x8] sm:$0xf] %v983
  %992 = vst [vmem:[%s4 + $0xc] sm:$0xf] %v984
  // Predicated region
  $region18: #{forward.9} parent=0 // pred_check
    _
  $region19: #{forward.9} parent=0 // pred_check_branch
    %994 = sbr.rel (0) target = $region21
  $region20: #{forward.9} parent=0 // pred_region
    _
  $region21: #{forward.9} parent=0 // pred_fallthru
    _
  // Predicated region
  $region22: #{forward.9} parent=0 // pred_check
    _
  $region23: #{forward.9} parent=0 // pred_check_branch
    %996 = sbr.rel (0) target = $region25
  $region24: #{forward.9} parent=0 // pred_region
    _
  $region25: #{forward.9} parent=0 // pred_fallthru
    _

// kernel: forward.10
$region0: #{forward.10}
  #allocation0 [shape = 'u32[]', space=smem, size = 0x4, offset = 0x4, fixed_abs, tag = 'smem constant byte address 0x4 - core index']
  #allocation1 [shape = 'u32[144,128]{1,0:T(1,128)}', space=vmem, size = 0x12000, scoped, tag = 'internal scratch']
  #allocation2 [shape = 'f32[48,256]{1,0:T(8,128)}', space=vmem, size = 0xc000, scoped, tag = 'scratch operand']
  %s0 = inlined_call_operand.vmem [shape: bf16[2,16,128], index: 0, kind: input, shape index: {}]
  %s1 = inlined_call_operand.vmem [shape: bf16[128,256], index: 1, kind: input, shape index: {}]
  %s2 = inlined_call_operand.vmem [shape: f32[1,256], index: 2, kind: input, shape index: {}]
  %s3 = inlined_call_operand.vmem [shape: f32[1,256], index: 3, kind: input, shape index: {}]
  %s4 = inlined_call_operand.vmem [shape: f32[25,1,256], index: 4, kind: input, shape index: {}]
  %s5 = inlined_call_operand.vmem [shape: f32[1,256], index: 5, kind: input, shape index: {}]
  %s6 = inlined_call_operand.vmem [shape: bf16[256,128], index: 6, kind: input, shape index: {}]
  %s7 = inlined_call_operand.vmem [shape: f32[1,128], index: 7, kind: input, shape index: {}]
  %s8 = inlined_call_operand.vmem [shape: f32[1,128], index: 8, kind: input, shape index: {}]
  %s9 = inlined_call_operand.vmem [shape: bf16[128,256], index: 9, kind: input, shape index: {}]
  %s10 = inlined_call_operand.vmem [shape: bf16[256,128], index: 10, kind: input, shape index: {}]
  %s11 = inlined_call_operand.vmem [shape: f32[1,128], index: 11, kind: input, shape index: {}]
  %s12 = inlined_call_operand.vmem [shape: f32[1,128], index: 12, kind: input, shape index: {}]
  %s13 = inlined_call_operand.vmem [shape: bf16[2,16,128], index: 13, kind: output, shape index: {}]
  %s14 = sld [smem:[#allocation0]]
  $region85: #{forward.10} parent=0
    _
  %s16 = ssub.s32 1, %s14
  %s17 = scalar_select 0, %s16, %s14
  loop: start=0, step=1, limit=4
  $region2: #{forward.10} parent=0 // loop_pre_header
    _
  $region3: #{forward.10} parent=0 // loop_header
    %s19 = sphi 0, %s23
    %p20 = scmp.ge.s32.totalorder %s19, 4
    %s29 = sphi 0, %s31
    %s32 = sphi 0, %s29
    %s33 = sphi 0, %s32
    %s49 = sphi 0, %s33
    %s53 = sphi 0, %s53
    %s55 = sphi 0, %s53
    %s56 = sphi 0, %s55
    %s70 = sphi 0, %s56
    %s74 = sphi 0, %s74
    %s76 = sphi 0, %s74
    %s77 = sphi 0, %s76
    %s91 = sphi 0, %s77
    %s95 = sphi 0, %s95
    %s97 = sphi 0, %s95
    %s98 = sphi 0, %s97
    %s112 = sphi 0, %s98
    %s116 = sphi 0, %s116
    %s118 = sphi 0, %s116
    %s119 = sphi 0, %s118
    %s133 = sphi 0, %s119
    %s137 = sphi 0, %s137
    %s139 = sphi 0, %s137
    %s140 = sphi 0, %s139
    %s154 = sphi 0, %s140
    %s158 = sphi 0, %s158
    %s160 = sphi 0, %s158
    %s161 = sphi 0, %s160
    %s175 = sphi 0, %s161
    %s179 = sphi 0, %s179
    %s181 = sphi 0, %s179
    %s182 = sphi 0, %s181
    %s196 = sphi 0, %s182
    %s200 = sphi 0, %s200
    %s202 = sphi 0, %s200
    %s203 = sphi 0, %s202
    %s217 = sphi 0, %s203
    %s221 = sphi 0, %s221
    %s223 = sphi 0, %s221
    %s224 = sphi 0, %s223
    %s238 = sphi 0, %s224
    %s242 = sphi 0, %s242
    %s244 = sphi 0, %s242
    %s245 = sphi 0, %s244
    %s259 = sphi 0, %s245
    %s263 = sphi 0, %s263
    %s265 = sphi 0, %s263
    %s266 = sphi 0, %s265
    %s280 = sphi 0, %s266
    %s284 = sphi 0, %s284
    %s286 = sphi 0, %s284
    %s287 = sphi 0, %s286
    %s301 = sphi 0, %s287
    %s307 = sphi 0, %s309
    %s310 = sphi 0, %s307
    %s311 = sphi 0, %s310
    %s327 = sphi 0, %s311
  $region4: #{forward.10} parent=0 // loop_header_branch
    %22 = sbr.rel (%p20) target = $region8
  $region5: #{forward.10} parent=0 // loop_body
    %s24 = ssub.s32 %s19, 1
    %s25 = ssub.s32 %s19, 2
    %s26 = sadd.s32 %s19, 1
    %s27 = ssub.s32 %s19, %s26
    %p28 = scmp.eq.s32.totalorder %s27, 0
    %s30 = sadd.s32 %s29, 1
    %s31 = scalar_select %p28, %s29, %s30
    %p34 = pneg %p28
    %p35 = scmp.eq.s32.totalorder %s19, 1
    %p36 = por %p34, %p35
    %p37 = scmp.ne.s32.totalorder %s29, %s32
    %p38 = scmp.eq.s32.totalorder %s19, 0
    %p39 = por %p37, %p38
    %p40 = scmp.ne.s32.totalorder %s29, %s32
    %p41 = scmp.eq.s32.totalorder %s24, 1
    %p42 = por %p40, %p41
    %p43 = scmp.ne.s32.totalorder %s32, %s33
    %p44 = scmp.eq.s32.totalorder %s24, 0
    %p45 = por %p43, %p44
    %p46 = scmp.ne.s32.totalorder %s32, %s33
    %p47 = scmp.eq.s32.totalorder %s25, 1
    %p48 = por %p46, %p47
    %p50 = scmp.ne.s32.totalorder %s33, %s49
    %p51 = scmp.eq.s32.totalorder %s25, 0
    %p52 = por %p50, %p51
    %s54 = sadd.s32 %s53, 1
    %p57 = scmp.eq.s32.totalorder %s19, 1
    %p58 = scmp.ne.s32.totalorder %s53, %s55
    %p59 = scmp.eq.s32.totalorder %s19, 0
    %p60 = por %p58, %p59
    %p61 = scmp.ne.s32.totalorder %s53, %s55
    %p62 = scmp.eq.s32.totalorder %s24, 1
    %p63 = por %p61, %p62
    %p64 = scmp.ne.s32.totalorder %s55, %s56
    %p65 = scmp.eq.s32.totalorder %s24, 0
    %p66 = por %p64, %p65
    %p67 = scmp.ne.s32.totalorder %s55, %s56
    %p68 = scmp.eq.s32.totalorder %s25, 1
    %p69 = por %p67, %p68
    %p71 = scmp.ne.s32.totalorder %s56, %s70
    %p72 = scmp.eq.s32.totalorder %s25, 0
    %p73 = por %p71, %p72
    %s75 = sadd.s32 %s74, 1
    %p78 = scmp.eq.s32.totalorder %s19, 1
    %p79 = scmp.ne.s32.totalorder %s74, %s76
    %p80 = scmp.eq.s32.totalorder %s19, 0
    %p81 = por %p79, %p80
    %p82 = scmp.ne.s32.totalorder %s74, %s76
    %p83 = scmp.eq.s32.totalorder %s24, 1
    %p84 = por %p82, %p83
    %p85 = scmp.ne.s32.totalorder %s76, %s77
    %p86 = scmp.eq.s32.totalorder %s24, 0
    %p87 = por %p85, %p86
    %p88 = scmp.ne.s32.totalorder %s76, %s77
    %p89 = scmp.eq.s32.totalorder %s25, 1
    %p90 = por %p88, %p89
    %p92 = scmp.ne.s32.totalorder %s77, %s91
    %p93 = scmp.eq.s32.totalorder %s25, 0
    %p94 = por %p92, %p93
    %s96 = sadd.s32 %s95, 1
    %p99 = scmp.eq.s32.totalorder %s19, 1
    %p100 = scmp.ne.s32.totalorder %s95, %s97
    %p101 = scmp.eq.s32.totalorder %s19, 0
    %p102 = por %p100, %p101
    %p103 = scmp.ne.s32.totalorder %s95, %s97
    %p104 = scmp.eq.s32.totalorder %s24, 1
    %p105 = por %p103, %p104
    %p106 = scmp.ne.s32.totalorder %s97, %s98
    %p107 = scmp.eq.s32.totalorder %s24, 0
    %p108 = por %p106, %p107
    %p109 = scmp.ne.s32.totalorder %s97, %s98
    %p110 = scmp.eq.s32.totalorder %s25, 1
    %p111 = por %p109, %p110
    %p113 = scmp.ne.s32.totalorder %s98, %s112
    %p114 = scmp.eq.s32.totalorder %s25, 0
    %p115 = por %p113, %p114
    %s117 = sadd.s32 %s116, 1
    %p120 = scmp.eq.s32.totalorder %s19, 1
    %p121 = scmp.ne.s32.totalorder %s116, %s118
    %p122 = scmp.eq.s32.totalorder %s19, 0
    %p123 = por %p121, %p122
    %p124 = scmp.ne.s32.totalorder %s116, %s118
    %p125 = scmp.eq.s32.totalorder %s24, 1
    %p126 = por %p124, %p125
    %p127 = scmp.ne.s32.totalorder %s118, %s119
    %p128 = scmp.eq.s32.totalorder %s24, 0
    %p129 = por %p127, %p128
    %p130 = scmp.ne.s32.totalorder %s118, %s119
    %p131 = scmp.eq.s32.totalorder %s25, 1
    %p132 = por %p130, %p131
    %p134 = scmp.ne.s32.totalorder %s119, %s133
    %p135 = scmp.eq.s32.totalorder %s25, 0
    %p136 = por %p134, %p135
    %s138 = sadd.s32 %s137, 1
    %p141 = scmp.eq.s32.totalorder %s19, 1
    %p142 = scmp.ne.s32.totalorder %s137, %s139
    %p143 = scmp.eq.s32.totalorder %s19, 0
    %p144 = por %p142, %p143
    %p145 = scmp.ne.s32.totalorder %s137, %s139
    %p146 = scmp.eq.s32.totalorder %s24, 1
    %p147 = por %p145, %p146
    %p148 = scmp.ne.s32.totalorder %s139, %s140
    %p149 = scmp.eq.s32.totalorder %s24, 0
    %p150 = por %p148, %p149
    %p151 = scmp.ne.s32.totalorder %s139, %s140
    %p152 = scmp.eq.s32.totalorder %s25, 1
    %p153 = por %p151, %p152
    %p155 = scmp.ne.s32.totalorder %s140, %s154
    %p156 = scmp.eq.s32.totalorder %s25, 0
    %p157 = por %p155, %p156
    %s159 = sadd.s32 %s158, 1
    %p162 = scmp.eq.s32.totalorder %s19, 1
    %p163 = scmp.ne.s32.totalorder %s158, %s160
    %p164 = scmp.eq.s32.totalorder %s19, 0
    %p165 = por %p163, %p164
    %p166 = scmp.ne.s32.totalorder %s158, %s160
    %p167 = scmp.eq.s32.totalorder %s24, 1
    %p168 = por %p166, %p167
    %p169 = scmp.ne.s32.totalorder %s160, %s161
    %p170 = scmp.eq.s32.totalorder %s24, 0
    %p171 = por %p169, %p170
    %p172 = scmp.ne.s32.totalorder %s160, %s161
    %p173 = scmp.eq.s32.totalorder %s25, 1
    %p174 = por %p172, %p173
    %p176 = scmp.ne.s32.totalorder %s161, %s175
    %p177 = scmp.eq.s32.totalorder %s25, 0
    %p178 = por %p176, %p177
    %s180 = sadd.s32 %s179, 1
    %p183 = scmp.eq.s32.totalorder %s19, 1
    %p184 = scmp.ne.s32.totalorder %s179, %s181
    %p185 = scmp.eq.s32.totalorder %s19, 0
    %p186 = por %p184, %p185
    %p187 = scmp.ne.s32.totalorder %s179, %s181
    %p188 = scmp.eq.s32.totalorder %s24, 1
    %p189 = por %p187, %p188
    %p190 = scmp.ne.s32.totalorder %s181, %s182
    %p191 = scmp.eq.s32.totalorder %s24, 0
    %p192 = por %p190, %p191
    %p193 = scmp.ne.s32.totalorder %s181, %s182
    %p194 = scmp.eq.s32.totalorder %s25, 1
    %p195 = por %p193, %p194
    %p197 = scmp.ne.s32.totalorder %s182, %s196
    %p198 = scmp.eq.s32.totalorder %s25, 0
    %p199 = por %p197, %p198
    %s201 = sadd.s32 %s200, 1
    %p204 = scmp.eq.s32.totalorder %s19, 1
    %p205 = scmp.ne.s32.totalorder %s200, %s202
    %p206 = scmp.eq.s32.totalorder %s19, 0
    %p207 = por %p205, %p206
    %p208 = scmp.ne.s32.totalorder %s200, %s202
    %p209 = scmp.eq.s32.totalorder %s24, 1
    %p210 = por %p208, %p209
    %p211 = scmp.ne.s32.totalorder %s202, %s203
    %p212 = scmp.eq.s32.totalorder %s24, 0
    %p213 = por %p211, %p212
    %p214 = scmp.ne.s32.totalorder %s202, %s203
    %p215 = scmp.eq.s32.totalorder %s25, 1
    %p216 = por %p214, %p215
    %p218 = scmp.ne.s32.totalorder %s203, %s217
    %p219 = scmp.eq.s32.totalorder %s25, 0
    %p220 = por %p218, %p219
    %s222 = sadd.s32 %s221, 1
    %p225 = scmp.eq.s32.totalorder %s19, 1
    %p226 = scmp.ne.s32.totalorder %s221, %s223
    %p227 = scmp.eq.s32.totalorder %s19, 0
    %p228 = por %p226, %p227
    %p229 = scmp.ne.s32.totalorder %s221, %s223
    %p230 = scmp.eq.s32.totalorder %s24, 1
    %p231 = por %p229, %p230
    %p232 = scmp.ne.s32.totalorder %s223, %s224
    %p233 = scmp.eq.s32.totalorder %s24, 0
    %p234 = por %p232, %p233
    %p235 = scmp.ne.s32.totalorder %s223, %s224
    %p236 = scmp.eq.s32.totalorder %s25, 1
    %p237 = por %p235, %p236
    %p239 = scmp.ne.s32.totalorder %s224, %s238
    %p240 = scmp.eq.s32.totalorder %s25, 0
    %p241 = por %p239, %p240
    %s243 = sadd.s32 %s242, 1
    %p246 = scmp.eq.s32.totalorder %s19, 1
    %p247 = scmp.ne.s32.totalorder %s242, %s244
    %p248 = scmp.eq.s32.totalorder %s19, 0
    %p249 = por %p247, %p248
    %p250 = scmp.ne.s32.totalorder %s242, %s244
    %p251 = scmp.eq.s32.totalorder %s24, 1
    %p252 = por %p250, %p251
    %p253 = scmp.ne.s32.totalorder %s244, %s245
    %p254 = scmp.eq.s32.totalorder %s24, 0
    %p255 = por %p253, %p254
    %p256 = scmp.ne.s32.totalorder %s244, %s245
    %p257 = scmp.eq.s32.totalorder %s25, 1
    %p258 = por %p256, %p257
    %p260 = scmp.ne.s32.totalorder %s245, %s259
    %p261 = scmp.eq.s32.totalorder %s25, 0
    %p262 = por %p260, %p261
    %s264 = sadd.s32 %s263, 1
    %p267 = scmp.eq.s32.totalorder %s19, 1
    %p268 = scmp.ne.s32.totalorder %s263, %s265
    %p269 = scmp.eq.s32.totalorder %s19, 0
    %p270 = por %p268, %p269
    %p271 = scmp.ne.s32.totalorder %s263, %s265
    %p272 = scmp.eq.s32.totalorder %s24, 1
    %p273 = por %p271, %p272
    %p274 = scmp.ne.s32.totalorder %s265, %s266
    %p275 = scmp.eq.s32.totalorder %s24, 0
    %p276 = por %p274, %p275
    %p277 = scmp.ne.s32.totalorder %s265, %s266
    %p278 = scmp.eq.s32.totalorder %s25, 1
    %p279 = por %p277, %p278
    %p281 = scmp.ne.s32.totalorder %s266, %s280
    %p282 = scmp.eq.s32.totalorder %s25, 0
    %p283 = por %p281, %p282
    %s285 = sadd.s32 %s284, 1
    %p288 = scmp.eq.s32.totalorder %s19, 1
    %p289 = scmp.ne.s32.totalorder %s284, %s286
    %p290 = scmp.eq.s32.totalorder %s19, 0
    %p291 = por %p289, %p290
    %p292 = scmp.ne.s32.totalorder %s284, %s286
    %p293 = scmp.eq.s32.totalorder %s24, 1
    %p294 = por %p292, %p293
    %p295 = scmp.ne.s32.totalorder %s286, %s287
    %p296 = scmp.eq.s32.totalorder %s24, 0
    %p297 = por %p295, %p296
    %p298 = scmp.ne.s32.totalorder %s286, %s287
    %p299 = scmp.eq.s32.totalorder %s25, 1
    %p300 = por %p298, %p299
    %p302 = scmp.ne.s32.totalorder %s287, %s301
    %p303 = scmp.eq.s32.totalorder %s25, 0
    %p304 = por %p302, %p303
    %s305 = ssub.s32 %s19, %s26
    %p306 = scmp.eq.s32.totalorder %s305, 0
    %s308 = sadd.s32 %s307, 1
    %s309 = scalar_select %p306, %s307, %s308
    %p312 = pneg %p306
    %p313 = scmp.eq.s32.totalorder %s19, 1
    %p314 = por %p312, %p313
    %p315 = scmp.ne.s32.totalorder %s307, %s310
    %p316 = scmp.eq.s32.totalorder %s19, 0
    %p317 = por %p315, %p316
    %p318 = scmp.ne.s32.totalorder %s307, %s310
    %p319 = scmp.eq.s32.totalorder %s24, 1
    %p320 = por %p318, %p319
    %p321 = scmp.ne.s32.totalorder %s310, %s311
    %p322 = scmp.eq.s32.totalorder %s24, 0
    %p323 = por %p321, %p322
    %p324 = scmp.ne.s32.totalorder %s310, %s311
    %p325 = scmp.eq.s32.totalorder %s25, 1
    %p326 = por %p324, %p325
    %p328 = scmp.ne.s32.totalorder %s311, %s327
    %p329 = scmp.eq.s32.totalorder %s25, 0
    %p330 = por %p328, %p329
    %p331 = scmp.le.s32.totalorder 1, %s19
    %p332 = scmp.lt.s32.totalorder %s19, 3
    %p333 = pnand %p331, %p332
    %p334 = pneg %p333
    // Predicated region
    $region9: #{forward.10} parent=5 // pred_check
      _
    $region10: #{forward.10} parent=5 // pred_check_branch
      %336 = sbr.rel (%p333) target = $region12
    $region11: #{forward.10} parent=5 // pred_region
      %s337 = ssub.s32 %s19, 1
      // Predicated region
      $region13: #{forward.10} parent=11 // pred_check
        %p338 = pneg %p66
      $region14: #{forward.10} parent=11 // pred_check_branch
        %340 = sbr.rel (%p338) target = $region16
      $region15: #{forward.10} parent=11 // pred_region
        _
      $region16: #{forward.10} parent=11 // pred_fallthru
        _
      // Predicated region
      $region17: #{forward.10} parent=11 // pred_check
        %p341 = pneg %p87
      $region18: #{forward.10} parent=11 // pred_check_branch
        %343 = sbr.rel (%p341) target = $region20
      $region19: #{forward.10} parent=11 // pred_region
        _
      $region20: #{forward.10} parent=11 // pred_fallthru
        _
      // Predicated region
      $region21: #{forward.10} parent=11 // pred_check
        %p344 = pneg %p108
      $region22: #{forward.10} parent=11 // pred_check_branch
        %346 = sbr.rel (%p344) target = $region24
      $region23: #{forward.10} parent=11 // pred_region
        _
      $region24: #{forward.10} parent=11 // pred_fallthru
        _
      // Predicated region
      $region25: #{forward.10} parent=11 // pred_check
        %p347 = pneg %p129
      $region26: #{forward.10} parent=11 // pred_check_branch
        %349 = sbr.rel (%p347) target = $region28
      $region27: #{forward.10} parent=11 // pred_region
        _
      $region28: #{forward.10} parent=11 // pred_fallthru
        _
      // Predicated region
      $region29: #{forward.10} parent=11 // pred_check
        %p350 = pneg %p150
      $region30: #{forward.10} parent=11 // pred_check_branch
        %352 = sbr.rel (%p350) target = $region32
      $region31: #{forward.10} parent=11 // pred_region
        _
      $region32: #{forward.10} parent=11 // pred_fallthru
        _
      // Predicated region
      $region33: #{forward.10} parent=11 // pred_check
        %p353 = pneg %p171
      $region34: #{forward.10} parent=11 // pred_check_branch
        %355 = sbr.rel (%p353) target = $region36
      $region35: #{forward.10} parent=11 // pred_region
        _
      $region36: #{forward.10} parent=11 // pred_fallthru
        _
      // Predicated region
      $region37: #{forward.10} parent=11 // pred_check
        %p356 = pneg %p192
      $region38: #{forward.10} parent=11 // pred_check_branch
        %358 = sbr.rel (%p356) target = $region40
      $region39: #{forward.10} parent=11 // pred_region
        _
      $region40: #{forward.10} parent=11 // pred_fallthru
        _
      // Predicated region
      $region41: #{forward.10} parent=11 // pred_check
        %p359 = pneg %p213
      $region42: #{forward.10} parent=11 // pred_check_branch
        %361 = sbr.rel (%p359) target = $region44
      $region43: #{forward.10} parent=11 // pred_region
        _
      $region44: #{forward.10} parent=11 // pred_fallthru
        _
      // Predicated region
      $region45: #{forward.10} parent=11 // pred_check
        %p362 = pneg %p234
      $region46: #{forward.10} parent=11 // pred_check_branch
        %364 = sbr.rel (%p362) target = $region48
      $region47: #{forward.10} parent=11 // pred_region
        _
      $region48: #{forward.10} parent=11 // pred_fallthru
        _
      // Predicated region
      $region49: #{forward.10} parent=11 // pred_check
        %p365 = pneg %p255
      $region50: #{forward.10} parent=11 // pred_check_branch
        %367 = sbr.rel (%p365) target = $region52
      $region51: #{forward.10} parent=11 // pred_region
        _
      $region52: #{forward.10} parent=11 // pred_fallthru
        _
      // Predicated region
      $region53: #{forward.10} parent=11 // pred_check
        %p368 = pneg %p276
      $region54: #{forward.10} parent=11 // pred_check_branch
        %370 = sbr.rel (%p368) target = $region56
      $region55: #{forward.10} parent=11 // pred_region
        _
      $region56: #{forward.10} parent=11 // pred_fallthru
        _
      // Predicated region
      $region57: #{forward.10} parent=11 // pred_check
        %p371 = pneg %p297
      $region58: #{forward.10} parent=11 // pred_check_branch
        %373 = sbr.rel (%p371) target = $region60
      $region59: #{forward.10} parent=11 // pred_region
        _
      $region60: #{forward.10} parent=11 // pred_fallthru
        _
    $region12: #{forward.10} parent=5 // pred_fallthru
      _
    %p374 = scmp.lt.s32.totalorder %s19, 2
    // Predicated region
    $region61: #{forward.10} parent=5 // pred_check
      %p375 = pneg %p374
    $region62: #{forward.10} parent=5 // pred_check_branch
      %377 = sbr.rel (%p375) target = $region64
    $region63: #{forward.10} parent=5 // pred_region
      // Predicated region
      $region65: #{forward.10} parent=63 // pred_check
        %p378 = pneg %p39
      $region66: #{forward.10} parent=63 // pred_check_branch
        %380 = sbr.rel (%p378) target = $region68
      $region67: #{forward.10} parent=63 // pred_region
        %p381 = scmp.lt.s32.totalorder %s19, 1
        %s382 = scalar_select %p381, %s19, 1
        %s383 = smul.addr %s382, 2
        %s384 = smul.addr %s383, 4
        %s385 = scalar_lea.vmem %s0, %s384
      $region68: #{forward.10} parent=63 // pred_fallthru
        _
    $region64: #{forward.10} parent=5 // pred_fallthru
      _
    %p386 = scmp.le.s32.totalorder 1, %s19
    %p387 = scmp.lt.s32.totalorder %s19, 3
    %p388 = pnand %p386, %p387
    %p389 = pneg %p388
    // Predicated region
    $region69: #{forward.10} parent=5 // pred_check
      _
    $region70: #{forward.10} parent=5 // pred_check_branch
      %391 = sbr.rel (%p388) target = $region72
    $region71: #{forward.10} parent=5 // pred_region
      %s392 = ssub.s32 %s19, 1
      %p393 = scmp.lt.s32.totalorder %s24, 1
      %s394 = scalar_select %p393, %s24, 1
      %s395 = smul.addr %s394, 2
      %s396 = smul.addr %s395, 4
      %s397 = scalar_lea.vmem %s0, %s396
      %p398 = pneg %p45
      %p399 = pneg %p42
      %p400 = pneg %p66
      %p401 = pneg %p63
      %p402 = pneg %p87
      %p403 = pneg %p84
      %p404 = pneg %p108
      %p405 = pneg %p105
      %p406 = pneg %p129
      %p407 = pneg %p126
      %p408 = pneg %p150
      %p409 = pneg %p147
      %p410 = pneg %p171
      %p411 = pneg %p168
      %p412 = pneg %p192
      %p413 = pneg %p189
      %p414 = pneg %p213
      %p415 = pneg %p210
      %p416 = pneg %p234
      %p417 = pneg %p231
      %p418 = pneg %p255
      %p419 = pneg %p252
      %p420 = pneg %p276
      %p421 = pneg %p273
      %p422 = pneg %p297
      %p423 = pneg %p294
      %p424 = pneg %p323
      %p425 = pneg %p320
      %p426 = scmp.lt.s32.totalorder %s24, 1
      %s427 = scalar_select %p426, %s24, 1
      %s428 = smul.addr %s427, 2
      %s429 = smul.addr %s428, 4
      %s430 = scalar_lea.vmem %s13, %s429
      %p431 = scmp.lt.s32.totalorder %s24, 1
      %s432 = scalar_select %p431, %s24, 1
      %s433 = smul.addr %s432, 2
      %s434 = smul.addr %s433, 4
      %s435 = scalar_lea.vmem %s0, %s434
      %p436 = scmp.lt.s32.totalorder %s24, 1
      %s437 = scalar_select %p436, %s24, 1
      %s438 = smul.addr %s437, 2
      %s439 = smul.addr %s438, 4
      %s440 = scalar_lea.vmem %s13, %s439
      %v442 = vld [vmem:[%s435] sm:$0xf]
      %v443 = vld [vmem:[%s435 + $0x4] sm:$0xf]
      %v444 = vld [vmem:[%s1] sm:$0xff]
      %v445 = vld [vmem:[%s1 + $0x8] sm:$0xff]
      %v446 = vld [vmem:[%s1 + $0x10] sm:$0xff]
      %v447 = vld [vmem:[%s1 + $0x18] sm:$0xff]
      %v448 = vld [vmem:[%s1 + $0x20] sm:$0xff]
      %v449 = vld [vmem:[%s1 + $0x28] sm:$0xff]
      %v450 = vld [vmem:[%s1 + $0x30] sm:$0xff]
      %v451 = vld [vmem:[%s1 + $0x38] sm:$0xff]
      %v452 = vld [vmem:[%s1 + $0x40] sm:$0xff]
      %v453 = vld [vmem:[%s1 + $0x48] sm:$0xff]
      %v454 = vld [vmem:[%s1 + $0x50] sm:$0xff]
      %v455 = vld [vmem:[%s1 + $0x58] sm:$0xff]
      %v456 = vld [vmem:[%s1 + $0x60] sm:$0xff]
      %v457 = vld [vmem:[%s1 + $0x68] sm:$0xff]
      %v458 = vld [vmem:[%s1 + $0x70] sm:$0xff]
      %v459 = vld [vmem:[%s1 + $0x78] sm:$0xff]
      %v462 = vunpack.c.l.b16 %v442
      %v463 = vunpack.c.l.b16 %v443
      %v464 = vpack.c.b16 %v463, %v462
      %v482 = vunpack.c.l.b16 %v444
      %v483 = vunpack.c.h.b16 %v444
      %v484 = vunpack.c.l.b16 %v445
      %v485 = vunpack.c.h.b16 %v445
      %v486 = vunpack.c.l.b16 %v446
      %v487 = vunpack.c.h.b16 %v446
      %v488 = vunpack.c.l.b16 %v447
      %v489 = vunpack.c.h.b16 %v447
      %v490 = vunpack.c.l.b16 %v448
      %v491 = vunpack.c.h.b16 %v448
      %v492 = vunpack.c.l.b16 %v449
      %v493 = vunpack.c.h.b16 %v449
      %v494 = vunpack.c.l.b16 %v450
      %v495 = vunpack.c.h.b16 %v450
      %v496 = vunpack.c.l.b16 %v451
      %v497 = vunpack.c.h.b16 %v451
      %v498 = vunpack.c.l.b16 %v452
      %v499 = vunpack.c.h.b16 %v452
      %v500 = vunpack.c.l.b16 %v453
      %v501 = vunpack.c.h.b16 %v453
      %v502 = vunpack.c.l.b16 %v454
      %v503 = vunpack.c.h.b16 %v454
      %v504 = vunpack.c.l.b16 %v455
      %v505 = vunpack.c.h.b16 %v455
      %v506 = vunpack.c.l.b16 %v456
      %v507 = vunpack.c.h.b16 %v456
      %v508 = vunpack.c.l.b16 %v457
      %v509 = vunpack.c.h.b16 %v457
      %v510 = vunpack.c.l.b16 %v458
      %v511 = vunpack.c.h.b16 %v458
      %v512 = vunpack.c.l.b16 %v459
      %v513 = vunpack.c.h.b16 %v459
      %v514 = vpack.c.b16 %v484, %v482
      %v515 = vpack.c.b16 %v485, %v483
      %v516 = vpack.c.b16 %v488, %v486
      %v517 = vpack.c.b16 %v489, %v487
      %v518 = vpack.c.b16 %v492, %v490
      %v519 = vpack.c.b16 %v493, %v491
      %v520 = vpack.c.b16 %v496, %v494
      %v521 = vpack.c.b16 %v497, %v495
      %v522 = vpack.c.b16 %v500, %v498
      %v523 = vpack.c.b16 %v501, %v499
      %v524 = vpack.c.b16 %v504, %v502
      %v525 = vpack.c.b16 %v505, %v503
      %v526 = vpack.c.b16 %v508, %v506
      %v527 = vpack.c.b16 %v509, %v507
      %v528 = vpack.c.b16 %v512, %v510
      %v529 = vpack.c.b16 %v513, %v511
      %546 = vmatprep.subr.bf16.mxu0 %v529
      %547 = vmatpush1.bf16.msra.mxu0 %v528
      %548 = vmatprep.subr.bf16.mxu0 %v527
      %549 = vmatpush1.bf16.msra.mxu0 %v526
      %550 = vmatprep.subr.bf16.mxu0 %v525
      %551 = vmatpush1.bf16.msra.mxu0 %v524
      %552 = vmatprep.subr.bf16.mxu0 %v523
      %553 = vmatpush1.bf16.msra.mxu0 %v522
      %554 = vmatprep.subr.bf16.mxu0 %v521
      %555 = vmatpush1.bf16.msra.mxu0 %v520
      %556 = vmatprep.subr.bf16.mxu0 %v519
      %557 = vmatpush1.bf16.msra.mxu0 %v518
      %558 = vmatprep.subr.bf16.mxu0 %v517
      %559 = vmatpush1.bf16.msra.mxu0 %v516
      %560 = vmatprep.subr.bf16.mxu0 %v515
      %561 = vmatpush1.bf16.msra.mxu0 %v514
      %562 = vmatprep.subr.bf16.mxu0 0
      %563 = vmatpush2.bf16.msra.mxu0 0
      %564 = vmatprep.subr.bf16.mxu0 0
      %565 = vmatpush2.bf16.msra.mxu0 0
      %566 = vmatprep.subr.bf16.mxu0 0
      %567 = vmatpush2.bf16.msra.mxu0 0
      %568 = vmatprep.subr.bf16.mxu0 0
      %569 = vmatpush2.bf16.msra.mxu0 0
      %570 = vmatprep.subr.bf16.mxu0 0
      %571 = vmatpush2.bf16.msra.mxu0 0
      %572 = vmatprep.subr.bf16.mxu0 0
      %573 = vmatpush2.bf16.msra.mxu0 0
      %574 = vmatprep.subr.bf16.mxu0 0
      %575 = vmatpush2.bf16.msra.mxu0 0
      %576 = vmatprep.subr.bf16.mxu0 0
      %577 = vmatpush2.bf16.msra.mxu0 0
      %578 = vmatprep.mubr.bf16.mxu0 0
      %579 = vmatmul.mubr.bf16.gmra.mxu0 %v464
      %v580 = vpop.f32.mrf.mxu0
      %v581 = vadd.f32 0.0, %v580
      %v582 = vpop.f32.mrf.mxu0
      %v583 = vadd.f32 0.0, %v582
      %v584 = vpop.f32.mrf.mxu0
      %v585 = vadd.f32 0.0, %v584
      %v586 = vpop.f32.mrf.mxu0
      %v587 = vadd.f32 0.0, %v586
      %588 = vdwg.mxu0
      %v589 = vld [vmem:[%s2] sm:$0x3]
      %v591 = vlaneseq
      %v592 = vshrl.u32 %v591, 7
      %v593 = vsub.s32 0, %v592
      %v594 = vrot.slane %v589, %v593
      %v595 = vlaneseq
      %v596 = vshrl.u32 %v595, 7
      %v597 = vsub.s32 1, %v596
      %v598 = vrot.slane %v589, %v597
      %v601 = vmul.f32 %v581, %v594
      %v602 = vmul.f32 %v583, %v598
      %v603 = vmul.f32 %v585, %v594
      %v604 = vmul.f32 %v587, %v598
      %v605 = vld [vmem:[%s3] sm:$0x3]
      %v607 = vlaneseq
      %v608 = vshrl.u32 %v607, 7
      %v609 = vsub.s32 0, %v608
      %v610 = vrot.slane %v605, %v609
      %v611 = vlaneseq
      %v612 = vshrl.u32 %v611, 7
      %v613 = vsub.s32 1, %v612
      %v614 = vrot.slane %v605, %v613
      %v617 = vadd.f32 %v601, %v610
      %v618 = vadd.f32 %v602, %v614
      %v619 = vadd.f32 %v603, %v610
      %v620 = vadd.f32 %v604, %v614
      %v621 = vxor.u32 %v617, 2147483648
      %v622 = vxor.u32 %v618, 2147483648
      %v623 = vxor.u32 %v619, 2147483648
      %v624 = vxor.u32 %v620, 2147483648
      %v625 = vmul.f32 %v621, 1.442695
      %v626 = vpow.pop %v625
      %v627 = vmul.f32 %v622, 1.442695
      %v628 = vpow.pop %v627
      %v629 = vmul.f32 %v623, 1.442695
      %v630 = vpow.pop %v629
      %v631 = vmul.f32 %v624, 1.442695
      %v632 = vpow.pop %v631
      %v633 = vadd.f32 %v626, 1.0
      %v634 = vadd.f32 %v628, 1.0
      %v635 = vadd.f32 %v630, 1.0
      %v636 = vadd.f32 %v632, 1.0
      %v637 = vrcp.pop %v633
      %v638 = vmul.f32 1.0, %v637
      %v639 = vrcp.pop %v634
      %v640 = vmul.f32 1.0, %v639
      %v641 = vrcp.pop %v635
      %v642 = vmul.f32 1.0, %v641
      %v643 = vrcp.pop %v636
      %v644 = vmul.f32 1.0, %v643
      %v645 = vmul.f32 %v617, %v638
      %v646 = vmul.f32 %v618, %v640
      %v647 = vmul.f32 %v619, %v642
      %v648 = vmul.f32 %v620, %v644
      %649 = vst [vmem:[#allocation2] sm:$0xff] 0.0
      %650 = vst [vmem:[#allocation2 + $0x8] sm:$0xff] 0.0
      %651 = vst [vmem:[#allocation2 + $0x10] sm:$0xff] 0.0
      %652 = vst [vmem:[#allocation2 + $0x18] sm:$0xff] 0.0
      %653 = vst [vmem:[#allocation2 + $0x20] sm:$0xff] 0.0
      %654 = vst [vmem:[#allocation2 + $0x28] sm:$0xff] 0.0
      %655 = vst [vmem:[#allocation2 + $0x30] sm:$0xff] 0.0
      %656 = vst [vmem:[#allocation2 + $0x38] sm:$0xff] 0.0
      %657 = vst [vmem:[#allocation2 + $0x40] sm:$0xff] 0.0
      %658 = vst [vmem:[#allocation2 + $0x48] sm:$0xff] 0.0
      %659 = vst [vmem:[#allocation2 + $0x50] sm:$0xff] 0.0
      %660 = vst [vmem:[#allocation2 + $0x58] sm:$0xff] 0.0
      %661 = vst [vmem:[#allocation2 + $0x20] sm:$0xff] %v645
      %662 = vst [vmem:[#allocation2 + $0x28] sm:$0xff] %v646
      %663 = vst [vmem:[#allocation2 + $0x30] sm:$0xff] %v647
      %664 = vst [vmem:[#allocation2 + $0x38] sm:$0xff] %v648
      %v665 = vlaneseq
      %v666 = vshrl.u32 %v665, 7
      %v667 = vadd.s32 %v666, 8
      %vm668 = vcmp.lt.s32.totalorder %v666, 0
      %v669 = vsub.s32 0, %v666
      %v670 = vsel %vm668, %v669, %v666
      %v671 = vshrl.u32 %v670, 2
      %v672 = vand.u32 %v670, 3
      %v673 = vsub.s32 0, %v672
      %v674 = vsel %vm668, %v673, %v672
      %vm675 = vcmp.lt.s32.totalorder %v667, 0
      %v676 = vsub.s32 0, %v667
      %v677 = vsel %vm675, %v676, %v667
      %v678 = vshrl.u32 %v677, 2
      %v679 = vand.u32 %v677, 3
      %v680 = vsub.s32 0, %v679
      %v681 = vsel %vm675, %v680, %v679
      %vm682 = vcmp.ne.s32.totalorder %v674, 0
      %vm683 = vcmp.ne.s32.totalorder %v681, 0
      %vm684 = vcmp.lt.s32.totalorder %v674, 0
      %vm685 = vcmp.lt.s32.totalorder %v681, 0
      %vm686 = vmand %vm684, %vm682
      %vm687 = vmand %vm685, %vm683
      %v688 = vadd.s32 %v674, 4
      %v689 = vadd.s32 %v681, 4
      %v690 = vsel %vm686, %v688, %v674
      %v691 = vsel %vm687, %v689, %v681
      %v692 = vld [vmem:[%s4] sm:$0x3]
      %v693 = vld [vmem:[%s4 + $0x2] sm:$0x3]
      %v694 = vld [vmem:[%s4 + $0x4] sm:$0x3]
      %v695 = vld [vmem:[%s4 + $0x6] sm:$0x3]
      %v696 = vld [vmem:[%s4 + $0x8] sm:$0x3]
      %v697 = vld [vmem:[%s4 + $0xa] sm:$0x3]
      %v698 = vld [vmem:[%s4 + $0xc] sm:$0x3]
      %v699 = vld [vmem:[%s4 + $0xe] sm:$0x3]
      %v700 = vld [vmem:[%s4 + $0x10] sm:$0x3]
      %v701 = vld [vmem:[%s4 + $0x12] sm:$0x3]
      %v702 = vld [vmem:[%s4 + $0x14] sm:$0x3]
      %v703 = vld [vmem:[%s4 + $0x16] sm:$0x3]
      %v704 = vld [vmem:[%s4 + $0x18] sm:$0x3]
      %v705 = vld [vmem:[%s4 + $0x1a] sm:$0x3]
      %v706 = vld [vmem:[%s4 + $0x1c] sm:$0x3]
      %v707 = vld [vmem:[%s4 + $0x1e] sm:$0x3]
      %v708 = vld [vmem:[%s4 + $0x20] sm:$0x3]
      %v709 = vld [vmem:[%s4 + $0x22] sm:$0x3]
      %v710 = vld [vmem:[%s4 + $0x24] sm:$0x3]
      %v711 = vld [vmem:[%s4 + $0x26] sm:$0x3]
      %v712 = vld [vmem:[%s4 + $0x28] sm:$0x3]
      %v713 = vld [vmem:[%s4 + $0x2a] sm:$0x3]
      %v714 = vld [vmem:[%s4 + $0x2c] sm:$0x3]
      %v715 = vld [vmem:[%s4 + $0x2e] sm:$0x3]
      %v716 = vld [vmem:[%s4 + $0x30] sm:$0x3]
      %v717 = vld [vmem:[#allocation2] sm:$0xc0]
      %v718 = vld [vmem:[#allocation2 + $0x8] sm:$0xc0]
      %v719 = vld [vmem:[#allocation2 + $0x10] sm:$0xff]
      %v720 = vld [vmem:[#allocation2 + $0x18] sm:$0xff]
      %v721 = vld [vmem:[#allocation2 + $0x20] sm:$0x3f]
      %v722 = vld [vmem:[#allocation2 + $0x28] sm:$0x3f]
      %vm723 = vcmp.ge.s32.totalorder %v690, 2
      %vm724 = vcmp.ge.s32.totalorder %v691, 2
      %vm725 = vcmp.lt.s32.totalorder %v690, 6
      %vm726 = vcmp.lt.s32.totalorder %v691, 6
      %vm727 = vmand %vm723, %vm725
      %vm728 = vmand %vm724, %vm726
      %v729 = vsel %vm727, 1, 0
      %v730 = vsel %vm728, 1, 0
      %vm731 = vcmp.eq.s32.totalorder %v729, 1
      %vm732 = vcmp.eq.s32.totalorder %v730, 1
      %vm739 = vcmask 1041408
      %v740 = vrot.slane %v717, 6
      %v741 = vrot.slane %v719, 6
      %v742 = vsel %vm739, %v740, %v741
      %v743 = vrot.slane %v718, 6
      %v744 = vrot.slane %v720, 6
      %v745 = vsel %vm739, %v743, %v744
      %v746 = vrot.slane %v721, 6
      %v747 = vsel %vm739, %v741, %v746
      %v748 = vrot.slane %v722, 6
      %v749 = vsel %vm739, %v744, %v748
      %v754 = vsel %vm731, %v742, 0.0
      %v755 = vsel %vm731, %v745, 0.0
      %v756 = vsel %vm732, %v747, 0.0
      %v757 = vsel %vm732, %v749, 0.0
      %v759 = vlaneseq
      %v760 = vshrl.u32 %v759, 7
      %v761 = vsub.s32 0, %v760
      %v762 = vrot.slane %v692, %v761
      %v763 = vlaneseq
      %v764 = vshrl.u32 %v763, 7
      %v765 = vsub.s32 1, %v764
      %v766 = vrot.slane %v692, %v765
      %v769 = vmul.f32 %v754, %v762
      %v770 = vmul.f32 %v755, %v766
      %v771 = vmul.f32 %v756, %v762
      %v772 = vmul.f32 %v757, %v766
      %v773 = vadd.f32 %v769, 0.0
      %v774 = vadd.f32 %v770, 0.0
      %v775 = vadd.f32 %v771, 0.0
      %v776 = vadd.f32 %v772, 0.0
      %v777 = vld [vmem:[#allocation2] sm:$0x80]
      %v778 = vld [vmem:[#allocation2 + $0x8] sm:$0x80]
      %v779 = vld [vmem:[#allocation2 + $0x20] sm:$0x7f]
      %v780 = vld [vmem:[#allocation2 + $0x28] sm:$0x7f]
      %vm781 = vcmp.ge.s32.totalorder %v690, 1
      %vm782 = vcmp.ge.s32.totalorder %v691, 1
      %vm783 = vcmp.lt.s32.totalorder %v690, 5
      %vm784 = vcmp.lt.s32.totalorder %v691, 5
      %vm785 = vmand %vm781, %vm783
      %vm786 = vmand %vm782, %vm784
      %v787 = vsel %vm785, 1, 0
      %v788 = vsel %vm786, 1, 0
      %vm789 = vcmp.eq.s32.totalorder %v787, 1
      %vm790 = vcmp.eq.s32.totalorder %v788, 1
      %vm795 = vcmask 1040384
      %v796 = vrot.slane %v777, 7
      %v797 = vrot.slane %v719, 7
      %v798 = vsel %vm795, %v796, %v797
      %v799 = vrot.slane %v778, 7
      %v800 = vrot.slane %v720, 7
      %v801 = vsel %vm795, %v799, %v800
      %v802 = vrot.slane %v779, 7
      %v803 = vsel %vm795, %v797, %v802
      %v804 = vrot.slane %v780, 7
      %v805 = vsel %vm795, %v800, %v804
      %v810 = vsel %vm789, %v798, 0.0
      %v811 = vsel %vm789, %v801, 0.0
      %v812 = vsel %vm790, %v803, 0.0
      %v813 = vsel %vm790, %v805, 0.0
      %v815 = vlaneseq
      %v816 = vshrl.u32 %v815, 7
      %v817 = vsub.s32 0, %v816
      %v818 = vrot.slane %v693, %v817
      %v819 = vlaneseq
      %v820 = vshrl.u32 %v819, 7
      %v821 = vsub.s32 1, %v820
      %v822 = vrot.slane %v693, %v821
      %v825 = vmul.f32 %v810, %v818
      %v826 = vmul.f32 %v811, %v822
      %v827 = vmul.f32 %v812, %v818
      %v828 = vmul.f32 %v813, %v822
      %v829 = vadd.f32 %v773, %v825
      %v830 = vadd.f32 %v774, %v826
      %v831 = vadd.f32 %v775, %v827
      %v832 = vadd.f32 %v776, %v828
      %v833 = vld [vmem:[#allocation2 + $0x20] sm:$0xff]
      %v834 = vld [vmem:[#allocation2 + $0x28] sm:$0xff]
      %v836 = vlaneseq
      %v837 = vshrl.u32 %v836, 7
      %v838 = vsub.s32 0, %v837
      %v839 = vrot.slane %v694, %v838
      %v840 = vlaneseq
      %v841 = vshrl.u32 %v840, 7
      %v842 = vsub.s32 1, %v841
      %v843 = vrot.slane %v694, %v842
      %v846 = vmul.f32 %v719, %v839
      %v847 = vmul.f32 %v720, %v843
      %v848 = vmul.f32 %v833, %v839
      %v849 = vmul.f32 %v834, %v843
      %v850 = vadd.f32 %v829, %v846
      %v851 = vadd.f32 %v830, %v847
      %v852 = vadd.f32 %v831, %v848
      %v853 = vadd.f32 %v832, %v849
      %v854 = vld [vmem:[#allocation2 + $0x10] sm:$0xfe]
      %v855 = vld [vmem:[#allocation2 + $0x18] sm:$0xfe]
      %v856 = vld [vmem:[#allocation2 + $0x30] sm:$0x1]
      %v857 = vld [vmem:[#allocation2 + $0x38] sm:$0x1]
      %vm858 = vcmp.ge.s32.totalorder %v690, 4294967295
      %vm859 = vcmp.ge.s32.totalorder %v691, 4294967295
      %vm860 = vcmp.lt.s32.totalorder %v690, 3
      %vm861 = vcmp.lt.s32.totalorder %v691, 3
      %vm862 = vmand %vm858, %vm860
      %vm863 = vmand %vm859, %vm861
      %v864 = vsel %vm862, 1, 0
      %v865 = vsel %vm863, 1, 0
      %vm866 = vcmp.eq.s32.totalorder %v864, 1
      %vm867 = vcmp.eq.s32.totalorder %v865, 1
      %vm874 = vcmask 1046528
      %v875 = vrot.slane %v854, 1
      %v876 = vrot.slane %v833, 1
      %v877 = vsel %vm874, %v875, %v876
      %v878 = vrot.slane %v855, 1
      %v879 = vrot.slane %v834, 1
      %v880 = vsel %vm874, %v878, %v879
      %v881 = vrot.slane %v856, 1
      %v882 = vsel %vm874, %v876, %v881
      %v883 = vrot.slane %v857, 1
      %v884 = vsel %vm874, %v879, %v883
      %v889 = vsel %vm866, %v877, 0.0
      %v890 = vsel %vm866, %v880, 0.0
      %v891 = vsel %vm867, %v882, 0.0
      %v892 = vsel %vm867, %v884, 0.0
      %v894 = vlaneseq
      %v895 = vshrl.u32 %v894, 7
      %v896 = vsub.s32 0, %v895
      %v897 = vrot.slane %v695, %v896
      %v898 = vlaneseq
      %v899 = vshrl.u32 %v898, 7
      %v900 = vsub.s32 1, %v899
      %v901 = vrot.slane %v695, %v900
      %v904 = vmul.f32 %v889, %v897
      %v905 = vmul.f32 %v890, %v901
      %v906 = vmul.f32 %v891, %v897
      %v907 = vmul.f32 %v892, %v901
      %v908 = vadd.f32 %v850, %v904
      %v909 = vadd.f32 %v851, %v905
      %v910 = vadd.f32 %v852, %v906
      %v911 = vadd.f32 %v853, %v907
      %v912 = vld [vmem:[#allocation2 + $0x10] sm:$0xfc]
      %v913 = vld [vmem:[#allocation2 + $0x18] sm:$0xfc]
      %v914 = vld [vmem:[#allocation2 + $0x30] sm:$0x3]
      %v915 = vld [vmem:[#allocation2 + $0x38] sm:$0x3]
      %vm916 = vcmp.ge.s32.totalorder %v690, 4294967294
      %vm917 = vcmp.ge.s32.totalorder %v691, 4294967294
      %vm918 = vcmp.lt.s32.totalorder %v690, 2
      %vm919 = vcmp.lt.s32.totalorder %v691, 2
      %vm920 = vmand %vm916, %vm918
      %vm921 = vmand %vm917, %vm919
      %v922 = vsel %vm920, 1, 0
      %v923 = vsel %vm921, 1, 0
      %vm924 = vcmp.eq.s32.totalorder %v922, 1
      %vm925 = vcmp.eq.s32.totalorder %v923, 1
      %vm930 = vcmask 1045504
      %v931 = vrot.slane %v912, 2
      %v932 = vrot.slane %v833, 2
      %v933 = vsel %vm930, %v931, %v932
      %v934 = vrot.slane %v913, 2
      %v935 = vrot.slane %v834, 2
      %v936 = vsel %vm930, %v934, %v935
      %v937 = vrot.slane %v914, 2
      %v938 = vsel %vm930, %v932, %v937
      %v939 = vrot.slane %v915, 2
      %v940 = vsel %vm930, %v935, %v939
      %v945 = vsel %vm924, %v933, 0.0
      %v946 = vsel %vm924, %v936, 0.0
      %v947 = vsel %vm925, %v938, 0.0
      %v948 = vsel %vm925, %v940, 0.0
      %v950 = vlaneseq
      %v951 = vshrl.u32 %v950, 7
      %v952 = vsub.s32 0, %v951
      %v953 = vrot.slane %v696, %v952
      %v954 = vlaneseq
      %v955 = vshrl.u32 %v954, 7
      %v956 = vsub.s32 1, %v955
      %v957 = vrot.slane %v696, %v956
      %v960 = vmul.f32 %v945, %v953
      %v961 = vmul.f32 %v946, %v957
      %v962 = vmul.f32 %v947, %v953
      %v963 = vmul.f32 %v948, %v957
      %v964 = vadd.f32 %v908, %v960
      %v965 = vadd.f32 %v909, %v961
      %v966 = vadd.f32 %v910, %v962
      %v967 = vadd.f32 %v911, %v963
      %v968 = vsel %vm731, %v933, 0.0
      %v969 = vsel %vm731, %v936, 0.0
      %v970 = vsel %vm732, %v938, 0.0
      %v971 = vsel %vm732, %v940, 0.0
      %v973 = vlaneseq
      %v974 = vshrl.u32 %v973, 7
      %v975 = vsub.s32 0, %v974
      %v976 = vrot.slane %v697, %v975
      %v977 = vlaneseq
      %v978 = vshrl.u32 %v977, 7
      %v979 = vsub.s32 1, %v978
      %v980 = vrot.slane %v697, %v979
      %v983 = vmul.f32 %v968, %v976
      %v984 = vmul.f32 %v969, %v980
      %v985 = vmul.f32 %v970, %v976
      %v986 = vmul.f32 %v971, %v980
      %v987 = vadd.f32 %v964, %v983
      %v988 = vadd.f32 %v965, %v984
      %v989 = vadd.f32 %v966, %v985
      %v990 = vadd.f32 %v967, %v986
      %v991 = vld [vmem:[#allocation2 + $0x10] sm:$0xf8]
      %v992 = vld [vmem:[#allocation2 + $0x18] sm:$0xf8]
      %v993 = vld [vmem:[#allocation2 + $0x30] sm:$0x7]
      %v994 = vld [vmem:[#allocation2 + $0x38] sm:$0x7]
      %vm999 = vcmask 1044480
      %v1000 = vrot.slane %v991, 3
      %v1001 = vrot.slane %v833, 3
      %v1002 = vsel %vm999, %v1000, %v1001
      %v1003 = vrot.slane %v992, 3
      %v1004 = vrot.slane %v834, 3
      %v1005 = vsel %vm999, %v1003, %v1004
      %v1006 = vrot.slane %v993, 3
      %v1007 = vsel %vm999, %v1001, %v1006
      %v1008 = vrot.slane %v994, 3
      %v1009 = vsel %vm999, %v1004, %v1008
      %v1014 = vsel %vm789, %v1002, 0.0
      %v1015 = vsel %vm789, %v1005, 0.0
      %v1016 = vsel %vm790, %v1007, 0.0
      %v1017 = vsel %vm790, %v1009, 0.0
      %v1019 = vlaneseq
      %v1020 = vshrl.u32 %v1019, 7
      %v1021 = vsub.s32 0, %v1020
      %v1022 = vrot.slane %v698, %v1021
      %v1023 = vlaneseq
      %v1024 = vshrl.u32 %v1023, 7
      %v1025 = vsub.s32 1, %v1024
      %v1026 = vrot.slane %v698, %v1025
      %v1029 = vmul.f32 %v1014, %v1022
      %v1030 = vmul.f32 %v1015, %v1026
      %v1031 = vmul.f32 %v1016, %v1022
      %v1032 = vmul.f32 %v1017, %v1026
      %v1033 = vadd.f32 %v987, %v1029
      %v1034 = vadd.f32 %v988, %v1030
      %v1035 = vadd.f32 %v989, %v1031
      %v1036 = vadd.f32 %v990, %v1032
      %v1037 = vld [vmem:[#allocation2 + $0x10] sm:$0xf0]
      %v1038 = vld [vmem:[#allocation2 + $0x18] sm:$0xf0]
      %v1039 = vld [vmem:[#allocation2 + $0x30] sm:$0xf]
      %v1040 = vld [vmem:[#allocation2 + $0x38] sm:$0xf]
      %v1042 = vlaneseq
      %v1043 = vshrl.u32 %v1042, 7
      %v1044 = vsub.s32 0, %v1043
      %v1045 = vrot.slane %v699, %v1044
      %v1046 = vlaneseq
      %v1047 = vshrl.u32 %v1046, 7
      %v1048 = vsub.s32 1, %v1047
      %v1049 = vrot.slane %v699, %v1048
      %v1052 = vmul.f32 %v1037, %v1045
      %v1053 = vmul.f32 %v1038, %v1049
      %v1054 = vmul.f32 %v833, %v1045
      %v1055 = vmul.f32 %v834, %v1049
      %v1056 = vmul.f32 %v1039, %v1045
      %v1057 = vmul.f32 %v1040, %v1049
      %vm1064 = vcmask 1043456
      %v1065 = vrot.slane %v1052, 4
      %v1066 = vrot.slane %v1054, 4
      %v1067 = vsel %vm1064, %v1065, %v1066
      %v1068 = vrot.slane %v1053, 4
      %v1069 = vrot.slane %v1055, 4
      %v1070 = vsel %vm1064, %v1068, %v1069
      %v1071 = vrot.slane %v1056, 4
      %v1072 = vsel %vm1064, %v1066, %v1071
      %v1073 = vrot.slane %v1057, 4
      %v1074 = vsel %vm1064, %v1069, %v1073
      %v1079 = vadd.f32 %v1033, %v1067
      %v1080 = vadd.f32 %v1034, %v1070
      %v1081 = vadd.f32 %v1035, %v1072
      %v1082 = vadd.f32 %v1036, %v1074
      %v1083 = vld [vmem:[#allocation2 + $0x10] sm:$0xe0]
      %v1084 = vld [vmem:[#allocation2 + $0x18] sm:$0xe0]
      %v1085 = vld [vmem:[#allocation2 + $0x30] sm:$0x1f]
      %v1086 = vld [vmem:[#allocation2 + $0x38] sm:$0x1f]
      %vm1091 = vcmask 1042432
      %v1092 = vrot.slane %v1083, 5
      %v1093 = vrot.slane %v833, 5
      %v1094 = vsel %vm1091, %v1092, %v1093
      %v1095 = vrot.slane %v1084, 5
      %v1096 = vrot.slane %v834, 5
      %v1097 = vsel %vm1091, %v1095, %v1096
      %v1098 = vrot.slane %v1085, 5
      %v1099 = vsel %vm1091, %v1093, %v1098
      %v1100 = vrot.slane %v1086, 5
      %v1101 = vsel %vm1091, %v1096, %v1100
      %v1106 = vsel %vm866, %v1094, 0.0
      %v1107 = vsel %vm866, %v1097, 0.0
      %v1108 = vsel %vm867, %v1099, 0.0
      %v1109 = vsel %vm867, %v1101, 0.0
      %v1111 = vlaneseq
      %v1112 = vshrl.u32 %v1111, 7
      %v1113 = vsub.s32 0, %v1112
      %v1114 = vrot.slane %v700, %v1113
      %v1115 = vlaneseq
      %v1116 = vshrl.u32 %v1115, 7
      %v1117 = vsub.s32 1, %v1116
      %v1118 = vrot.slane %v700, %v1117
      %v1121 = vmul.f32 %v1106, %v1114
      %v1122 = vmul.f32 %v1107, %v1118
      %v1123 = vmul.f32 %v1108, %v1114
      %v1124 = vmul.f32 %v1109, %v1118
      %v1125 = vadd.f32 %v1079, %v1121
      %v1126 = vadd.f32 %v1080, %v1122
      %v1127 = vadd.f32 %v1081, %v1123
      %v1128 = vadd.f32 %v1082, %v1124
      %v1129 = vld [vmem:[#allocation2 + $0x10] sm:$0xc0]
      %v1130 = vld [vmem:[#allocation2 + $0x18] sm:$0xc0]
      %v1131 = vld [vmem:[#allocation2 + $0x30] sm:$0x3f]
      %v1132 = vld [vmem:[#allocation2 + $0x38] sm:$0x3f]
      %v1137 = vrot.slane %v1129, 6
      %v1138 = vrot.slane %v833, 6
      %v1139 = vsel %vm739, %v1137, %v1138
      %v1140 = vrot.slane %v1130, 6
      %v1141 = vrot.slane %v834, 6
      %v1142 = vsel %vm739, %v1140, %v1141
      %v1143 = vrot.slane %v1131, 6
      %v1144 = vsel %vm739, %v1138, %v1143
      %v1145 = vrot.slane %v1132, 6
      %v1146 = vsel %vm739, %v1141, %v1145
      %v1151 = vsel %vm924, %v1139, 0.0
      %v1152 = vsel %vm924, %v1142, 0.0
      %v1153 = vsel %vm925, %v1144, 0.0
      %v1154 = vsel %vm925, %v1146, 0.0
      %v1156 = vlaneseq
      %v1157 = vshrl.u32 %v1156, 7
      %v1158 = vsub.s32 0, %v1157
      %v1159 = vrot.slane %v701, %v1158
      %v1160 = vlaneseq
      %v1161 = vshrl.u32 %v1160, 7
      %v1162 = vsub.s32 1, %v1161
      %v1163 = vrot.slane %v701, %v1162
      %v1166 = vmul.f32 %v1151, %v1159
      %v1167 = vmul.f32 %v1152, %v1163
      %v1168 = vmul.f32 %v1153, %v1159
      %v1169 = vmul.f32 %v1154, %v1163
      %v1170 = vadd.f32 %v1125, %v1166
      %v1171 = vadd.f32 %v1126, %v1167
      %v1172 = vadd.f32 %v1127, %v1168
      %v1173 = vadd.f32 %v1128, %v1169
      %v1174 = vsel %vm731, %v1139, 0.0
      %v1175 = vsel %vm731, %v1142, 0.0
      %v1176 = vsel %vm732, %v1144, 0.0
      %v1177 = vsel %vm732, %v1146, 0.0
      %v1179 = vlaneseq
      %v1180 = vshrl.u32 %v1179, 7
      %v1181 = vsub.s32 0, %v1180
      %v1182 = vrot.slane %v702, %v1181
      %v1183 = vlaneseq
      %v1184 = vshrl.u32 %v1183, 7
      %v1185 = vsub.s32 1, %v1184
      %v1186 = vrot.slane %v702, %v1185
      %v1189 = vmul.f32 %v1174, %v1182
      %v1190 = vmul.f32 %v1175, %v1186
      %v1191 = vmul.f32 %v1176, %v1182
      %v1192 = vmul.f32 %v1177, %v1186
      %v1193 = vadd.f32 %v1170, %v1189
      %v1194 = vadd.f32 %v1171, %v1190
      %v1195 = vadd.f32 %v1172, %v1191
      %v1196 = vadd.f32 %v1173, %v1192
      %v1197 = vld [vmem:[#allocation2 + $0x10] sm:$0x80]
      %v1198 = vld [vmem:[#allocation2 + $0x18] sm:$0x80]
      %v1199 = vld [vmem:[#allocation2 + $0x30] sm:$0x7f]
      %v1200 = vld [vmem:[#allocation2 + $0x38] sm:$0x7f]
      %v1205 = vrot.slane %v1197, 7
      %v1206 = vrot.slane %v833, 7
      %v1207 = vsel %vm795, %v1205, %v1206
      %v1208 = vrot.slane %v1198, 7
      %v1209 = vrot.slane %v834, 7
      %v1210 = vsel %vm795, %v1208, %v1209
      %v1211 = vrot.slane %v1199, 7
      %v1212 = vsel %vm795, %v1206, %v1211
      %v1213 = vrot.slane %v1200, 7
      %v1214 = vsel %vm795, %v1209, %v1213
      %v1219 = vsel %vm789, %v1207, 0.0
      %v1220 = vsel %vm789, %v1210, 0.0
      %v1221 = vsel %vm790, %v1212, 0.0
      %v1222 = vsel %vm790, %v1214, 0.0
      %v1224 = vlaneseq
      %v1225 = vshrl.u32 %v1224, 7
      %v1226 = vsub.s32 0, %v1225
      %v1227 = vrot.slane %v703, %v1226
      %v1228 = vlaneseq
      %v1229 = vshrl.u32 %v1228, 7
      %v1230 = vsub.s32 1, %v1229
      %v1231 = vrot.slane %v703, %v1230
      %v1234 = vmul.f32 %v1219, %v1227
      %v1235 = vmul.f32 %v1220, %v1231
      %v1236 = vmul.f32 %v1221, %v1227
      %v1237 = vmul.f32 %v1222, %v1231
      %v1238 = vadd.f32 %v1193, %v1234
      %v1239 = vadd.f32 %v1194, %v1235
      %v1240 = vadd.f32 %v1195, %v1236
      %v1241 = vadd.f32 %v1196, %v1237
      %v1242 = vld [vmem:[#allocation2 + $0x30] sm:$0xff]
      %v1243 = vld [vmem:[#allocation2 + $0x38] sm:$0xff]
      %v1245 = vlaneseq
      %v1246 = vshrl.u32 %v1245, 7
      %v1247 = vsub.s32 0, %v1246
      %v1248 = vrot.slane %v704, %v1247
      %v1249 = vlaneseq
      %v1250 = vshrl.u32 %v1249, 7
      %v1251 = vsub.s32 1, %v1250
      %v1252 = vrot.slane %v704, %v1251
      %v1255 = vmul.f32 %v833, %v1248
      %v1256 = vmul.f32 %v834, %v1252
      %v1257 = vmul.f32 %v1242, %v1248
      %v1258 = vmul.f32 %v1243, %v1252
      %v1259 = vadd.f32 %v1238, %v1255
      %v1260 = vadd.f32 %v1239, %v1256
      %v1261 = vadd.f32 %v1240, %v1257
      %v1262 = vadd.f32 %v1241, %v1258
      %v1263 = vld [vmem:[#allocation2 + $0x20] sm:$0xfe]
      %v1264 = vld [vmem:[#allocation2 + $0x28] sm:$0xfe]
      %v1265 = vld [vmem:[#allocation2 + $0x40] sm:$0x1]
      %v1266 = vld [vmem:[#allocation2 + $0x48] sm:$0x1]
      %v1273 = vrot.slane %v1263, 1
      %v1274 = vrot.slane %v1242, 1
      %v1275 = vsel %vm874, %v1273, %v1274
      %v1276 = vrot.slane %v1264, 1
      %v1277 = vrot.slane %v1243, 1
      %v1278 = vsel %vm874, %v1276, %v1277
      %v1279 = vrot.slane %v1265, 1
      %v1280 = vsel %vm874, %v1274, %v1279
      %v1281 = vrot.slane %v1266, 1
      %v1282 = vsel %vm874, %v1277, %v1281
      %v1287 = vsel %vm866, %v1275, 0.0
      %v1288 = vsel %vm866, %v1278, 0.0
      %v1289 = vsel %vm867, %v1280, 0.0
      %v1290 = vsel %vm867, %v1282, 0.0
      %v1292 = vlaneseq
      %v1293 = vshrl.u32 %v1292, 7
      %v1294 = vsub.s32 0, %v1293
      %v1295 = vrot.slane %v705, %v1294
      %v1296 = vlaneseq
      %v1297 = vshrl.u32 %v1296, 7
      %v1298 = vsub.s32 1, %v1297
      %v1299 = vrot.slane %v705, %v1298
      %v1302 = vmul.f32 %v1287, %v1295
      %v1303 = vmul.f32 %v1288, %v1299
      %v1304 = vmul.f32 %v1289, %v1295
      %v1305 = vmul.f32 %v1290, %v1299
      %v1306 = vadd.f32 %v1259, %v1302
      %v1307 = vadd.f32 %v1260, %v1303
      %v1308 = vadd.f32 %v1261, %v1304
      %v1309 = vadd.f32 %v1262, %v1305
      %v1310 = vld [vmem:[#allocation2 + $0x20] sm:$0xfc]
      %v1311 = vld [vmem:[#allocation2 + $0x28] sm:$0xfc]
      %v1312 = vld [vmem:[#allocation2 + $0x40] sm:$0x3]
      %v1313 = vld [vmem:[#allocation2 + $0x48] sm:$0x3]
      %v1318 = vrot.slane %v1310, 2
      %v1319 = vrot.slane %v1242, 2
      %v1320 = vsel %vm930, %v1318, %v1319
      %v1321 = vrot.slane %v1311, 2
      %v1322 = vrot.slane %v1243, 2
      %v1323 = vsel %vm930, %v1321, %v1322
      %v1324 = vrot.slane %v1312, 2
      %v1325 = vsel %vm930, %v1319, %v1324
      %v1326 = vrot.slane %v1313, 2
      %v1327 = vsel %vm930, %v1322, %v1326
      %v1332 = vsel %vm924, %v1320, 0.0
      %v1333 = vsel %vm924, %v1323, 0.0
      %v1334 = vsel %vm925, %v1325, 0.0
      %v1335 = vsel %vm925, %v1327, 0.0
      %v1337 = vlaneseq
      %v1338 = vshrl.u32 %v1337, 7
      %v1339 = vsub.s32 0, %v1338
      %v1340 = vrot.slane %v706, %v1339
      %v1341 = vlaneseq
      %v1342 = vshrl.u32 %v1341, 7
      %v1343 = vsub.s32 1, %v1342
      %v1344 = vrot.slane %v706, %v1343
      %v1347 = vmul.f32 %v1332, %v1340
      %v1348 = vmul.f32 %v1333, %v1344
      %v1349 = vmul.f32 %v1334, %v1340
      %v1350 = vmul.f32 %v1335, %v1344
      %v1351 = vadd.f32 %v1306, %v1347
      %v1352 = vadd.f32 %v1307, %v1348
      %v1353 = vadd.f32 %v1308, %v1349
      %v1354 = vadd.f32 %v1309, %v1350
      %v1355 = vsel %vm731, %v1320, 0.0
      %v1356 = vsel %vm731, %v1323, 0.0
      %v1357 = vsel %vm732, %v1325, 0.0
      %v1358 = vsel %vm732, %v1327, 0.0
      %v1360 = vlaneseq
      %v1361 = vshrl.u32 %v1360, 7
      %v1362 = vsub.s32 0, %v1361
      %v1363 = vrot.slane %v707, %v1362
      %v1364 = vlaneseq
      %v1365 = vshrl.u32 %v1364, 7
      %v1366 = vsub.s32 1, %v1365
      %v1367 = vrot.slane %v707, %v1366
      %v1370 = vmul.f32 %v1355, %v1363
      %v1371 = vmul.f32 %v1356, %v1367
      %v1372 = vmul.f32 %v1357, %v1363
      %v1373 = vmul.f32 %v1358, %v1367
      %v1374 = vadd.f32 %v1351, %v1370
      %v1375 = vadd.f32 %v1352, %v1371
      %v1376 = vadd.f32 %v1353, %v1372
      %v1377 = vadd.f32 %v1354, %v1373
      %v1378 = vld [vmem:[#allocation2 + $0x20] sm:$0xf8]
      %v1379 = vld [vmem:[#allocation2 + $0x28] sm:$0xf8]
      %v1380 = vld [vmem:[#allocation2 + $0x40] sm:$0x7]
      %v1381 = vld [vmem:[#allocation2 + $0x48] sm:$0x7]
      %v1386 = vrot.slane %v1378, 3
      %v1387 = vrot.slane %v1242, 3
      %v1388 = vsel %vm999, %v1386, %v1387
      %v1389 = vrot.slane %v1379, 3
      %v1390 = vrot.slane %v1243, 3
      %v1391 = vsel %vm999, %v1389, %v1390
      %v1392 = vrot.slane %v1380, 3
      %v1393 = vsel %vm999, %v1387, %v1392
      %v1394 = vrot.slane %v1381, 3
      %v1395 = vsel %vm999, %v1390, %v1394
      %v1400 = vsel %vm789, %v1388, 0.0
      %v1401 = vsel %vm789, %v1391, 0.0
      %v1402 = vsel %vm790, %v1393, 0.0
      %v1403 = vsel %vm790, %v1395, 0.0
      %v1405 = vlaneseq
      %v1406 = vshrl.u32 %v1405, 7
      %v1407 = vsub.s32 0, %v1406
      %v1408 = vrot.slane %v708, %v1407
      %v1409 = vlaneseq
      %v1410 = vshrl.u32 %v1409, 7
      %v1411 = vsub.s32 1, %v1410
      %v1412 = vrot.slane %v708, %v1411
      %v1415 = vmul.f32 %v1400, %v1408
      %v1416 = vmul.f32 %v1401, %v1412
      %v1417 = vmul.f32 %v1402, %v1408
      %v1418 = vmul.f32 %v1403, %v1412
      %v1419 = vadd.f32 %v1374, %v1415
      %v1420 = vadd.f32 %v1375, %v1416
      %v1421 = vadd.f32 %v1376, %v1417
      %v1422 = vadd.f32 %v1377, %v1418
      %v1423 = vld [vmem:[#allocation2 + $0x20] sm:$0xf0]
      %v1424 = vld [vmem:[#allocation2 + $0x28] sm:$0xf0]
      %v1425 = vld [vmem:[#allocation2 + $0x40] sm:$0xf]
      %v1426 = vld [vmem:[#allocation2 + $0x48] sm:$0xf]
      %v1428 = vlaneseq
      %v1429 = vshrl.u32 %v1428, 7
      %v1430 = vsub.s32 0, %v1429
      %v1431 = vrot.slane %v709, %v1430
      %v1432 = vlaneseq
      %v1433 = vshrl.u32 %v1432, 7
      %v1434 = vsub.s32 1, %v1433
      %v1435 = vrot.slane %v709, %v1434
      %v1438 = vmul.f32 %v1423, %v1431
      %v1439 = vmul.f32 %v1424, %v1435
      %v1440 = vmul.f32 %v1242, %v1431
      %v1441 = vmul.f32 %v1243, %v1435
      %v1442 = vmul.f32 %v1425, %v1431
      %v1443 = vmul.f32 %v1426, %v1435
      %v1450 = vrot.slane %v1438, 4
      %v1451 = vrot.slane %v1440, 4
      %v1452 = vsel %vm1064, %v1450, %v1451
      %v1453 = vrot.slane %v1439, 4
      %v1454 = vrot.slane %v1441, 4
      %v1455 = vsel %vm1064, %v1453, %v1454
      %v1456 = vrot.slane %v1442, 4
      %v1457 = vsel %vm1064, %v1451, %v1456
      %v1458 = vrot.slane %v1443, 4
      %v1459 = vsel %vm1064, %v1454, %v1458
      %v1464 = vadd.f32 %v1419, %v1452
      %v1465 = vadd.f32 %v1420, %v1455
      %v1466 = vadd.f32 %v1421, %v1457
      %v1467 = vadd.f32 %v1422, %v1459
      %v1468 = vld [vmem:[#allocation2 + $0x20] sm:$0xe0]
      %v1469 = vld [vmem:[#allocation2 + $0x28] sm:$0xe0]
      %v1470 = vld [vmem:[#allocation2 + $0x40] sm:$0x1f]
      %v1471 = vld [vmem:[#allocation2 + $0x48] sm:$0x1f]
      %v1476 = vrot.slane %v1468, 5
      %v1477 = vrot.slane %v1242, 5
      %v1478 = vsel %vm1091, %v1476, %v1477
      %v1479 = vrot.slane %v1469, 5
      %v1480 = vrot.slane %v1243, 5
      %v1481 = vsel %vm1091, %v1479, %v1480
      %v1482 = vrot.slane %v1470, 5
      %v1483 = vsel %vm1091, %v1477, %v1482
      %v1484 = vrot.slane %v1471, 5
      %v1485 = vsel %vm1091, %v1480, %v1484
      %v1490 = vsel %vm866, %v1478, 0.0
      %v1491 = vsel %vm866, %v1481, 0.0
      %v1492 = vsel %vm867, %v1483, 0.0
      %v1493 = vsel %vm867, %v1485, 0.0
      %v1495 = vlaneseq
      %v1496 = vshrl.u32 %v1495, 7
      %v1497 = vsub.s32 0, %v1496
      %v1498 = vrot.slane %v710, %v1497
      %v1499 = vlaneseq
      %v1500 = vshrl.u32 %v1499, 7
      %v1501 = vsub.s32 1, %v1500
      %v1502 = vrot.slane %v710, %v1501
      %v1505 = vmul.f32 %v1490, %v1498
      %v1506 = vmul.f32 %v1491, %v1502
      %v1507 = vmul.f32 %v1492, %v1498
      %v1508 = vmul.f32 %v1493, %v1502
      %v1509 = vadd.f32 %v1464, %v1505
      %v1510 = vadd.f32 %v1465, %v1506
      %v1511 = vadd.f32 %v1466, %v1507
      %v1512 = vadd.f32 %v1467, %v1508
      %v1513 = vld [vmem:[#allocation2 + $0x20] sm:$0xc0]
      %v1514 = vld [vmem:[#allocation2 + $0x28] sm:$0xc0]
      %v1515 = vld [vmem:[#allocation2 + $0x40] sm:$0x3f]
      %v1516 = vld [vmem:[#allocation2 + $0x48] sm:$0x3f]
      %v1521 = vrot.slane %v1513, 6
      %v1522 = vrot.slane %v1242, 6
      %v1523 = vsel %vm739, %v1521, %v1522
      %v1524 = vrot.slane %v1514, 6
      %v1525 = vrot.slane %v1243, 6
      %v1526 = vsel %vm739, %v1524, %v1525
      %v1527 = vrot.slane %v1515, 6
      %v1528 = vsel %vm739, %v1522, %v1527
      %v1529 = vrot.slane %v1516, 6
      %v1530 = vsel %vm739, %v1525, %v1529
      %v1535 = vsel %vm924, %v1523, 0.0
      %v1536 = vsel %vm924, %v1526, 0.0
      %v1537 = vsel %vm925, %v1528, 0.0
      %v1538 = vsel %vm925, %v1530, 0.0
      %v1540 = vlaneseq
      %v1541 = vshrl.u32 %v1540, 7
      %v1542 = vsub.s32 0, %v1541
      %v1543 = vrot.slane %v711, %v1542
      %v1544 = vlaneseq
      %v1545 = vshrl.u32 %v1544, 7
      %v1546 = vsub.s32 1, %v1545
      %v1547 = vrot.slane %v711, %v1546
      %v1550 = vmul.f32 %v1535, %v1543
      %v1551 = vmul.f32 %v1536, %v1547
      %v1552 = vmul.f32 %v1537, %v1543
      %v1553 = vmul.f32 %v1538, %v1547
      %v1554 = vadd.f32 %v1509, %v1550
      %v1555 = vadd.f32 %v1510, %v1551
      %v1556 = vadd.f32 %v1511, %v1552
      %v1557 = vadd.f32 %v1512, %v1553
      %v1558 = vsel %vm731, %v1523, 0.0
      %v1559 = vsel %vm731, %v1526, 0.0
      %v1560 = vsel %vm732, %v1528, 0.0
      %v1561 = vsel %vm732, %v1530, 0.0
      %v1563 = vlaneseq
      %v1564 = vshrl.u32 %v1563, 7
      %v1565 = vsub.s32 0, %v1564
      %v1566 = vrot.slane %v712, %v1565
      %v1567 = vlaneseq
      %v1568 = vshrl.u32 %v1567, 7
      %v1569 = vsub.s32 1, %v1568
      %v1570 = vrot.slane %v712, %v1569
      %v1573 = vmul.f32 %v1558, %v1566
      %v1574 = vmul.f32 %v1559, %v1570
      %v1575 = vmul.f32 %v1560, %v1566
      %v1576 = vmul.f32 %v1561, %v1570
      %v1577 = vadd.f32 %v1554, %v1573
      %v1578 = vadd.f32 %v1555, %v1574
      %v1579 = vadd.f32 %v1556, %v1575
      %v1580 = vadd.f32 %v1557, %v1576
      %v1581 = vld [vmem:[#allocation2 + $0x20] sm:$0x80]
      %v1582 = vld [vmem:[#allocation2 + $0x28] sm:$0x80]
      %v1583 = vld [vmem:[#allocation2 + $0x40] sm:$0x7f]
      %v1584 = vld [vmem:[#allocation2 + $0x48] sm:$0x7f]
      %v1589 = vrot.slane %v1581, 7
      %v1590 = vrot.slane %v1242, 7
      %v1591 = vsel %vm795, %v1589, %v1590
      %v1592 = vrot.slane %v1582, 7
      %v1593 = vrot.slane %v1243, 7
      %v1594 = vsel %vm795, %v1592, %v1593
      %v1595 = vrot.slane %v1583, 7
      %v1596 = vsel %vm795, %v1590, %v1595
      %v1597 = vrot.slane %v1584, 7
      %v1598 = vsel %vm795, %v1593, %v1597
      %v1603 = vsel %vm789, %v1591, 0.0
      %v1604 = vsel %vm789, %v1594, 0.0
      %v1605 = vsel %vm790, %v1596, 0.0
      %v1606 = vsel %vm790, %v1598, 0.0
      %v1608 = vlaneseq
      %v1609 = vshrl.u32 %v1608, 7
      %v1610 = vsub.s32 0, %v1609
      %v1611 = vrot.slane %v713, %v1610
      %v1612 = vlaneseq
      %v1613 = vshrl.u32 %v1612, 7
      %v1614 = vsub.s32 1, %v1613
      %v1615 = vrot.slane %v713, %v1614
      %v1618 = vmul.f32 %v1603, %v1611
      %v1619 = vmul.f32 %v1604, %v1615
      %v1620 = vmul.f32 %v1605, %v1611
      %v1621 = vmul.f32 %v1606, %v1615
      %v1622 = vadd.f32 %v1577, %v1618
      %v1623 = vadd.f32 %v1578, %v1619
      %v1624 = vadd.f32 %v1579, %v1620
      %v1625 = vadd.f32 %v1580, %v1621
      %v1626 = vld [vmem:[#allocation2 + $0x40] sm:$0xff]
      %v1627 = vld [vmem:[#allocation2 + $0x48] sm:$0xff]
      %v1629 = vlaneseq
      %v1630 = vshrl.u32 %v1629, 7
      %v1631 = vsub.s32 0, %v1630
      %v1632 = vrot.slane %v714, %v1631
      %v1633 = vlaneseq
      %v1634 = vshrl.u32 %v1633, 7
      %v1635 = vsub.s32 1, %v1634
      %v1636 = vrot.slane %v714, %v1635
      %v1639 = vmul.f32 %v1242, %v1632
      %v1640 = vmul.f32 %v1243, %v1636
      %v1641 = vmul.f32 %v1626, %v1632
      %v1642 = vmul.f32 %v1627, %v1636
      %v1643 = vadd.f32 %v1622, %v1639
      %v1644 = vadd.f32 %v1623, %v1640
      %v1645 = vadd.f32 %v1624, %v1641
      %v1646 = vadd.f32 %v1625, %v1642
      %v1647 = vld [vmem:[#allocation2 + $0x30] sm:$0xfe]
      %v1648 = vld [vmem:[#allocation2 + $0x38] sm:$0xfe]
      %v1649 = vld [vmem:[#allocation2 + $0x40] sm:$0xff]
      %v1650 = vld [vmem:[#allocation2 + $0x48] sm:$0xff]
      %v1651 = vld [vmem:[#allocation2 + $0x50] sm:$0x1]
      %v1652 = vld [vmem:[#allocation2 + $0x58] sm:$0x1]
      %v1659 = vrot.slane %v1647, 1
      %v1660 = vrot.slane %v1649, 1
      %v1661 = vsel %vm874, %v1659, %v1660
      %v1662 = vrot.slane %v1648, 1
      %v1663 = vrot.slane %v1650, 1
      %v1664 = vsel %vm874, %v1662, %v1663
      %v1665 = vrot.slane %v1651, 1
      %v1666 = vsel %vm874, %v1660, %v1665
      %v1667 = vrot.slane %v1652, 1
      %v1668 = vsel %vm874, %v1663, %v1667
      %v1673 = vsel %vm866, %v1661, 0.0
      %v1674 = vsel %vm866, %v1664, 0.0
      %v1675 = vsel %vm867, %v1666, 0.0
      %v1676 = vsel %vm867, %v1668, 0.0
      %v1678 = vlaneseq
      %v1679 = vshrl.u32 %v1678, 7
      %v1680 = vsub.s32 0, %v1679
      %v1681 = vrot.slane %v715, %v1680
      %v1682 = vlaneseq
      %v1683 = vshrl.u32 %v1682, 7
      %v1684 = vsub.s32 1, %v1683
      %v1685 = vrot.slane %v715, %v1684
      %v1688 = vmul.f32 %v1673, %v1681
      %v1689 = vmul.f32 %v1674, %v1685
      %v1690 = vmul.f32 %v1675, %v1681
      %v1691 = vmul.f32 %v1676, %v1685
      %v1692 = vadd.f32 %v1643, %v1688
      %v1693 = vadd.f32 %v1644, %v1689
      %v1694 = vadd.f32 %v1645, %v1690
      %v1695 = vadd.f32 %v1646, %v1691
      %v1696 = vld [vmem:[#allocation2 + $0x30] sm:$0xfc]
      %v1697 = vld [vmem:[#allocation2 + $0x38] sm:$0xfc]
      %v1698 = vld [vmem:[#allocation2 + $0x50] sm:$0x3]
      %v1699 = vld [vmem:[#allocation2 + $0x58] sm:$0x3]
      %v1704 = vrot.slane %v1696, 2
      %v1705 = vrot.slane %v1649, 2
      %v1706 = vsel %vm930, %v1704, %v1705
      %v1707 = vrot.slane %v1697, 2
      %v1708 = vrot.slane %v1650, 2
      %v1709 = vsel %vm930, %v1707, %v1708
      %v1710 = vrot.slane %v1698, 2
      %v1711 = vsel %vm930, %v1705, %v1710
      %v1712 = vrot.slane %v1699, 2
      %v1713 = vsel %vm930, %v1708, %v1712
      %v1718 = vsel %vm924, %v1706, 0.0
      %v1719 = vsel %vm924, %v1709, 0.0
      %v1720 = vsel %vm925, %v1711, 0.0
      %v1721 = vsel %vm925, %v1713, 0.0
      %v1723 = vlaneseq
      %v1724 = vshrl.u32 %v1723, 7
      %v1725 = vsub.s32 0, %v1724
      %v1726 = vrot.slane %v716, %v1725
      %v1727 = vlaneseq
      %v1728 = vshrl.u32 %v1727, 7
      %v1729 = vsub.s32 1, %v1728
      %v1730 = vrot.slane %v716, %v1729
      %v1733 = vmul.f32 %v1718, %v1726
      %v1734 = vmul.f32 %v1719, %v1730
      %v1735 = vmul.f32 %v1720, %v1726
      %v1736 = vmul.f32 %v1721, %v1730
      %v1737 = vadd.f32 %v1692, %v1733
      %v1738 = vadd.f32 %v1693, %v1734
      %v1739 = vadd.f32 %v1694, %v1735
      %v1740 = vadd.f32 %v1695, %v1736
      %v1741 = vld [vmem:[%s5] sm:$0x3]
      %v1743 = vlaneseq
      %v1744 = vshrl.u32 %v1743, 7
      %v1745 = vsub.s32 0, %v1744
      %v1746 = vrot.slane %v1741, %v1745
      %v1747 = vlaneseq
      %v1748 = vshrl.u32 %v1747, 7
      %v1749 = vsub.s32 1, %v1748
      %v1750 = vrot.slane %v1741, %v1749
      %v1753 = vadd.f32 %v1737, %v1746
      %v1754 = vadd.f32 %v1738, %v1750
      %v1755 = vadd.f32 %v1739, %v1746
      %v1756 = vadd.f32 %v1740, %v1750
      %v1757 = vxor.u32 %v1753, 2147483648
      %v1758 = vxor.u32 %v1754, 2147483648
      %v1759 = vxor.u32 %v1755, 2147483648
      %v1760 = vxor.u32 %v1756, 2147483648
      %v1761 = vmul.f32 %v1757, 1.442695
      %v1762 = vpow.pop %v1761
      %v1763 = vmul.f32 %v1758, 1.442695
      %v1764 = vpow.pop %v1763
      %v1765 = vmul.f32 %v1759, 1.442695
      %v1766 = vpow.pop %v1765
      %v1767 = vmul.f32 %v1760, 1.442695
      %v1768 = vpow.pop %v1767
      %v1769 = vadd.f32 %v1762, 1.0
      %v1770 = vadd.f32 %v1764, 1.0
      %v1771 = vadd.f32 %v1766, 1.0
      %v1772 = vadd.f32 %v1768, 1.0
      %v1773 = vrcp.pop %v1769
      %v1774 = vmul.f32 1.0, %v1773
      %v1775 = vrcp.pop %v1770
      %v1776 = vmul.f32 1.0, %v1775
      %v1777 = vrcp.pop %v1771
      %v1778 = vmul.f32 1.0, %v1777
      %v1779 = vrcp.pop %v1772
      %v1780 = vmul.f32 1.0, %v1779
      %v1781 = vmul.f32 %v1753, %v1774
      %v1782 = vmul.f32 %v1754, %v1776
      %v1783 = vmul.f32 %v1755, %v1778
      %v1784 = vmul.f32 %v1756, %v1780
      %v1785 = vadd.f32 %v1781, %v1783
      %v1786 = vrot.slane %v1785, 4
      %v1787 = vadd.f32 %v1785, %v1786
      %v1788 = vrot.slane %v1787, 2
      %v1789 = vadd.f32 %v1787, %v1788
      %v1790 = vrot.slane %v1789, 1
      %v1791 = vadd.f32 %v1789, %v1790
      %v1792 = vadd.f32 %v1782, %v1784
      %v1793 = vrot.slane %v1792, 4
      %v1794 = vadd.f32 %v1792, %v1793
      %v1795 = vrot.slane %v1794, 2
      %v1796 = vadd.f32 %v1794, %v1795
      %v1797 = vrot.slane %v1796, 1
      %v1798 = vadd.f32 %v1796, %v1797
      %v1799 = vrcp.pop 16.0
      %v1800 = vmul.f32 %v1791, %v1799
      %v1801 = vmul.f32 %v1798, %v1799
      %v1802 = vpack.c.bf16 %v1800, %v1800
      %v1803 = vpack.c.bf16 %v1801, %v1801
      %v1804 = vld [vmem:[%s6] sm:$0xf]
      %v1805 = vld [vmem:[%s6 + $0x4] sm:$0xf]
      %v1806 = vld [vmem:[%s6 + $0x8] sm:$0xf]
      %v1807 = vld [vmem:[%s6 + $0xc] sm:$0xf]
      %v1808 = vld [vmem:[%s6 + $0x10] sm:$0xf]
      %v1809 = vld [vmem:[%s6 + $0x14] sm:$0xf]
      %v1810 = vld [vmem:[%s6 + $0x18] sm:$0xf]
      %v1811 = vld [vmem:[%s6 + $0x1c] sm:$0xf]
      %v1812 = vld [vmem:[%s6 + $0x20] sm:$0xf]
      %v1813 = vld [vmem:[%s6 + $0x24] sm:$0xf]
      %v1814 = vld [vmem:[%s6 + $0x28] sm:$0xf]
      %v1815 = vld [vmem:[%s6 + $0x2c] sm:$0xf]
      %v1816 = vld [vmem:[%s6 + $0x30] sm:$0xf]
      %v1817 = vld [vmem:[%s6 + $0x34] sm:$0xf]
      %v1818 = vld [vmem:[%s6 + $0x38] sm:$0xf]
      %v1819 = vld [vmem:[%s6 + $0x3c] sm:$0xf]
      %v1820 = vld [vmem:[%s6 + $0x40] sm:$0xf]
      %v1821 = vld [vmem:[%s6 + $0x44] sm:$0xf]
      %v1822 = vld [vmem:[%s6 + $0x48] sm:$0xf]
      %v1823 = vld [vmem:[%s6 + $0x4c] sm:$0xf]
      %v1824 = vld [vmem:[%s6 + $0x50] sm:$0xf]
      %v1825 = vld [vmem:[%s6 + $0x54] sm:$0xf]
      %v1826 = vld [vmem:[%s6 + $0x58] sm:$0xf]
      %v1827 = vld [vmem:[%s6 + $0x5c] sm:$0xf]
      %v1828 = vld [vmem:[%s6 + $0x60] sm:$0xf]
      %v1829 = vld [vmem:[%s6 + $0x64] sm:$0xf]
      %v1830 = vld [vmem:[%s6 + $0x68] sm:$0xf]
      %v1831 = vld [vmem:[%s6 + $0x6c] sm:$0xf]
      %v1832 = vld [vmem:[%s6 + $0x70] sm:$0xf]
      %v1833 = vld [vmem:[%s6 + $0x74] sm:$0xf]
      %v1834 = vld [vmem:[%s6 + $0x78] sm:$0xf]
      %v1835 = vld [vmem:[%s6 + $0x7c] sm:$0xf]
      %v1868 = vunpack.c.l.b16 %v1804
      %v1869 = vunpack.c.l.b16 %v1805
      %v1870 = vunpack.c.l.b16 %v1806
      %v1871 = vunpack.c.l.b16 %v1807
      %v1872 = vunpack.c.l.b16 %v1808
      %v1873 = vunpack.c.l.b16 %v1809
      %v1874 = vunpack.c.l.b16 %v1810
      %v1875 = vunpack.c.l.b16 %v1811
      %v1876 = vunpack.c.l.b16 %v1812
      %v1877 = vunpack.c.l.b16 %v1813
      %v1878 = vunpack.c.l.b16 %v1814
      %v1879 = vunpack.c.l.b16 %v1815
      %v1880 = vunpack.c.l.b16 %v1816
      %v1881 = vunpack.c.l.b16 %v1817
      %v1882 = vunpack.c.l.b16 %v1818
      %v1883 = vunpack.c.l.b16 %v1819
      %v1884 = vunpack.c.l.b16 %v1820
      %v1885 = vunpack.c.l.b16 %v1821
      %v1886 = vunpack.c.l.b16 %v1822
      %v1887 = vunpack.c.l.b16 %v1823
      %v1888 = vunpack.c.l.b16 %v1824
      %v1889 = vunpack.c.l.b16 %v1825
      %v1890 = vunpack.c.l.b16 %v1826
      %v1891 = vunpack.c.l.b16 %v1827
      %v1892 = vunpack.c.l.b16 %v1828
      %v1893 = vunpack.c.l.b16 %v1829
      %v1894 = vunpack.c.l.b16 %v1830
      %v1895 = vunpack.c.l.b16 %v1831
      %v1896 = vunpack.c.l.b16 %v1832
      %v1897 = vunpack.c.l.b16 %v1833
      %v1898 = vunpack.c.l.b16 %v1834
      %v1899 = vunpack.c.l.b16 %v1835
      %v1900 = vpack.c.b16 %v1869, %v1868
      %v1901 = vpack.c.b16 %v1871, %v1870
      %v1902 = vpack.c.b16 %v1873, %v1872
      %v1903 = vpack.c.b16 %v1875, %v1874
      %v1904 = vpack.c.b16 %v1877, %v1876
      %v1905 = vpack.c.b16 %v1879, %v1878
      %v1906 = vpack.c.b16 %v1881, %v1880
      %v1907 = vpack.c.b16 %v1883, %v1882
      %v1908 = vpack.c.b16 %v1885, %v1884
      %v1909 = vpack.c.b16 %v1887, %v1886
      %v1910 = vpack.c.b16 %v1889, %v1888
      %v1911 = vpack.c.b16 %v1891, %v1890
      %v1912 = vpack.c.b16 %v1893, %v1892
      %v1913 = vpack.c.b16 %v1895, %v1894
      %v1914 = vpack.c.b16 %v1897, %v1896
      %v1915 = vpack.c.b16 %v1899, %v1898
      %1932 = vmatprep.subr.bf16.mxu0 0
      %1933 = vmatpush1.bf16.msra.mxu0 %v1907
      %1934 = vmatprep.subr.bf16.mxu0 0
      %1935 = vmatpush1.bf16.msra.mxu0 %v1906
      %1936 = vmatprep.subr.bf16.mxu0 0
      %1937 = vmatpush1.bf16.msra.mxu0 %v1905
      %1938 = vmatprep.subr.bf16.mxu0 0
      %1939 = vmatpush1.bf16.msra.mxu0 %v1904
      %1940 = vmatprep.subr.bf16.mxu0 0
      %1941 = vmatpush1.bf16.msra.mxu0 %v1903
      %1942 = vmatprep.subr.bf16.mxu0 0
      %1943 = vmatpush1.bf16.msra.mxu0 %v1902
      %1944 = vmatprep.subr.bf16.mxu0 0
      %1945 = vmatpush1.bf16.msra.mxu0 %v1901
      %1946 = vmatprep.subr.bf16.mxu0 0
      %1947 = vmatpush1.bf16.msra.mxu0 %v1900
      %1948 = vmatprep.subr.bf16.mxu0 0
      %1949 = vmatpush2.bf16.msra.mxu0 %v1915
      %1950 = vmatprep.subr.bf16.mxu0 0
      %1951 = vmatpush2.bf16.msra.mxu0 %v1914
      %1952 = vmatprep.subr.bf16.mxu0 0
      %1953 = vmatpush2.bf16.msra.mxu0 %v1913
      %1954 = vmatprep.subr.bf16.mxu0 0
      %1955 = vmatpush2.bf16.msra.mxu0 %v1912
      %1956 = vmatprep.subr.bf16.mxu0 0
      %1957 = vmatpush2.bf16.msra.mxu0 %v1911
      %1958 = vmatprep.subr.bf16.mxu0 0
      %1959 = vmatpush2.bf16.msra.mxu0 %v1910
      %1960 = vmatprep.subr.bf16.mxu0 0
      %1961 = vmatpush2.bf16.msra.mxu0 %v1909
      %1962 = vmatprep.subr.bf16.mxu0 0
      %1963 = vmatpush2.bf16.msra.mxu0 %v1908
      %1964 = vmatprep.mubr.bf16.mxu0 %v1803
      %1965 = vmatmul.mubr.bf16.gmra.mxu0 %v1802
      %v1966 = vpop.f32.mrf.mxu0
      %v1967 = vadd.f32 0.0, %v1966
      %v1968 = vpop.f32.mrf.mxu0
      %v1969 = vpop.f32.mrf.mxu0
      %v1970 = vpop.f32.mrf.mxu0
      %1971 = vdwg.mxu0
      %v1972 = vld [vmem:[%s7] sm:$0x1]
      %v1973 = vmul.f32 %v1967, %v1972
      %v1974 = vld [vmem:[%s8] sm:$0x1]
      %v1975 = vadd.f32 %v1973, %v1974
      %v1976 = vmax.f32 %v1975, 0.0
      %v1977 = vpack.c.bf16 %v1976, %v1976
      %v1978 = vld [vmem:[%s9] sm:$0xff]
      %v1979 = vld [vmem:[%s9 + $0x8] sm:$0xff]
      %v1980 = vld [vmem:[%s9 + $0x10] sm:$0xff]
      %v1981 = vld [vmem:[%s9 + $0x18] sm:$0xff]
      %v1982 = vld [vmem:[%s9 + $0x20] sm:$0xff]
      %v1983 = vld [vmem:[%s9 + $0x28] sm:$0xff]
      %v1984 = vld [vmem:[%s9 + $0x30] sm:$0xff]
      %v1985 = vld [vmem:[%s9 + $0x38] sm:$0xff]
      %v1986 = vld [vmem:[%s9 + $0x40] sm:$0xff]
      %v1987 = vld [vmem:[%s9 + $0x48] sm:$0xff]
      %v1988 = vld [vmem:[%s9 + $0x50] sm:$0xff]
      %v1989 = vld [vmem:[%s9 + $0x58] sm:$0xff]
      %v1990 = vld [vmem:[%s9 + $0x60] sm:$0xff]
      %v1991 = vld [vmem:[%s9 + $0x68] sm:$0xff]
      %v1992 = vld [vmem:[%s9 + $0x70] sm:$0xff]
      %v1993 = vld [vmem:[%s9 + $0x78] sm:$0xff]
      %v2010 = vunpack.c.l.b16 %v1978
      %v2011 = vunpack.c.h.b16 %v1978
      %v2012 = vunpack.c.l.b16 %v1979
      %v2013 = vunpack.c.h.b16 %v1979
      %v2014 = vunpack.c.l.b16 %v1980
      %v2015 = vunpack.c.h.b16 %v1980
      %v2016 = vunpack.c.l.b16 %v1981
      %v2017 = vunpack.c.h.b16 %v1981
      %v2018 = vunpack.c.l.b16 %v1982
      %v2019 = vunpack.c.h.b16 %v1982
      %v2020 = vunpack.c.l.b16 %v1983
      %v2021 = vunpack.c.h.b16 %v1983
      %v2022 = vunpack.c.l.b16 %v1984
      %v2023 = vunpack.c.h.b16 %v1984
      %v2024 = vunpack.c.l.b16 %v1985
      %v2025 = vunpack.c.h.b16 %v1985
      %v2026 = vunpack.c.l.b16 %v1986
      %v2027 = vunpack.c.h.b16 %v1986
      %v2028 = vunpack.c.l.b16 %v1987
      %v2029 = vunpack.c.h.b16 %v1987
      %v2030 = vunpack.c.l.b16 %v1988
      %v2031 = vunpack.c.h.b16 %v1988
      %v2032 = vunpack.c.l.b16 %v1989
      %v2033 = vunpack.c.h.b16 %v1989
      %v2034 = vunpack.c.l.b16 %v1990
      %v2035 = vunpack.c.h.b16 %v1990
      %v2036 = vunpack.c.l.b16 %v1991
      %v2037 = vunpack.c.h.b16 %v1991
      %v2038 = vunpack.c.l.b16 %v1992
      %v2039 = vunpack.c.h.b16 %v1992
      %v2040 = vunpack.c.l.b16 %v1993
      %v2041 = vunpack.c.h.b16 %v1993
      %v2042 = vpack.c.b16 %v2012, %v2010
      %v2043 = vpack.c.b16 %v2013, %v2011
      %v2044 = vpack.c.b16 %v2016, %v2014
      %v2045 = vpack.c.b16 %v2017, %v2015
      %v2046 = vpack.c.b16 %v2020, %v2018
      %v2047 = vpack.c.b16 %v2021, %v2019
      %v2048 = vpack.c.b16 %v2024, %v2022
      %v2049 = vpack.c.b16 %v2025, %v2023
      %v2050 = vpack.c.b16 %v2028, %v2026
      %v2051 = vpack.c.b16 %v2029, %v2027
      %v2052 = vpack.c.b16 %v2032, %v2030
      %v2053 = vpack.c.b16 %v2033, %v2031
      %v2054 = vpack.c.b16 %v2036, %v2034
      %v2055 = vpack.c.b16 %v2037, %v2035
      %v2056 = vpack.c.b16 %v2040, %v2038
      %v2057 = vpack.c.b16 %v2041, %v2039
      %2074 = vmatprep.subr.bf16.mxu0 %v2057
      %2075 = vmatpush1.bf16.msra.mxu0 %v2056
      %2076 = vmatprep.subr.bf16.mxu0 %v2055
      %2077 = vmatpush1.bf16.msra.mxu0 %v2054
      %2078 = vmatprep.subr.bf16.mxu0 %v2053
      %2079 = vmatpush1.bf16.msra.mxu0 %v2052
      %2080 = vmatprep.subr.bf16.mxu0 %v2051
      %2081 = vmatpush1.bf16.msra.mxu0 %v2050
      %2082 = vmatprep.subr.bf16.mxu0 %v2049
      %2083 = vmatpush1.bf16.msra.mxu0 %v2048
      %2084 = vmatprep.subr.bf16.mxu0 %v2047
      %2085 = vmatpush1.bf16.msra.mxu0 %v2046
      %2086 = vmatprep.subr.bf16.mxu0 %v2045
      %2087 = vmatpush1.bf16.msra.mxu0 %v2044
      %2088 = vmatprep.subr.bf16.mxu0 %v2043
      %2089 = vmatpush1.bf16.msra.mxu0 %v2042
      %2090 = vmatprep.subr.bf16.mxu0 0
      %2091 = vmatpush2.bf16.msra.mxu0 0
      %2092 = vmatprep.subr.bf16.mxu0 0
      %2093 = vmatpush2.bf16.msra.mxu0 0
      %2094 = vmatprep.subr.bf16.mxu0 0
      %2095 = vmatpush2.bf16.msra.mxu0 0
      %2096 = vmatprep.subr.bf16.mxu0 0
      %2097 = vmatpush2.bf16.msra.mxu0 0
      %2098 = vmatprep.subr.bf16.mxu0 0
      %2099 = vmatpush2.bf16.msra.mxu0 0
      %2100 = vmatprep.subr.bf16.mxu0 0
      %2101 = vmatpush2.bf16.msra.mxu0 0
      %2102 = vmatprep.subr.bf16.mxu0 0
      %2103 = vmatpush2.bf16.msra.mxu0 0
      %2104 = vmatprep.subr.bf16.mxu0 0
      %2105 = vmatpush2.bf16.msra.mxu0 0
      %2106 = vmatprep.mubr.bf16.mxu0 0
      %2107 = vmatmul.mubr.bf16.gmra.mxu0 %v1977
      %v2108 = vpop.f32.mrf.mxu0
      %v2109 = vadd.f32 0.0, %v2108
      %v2110 = vpop.f32.mrf.mxu0
      %v2111 = vadd.f32 0.0, %v2110
      %v2112 = vpop.f32.mrf.mxu0
      %v2113 = vpop.f32.mrf.mxu0
      %2114 = vdwg.mxu0
      %v2115 = vrcp.pop 6.0
      %v2116 = vmul.f32 %v2109, %v2115
      %v2117 = vmul.f32 %v2111, %v2115
      %v2118 = vadd.f32 %v2116, 0.5
      %v2119 = vadd.f32 %v2117, 0.5
      %v2120 = vmax.f32 %v2118, 0.0
      %v2121 = vmax.f32 %v2119, 0.0
      %v2122 = vmin.f32 %v2120, 1.0
      %v2123 = vmin.f32 %v2121, 1.0
      %v2124 = vlaneseq
      %v2125 = vshrl.u32 %v2124, 7
      %v2126 = vsub.s32 0, %v2125
      %v2127 = vrot.slane %v2122, %v2126
      %v2128 = vlaneseq
      %v2129 = vshrl.u32 %v2128, 7
      %v2130 = vsub.s32 0, %v2129
      %v2131 = vrot.slane %v2123, %v2130
      %v2132 = vmul.f32 %v1781, %v2127
      %v2133 = vmul.f32 %v1782, %v2131
      %v2134 = vmul.f32 %v1783, %v2127
      %v2135 = vmul.f32 %v1784, %v2131
      %v2136 = vpack.c.bf16 %v2134, %v2132
      %v2137 = vpack.c.bf16 %v2135, %v2133
      %v2138 = vld [vmem:[%s10] sm:$0xf]
      %v2139 = vld [vmem:[%s10 + $0x4] sm:$0xf]
      %v2140 = vld [vmem:[%s10 + $0x8] sm:$0xf]
      %v2141 = vld [vmem:[%s10 + $0xc] sm:$0xf]
      %v2142 = vld [vmem:[%s10 + $0x10] sm:$0xf]
      %v2143 = vld [vmem:[%s10 + $0x14] sm:$0xf]
      %v2144 = vld [vmem:[%s10 + $0x18] sm:$0xf]
      %v2145 = vld [vmem:[%s10 + $0x1c] sm:$0xf]
      %v2146 = vld [vmem:[%s10 + $0x20] sm:$0xf]
      %v2147 = vld [vmem:[%s10 + $0x24] sm:$0xf]
      %v2148 = vld [vmem:[%s10 + $0x28] sm:$0xf]
      %v2149 = vld [vmem:[%s10 + $0x2c] sm:$0xf]
      %v2150 = vld [vmem:[%s10 + $0x30] sm:$0xf]
      %v2151 = vld [vmem:[%s10 + $0x34] sm:$0xf]
      %v2152 = vld [vmem:[%s10 + $0x38] sm:$0xf]
      %v2153 = vld [vmem:[%s10 + $0x3c] sm:$0xf]
      %v2154 = vld [vmem:[%s10 + $0x40] sm:$0xf]
      %v2155 = vld [vmem:[%s10 + $0x44] sm:$0xf]
      %v2156 = vld [vmem:[%s10 + $0x48] sm:$0xf]
      %v2157 = vld [vmem:[%s10 + $0x4c] sm:$0xf]
      %v2158 = vld [vmem:[%s10 + $0x50] sm:$0xf]
      %v2159 = vld [vmem:[%s10 + $0x54] sm:$0xf]
      %v2160 = vld [vmem:[%s10 + $0x58] sm:$0xf]
      %v2161 = vld [vmem:[%s10 + $0x5c] sm:$0xf]
      %v2162 = vld [vmem:[%s10 + $0x60] sm:$0xf]
      %v2163 = vld [vmem:[%s10 + $0x64] sm:$0xf]
      %v2164 = vld [vmem:[%s10 + $0x68] sm:$0xf]
      %v2165 = vld [vmem:[%s10 + $0x6c] sm:$0xf]
      %v2166 = vld [vmem:[%s10 + $0x70] sm:$0xf]
      %v2167 = vld [vmem:[%s10 + $0x74] sm:$0xf]
      %v2168 = vld [vmem:[%s10 + $0x78] sm:$0xf]
      %v2169 = vld [vmem:[%s10 + $0x7c] sm:$0xf]
      %v2202 = vunpack.c.l.b16 %v2138
      %v2203 = vunpack.c.l.b16 %v2139
      %v2204 = vunpack.c.l.b16 %v2140
      %v2205 = vunpack.c.l.b16 %v2141
      %v2206 = vunpack.c.l.b16 %v2142
      %v2207 = vunpack.c.l.b16 %v2143
      %v2208 = vunpack.c.l.b16 %v2144
      %v2209 = vunpack.c.l.b16 %v2145
      %v2210 = vunpack.c.l.b16 %v2146
      %v2211 = vunpack.c.l.b16 %v2147
      %v2212 = vunpack.c.l.b16 %v2148
      %v2213 = vunpack.c.l.b16 %v2149
      %v2214 = vunpack.c.l.b16 %v2150
      %v2215 = vunpack.c.l.b16 %v2151
      %v2216 = vunpack.c.l.b16 %v2152
      %v2217 = vunpack.c.l.b16 %v2153
      %v2218 = vunpack.c.l.b16 %v2154
      %v2219 = vunpack.c.l.b16 %v2155
      %v2220 = vunpack.c.l.b16 %v2156
      %v2221 = vunpack.c.l.b16 %v2157
      %v2222 = vunpack.c.l.b16 %v2158
      %v2223 = vunpack.c.l.b16 %v2159
      %v2224 = vunpack.c.l.b16 %v2160
      %v2225 = vunpack.c.l.b16 %v2161
      %v2226 = vunpack.c.l.b16 %v2162
      %v2227 = vunpack.c.l.b16 %v2163
      %v2228 = vunpack.c.l.b16 %v2164
      %v2229 = vunpack.c.l.b16 %v2165
      %v2230 = vunpack.c.l.b16 %v2166
      %v2231 = vunpack.c.l.b16 %v2167
      %v2232 = vunpack.c.l.b16 %v2168
      %v2233 = vunpack.c.l.b16 %v2169
      %v2234 = vpack.c.b16 %v2203, %v2202
      %v2235 = vpack.c.b16 %v2205, %v2204
      %v2236 = vpack.c.b16 %v2207, %v2206
      %v2237 = vpack.c.b16 %v2209, %v2208
      %v2238 = vpack.c.b16 %v2211, %v2210
      %v2239 = vpack.c.b16 %v2213, %v2212
      %v2240 = vpack.c.b16 %v2215, %v2214
      %v2241 = vpack.c.b16 %v2217, %v2216
      %v2242 = vpack.c.b16 %v2219, %v2218
      %v2243 = vpack.c.b16 %v2221, %v2220
      %v2244 = vpack.c.b16 %v2223, %v2222
      %v2245 = vpack.c.b16 %v2225, %v2224
      %v2246 = vpack.c.b16 %v2227, %v2226
      %v2247 = vpack.c.b16 %v2229, %v2228
      %v2248 = vpack.c.b16 %v2231, %v2230
      %v2249 = vpack.c.b16 %v2233, %v2232
      %2266 = vmatprep.subr.bf16.mxu0 0
      %2267 = vmatpush1.bf16.msra.mxu0 %v2241
      %2268 = vmatprep.subr.bf16.mxu0 0
      %2269 = vmatpush1.bf16.msra.mxu0 %v2240
      %2270 = vmatprep.subr.bf16.mxu0 0
      %2271 = vmatpush1.bf16.msra.mxu0 %v2239
      %2272 = vmatprep.subr.bf16.mxu0 0
      %2273 = vmatpush1.bf16.msra.mxu0 %v2238
      %2274 = vmatprep.subr.bf16.mxu0 0
      %2275 = vmatpush1.bf16.msra.mxu0 %v2237
      %2276 = vmatprep.subr.bf16.mxu0 0
      %2277 = vmatpush1.bf16.msra.mxu0 %v2236
      %2278 = vmatprep.subr.bf16.mxu0 0
      %2279 = vmatpush1.bf16.msra.mxu0 %v2235
      %2280 = vmatprep.subr.bf16.mxu0 0
      %2281 = vmatpush1.bf16.msra.mxu0 %v2234
      %2282 = vmatprep.subr.bf16.mxu0 0
      %2283 = vmatpush2.bf16.msra.mxu0 %v2249
      %2284 = vmatprep.subr.bf16.mxu0 0
      %2285 = vmatpush2.bf16.msra.mxu0 %v2248
      %2286 = vmatprep.subr.bf16.mxu0 0
      %2287 = vmatpush2.bf16.msra.mxu0 %v2247
      %2288 = vmatprep.subr.bf16.mxu0 0
      %2289 = vmatpush2.bf16.msra.mxu0 %v2246
      %2290 = vmatprep.subr.bf16.mxu0 0
      %2291 = vmatpush2.bf16.msra.mxu0 %v2245
      %2292 = vmatprep.subr.bf16.mxu0 0
      %2293 = vmatpush2.bf16.msra.mxu0 %v2244
      %2294 = vmatprep.subr.bf16.mxu0 0
      %2295 = vmatpush2.bf16.msra.mxu0 %v2243
      %2296 = vmatprep.subr.bf16.mxu0 0
      %2297 = vmatpush2.bf16.msra.mxu0 %v2242
      %2298 = vmatprep.mubr.bf16.mxu0 %v2137
      %2299 = vmatmul.mubr.bf16.gmra.mxu0 %v2136
      %v2300 = vpop.f32.mrf.mxu0
      %v2301 = vadd.f32 0.0, %v2300
      %v2302 = vpop.f32.mrf.mxu0
      %v2303 = vpop.f32.mrf.mxu0
      %v2304 = vadd.f32 0.0, %v2303
      %v2305 = vpop.f32.mrf.mxu0
      %2306 = vdwg.mxu0
      %v2307 = vld [vmem:[%s11] sm:$0x1]
      %v2309 = vlaneseq
      %v2310 = vshrl.u32 %v2309, 7
      %v2311 = vsub.s32 0, %v2310
      %v2312 = vrot.slane %v2307, %v2311
      %v2314 = vmul.f32 %v2301, %v2312
      %v2315 = vmul.f32 %v2304, %v2312
      %v2316 = vld [vmem:[%s12] sm:$0x1]
      %v2318 = vlaneseq
      %v2319 = vshrl.u32 %v2318, 7
      %v2320 = vsub.s32 0, %v2319
      %v2321 = vrot.slane %v2316, %v2320
      %v2323 = vadd.f32 %v2314, %v2321
      %v2324 = vadd.f32 %v2315, %v2321
      %v2325 = vunpack.c.l.bf16 %v442
      %v2326 = vunpack.c.l.bf16 %v443
      %v2327 = vadd.f32 %v2323, %v2325
      %v2328 = vadd.f32 %v2324, %v2326
      %v2329 = vxor.u32 %v2327, 2147483648
      %v2330 = vxor.u32 %v2328, 2147483648
      %v2331 = vmul.f32 %v2329, 1.442695
      %v2332 = vpow.pop %v2331
      %v2333 = vmul.f32 %v2330, 1.442695
      %v2334 = vpow.pop %v2333
      %v2335 = vadd.f32 %v2332, 1.0
      %v2336 = vadd.f32 %v2334, 1.0
      %v2337 = vrcp.pop %v2335
      %v2338 = vmul.f32 1.0, %v2337
      %v2339 = vrcp.pop %v2336
      %v2340 = vmul.f32 1.0, %v2339
      %v2341 = vmul.f32 %v2327, %v2338
      %v2342 = vmul.f32 %v2328, %v2340
      %v2343 = vpack.c.bf16 %v2342, %v2341
      %v2345 = vunpack.c.l.b16 %v2343
      %v2346 = vunpack.c.h.b16 %v2343
      %v2347 = vpack.c.b16 %v2345, %v2345
      %v2348 = vpack.c.b16 %v2346, %v2346
      %2351 = vst [vmem:[%s440] sm:$0xf] %v2347
      %2352 = vst [vmem:[%s440 + $0x4] sm:$0xf] %v2348
      %p2353 = scmp.lt.s32.totalorder %s24, 1
      %s2354 = scalar_select %p2353, %s24, 1
      %s2355 = smul.addr %s2354, 2
      %s2356 = smul.addr %s2355, 4
      %s2357 = scalar_lea.vmem %s13, %s2356
      // Predicated region
      $region73: #{forward.10} parent=71 // pred_check
        %p2358 = pneg %p320
      $region74: #{forward.10} parent=71 // pred_check_branch
        %2360 = sbr.rel (%p2358) target = $region76
      $region75: #{forward.10} parent=71 // pred_region
        _
      $region76: #{forward.10} parent=71 // pred_fallthru
        _
    $region72: #{forward.10} parent=5 // pred_fallthru
      _
    %p2361 = scmp.le.s32.totalorder 2, %s19
    // Predicated region
    $region77: #{forward.10} parent=5 // pred_check
      %p2362 = pneg %p2361
    $region78: #{forward.10} parent=5 // pred_check_branch
      %2364 = sbr.rel (%p2362) target = $region80
    $region79: #{forward.10} parent=5 // pred_region
      %s2365 = ssub.s32 %s19, 2
      // Predicated region
      $region81: #{forward.10} parent=79 // pred_check
        %p2366 = pneg %p326
      $region82: #{forward.10} parent=79 // pred_check_branch
        %2368 = sbr.rel (%p2366) target = $region84
      $region83: #{forward.10} parent=79 // pred_region
        %p2369 = scmp.lt.s32.totalorder %s25, 1
        %s2370 = scalar_select %p2369, %s25, 1
        %s2371 = smul.addr %s2370, 2
        %s2372 = smul.addr %s2371, 4
        %s2373 = scalar_lea.vmem %s13, %s2372
      $region84: #{forward.10} parent=79 // pred_fallthru
        _
    $region80: #{forward.10} parent=5 // pred_fallthru
      _
  $region6: #{forward.10} parent=0 // loop_footer
    %s23 = sadd.s32 1, %s19
  $region7: #{forward.10} parent=0 // loop_footer_branch
    %18 = sbr.rel target = $region3
  $region8: #{forward.10} parent=0 // loop_exit
    _

// kernel: forward.13
$region0: #{forward.13}
  #allocation0 [shape = 'u32[]', space=smem, size = 0x4, offset = 0x4, fixed_abs, tag = 'smem constant byte address 0x4 - core index']
  #allocation1 [shape = 'u32[144,128]{1,0:T(1,128)}', space=vmem, size = 0x12000, scoped, tag = 'internal scratch']
  %s0 = inlined_call_operand.vmem [shape: bf16[2,4,128], index: 0, kind: input, shape index: {}]
  %s1 = inlined_call_operand.vmem [shape: bf16[128,128], index: 1, kind: input, shape index: {}]
  %s2 = inlined_call_operand.vmem [shape: f32[1,128], index: 2, kind: input, shape index: {}]
  %s3 = inlined_call_operand.hbm [shape: f32[2,128], index: 3, kind: output, shape index: {}]
  %s4 = sld [smem:[#allocation0]]
  $region22: #{forward.13} parent=0
    _
  %s6 = ssub.s32 1, %s4
  %s7 = scalar_select 0, %s6, %s4
  $region1: #{forward.13} parent=0
    #allocation2 [shape = 'u8[1024]{0}', space=vmem, size = 0x400, scoped, tag = 'output window, operand 0, single buffered']
    #allocation3 [shape = 's32[1]{0}', space=sflag, size = 0x4, scoped, tag = 'scoped memory for forward.13']
    %8 = vsyncpa [#allocation3], 0
    // Predicated region
    $region2: #{forward.13} parent=1 // pred_check
      _
    $region3: #{forward.13} parent=1 // pred_check_branch
      %10 = sbr.rel (0) target = $region5
    $region4: #{forward.13} parent=1 // pred_region
      _
    $region5: #{forward.13} parent=1 // pred_fallthru
      _
    // Predicated region
    $region6: #{forward.13} parent=1 // pred_check
      _
    $region7: #{forward.13} parent=1 // pred_check_branch
      %12 = sbr.rel (0) target = $region9
    $region8: #{forward.13} parent=1 // pred_region
      _
    $region9: #{forward.13} parent=1 // pred_fallthru
      _
    // Predicated region
    $region10: #{forward.13} parent=1 // pred_check
      _
    $region11: #{forward.13} parent=1 // pred_check_branch
      %14 = sbr.rel (0) target = $region13
    $region12: #{forward.13} parent=1 // pred_region
      _
    $region13: #{forward.13} parent=1 // pred_fallthru
      _
    %v16 = vld [vmem:[%s0] sm:$0x3]
    %v17 = vld [vmem:[%s0 + $0x2] sm:$0x3]
    %v18 = vunpack.c.l.bf16 %v16
    %v19 = vunpack.c.l.bf16 %v17
    %vm20 = vcmask 1043456
    %v21 = vsel %vm20, %v18, 0.0
    %v22 = vrot.slane %v21, 4
    %v23 = vadd.f32 %v21, %v22
    %v24 = vrot.slane %v23, 2
    %v25 = vadd.f32 %v23, %v24
    %v26 = vrot.slane %v25, 1
    %v27 = vadd.f32 %v25, %v26
    %v28 = vsel %vm20, %v19, 0.0
    %v29 = vrot.slane %v28, 4
    %v30 = vadd.f32 %v28, %v29
    %v31 = vrot.slane %v30, 2
    %v32 = vadd.f32 %v30, %v31
    %v33 = vrot.slane %v32, 1
    %v34 = vadd.f32 %v32, %v33
    %v35 = vrcp.pop 4.0
    %v36 = vmul.f32 %v27, %v35
    %v37 = vmul.f32 %v34, %v35
    %v38 = vpack.c.bf16 %v36, %v36
    %v39 = vpack.c.bf16 %v37, %v37
    %v40 = vld [vmem:[%s1] sm:$0xf]
    %v41 = vld [vmem:[%s1 + $0x4] sm:$0xf]
    %v42 = vld [vmem:[%s1 + $0x8] sm:$0xf]
    %v43 = vld [vmem:[%s1 + $0xc] sm:$0xf]
    %v44 = vld [vmem:[%s1 + $0x10] sm:$0xf]
    %v45 = vld [vmem:[%s1 + $0x14] sm:$0xf]
    %v46 = vld [vmem:[%s1 + $0x18] sm:$0xf]
    %v47 = vld [vmem:[%s1 + $0x1c] sm:$0xf]
    %v48 = vld [vmem:[%s1 + $0x20] sm:$0xf]
    %v49 = vld [vmem:[%s1 + $0x24] sm:$0xf]
    %v50 = vld [vmem:[%s1 + $0x28] sm:$0xf]
    %v51 = vld [vmem:[%s1 + $0x2c] sm:$0xf]
    %v52 = vld [vmem:[%s1 + $0x30] sm:$0xf]
    %v53 = vld [vmem:[%s1 + $0x34] sm:$0xf]
    %v54 = vld [vmem:[%s1 + $0x38] sm:$0xf]
    %v55 = vld [vmem:[%s1 + $0x3c] sm:$0xf]
    %v56 = vld [vmem:[%s2] sm:$0x1]
    %v58 = vlaneseq
    %v59 = vshrl.u32 %v58, 7
    %v60 = vsub.s32 0, %v59
    %v61 = vrot.slane %v56, %v60
    %v65 = vunpack.c.l.b16 %v38
    %v66 = vunpack.c.l.b16 %v39
    %vm67 = vcmask 1041409
    %v68 = vsel %vm67, %v66, %v65
    %v69 = vpack.c.b16 %v68, %v68
    %v87 = vunpack.c.l.b16 %v40
    %v88 = vunpack.c.l.b16 %v41
    %v89 = vunpack.c.l.b16 %v42
    %v90 = vunpack.c.l.b16 %v43
    %v91 = vunpack.c.l.b16 %v44
    %v92 = vunpack.c.l.b16 %v45
    %v93 = vunpack.c.l.b16 %v46
    %v94 = vunpack.c.l.b16 %v47
    %v95 = vunpack.c.l.b16 %v48
    %v96 = vunpack.c.l.b16 %v49
    %v97 = vunpack.c.l.b16 %v50
    %v98 = vunpack.c.l.b16 %v51
    %v99 = vunpack.c.l.b16 %v52
    %v100 = vunpack.c.l.b16 %v53
    %v101 = vunpack.c.l.b16 %v54
    %v102 = vunpack.c.l.b16 %v55
    %v103 = vpack.c.b16 %v88, %v87
    %v104 = vpack.c.b16 %v90, %v89
    %v105 = vpack.c.b16 %v92, %v91
    %v106 = vpack.c.b16 %v94, %v93
    %v107 = vpack.c.b16 %v96, %v95
    %v108 = vpack.c.b16 %v98, %v97
    %v109 = vpack.c.b16 %v100, %v99
    %v110 = vpack.c.b16 %v102, %v101
    %119 = vmatprep.subr.bf16.mxu0 0
    %120 = vmatpush1.bf16.msra.mxu0 %v110
    %121 = vmatprep.subr.bf16.mxu0 0
    %122 = vmatpush1.bf16.msra.mxu0 %v109
    %123 = vmatprep.subr.bf16.mxu0 0
    %124 = vmatpush1.bf16.msra.mxu0 %v108
    %125 = vmatprep.subr.bf16.mxu0 0
    %126 = vmatpush1.bf16.msra.mxu0 %v107
    %127 = vmatprep.subr.bf16.mxu0 0
    %128 = vmatpush1.bf16.msra.mxu0 %v106
    %129 = vmatprep.subr.bf16.mxu0 0
    %130 = vmatpush1.bf16.msra.mxu0 %v105
    %131 = vmatprep.subr.bf16.mxu0 0
    %132 = vmatpush1.bf16.msra.mxu0 %v104
    %133 = vmatprep.subr.bf16.mxu0 0
    %134 = vmatpush1.bf16.msra.mxu0 %v103
    %135 = vmatprep.subr.bf16.mxu0 0
    %136 = vmatpush2.bf16.msra.mxu0 0
    %137 = vmatprep.subr.bf16.mxu0 0
    %138 = vmatpush2.bf16.msra.mxu0 0
    %139 = vmatprep.subr.bf16.mxu0 0
    %140 = vmatpush2.bf16.msra.mxu0 0
    %141 = vmatprep.subr.bf16.mxu0 0
    %142 = vmatpush2.bf16.msra.mxu0 0
    %143 = vmatprep.subr.bf16.mxu0 0
    %144 = vmatpush2.bf16.msra.mxu0 0
    %145 = vmatprep.subr.bf16.mxu0 0
    %146 = vmatpush2.bf16.msra.mxu0 0
    %147 = vmatprep.subr.bf16.mxu0 0
    %148 = vmatpush2.bf16.msra.mxu0 0
    %149 = vmatprep.subr.bf16.mxu0 0
    %150 = vmatpush2.bf16.msra.mxu0 0
    %151 = vmatprep.mubr.bf16.mxu0 0
    %152 = vmatmul.mubr.bf16.gmra.mxu0 %v69
    %v153 = vpop.f32.mrf.mxu0
    %v154 = vadd.f32 %v61, %v153
    %v155 = vpop.f32.mrf.mxu0
    %v156 = vpop.f32.mrf.mxu0
    %v157 = vpop.f32.mrf.mxu0
    %158 = vdwg.mxu0
    %159 = vst [vmem:[#allocation2] sm:$0x3] %v154
    // Predicated region
    $region14: #{forward.13} parent=1 // pred_check
      _
    $region15: #{forward.13} parent=1 // pred_check_branch
      %161 = sbr.rel (0) target = $region17
    $region16: #{forward.13} parent=1 // pred_region
      %s163 = ssub.s32 32, 32
      %164 = vsyncadd [#allocation3], %s163
      %s166 = sshll.u32 [#allocation2], 4
      %s167 = int_to_ptr.vmem [resolvable:$true] %s166
      %169 = dma.vmem_to_hbm [thread:$0]  %s167, 32, %s3, [#allocation3]
    $region17: #{forward.13} parent=1 // pred_fallthru
      _
    // Predicated region
    $region18: #{forward.13} parent=1 // pred_check
      _
    $region19: #{forward.13} parent=1 // pred_check_branch
      %171 = sbr.rel (0) target = $region21
    $region20: #{forward.13} parent=1 // pred_region
      %172 = dma.done [#allocation3], 32
    $region21: #{forward.13} parent=1 // pred_fallthru
      _
    %173 = vsyncpa [#allocation3], 1

// kernel: forward.11
$region0: #{forward.11}
  #allocation0 [shape = 'u32[]', space=smem, size = 0x4, offset = 0x4, fixed_abs, tag = 'smem constant byte address 0x4 - core index']
  #allocation1 [shape = 'u32[144,128]{1,0:T(1,128)}', space=vmem, size = 0x12000, scoped, tag = 'internal scratch']
  %s0 = inlined_call_operand.vmem [shape: bf16[8,1152], index: 0, kind: input, shape index: {}]
  %s1 = inlined_call_operand.vmem [shape: bf16[1152,128], index: 1, kind: input, shape index: {}]
  %s2 = inlined_call_operand.vmem [shape: f32[1,128], index: 2, kind: input, shape index: {}]
  %s3 = inlined_call_operand.vmem [shape: f32[1,128], index: 3, kind: input, shape index: {}]
  %s4 = inlined_call_operand.vmem [shape: bf16[8,128], index: 4, kind: output, shape index: {}]
  %s5 = sld [smem:[#allocation0]]
  $region26: #{forward.11} parent=0
    _
  %s7 = ssub.s32 1, %s5
  %s8 = scalar_select 0, %s7, %s5
  // Predicated region
  $region2: #{forward.11} parent=0 // pred_check
    _
  $region3: #{forward.11} parent=0 // pred_check_branch
    %10 = sbr.rel (0) target = $region5
  $region4: #{forward.11} parent=0 // pred_region
    _
  $region5: #{forward.11} parent=0 // pred_fallthru
    _
  // Predicated region
  $region6: #{forward.11} parent=0 // pred_check
    _
  $region7: #{forward.11} parent=0 // pred_check_branch
    %12 = sbr.rel (0) target = $region9
  $region8: #{forward.11} parent=0 // pred_region
    _
  $region9: #{forward.11} parent=0 // pred_fallthru
    _
  // Predicated region
  $region10: #{forward.11} parent=0 // pred_check
    _
  $region11: #{forward.11} parent=0 // pred_check_branch
    %14 = sbr.rel (0) target = $region13
  $region12: #{forward.11} parent=0 // pred_region
    _
  $region13: #{forward.11} parent=0 // pred_fallthru
    _
  // Predicated region
  $region14: #{forward.11} parent=0 // pred_check
    _
  $region15: #{forward.11} parent=0 // pred_check_branch
    %16 = sbr.rel (0) target = $region17
  $region16: #{forward.11} parent=0 // pred_region
    _
  $region17: #{forward.11} parent=0 // pred_fallthru
    _
  %v18 = vld [vmem:[%s0] sm:$0xff]
  %v19 = vld [vmem:[%s0 + $0x8] sm:$0xff]
  %v20 = vld [vmem:[%s0 + $0x10] sm:$0xff]
  %v21 = vld [vmem:[%s0 + $0x18] sm:$0xff]
  %v22 = vld [vmem:[%s0 + $0x20] sm:$0xf]
  %v23 = vld [vmem:[%s1] sm:$0xf]
  %v24 = vld [vmem:[%s1 + $0x4] sm:$0xf]
  %v25 = vld [vmem:[%s1 + $0x8] sm:$0xf]
  %v26 = vld [vmem:[%s1 + $0xc] sm:$0xf]
  %v27 = vld [vmem:[%s1 + $0x10] sm:$0xf]
  %v28 = vld [vmem:[%s1 + $0x14] sm:$0xf]
  %v29 = vld [vmem:[%s1 + $0x18] sm:$0xf]
  %v30 = vld [vmem:[%s1 + $0x1c] sm:$0xf]
  %v31 = vld [vmem:[%s1 + $0x20] sm:$0xf]
  %v32 = vld [vmem:[%s1 + $0x24] sm:$0xf]
  %v33 = vld [vmem:[%s1 + $0x28] sm:$0xf]
  %v34 = vld [vmem:[%s1 + $0x2c] sm:$0xf]
  %v35 = vld [vmem:[%s1 + $0x30] sm:$0xf]
  %v36 = vld [vmem:[%s1 + $0x34] sm:$0xf]
  %v37 = vld [vmem:[%s1 + $0x38] sm:$0xf]
  %v38 = vld [vmem:[%s1 + $0x3c] sm:$0xf]
  %v39 = vld [vmem:[%s1 + $0x40] sm:$0xf]
  %v40 = vld [vmem:[%s1 + $0x44] sm:$0xf]
  %v41 = vld [vmem:[%s1 + $0x48] sm:$0xf]
  %v42 = vld [vmem:[%s1 + $0x4c] sm:$0xf]
  %v43 = vld [vmem:[%s1 + $0x50] sm:$0xf]
  %v44 = vld [vmem:[%s1 + $0x54] sm:$0xf]
  %v45 = vld [vmem:[%s1 + $0x58] sm:$0xf]
  %v46 = vld [vmem:[%s1 + $0x5c] sm:$0xf]
  %v47 = vld [vmem:[%s1 + $0x60] sm:$0xf]
  %v48 = vld [vmem:[%s1 + $0x64] sm:$0xf]
  %v49 = vld [vmem:[%s1 + $0x68] sm:$0xf]
  %v50 = vld [vmem:[%s1 + $0x6c] sm:$0xf]
  %v51 = vld [vmem:[%s1 + $0x70] sm:$0xf]
  %v52 = vld [vmem:[%s1 + $0x74] sm:$0xf]
  %v53 = vld [vmem:[%s1 + $0x78] sm:$0xf]
  %v54 = vld [vmem:[%s1 + $0x7c] sm:$0xf]
  %v55 = vld [vmem:[%s1 + $0x80] sm:$0xf]
  %v56 = vld [vmem:[%s1 + $0x84] sm:$0xf]
  %v57 = vld [vmem:[%s1 + $0x88] sm:$0xf]
  %v58 = vld [vmem:[%s1 + $0x8c] sm:$0xf]
  %v59 = vld [vmem:[%s1 + $0x90] sm:$0xf]
  %v60 = vld [vmem:[%s1 + $0x94] sm:$0xf]
  %v61 = vld [vmem:[%s1 + $0x98] sm:$0xf]
  %v62 = vld [vmem:[%s1 + $0x9c] sm:$0xf]
  %v63 = vld [vmem:[%s1 + $0xa0] sm:$0xf]
  %v64 = vld [vmem:[%s1 + $0xa4] sm:$0xf]
  %v65 = vld [vmem:[%s1 + $0xa8] sm:$0xf]
  %v66 = vld [vmem:[%s1 + $0xac] sm:$0xf]
  %v67 = vld [vmem:[%s1 + $0xb0] sm:$0xf]
  %v68 = vld [vmem:[%s1 + $0xb4] sm:$0xf]
  %v69 = vld [vmem:[%s1 + $0xb8] sm:$0xf]
  %v70 = vld [vmem:[%s1 + $0xbc] sm:$0xf]
  %v71 = vld [vmem:[%s1 + $0xc0] sm:$0xf]
  %v72 = vld [vmem:[%s1 + $0xc4] sm:$0xf]
  %v73 = vld [vmem:[%s1 + $0xc8] sm:$0xf]
  %v74 = vld [vmem:[%s1 + $0xcc] sm:$0xf]
  %v75 = vld [vmem:[%s1 + $0xd0] sm:$0xf]
  %v76 = vld [vmem:[%s1 + $0xd4] sm:$0xf]
  %v77 = vld [vmem:[%s1 + $0xd8] sm:$0xf]
  %v78 = vld [vmem:[%s1 + $0xdc] sm:$0xf]
  %v79 = vld [vmem:[%s1 + $0xe0] sm:$0xf]
  %v80 = vld [vmem:[%s1 + $0xe4] sm:$0xf]
  %v81 = vld [vmem:[%s1 + $0xe8] sm:$0xf]
  %v82 = vld [vmem:[%s1 + $0xec] sm:$0xf]
  %v83 = vld [vmem:[%s1 + $0xf0] sm:$0xf]
  %v84 = vld [vmem:[%s1 + $0xf4] sm:$0xf]
  %v85 = vld [vmem:[%s1 + $0xf8] sm:$0xf]
  %v86 = vld [vmem:[%s1 + $0xfc] sm:$0xf]
  %v87 = vld [vmem:[%s1 + $0x100] sm:$0xf]
  %v88 = vld [vmem:[%s1 + $0x104] sm:$0xf]
  %v89 = vld [vmem:[%s1 + $0x108] sm:$0xf]
  %v90 = vld [vmem:[%s1 + $0x10c] sm:$0xf]
  %v91 = vld [vmem:[%s1 + $0x110] sm:$0xf]
  %v92 = vld [vmem:[%s1 + $0x114] sm:$0xf]
  %v93 = vld [vmem:[%s1 + $0x118] sm:$0xf]
  %v94 = vld [vmem:[%s1 + $0x11c] sm:$0xf]
  %v95 = vld [vmem:[%s1 + $0x120] sm:$0xf]
  %v96 = vld [vmem:[%s1 + $0x124] sm:$0xf]
  %v97 = vld [vmem:[%s1 + $0x128] sm:$0xf]
  %v98 = vld [vmem:[%s1 + $0x12c] sm:$0xf]
  %v99 = vld [vmem:[%s1 + $0x130] sm:$0xf]
  %v100 = vld [vmem:[%s1 + $0x134] sm:$0xf]
  %v101 = vld [vmem:[%s1 + $0x138] sm:$0xf]
  %v102 = vld [vmem:[%s1 + $0x13c] sm:$0xf]
  %v103 = vld [vmem:[%s1 + $0x140] sm:$0xf]
  %v104 = vld [vmem:[%s1 + $0x144] sm:$0xf]
  %v105 = vld [vmem:[%s1 + $0x148] sm:$0xf]
  %v106 = vld [vmem:[%s1 + $0x14c] sm:$0xf]
  %v107 = vld [vmem:[%s1 + $0x150] sm:$0xf]
  %v108 = vld [vmem:[%s1 + $0x154] sm:$0xf]
  %v109 = vld [vmem:[%s1 + $0x158] sm:$0xf]
  %v110 = vld [vmem:[%s1 + $0x15c] sm:$0xf]
  %v111 = vld [vmem:[%s1 + $0x160] sm:$0xf]
  %v112 = vld [vmem:[%s1 + $0x164] sm:$0xf]
  %v113 = vld [vmem:[%s1 + $0x168] sm:$0xf]
  %v114 = vld [vmem:[%s1 + $0x16c] sm:$0xf]
  %v115 = vld [vmem:[%s1 + $0x170] sm:$0xf]
  %v116 = vld [vmem:[%s1 + $0x174] sm:$0xf]
  %v117 = vld [vmem:[%s1 + $0x178] sm:$0xf]
  %v118 = vld [vmem:[%s1 + $0x17c] sm:$0xf]
  %v119 = vld [vmem:[%s1 + $0x180] sm:$0xf]
  %v120 = vld [vmem:[%s1 + $0x184] sm:$0xf]
  %v121 = vld [vmem:[%s1 + $0x188] sm:$0xf]
  %v122 = vld [vmem:[%s1 + $0x18c] sm:$0xf]
  %v123 = vld [vmem:[%s1 + $0x190] sm:$0xf]
  %v124 = vld [vmem:[%s1 + $0x194] sm:$0xf]
  %v125 = vld [vmem:[%s1 + $0x198] sm:$0xf]
  %v126 = vld [vmem:[%s1 + $0x19c] sm:$0xf]
  %v127 = vld [vmem:[%s1 + $0x1a0] sm:$0xf]
  %v128 = vld [vmem:[%s1 + $0x1a4] sm:$0xf]
  %v129 = vld [vmem:[%s1 + $0x1a8] sm:$0xf]
  %v130 = vld [vmem:[%s1 + $0x1ac] sm:$0xf]
  %v131 = vld [vmem:[%s1 + $0x1b0] sm:$0xf]
  %v132 = vld [vmem:[%s1 + $0x1b4] sm:$0xf]
  %v133 = vld [vmem:[%s1 + $0x1b8] sm:$0xf]
  %v134 = vld [vmem:[%s1 + $0x1bc] sm:$0xf]
  %v135 = vld [vmem:[%s1 + $0x1c0] sm:$0xf]
  %v136 = vld [vmem:[%s1 + $0x1c4] sm:$0xf]
  %v137 = vld [vmem:[%s1 + $0x1c8] sm:$0xf]
  %v138 = vld [vmem:[%s1 + $0x1cc] sm:$0xf]
  %v139 = vld [vmem:[%s1 + $0x1d0] sm:$0xf]
  %v140 = vld [vmem:[%s1 + $0x1d4] sm:$0xf]
  %v141 = vld [vmem:[%s1 + $0x1d8] sm:$0xf]
  %v142 = vld [vmem:[%s1 + $0x1dc] sm:$0xf]
  %v143 = vld [vmem:[%s1 + $0x1e0] sm:$0xf]
  %v144 = vld [vmem:[%s1 + $0x1e4] sm:$0xf]
  %v145 = vld [vmem:[%s1 + $0x1e8] sm:$0xf]
  %v146 = vld [vmem:[%s1 + $0x1ec] sm:$0xf]
  %v147 = vld [vmem:[%s1 + $0x1f0] sm:$0xf]
  %v148 = vld [vmem:[%s1 + $0x1f4] sm:$0xf]
  %v149 = vld [vmem:[%s1 + $0x1f8] sm:$0xf]
  %v150 = vld [vmem:[%s1 + $0x1fc] sm:$0xf]
  %v151 = vld [vmem:[%s1 + $0x200] sm:$0xf]
  %v152 = vld [vmem:[%s1 + $0x204] sm:$0xf]
  %v153 = vld [vmem:[%s1 + $0x208] sm:$0xf]
  %v154 = vld [vmem:[%s1 + $0x20c] sm:$0xf]
  %v155 = vld [vmem:[%s1 + $0x210] sm:$0xf]
  %v156 = vld [vmem:[%s1 + $0x214] sm:$0xf]
  %v157 = vld [vmem:[%s1 + $0x218] sm:$0xf]
  %v158 = vld [vmem:[%s1 + $0x21c] sm:$0xf]
  %v159 = vld [vmem:[%s1 + $0x220] sm:$0xf]
  %v160 = vld [vmem:[%s1 + $0x224] sm:$0xf]
  %v161 = vld [vmem:[%s1 + $0x228] sm:$0xf]
  %v162 = vld [vmem:[%s1 + $0x22c] sm:$0xf]
  %v163 = vld [vmem:[%s1 + $0x230] sm:$0xf]
  %v164 = vld [vmem:[%s1 + $0x234] sm:$0xf]
  %v165 = vld [vmem:[%s1 + $0x238] sm:$0xf]
  %v166 = vld [vmem:[%s1 + $0x23c] sm:$0xf]
  %v172 = vunpack.c.l.b16 %v18
  %v173 = vunpack.c.h.b16 %v18
  %v174 = vunpack.c.l.b16 %v19
  %v175 = vunpack.c.h.b16 %v19
  %v176 = vunpack.c.l.b16 %v20
  %v177 = vunpack.c.h.b16 %v20
  %v178 = vunpack.c.l.b16 %v21
  %v179 = vunpack.c.h.b16 %v21
  %v180 = vunpack.c.l.b16 %v22
  %v181 = vpack.c.b16 %v172, %v172
  %v182 = vpack.c.b16 %v173, %v173
  %v183 = vpack.c.b16 %v174, %v174
  %v184 = vpack.c.b16 %v175, %v175
  %v185 = vpack.c.b16 %v176, %v176
  %v186 = vpack.c.b16 %v177, %v177
  %v187 = vpack.c.b16 %v178, %v178
  %v188 = vpack.c.b16 %v179, %v179
  %v189 = vpack.c.b16 %v180, %v180
  %v343 = vunpack.c.l.b16 %v23
  %v344 = vunpack.c.l.b16 %v24
  %v345 = vunpack.c.l.b16 %v25
  %v346 = vunpack.c.l.b16 %v26
  %v347 = vunpack.c.l.b16 %v27
  %v348 = vunpack.c.l.b16 %v28
  %v349 = vunpack.c.l.b16 %v29
  %v350 = vunpack.c.l.b16 %v30
  %v351 = vunpack.c.l.b16 %v31
  %v352 = vunpack.c.l.b16 %v32
  %v353 = vunpack.c.l.b16 %v33
  %v354 = vunpack.c.l.b16 %v34
  %v355 = vunpack.c.l.b16 %v35
  %v356 = vunpack.c.l.b16 %v36
  %v357 = vunpack.c.l.b16 %v37
  %v358 = vunpack.c.l.b16 %v38
  %v359 = vunpack.c.l.b16 %v39
  %v360 = vunpack.c.l.b16 %v40
  %v361 = vunpack.c.l.b16 %v41
  %v362 = vunpack.c.l.b16 %v42
  %v363 = vunpack.c.l.b16 %v43
  %v364 = vunpack.c.l.b16 %v44
  %v365 = vunpack.c.l.b16 %v45
  %v366 = vunpack.c.l.b16 %v46
  %v367 = vunpack.c.l.b16 %v47
  %v368 = vunpack.c.l.b16 %v48
  %v369 = vunpack.c.l.b16 %v49
  %v370 = vunpack.c.l.b16 %v50
  %v371 = vunpack.c.l.b16 %v51
  %v372 = vunpack.c.l.b16 %v52
  %v373 = vunpack.c.l.b16 %v53
  %v374 = vunpack.c.l.b16 %v54
  %v375 = vunpack.c.l.b16 %v55
  %v376 = vunpack.c.l.b16 %v56
  %v377 = vunpack.c.l.b16 %v57
  %v378 = vunpack.c.l.b16 %v58
  %v379 = vunpack.c.l.b16 %v59
  %v380 = vunpack.c.l.b16 %v60
  %v381 = vunpack.c.l.b16 %v61
  %v382 = vunpack.c.l.b16 %v62
  %v383 = vunpack.c.l.b16 %v63
  %v384 = vunpack.c.l.b16 %v64
  %v385 = vunpack.c.l.b16 %v65
  %v386 = vunpack.c.l.b16 %v66
  %v387 = vunpack.c.l.b16 %v67
  %v388 = vunpack.c.l.b16 %v68
  %v389 = vunpack.c.l.b16 %v69
  %v390 = vunpack.c.l.b16 %v70
  %v391 = vunpack.c.l.b16 %v71
  %v392 = vunpack.c.l.b16 %v72
  %v393 = vunpack.c.l.b16 %v73
  %v394 = vunpack.c.l.b16 %v74
  %v395 = vunpack.c.l.b16 %v75
  %v396 = vunpack.c.l.b16 %v76
  %v397 = vunpack.c.l.b16 %v77
  %v398 = vunpack.c.l.b16 %v78
  %v399 = vunpack.c.l.b16 %v79
  %v400 = vunpack.c.l.b16 %v80
  %v401 = vunpack.c.l.b16 %v81
  %v402 = vunpack.c.l.b16 %v82
  %v403 = vunpack.c.l.b16 %v83
  %v404 = vunpack.c.l.b16 %v84
  %v405 = vunpack.c.l.b16 %v85
  %v406 = vunpack.c.l.b16 %v86
  %v407 = vunpack.c.l.b16 %v87
  %v408 = vunpack.c.l.b16 %v88
  %v409 = vunpack.c.l.b16 %v89
  %v410 = vunpack.c.l.b16 %v90
  %v411 = vunpack.c.l.b16 %v91
  %v412 = vunpack.c.l.b16 %v92
  %v413 = vunpack.c.l.b16 %v93
  %v414 = vunpack.c.l.b16 %v94
  %v415 = vunpack.c.l.b16 %v95
  %v416 = vunpack.c.l.b16 %v96
  %v417 = vunpack.c.l.b16 %v97
  %v418 = vunpack.c.l.b16 %v98
  %v419 = vunpack.c.l.b16 %v99
  %v420 = vunpack.c.l.b16 %v100
  %v421 = vunpack.c.l.b16 %v101
  %v422 = vunpack.c.l.b16 %v102
  %v423 = vunpack.c.l.b16 %v103
  %v424 = vunpack.c.l.b16 %v104
  %v425 = vunpack.c.l.b16 %v105
  %v426 = vunpack.c.l.b16 %v106
  %v427 = vunpack.c.l.b16 %v107
  %v428 = vunpack.c.l.b16 %v108
  %v429 = vunpack.c.l.b16 %v109
  %v430 = vunpack.c.l.b16 %v110
  %v431 = vunpack.c.l.b16 %v111
  %v432 = vunpack.c.l.b16 %v112
  %v433 = vunpack.c.l.b16 %v113
  %v434 = vunpack.c.l.b16 %v114
  %v435 = vunpack.c.l.b16 %v115
  %v436 = vunpack.c.l.b16 %v116
  %v437 = vunpack.c.l.b16 %v117
  %v438 = vunpack.c.l.b16 %v118
  %v439 = vunpack.c.l.b16 %v119
  %v440 = vunpack.c.l.b16 %v120
  %v441 = vunpack.c.l.b16 %v121
  %v442 = vunpack.c.l.b16 %v122
  %v443 = vunpack.c.l.b16 %v123
  %v444 = vunpack.c.l.b16 %v124
  %v445 = vunpack.c.l.b16 %v125
  %v446 = vunpack.c.l.b16 %v126
  %v447 = vunpack.c.l.b16 %v127
  %v448 = vunpack.c.l.b16 %v128
  %v449 = vunpack.c.l.b16 %v129
  %v450 = vunpack.c.l.b16 %v130
  %v451 = vunpack.c.l.b16 %v131
  %v452 = vunpack.c.l.b16 %v132
  %v453 = vunpack.c.l.b16 %v133
  %v454 = vunpack.c.l.b16 %v134
  %v455 = vunpack.c.l.b16 %v135
  %v456 = vunpack.c.l.b16 %v136
  %v457 = vunpack.c.l.b16 %v137
  %v458 = vunpack.c.l.b16 %v138
  %v459 = vunpack.c.l.b16 %v139
  %v460 = vunpack.c.l.b16 %v140
  %v461 = vunpack.c.l.b16 %v141
  %v462 = vunpack.c.l.b16 %v142
  %v463 = vunpack.c.l.b16 %v143
  %v464 = vunpack.c.l.b16 %v144
  %v465 = vunpack.c.l.b16 %v145
  %v466 = vunpack.c.l.b16 %v146
  %v467 = vunpack.c.l.b16 %v147
  %v468 = vunpack.c.l.b16 %v148
  %v469 = vunpack.c.l.b16 %v149
  %v470 = vunpack.c.l.b16 %v150
  %v471 = vunpack.c.l.b16 %v151
  %v472 = vunpack.c.l.b16 %v152
  %v473 = vunpack.c.l.b16 %v153
  %v474 = vunpack.c.l.b16 %v154
  %v475 = vunpack.c.l.b16 %v155
  %v476 = vunpack.c.l.b16 %v156
  %v477 = vunpack.c.l.b16 %v157
  %v478 = vunpack.c.l.b16 %v158
  %v479 = vunpack.c.l.b16 %v159
  %v480 = vunpack.c.l.b16 %v160
  %v481 = vunpack.c.l.b16 %v161
  %v482 = vunpack.c.l.b16 %v162
  %v483 = vunpack.c.l.b16 %v163
  %v484 = vunpack.c.l.b16 %v164
  %v485 = vunpack.c.l.b16 %v165
  %v486 = vunpack.c.l.b16 %v166
  %v487 = vpack.c.b16 %v344, %v343
  %v488 = vpack.c.b16 %v346, %v345
  %v489 = vpack.c.b16 %v348, %v347
  %v490 = vpack.c.b16 %v350, %v349
  %v491 = vpack.c.b16 %v352, %v351
  %v492 = vpack.c.b16 %v354, %v353
  %v493 = vpack.c.b16 %v356, %v355
  %v494 = vpack.c.b16 %v358, %v357
  %v495 = vpack.c.b16 %v360, %v359
  %v496 = vpack.c.b16 %v362, %v361
  %v497 = vpack.c.b16 %v364, %v363
  %v498 = vpack.c.b16 %v366, %v365
  %v499 = vpack.c.b16 %v368, %v367
  %v500 = vpack.c.b16 %v370, %v369
  %v501 = vpack.c.b16 %v372, %v371
  %v502 = vpack.c.b16 %v374, %v373
  %v503 = vpack.c.b16 %v376, %v375
  %v504 = vpack.c.b16 %v378, %v377
  %v505 = vpack.c.b16 %v380, %v379
  %v506 = vpack.c.b16 %v382, %v381
  %v507 = vpack.c.b16 %v384, %v383
  %v508 = vpack.c.b16 %v386, %v385
  %v509 = vpack.c.b16 %v388, %v387
  %v510 = vpack.c.b16 %v390, %v389
  %v511 = vpack.c.b16 %v392, %v391
  %v512 = vpack.c.b16 %v394, %v393
  %v513 = vpack.c.b16 %v396, %v395
  %v514 = vpack.c.b16 %v398, %v397
  %v515 = vpack.c.b16 %v400, %v399
  %v516 = vpack.c.b16 %v402, %v401
  %v517 = vpack.c.b16 %v404, %v403
  %v518 = vpack.c.b16 %v406, %v405
  %v519 = vpack.c.b16 %v408, %v407
  %v520 = vpack.c.b16 %v410, %v409
  %v521 = vpack.c.b16 %v412, %v411
  %v522 = vpack.c.b16 %v414, %v413
  %v523 = vpack.c.b16 %v416, %v415
  %v524 = vpack.c.b16 %v418, %v417
  %v525 = vpack.c.b16 %v420, %v419
  %v526 = vpack.c.b16 %v422, %v421
  %v527 = vpack.c.b16 %v424, %v423
  %v528 = vpack.c.b16 %v426, %v425
  %v529 = vpack.c.b16 %v428, %v427
  %v530 = vpack.c.b16 %v430, %v429
  %v531 = vpack.c.b16 %v432, %v431
  %v532 = vpack.c.b16 %v434, %v433
  %v533 = vpack.c.b16 %v436, %v435
  %v534 = vpack.c.b16 %v438, %v437
  %v535 = vpack.c.b16 %v440, %v439
  %v536 = vpack.c.b16 %v442, %v441
  %v537 = vpack.c.b16 %v444, %v443
  %v538 = vpack.c.b16 %v446, %v445
  %v539 = vpack.c.b16 %v448, %v447
  %v540 = vpack.c.b16 %v450, %v449
  %v541 = vpack.c.b16 %v452, %v451
  %v542 = vpack.c.b16 %v454, %v453
  %v543 = vpack.c.b16 %v456, %v455
  %v544 = vpack.c.b16 %v458, %v457
  %v545 = vpack.c.b16 %v460, %v459
  %v546 = vpack.c.b16 %v462, %v461
  %v547 = vpack.c.b16 %v464, %v463
  %v548 = vpack.c.b16 %v466, %v465
  %v549 = vpack.c.b16 %v468, %v467
  %v550 = vpack.c.b16 %v470, %v469
  %v551 = vpack.c.b16 %v472, %v471
  %v552 = vpack.c.b16 %v474, %v473
  %v553 = vpack.c.b16 %v476, %v475
  %v554 = vpack.c.b16 %v478, %v477
  %v555 = vpack.c.b16 %v480, %v479
  %v556 = vpack.c.b16 %v482, %v481
  %v557 = vpack.c.b16 %v484, %v483
  %v558 = vpack.c.b16 %v486, %v485
  %631 = vmatprep.subr.bf16.mxu0 0
  %632 = vmatpush1.bf16.msra.mxu0 %v494
  %633 = vmatprep.subr.bf16.mxu0 0
  %634 = vmatpush1.bf16.msra.mxu0 %v493
  %635 = vmatprep.subr.bf16.mxu0 0
  %636 = vmatpush1.bf16.msra.mxu0 %v492
  %637 = vmatprep.subr.bf16.mxu0 0
  %638 = vmatpush1.bf16.msra.mxu0 %v491
  %639 = vmatprep.subr.bf16.mxu0 0
  %640 = vmatpush1.bf16.msra.mxu0 %v490
  %641 = vmatprep.subr.bf16.mxu0 0
  %642 = vmatpush1.bf16.msra.mxu0 %v489
  %643 = vmatprep.subr.bf16.mxu0 0
  %644 = vmatpush1.bf16.msra.mxu0 %v488
  %645 = vmatprep.subr.bf16.mxu0 0
  %646 = vmatpush1.bf16.msra.mxu0 %v487
  %647 = vmatprep.subr.bf16.mxu0 0
  %648 = vmatpush2.bf16.msra.mxu0 %v502
  %649 = vmatprep.subr.bf16.mxu0 0
  %650 = vmatpush2.bf16.msra.mxu0 %v501
  %651 = vmatprep.subr.bf16.mxu0 0
  %652 = vmatpush2.bf16.msra.mxu0 %v500
  %653 = vmatprep.subr.bf16.mxu0 0
  %654 = vmatpush2.bf16.msra.mxu0 %v499
  %655 = vmatprep.subr.bf16.mxu0 0
  %656 = vmatpush2.bf16.msra.mxu0 %v498
  %657 = vmatprep.subr.bf16.mxu0 0
  %658 = vmatpush2.bf16.msra.mxu0 %v497
  %659 = vmatprep.subr.bf16.mxu0 0
  %660 = vmatpush2.bf16.msra.mxu0 %v496
  %661 = vmatprep.subr.bf16.mxu0 0
  %662 = vmatpush2.bf16.msra.mxu0 %v495
  %663 = vmatprep.mubr.bf16.mxu0 %v182
  %664 = vmatmul.mubr.bf16.gmra.mxu0 %v181
  %v665 = vpop.f32.mrf.mxu0
  %v666 = vadd.f32 0.0, %v665
  %v667 = vpop.f32.mrf.mxu0
  %v668 = vpop.f32.mrf.mxu0
  %v669 = vpop.f32.mrf.mxu0
  %670 = vdwg.mxu0
  %671 = vmatprep.subr.bf16.mxu0 0
  %672 = vmatpush1.bf16.msra.mxu0 %v510
  %673 = vmatprep.subr.bf16.mxu0 0
  %674 = vmatpush1.bf16.msra.mxu0 %v509
  %675 = vmatprep.subr.bf16.mxu0 0
  %676 = vmatpush1.bf16.msra.mxu0 %v508
  %677 = vmatprep.subr.bf16.mxu0 0
  %678 = vmatpush1.bf16.msra.mxu0 %v507
  %679 = vmatprep.subr.bf16.mxu0 0
  %680 = vmatpush1.bf16.msra.mxu0 %v506
  %681 = vmatprep.subr.bf16.mxu0 0
  %682 = vmatpush1.bf16.msra.mxu0 %v505
  %683 = vmatprep.subr.bf16.mxu0 0
  %684 = vmatpush1.bf16.msra.mxu0 %v504
  %685 = vmatprep.subr.bf16.mxu0 0
  %686 = vmatpush1.bf16.msra.mxu0 %v503
  %687 = vmatprep.subr.bf16.mxu0 0
  %688 = vmatpush2.bf16.msra.mxu0 %v518
  %689 = vmatprep.subr.bf16.mxu0 0
  %690 = vmatpush2.bf16.msra.mxu0 %v517
  %691 = vmatprep.subr.bf16.mxu0 0
  %692 = vmatpush2.bf16.msra.mxu0 %v516
  %693 = vmatprep.subr.bf16.mxu0 0
  %694 = vmatpush2.bf16.msra.mxu0 %v515
  %695 = vmatprep.subr.bf16.mxu0 0
  %696 = vmatpush2.bf16.msra.mxu0 %v514
  %697 = vmatprep.subr.bf16.mxu0 0
  %698 = vmatpush2.bf16.msra.mxu0 %v513
  %699 = vmatprep.subr.bf16.mxu0 0
  %700 = vmatpush2.bf16.msra.mxu0 %v512
  %701 = vmatprep.subr.bf16.mxu0 0
  %702 = vmatpush2.bf16.msra.mxu0 %v511
  %703 = vmatprep.mubr.bf16.mxu0 %v184
  %704 = vmatmul.mubr.bf16.gmra.mxu0 %v183
  %v705 = vpop.f32.mrf.mxu0
  %v706 = vadd.f32 %v666, %v705
  %v707 = vpop.f32.mrf.mxu0
  %v708 = vpop.f32.mrf.mxu0
  %v709 = vpop.f32.mrf.mxu0
  %710 = vdwg.mxu0
  %711 = vmatprep.subr.bf16.mxu0 0
  %712 = vmatpush1.bf16.msra.mxu0 %v526
  %713 = vmatprep.subr.bf16.mxu0 0
  %714 = vmatpush1.bf16.msra.mxu0 %v525
  %715 = vmatprep.subr.bf16.mxu0 0
  %716 = vmatpush1.bf16.msra.mxu0 %v524
  %717 = vmatprep.subr.bf16.mxu0 0
  %718 = vmatpush1.bf16.msra.mxu0 %v523
  %719 = vmatprep.subr.bf16.mxu0 0
  %720 = vmatpush1.bf16.msra.mxu0 %v522
  %721 = vmatprep.subr.bf16.mxu0 0
  %722 = vmatpush1.bf16.msra.mxu0 %v521
  %723 = vmatprep.subr.bf16.mxu0 0
  %724 = vmatpush1.bf16.msra.mxu0 %v520
  %725 = vmatprep.subr.bf16.mxu0 0
  %726 = vmatpush1.bf16.msra.mxu0 %v519
  %727 = vmatprep.subr.bf16.mxu0 0
  %728 = vmatpush2.bf16.msra.mxu0 %v534
  %729 = vmatprep.subr.bf16.mxu0 0
  %730 = vmatpush2.bf16.msra.mxu0 %v533
  %731 = vmatprep.subr.bf16.mxu0 0
  %732 = vmatpush2.bf16.msra.mxu0 %v532
  %733 = vmatprep.subr.bf16.mxu0 0
  %734 = vmatpush2.bf16.msra.mxu0 %v531
  %735 = vmatprep.subr.bf16.mxu0 0
  %736 = vmatpush2.bf16.msra.mxu0 %v530
  %737 = vmatprep.subr.bf16.mxu0 0
  %738 = vmatpush2.bf16.msra.mxu0 %v529
  %739 = vmatprep.subr.bf16.mxu0 0
  %740 = vmatpush2.bf16.msra.mxu0 %v528
  %741 = vmatprep.subr.bf16.mxu0 0
  %742 = vmatpush2.bf16.msra.mxu0 %v527
  %743 = vmatprep.mubr.bf16.mxu0 %v186
  %744 = vmatmul.mubr.bf16.gmra.mxu0 %v185
  %v745 = vpop.f32.mrf.mxu0
  %v746 = vadd.f32 %v706, %v745
  %v747 = vpop.f32.mrf.mxu0
  %v748 = vpop.f32.mrf.mxu0
  %v749 = vpop.f32.mrf.mxu0
  %750 = vdwg.mxu0
  %751 = vmatprep.subr.bf16.mxu0 0
  %752 = vmatpush1.bf16.msra.mxu0 %v542
  %753 = vmatprep.subr.bf16.mxu0 0
  %754 = vmatpush1.bf16.msra.mxu0 %v541
  %755 = vmatprep.subr.bf16.mxu0 0
  %756 = vmatpush1.bf16.msra.mxu0 %v540
  %757 = vmatprep.subr.bf16.mxu0 0
  %758 = vmatpush1.bf16.msra.mxu0 %v539
  %759 = vmatprep.subr.bf16.mxu0 0
  %760 = vmatpush1.bf16.msra.mxu0 %v538
  %761 = vmatprep.subr.bf16.mxu0 0
  %762 = vmatpush1.bf16.msra.mxu0 %v537
  %763 = vmatprep.subr.bf16.mxu0 0
  %764 = vmatpush1.bf16.msra.mxu0 %v536
  %765 = vmatprep.subr.bf16.mxu0 0
  %766 = vmatpush1.bf16.msra.mxu0 %v535
  %767 = vmatprep.subr.bf16.mxu0 0
  %768 = vmatpush2.bf16.msra.mxu0 %v550
  %769 = vmatprep.subr.bf16.mxu0 0
  %770 = vmatpush2.bf16.msra.mxu0 %v549
  %771 = vmatprep.subr.bf16.mxu0 0
  %772 = vmatpush2.bf16.msra.mxu0 %v548
  %773 = vmatprep.subr.bf16.mxu0 0
  %774 = vmatpush2.bf16.msra.mxu0 %v547
  %775 = vmatprep.subr.bf16.mxu0 0
  %776 = vmatpush2.bf16.msra.mxu0 %v546
  %777 = vmatprep.subr.bf16.mxu0 0
  %778 = vmatpush2.bf16.msra.mxu0 %v545
  %779 = vmatprep.subr.bf16.mxu0 0
  %780 = vmatpush2.bf16.msra.mxu0 %v544
  %781 = vmatprep.subr.bf16.mxu0 0
  %782 = vmatpush2.bf16.msra.mxu0 %v543
  %783 = vmatprep.mubr.bf16.mxu0 %v188
  %784 = vmatmul.mubr.bf16.gmra.mxu0 %v187
  %v785 = vpop.f32.mrf.mxu0
  %v786 = vadd.f32 %v746, %v785
  %v787 = vpop.f32.mrf.mxu0
  %v788 = vpop.f32.mrf.mxu0
  %v789 = vpop.f32.mrf.mxu0
  %790 = vdwg.mxu0
  %791 = vmatprep.subr.bf16.mxu0 0
  %792 = vmatpush1.bf16.msra.mxu0 %v558
  %793 = vmatprep.subr.bf16.mxu0 0
  %794 = vmatpush1.bf16.msra.mxu0 %v557
  %795 = vmatprep.subr.bf16.mxu0 0
  %796 = vmatpush1.bf16.msra.mxu0 %v556
  %797 = vmatprep.subr.bf16.mxu0 0
  %798 = vmatpush1.bf16.msra.mxu0 %v555
  %799 = vmatprep.subr.bf16.mxu0 0
  %800 = vmatpush1.bf16.msra.mxu0 %v554
  %801 = vmatprep.subr.bf16.mxu0 0
  %802 = vmatpush1.bf16.msra.mxu0 %v553
  %803 = vmatprep.subr.bf16.mxu0 0
  %804 = vmatpush1.bf16.msra.mxu0 %v552
  %805 = vmatprep.subr.bf16.mxu0 0
  %806 = vmatpush1.bf16.msra.mxu0 %v551
  %807 = vmatprep.subr.bf16.mxu0 0
  %808 = vmatpush2.bf16.msra.mxu0 0
  %809 = vmatprep.subr.bf16.mxu0 0
  %810 = vmatpush2.bf16.msra.mxu0 0
  %811 = vmatprep.subr.bf16.mxu0 0
  %812 = vmatpush2.bf16.msra.mxu0 0
  %813 = vmatprep.subr.bf16.mxu0 0
  %814 = vmatpush2.bf16.msra.mxu0 0
  %815 = vmatprep.subr.bf16.mxu0 0
  %816 = vmatpush2.bf16.msra.mxu0 0
  %817 = vmatprep.subr.bf16.mxu0 0
  %818 = vmatpush2.bf16.msra.mxu0 0
  %819 = vmatprep.subr.bf16.mxu0 0
  %820 = vmatpush2.bf16.msra.mxu0 0
  %821 = vmatprep.subr.bf16.mxu0 0
  %822 = vmatpush2.bf16.msra.mxu0 0
  %823 = vmatprep.mubr.bf16.mxu0 0
  %824 = vmatmul.mubr.bf16.gmra.mxu0 %v189
  %v825 = vpop.f32.mrf.mxu0
  %v826 = vadd.f32 %v786, %v825
  %v827 = vpop.f32.mrf.mxu0
  %v828 = vpop.f32.mrf.mxu0
  %v829 = vpop.f32.mrf.mxu0
  %830 = vdwg.mxu0
  %v831 = vld [vmem:[%s2] sm:$0x1]
  %v833 = vlaneseq
  %v834 = vshrl.u32 %v833, 7
  %v835 = vsub.s32 0, %v834
  %v836 = vrot.slane %v831, %v835
  %v838 = vmul.f32 %v826, %v836
  %v839 = vld [vmem:[%s3] sm:$0x1]
  %v841 = vlaneseq
  %v842 = vshrl.u32 %v841, 7
  %v843 = vsub.s32 0, %v842
  %v844 = vrot.slane %v839, %v843
  %v846 = vadd.f32 %v838, %v844
  %v847 = vpack.c.bf16 %v846, %v846
  %848 = vst [vmem:[%s4] sm:$0xf] %v847
  // Predicated region
  $region18: #{forward.11} parent=0 // pred_check
    _
  $region19: #{forward.11} parent=0 // pred_check_branch
    %850 = sbr.rel (0) target = $region21
  $region20: #{forward.11} parent=0 // pred_region
    _
  $region21: #{forward.11} parent=0 // pred_fallthru
    _
  // Predicated region
  $region22: #{forward.11} parent=0 // pred_check
    _
  $region23: #{forward.11} parent=0 // pred_check_branch
    %852 = sbr.rel (0) target = $region25
  $region24: #{forward.11} parent=0 // pred_region
    _
  $region25: #{forward.11} parent=0 // pred_fallthru
    _

// kernel: forward.12
$region0: #{forward.12}
  #allocation0 [shape = 'u32[]', space=smem, size = 0x4, offset = 0x4, fixed_abs, tag = 'smem constant byte address 0x4 - core index']
  #allocation1 [shape = 'u32[144,128]{1,0:T(1,128)}', space=vmem, size = 0x12000, scoped, tag = 'internal scratch']
  #allocation2 [shape = 'f32[28,384]{1,0:T(8,128)}', space=vmem, size = 0xc000, scoped, tag = 'scratch operand']
  %s0 = inlined_call_operand.vmem [shape: bf16[2,4,128], index: 0, kind: input, shape index: {}]
  %s1 = inlined_call_operand.vmem [shape: bf16[128,384], index: 1, kind: input, shape index: {}]
  %s2 = inlined_call_operand.vmem [shape: f32[1,384], index: 2, kind: input, shape index: {}]
  %s3 = inlined_call_operand.vmem [shape: f32[1,384], index: 3, kind: input, shape index: {}]
  %s4 = inlined_call_operand.vmem [shape: f32[25,1,384], index: 4, kind: input, shape index: {}]
  %s5 = inlined_call_operand.vmem [shape: f32[1,384], index: 5, kind: input, shape index: {}]
  %s6 = inlined_call_operand.vmem [shape: bf16[384,128], index: 6, kind: input, shape index: {}]
  %s7 = inlined_call_operand.vmem [shape: f32[1,128], index: 7, kind: input, shape index: {}]
  %s8 = inlined_call_operand.vmem [shape: f32[1,128], index: 8, kind: input, shape index: {}]
  %s9 = inlined_call_operand.vmem [shape: bf16[128,384], index: 9, kind: input, shape index: {}]
  %s10 = inlined_call_operand.vmem [shape: bf16[384,128], index: 10, kind: input, shape index: {}]
  %s11 = inlined_call_operand.vmem [shape: f32[1,128], index: 11, kind: input, shape index: {}]
  %s12 = inlined_call_operand.vmem [shape: f32[1,128], index: 12, kind: input, shape index: {}]
  %s13 = inlined_call_operand.vmem [shape: bf16[2,4,128], index: 13, kind: output, shape index: {}]
  %s14 = sld [smem:[#allocation0]]
  $region85: #{forward.12} parent=0
    _
  %s16 = ssub.s32 1, %s14
  %s17 = scalar_select 0, %s16, %s14
  loop: start=0, step=1, limit=4
  $region2: #{forward.12} parent=0 // loop_pre_header
    _
  $region3: #{forward.12} parent=0 // loop_header
    %s19 = sphi 0, %s23
    %p20 = scmp.ge.s32.totalorder %s19, 4
    %s29 = sphi 0, %s31
    %s32 = sphi 0, %s29
    %s33 = sphi 0, %s32
    %s49 = sphi 0, %s33
    %s53 = sphi 0, %s53
    %s55 = sphi 0, %s53
    %s56 = sphi 0, %s55
    %s70 = sphi 0, %s56
    %s74 = sphi 0, %s74
    %s76 = sphi 0, %s74
    %s77 = sphi 0, %s76
    %s91 = sphi 0, %s77
    %s95 = sphi 0, %s95
    %s97 = sphi 0, %s95
    %s98 = sphi 0, %s97
    %s112 = sphi 0, %s98
    %s116 = sphi 0, %s116
    %s118 = sphi 0, %s116
    %s119 = sphi 0, %s118
    %s133 = sphi 0, %s119
    %s137 = sphi 0, %s137
    %s139 = sphi 0, %s137
    %s140 = sphi 0, %s139
    %s154 = sphi 0, %s140
    %s158 = sphi 0, %s158
    %s160 = sphi 0, %s158
    %s161 = sphi 0, %s160
    %s175 = sphi 0, %s161
    %s179 = sphi 0, %s179
    %s181 = sphi 0, %s179
    %s182 = sphi 0, %s181
    %s196 = sphi 0, %s182
    %s200 = sphi 0, %s200
    %s202 = sphi 0, %s200
    %s203 = sphi 0, %s202
    %s217 = sphi 0, %s203
    %s221 = sphi 0, %s221
    %s223 = sphi 0, %s221
    %s224 = sphi 0, %s223
    %s238 = sphi 0, %s224
    %s242 = sphi 0, %s242
    %s244 = sphi 0, %s242
    %s245 = sphi 0, %s244
    %s259 = sphi 0, %s245
    %s263 = sphi 0, %s263
    %s265 = sphi 0, %s263
    %s266 = sphi 0, %s265
    %s280 = sphi 0, %s266
    %s284 = sphi 0, %s284
    %s286 = sphi 0, %s284
    %s287 = sphi 0, %s286
    %s301 = sphi 0, %s287
    %s307 = sphi 0, %s309
    %s310 = sphi 0, %s307
    %s311 = sphi 0, %s310
    %s327 = sphi 0, %s311
  $region4: #{forward.12} parent=0 // loop_header_branch
    %22 = sbr.rel (%p20) target = $region8
  $region5: #{forward.12} parent=0 // loop_body
    %s24 = ssub.s32 %s19, 1
    %s25 = ssub.s32 %s19, 2
    %s26 = sadd.s32 %s19, 1
    %s27 = ssub.s32 %s19, %s26
    %p28 = scmp.eq.s32.totalorder %s27, 0
    %s30 = sadd.s32 %s29, 1
    %s31 = scalar_select %p28, %s29, %s30
    %p34 = pneg %p28
    %p35 = scmp.eq.s32.totalorder %s19, 1
    %p36 = por %p34, %p35
    %p37 = scmp.ne.s32.totalorder %s29, %s32
    %p38 = scmp.eq.s32.totalorder %s19, 0
    %p39 = por %p37, %p38
    %p40 = scmp.ne.s32.totalorder %s29, %s32
    %p41 = scmp.eq.s32.totalorder %s24, 1
    %p42 = por %p40, %p41
    %p43 = scmp.ne.s32.totalorder %s32, %s33
    %p44 = scmp.eq.s32.totalorder %s24, 0
    %p45 = por %p43, %p44
    %p46 = scmp.ne.s32.totalorder %s32, %s33
    %p47 = scmp.eq.s32.totalorder %s25, 1
    %p48 = por %p46, %p47
    %p50 = scmp.ne.s32.totalorder %s33, %s49
    %p51 = scmp.eq.s32.totalorder %s25, 0
    %p52 = por %p50, %p51
    %s54 = sadd.s32 %s53, 1
    %p57 = scmp.eq.s32.totalorder %s19, 1
    %p58 = scmp.ne.s32.totalorder %s53, %s55
    %p59 = scmp.eq.s32.totalorder %s19, 0
    %p60 = por %p58, %p59
    %p61 = scmp.ne.s32.totalorder %s53, %s55
    %p62 = scmp.eq.s32.totalorder %s24, 1
    %p63 = por %p61, %p62
    %p64 = scmp.ne.s32.totalorder %s55, %s56
    %p65 = scmp.eq.s32.totalorder %s24, 0
    %p66 = por %p64, %p65
    %p67 = scmp.ne.s32.totalorder %s55, %s56
    %p68 = scmp.eq.s32.totalorder %s25, 1
    %p69 = por %p67, %p68
    %p71 = scmp.ne.s32.totalorder %s56, %s70
    %p72 = scmp.eq.s32.totalorder %s25, 0
    %p73 = por %p71, %p72
    %s75 = sadd.s32 %s74, 1
    %p78 = scmp.eq.s32.totalorder %s19, 1
    %p79 = scmp.ne.s32.totalorder %s74, %s76
    %p80 = scmp.eq.s32.totalorder %s19, 0
    %p81 = por %p79, %p80
    %p82 = scmp.ne.s32.totalorder %s74, %s76
    %p83 = scmp.eq.s32.totalorder %s24, 1
    %p84 = por %p82, %p83
    %p85 = scmp.ne.s32.totalorder %s76, %s77
    %p86 = scmp.eq.s32.totalorder %s24, 0
    %p87 = por %p85, %p86
    %p88 = scmp.ne.s32.totalorder %s76, %s77
    %p89 = scmp.eq.s32.totalorder %s25, 1
    %p90 = por %p88, %p89
    %p92 = scmp.ne.s32.totalorder %s77, %s91
    %p93 = scmp.eq.s32.totalorder %s25, 0
    %p94 = por %p92, %p93
    %s96 = sadd.s32 %s95, 1
    %p99 = scmp.eq.s32.totalorder %s19, 1
    %p100 = scmp.ne.s32.totalorder %s95, %s97
    %p101 = scmp.eq.s32.totalorder %s19, 0
    %p102 = por %p100, %p101
    %p103 = scmp.ne.s32.totalorder %s95, %s97
    %p104 = scmp.eq.s32.totalorder %s24, 1
    %p105 = por %p103, %p104
    %p106 = scmp.ne.s32.totalorder %s97, %s98
    %p107 = scmp.eq.s32.totalorder %s24, 0
    %p108 = por %p106, %p107
    %p109 = scmp.ne.s32.totalorder %s97, %s98
    %p110 = scmp.eq.s32.totalorder %s25, 1
    %p111 = por %p109, %p110
    %p113 = scmp.ne.s32.totalorder %s98, %s112
    %p114 = scmp.eq.s32.totalorder %s25, 0
    %p115 = por %p113, %p114
    %s117 = sadd.s32 %s116, 1
    %p120 = scmp.eq.s32.totalorder %s19, 1
    %p121 = scmp.ne.s32.totalorder %s116, %s118
    %p122 = scmp.eq.s32.totalorder %s19, 0
    %p123 = por %p121, %p122
    %p124 = scmp.ne.s32.totalorder %s116, %s118
    %p125 = scmp.eq.s32.totalorder %s24, 1
    %p126 = por %p124, %p125
    %p127 = scmp.ne.s32.totalorder %s118, %s119
    %p128 = scmp.eq.s32.totalorder %s24, 0
    %p129 = por %p127, %p128
    %p130 = scmp.ne.s32.totalorder %s118, %s119
    %p131 = scmp.eq.s32.totalorder %s25, 1
    %p132 = por %p130, %p131
    %p134 = scmp.ne.s32.totalorder %s119, %s133
    %p135 = scmp.eq.s32.totalorder %s25, 0
    %p136 = por %p134, %p135
    %s138 = sadd.s32 %s137, 1
    %p141 = scmp.eq.s32.totalorder %s19, 1
    %p142 = scmp.ne.s32.totalorder %s137, %s139
    %p143 = scmp.eq.s32.totalorder %s19, 0
    %p144 = por %p142, %p143
    %p145 = scmp.ne.s32.totalorder %s137, %s139
    %p146 = scmp.eq.s32.totalorder %s24, 1
    %p147 = por %p145, %p146
    %p148 = scmp.ne.s32.totalorder %s139, %s140
    %p149 = scmp.eq.s32.totalorder %s24, 0
    %p150 = por %p148, %p149
    %p151 = scmp.ne.s32.totalorder %s139, %s140
    %p152 = scmp.eq.s32.totalorder %s25, 1
    %p153 = por %p151, %p152
    %p155 = scmp.ne.s32.totalorder %s140, %s154
    %p156 = scmp.eq.s32.totalorder %s25, 0
    %p157 = por %p155, %p156
    %s159 = sadd.s32 %s158, 1
    %p162 = scmp.eq.s32.totalorder %s19, 1
    %p163 = scmp.ne.s32.totalorder %s158, %s160
    %p164 = scmp.eq.s32.totalorder %s19, 0
    %p165 = por %p163, %p164
    %p166 = scmp.ne.s32.totalorder %s158, %s160
    %p167 = scmp.eq.s32.totalorder %s24, 1
    %p168 = por %p166, %p167
    %p169 = scmp.ne.s32.totalorder %s160, %s161
    %p170 = scmp.eq.s32.totalorder %s24, 0
    %p171 = por %p169, %p170
    %p172 = scmp.ne.s32.totalorder %s160, %s161
    %p173 = scmp.eq.s32.totalorder %s25, 1
    %p174 = por %p172, %p173
    %p176 = scmp.ne.s32.totalorder %s161, %s175
    %p177 = scmp.eq.s32.totalorder %s25, 0
    %p178 = por %p176, %p177
    %s180 = sadd.s32 %s179, 1
    %p183 = scmp.eq.s32.totalorder %s19, 1
    %p184 = scmp.ne.s32.totalorder %s179, %s181
    %p185 = scmp.eq.s32.totalorder %s19, 0
    %p186 = por %p184, %p185
    %p187 = scmp.ne.s32.totalorder %s179, %s181
    %p188 = scmp.eq.s32.totalorder %s24, 1
    %p189 = por %p187, %p188
    %p190 = scmp.ne.s32.totalorder %s181, %s182
    %p191 = scmp.eq.s32.totalorder %s24, 0
    %p192 = por %p190, %p191
    %p193 = scmp.ne.s32.totalorder %s181, %s182
    %p194 = scmp.eq.s32.totalorder %s25, 1
    %p195 = por %p193, %p194
    %p197 = scmp.ne.s32.totalorder %s182, %s196
    %p198 = scmp.eq.s32.totalorder %s25, 0
    %p199 = por %p197, %p198
    %s201 = sadd.s32 %s200, 1
    %p204 = scmp.eq.s32.totalorder %s19, 1
    %p205 = scmp.ne.s32.totalorder %s200, %s202
    %p206 = scmp.eq.s32.totalorder %s19, 0
    %p207 = por %p205, %p206
    %p208 = scmp.ne.s32.totalorder %s200, %s202
    %p209 = scmp.eq.s32.totalorder %s24, 1
    %p210 = por %p208, %p209
    %p211 = scmp.ne.s32.totalorder %s202, %s203
    %p212 = scmp.eq.s32.totalorder %s24, 0
    %p213 = por %p211, %p212
    %p214 = scmp.ne.s32.totalorder %s202, %s203
    %p215 = scmp.eq.s32.totalorder %s25, 1
    %p216 = por %p214, %p215
    %p218 = scmp.ne.s32.totalorder %s203, %s217
    %p219 = scmp.eq.s32.totalorder %s25, 0
    %p220 = por %p218, %p219
    %s222 = sadd.s32 %s221, 1
    %p225 = scmp.eq.s32.totalorder %s19, 1
    %p226 = scmp.ne.s32.totalorder %s221, %s223
    %p227 = scmp.eq.s32.totalorder %s19, 0
    %p228 = por %p226, %p227
    %p229 = scmp.ne.s32.totalorder %s221, %s223
    %p230 = scmp.eq.s32.totalorder %s24, 1
    %p231 = por %p229, %p230
    %p232 = scmp.ne.s32.totalorder %s223, %s224
    %p233 = scmp.eq.s32.totalorder %s24, 0
    %p234 = por %p232, %p233
    %p235 = scmp.ne.s32.totalorder %s223, %s224
    %p236 = scmp.eq.s32.totalorder %s25, 1
    %p237 = por %p235, %p236
    %p239 = scmp.ne.s32.totalorder %s224, %s238
    %p240 = scmp.eq.s32.totalorder %s25, 0
    %p241 = por %p239, %p240
    %s243 = sadd.s32 %s242, 1
    %p246 = scmp.eq.s32.totalorder %s19, 1
    %p247 = scmp.ne.s32.totalorder %s242, %s244
    %p248 = scmp.eq.s32.totalorder %s19, 0
    %p249 = por %p247, %p248
    %p250 = scmp.ne.s32.totalorder %s242, %s244
    %p251 = scmp.eq.s32.totalorder %s24, 1
    %p252 = por %p250, %p251
    %p253 = scmp.ne.s32.totalorder %s244, %s245
    %p254 = scmp.eq.s32.totalorder %s24, 0
    %p255 = por %p253, %p254
    %p256 = scmp.ne.s32.totalorder %s244, %s245
    %p257 = scmp.eq.s32.totalorder %s25, 1
    %p258 = por %p256, %p257
    %p260 = scmp.ne.s32.totalorder %s245, %s259
    %p261 = scmp.eq.s32.totalorder %s25, 0
    %p262 = por %p260, %p261
    %s264 = sadd.s32 %s263, 1
    %p267 = scmp.eq.s32.totalorder %s19, 1
    %p268 = scmp.ne.s32.totalorder %s263, %s265
    %p269 = scmp.eq.s32.totalorder %s19, 0
    %p270 = por %p268, %p269
    %p271 = scmp.ne.s32.totalorder %s263, %s265
    %p272 = scmp.eq.s32.totalorder %s24, 1
    %p273 = por %p271, %p272
    %p274 = scmp.ne.s32.totalorder %s265, %s266
    %p275 = scmp.eq.s32.totalorder %s24, 0
    %p276 = por %p274, %p275
    %p277 = scmp.ne.s32.totalorder %s265, %s266
    %p278 = scmp.eq.s32.totalorder %s25, 1
    %p279 = por %p277, %p278
    %p281 = scmp.ne.s32.totalorder %s266, %s280
    %p282 = scmp.eq.s32.totalorder %s25, 0
    %p283 = por %p281, %p282
    %s285 = sadd.s32 %s284, 1
    %p288 = scmp.eq.s32.totalorder %s19, 1
    %p289 = scmp.ne.s32.totalorder %s284, %s286
    %p290 = scmp.eq.s32.totalorder %s19, 0
    %p291 = por %p289, %p290
    %p292 = scmp.ne.s32.totalorder %s284, %s286
    %p293 = scmp.eq.s32.totalorder %s24, 1
    %p294 = por %p292, %p293
    %p295 = scmp.ne.s32.totalorder %s286, %s287
    %p296 = scmp.eq.s32.totalorder %s24, 0
    %p297 = por %p295, %p296
    %p298 = scmp.ne.s32.totalorder %s286, %s287
    %p299 = scmp.eq.s32.totalorder %s25, 1
    %p300 = por %p298, %p299
    %p302 = scmp.ne.s32.totalorder %s287, %s301
    %p303 = scmp.eq.s32.totalorder %s25, 0
    %p304 = por %p302, %p303
    %s305 = ssub.s32 %s19, %s26
    %p306 = scmp.eq.s32.totalorder %s305, 0
    %s308 = sadd.s32 %s307, 1
    %s309 = scalar_select %p306, %s307, %s308
    %p312 = pneg %p306
    %p313 = scmp.eq.s32.totalorder %s19, 1
    %p314 = por %p312, %p313
    %p315 = scmp.ne.s32.totalorder %s307, %s310
    %p316 = scmp.eq.s32.totalorder %s19, 0
    %p317 = por %p315, %p316
    %p318 = scmp.ne.s32.totalorder %s307, %s310
    %p319 = scmp.eq.s32.totalorder %s24, 1
    %p320 = por %p318, %p319
    %p321 = scmp.ne.s32.totalorder %s310, %s311
    %p322 = scmp.eq.s32.totalorder %s24, 0
    %p323 = por %p321, %p322
    %p324 = scmp.ne.s32.totalorder %s310, %s311
    %p325 = scmp.eq.s32.totalorder %s25, 1
    %p326 = por %p324, %p325
    %p328 = scmp.ne.s32.totalorder %s311, %s327
    %p329 = scmp.eq.s32.totalorder %s25, 0
    %p330 = por %p328, %p329
    %p331 = scmp.le.s32.totalorder 1, %s19
    %p332 = scmp.lt.s32.totalorder %s19, 3
    %p333 = pnand %p331, %p332
    %p334 = pneg %p333
    // Predicated region
    $region9: #{forward.12} parent=5 // pred_check
      _
    $region10: #{forward.12} parent=5 // pred_check_branch
      %336 = sbr.rel (%p333) target = $region12
    $region11: #{forward.12} parent=5 // pred_region
      %s337 = ssub.s32 %s19, 1
      // Predicated region
      $region13: #{forward.12} parent=11 // pred_check
        %p338 = pneg %p66
      $region14: #{forward.12} parent=11 // pred_check_branch
        %340 = sbr.rel (%p338) target = $region16
      $region15: #{forward.12} parent=11 // pred_region
        _
      $region16: #{forward.12} parent=11 // pred_fallthru
        _
      // Predicated region
      $region17: #{forward.12} parent=11 // pred_check
        %p341 = pneg %p87
      $region18: #{forward.12} parent=11 // pred_check_branch
        %343 = sbr.rel (%p341) target = $region20
      $region19: #{forward.12} parent=11 // pred_region
        _
      $region20: #{forward.12} parent=11 // pred_fallthru
        _
      // Predicated region
      $region21: #{forward.12} parent=11 // pred_check
        %p344 = pneg %p108
      $region22: #{forward.12} parent=11 // pred_check_branch
        %346 = sbr.rel (%p344) target = $region24
      $region23: #{forward.12} parent=11 // pred_region
        _
      $region24: #{forward.12} parent=11 // pred_fallthru
        _
      // Predicated region
      $region25: #{forward.12} parent=11 // pred_check
        %p347 = pneg %p129
      $region26: #{forward.12} parent=11 // pred_check_branch
        %349 = sbr.rel (%p347) target = $region28
      $region27: #{forward.12} parent=11 // pred_region
        _
      $region28: #{forward.12} parent=11 // pred_fallthru
        _
      // Predicated region
      $region29: #{forward.12} parent=11 // pred_check
        %p350 = pneg %p150
      $region30: #{forward.12} parent=11 // pred_check_branch
        %352 = sbr.rel (%p350) target = $region32
      $region31: #{forward.12} parent=11 // pred_region
        _
      $region32: #{forward.12} parent=11 // pred_fallthru
        _
      // Predicated region
      $region33: #{forward.12} parent=11 // pred_check
        %p353 = pneg %p171
      $region34: #{forward.12} parent=11 // pred_check_branch
        %355 = sbr.rel (%p353) target = $region36
      $region35: #{forward.12} parent=11 // pred_region
        _
      $region36: #{forward.12} parent=11 // pred_fallthru
        _
      // Predicated region
      $region37: #{forward.12} parent=11 // pred_check
        %p356 = pneg %p192
      $region38: #{forward.12} parent=11 // pred_check_branch
        %358 = sbr.rel (%p356) target = $region40
      $region39: #{forward.12} parent=11 // pred_region
        _
      $region40: #{forward.12} parent=11 // pred_fallthru
        _
      // Predicated region
      $region41: #{forward.12} parent=11 // pred_check
        %p359 = pneg %p213
      $region42: #{forward.12} parent=11 // pred_check_branch
        %361 = sbr.rel (%p359) target = $region44
      $region43: #{forward.12} parent=11 // pred_region
        _
      $region44: #{forward.12} parent=11 // pred_fallthru
        _
      // Predicated region
      $region45: #{forward.12} parent=11 // pred_check
        %p362 = pneg %p234
      $region46: #{forward.12} parent=11 // pred_check_branch
        %364 = sbr.rel (%p362) target = $region48
      $region47: #{forward.12} parent=11 // pred_region
        _
      $region48: #{forward.12} parent=11 // pred_fallthru
        _
      // Predicated region
      $region49: #{forward.12} parent=11 // pred_check
        %p365 = pneg %p255
      $region50: #{forward.12} parent=11 // pred_check_branch
        %367 = sbr.rel (%p365) target = $region52
      $region51: #{forward.12} parent=11 // pred_region
        _
      $region52: #{forward.12} parent=11 // pred_fallthru
        _
      // Predicated region
      $region53: #{forward.12} parent=11 // pred_check
        %p368 = pneg %p276
      $region54: #{forward.12} parent=11 // pred_check_branch
        %370 = sbr.rel (%p368) target = $region56
      $region55: #{forward.12} parent=11 // pred_region
        _
      $region56: #{forward.12} parent=11 // pred_fallthru
        _
      // Predicated region
      $region57: #{forward.12} parent=11 // pred_check
        %p371 = pneg %p297
      $region58: #{forward.12} parent=11 // pred_check_branch
        %373 = sbr.rel (%p371) target = $region60
      $region59: #{forward.12} parent=11 // pred_region
        _
      $region60: #{forward.12} parent=11 // pred_fallthru
        _
    $region12: #{forward.12} parent=5 // pred_fallthru
      _
    %p374 = scmp.lt.s32.totalorder %s19, 2
    // Predicated region
    $region61: #{forward.12} parent=5 // pred_check
      %p375 = pneg %p374
    $region62: #{forward.12} parent=5 // pred_check_branch
      %377 = sbr.rel (%p375) target = $region64
    $region63: #{forward.12} parent=5 // pred_region
      // Predicated region
      $region65: #{forward.12} parent=63 // pred_check
        %p378 = pneg %p39
      $region66: #{forward.12} parent=63 // pred_check_branch
        %380 = sbr.rel (%p378) target = $region68
      $region67: #{forward.12} parent=63 // pred_region
        %p381 = scmp.lt.s32.totalorder %s19, 1
        %s382 = scalar_select %p381, %s19, 1
        %s383 = smul.addr %s382, 2
        %s384 = scalar_lea.vmem %s0, %s383
      $region68: #{forward.12} parent=63 // pred_fallthru
        _
    $region64: #{forward.12} parent=5 // pred_fallthru
      _
    %p385 = scmp.le.s32.totalorder 1, %s19
    %p386 = scmp.lt.s32.totalorder %s19, 3
    %p387 = pnand %p385, %p386
    %p388 = pneg %p387
    // Predicated region
    $region69: #{forward.12} parent=5 // pred_check
      _
    $region70: #{forward.12} parent=5 // pred_check_branch
      %390 = sbr.rel (%p387) target = $region72
    $region71: #{forward.12} parent=5 // pred_region
      %s391 = ssub.s32 %s19, 1
      %p392 = scmp.lt.s32.totalorder %s24, 1
      %s393 = scalar_select %p392, %s24, 1
      %s394 = smul.addr %s393, 2
      %s395 = scalar_lea.vmem %s0, %s394
      %p396 = pneg %p45
      %p397 = pneg %p42
      %p398 = pneg %p66
      %p399 = pneg %p63
      %p400 = pneg %p87
      %p401 = pneg %p84
      %p402 = pneg %p108
      %p403 = pneg %p105
      %p404 = pneg %p129
      %p405 = pneg %p126
      %p406 = pneg %p150
      %p407 = pneg %p147
      %p408 = pneg %p171
      %p409 = pneg %p168
      %p410 = pneg %p192
      %p411 = pneg %p189
      %p412 = pneg %p213
      %p413 = pneg %p210
      %p414 = pneg %p234
      %p415 = pneg %p231
      %p416 = pneg %p255
      %p417 = pneg %p252
      %p418 = pneg %p276
      %p419 = pneg %p273
      %p420 = pneg %p297
      %p421 = pneg %p294
      %p422 = pneg %p323
      %p423 = pneg %p320
      %p424 = scmp.lt.s32.totalorder %s24, 1
      %s425 = scalar_select %p424, %s24, 1
      %s426 = smul.addr %s425, 2
      %s427 = scalar_lea.vmem %s13, %s426
      %p428 = scmp.lt.s32.totalorder %s24, 1
      %s429 = scalar_select %p428, %s24, 1
      %s430 = smul.addr %s429, 2
      %s431 = scalar_lea.vmem %s0, %s430
      %p432 = scmp.lt.s32.totalorder %s24, 1
      %s433 = scalar_select %p432, %s24, 1
      %s434 = smul.addr %s433, 2
      %s435 = scalar_lea.vmem %s13, %s434
      %v437 = vld [vmem:[%s431] sm:$0x3]
      %v438 = vld [vmem:[%s1] sm:$0xff]
      %v439 = vld [vmem:[%s1 + $0x8] sm:$0xf]
      %v440 = vld [vmem:[%s1 + $0xc] sm:$0xff]
      %v441 = vld [vmem:[%s1 + $0x14] sm:$0xf]
      %v442 = vld [vmem:[%s1 + $0x18] sm:$0xff]
      %v443 = vld [vmem:[%s1 + $0x20] sm:$0xf]
      %v444 = vld [vmem:[%s1 + $0x24] sm:$0xff]
      %v445 = vld [vmem:[%s1 + $0x2c] sm:$0xf]
      %v446 = vld [vmem:[%s1 + $0x30] sm:$0xff]
      %v447 = vld [vmem:[%s1 + $0x38] sm:$0xf]
      %v448 = vld [vmem:[%s1 + $0x3c] sm:$0xff]
      %v449 = vld [vmem:[%s1 + $0x44] sm:$0xf]
      %v450 = vld [vmem:[%s1 + $0x48] sm:$0xff]
      %v451 = vld [vmem:[%s1 + $0x50] sm:$0xf]
      %v452 = vld [vmem:[%s1 + $0x54] sm:$0xff]
      %v453 = vld [vmem:[%s1 + $0x5c] sm:$0xf]
      %v454 = vld [vmem:[%s1 + $0x60] sm:$0xff]
      %v455 = vld [vmem:[%s1 + $0x68] sm:$0xf]
      %v456 = vld [vmem:[%s1 + $0x6c] sm:$0xff]
      %v457 = vld [vmem:[%s1 + $0x74] sm:$0xf]
      %v458 = vld [vmem:[%s1 + $0x78] sm:$0xff]
      %v459 = vld [vmem:[%s1 + $0x80] sm:$0xf]
      %v460 = vld [vmem:[%s1 + $0x84] sm:$0xff]
      %v461 = vld [vmem:[%s1 + $0x8c] sm:$0xf]
      %v462 = vld [vmem:[%s1 + $0x90] sm:$0xff]
      %v463 = vld [vmem:[%s1 + $0x98] sm:$0xf]
      %v464 = vld [vmem:[%s1 + $0x9c] sm:$0xff]
      %v465 = vld [vmem:[%s1 + $0xa4] sm:$0xf]
      %v466 = vld [vmem:[%s1 + $0xa8] sm:$0xff]
      %v467 = vld [vmem:[%s1 + $0xb0] sm:$0xf]
      %v468 = vld [vmem:[%s1 + $0xb4] sm:$0xff]
      %v469 = vld [vmem:[%s1 + $0xbc] sm:$0xf]
      %v502 = vunpack.c.l.b16 %v438
      %v503 = vunpack.c.h.b16 %v438
      %v504 = vunpack.c.l.b16 %v439
      %v505 = vunpack.c.l.b16 %v440
      %v506 = vunpack.c.h.b16 %v440
      %v507 = vunpack.c.l.b16 %v441
      %v508 = vunpack.c.l.b16 %v442
      %v509 = vunpack.c.h.b16 %v442
      %v510 = vunpack.c.l.b16 %v443
      %v511 = vunpack.c.l.b16 %v444
      %v512 = vunpack.c.h.b16 %v444
      %v513 = vunpack.c.l.b16 %v445
      %v514 = vunpack.c.l.b16 %v446
      %v515 = vunpack.c.h.b16 %v446
      %v516 = vunpack.c.l.b16 %v447
      %v517 = vunpack.c.l.b16 %v448
      %v518 = vunpack.c.h.b16 %v448
      %v519 = vunpack.c.l.b16 %v449
      %v520 = vunpack.c.l.b16 %v450
      %v521 = vunpack.c.h.b16 %v450
      %v522 = vunpack.c.l.b16 %v451
      %v523 = vunpack.c.l.b16 %v452
      %v524 = vunpack.c.h.b16 %v452
      %v525 = vunpack.c.l.b16 %v453
      %v526 = vunpack.c.l.b16 %v454
      %v527 = vunpack.c.h.b16 %v454
      %v528 = vunpack.c.l.b16 %v455
      %v529 = vunpack.c.l.b16 %v456
      %v530 = vunpack.c.h.b16 %v456
      %v531 = vunpack.c.l.b16 %v457
      %v532 = vunpack.c.l.b16 %v458
      %v533 = vunpack.c.h.b16 %v458
      %v534 = vunpack.c.l.b16 %v459
      %v535 = vunpack.c.l.b16 %v460
      %v536 = vunpack.c.h.b16 %v460
      %v537 = vunpack.c.l.b16 %v461
      %v538 = vunpack.c.l.b16 %v462
      %v539 = vunpack.c.h.b16 %v462
      %v540 = vunpack.c.l.b16 %v463
      %v541 = vunpack.c.l.b16 %v464
      %v542 = vunpack.c.h.b16 %v464
      %v543 = vunpack.c.l.b16 %v465
      %v544 = vunpack.c.l.b16 %v466
      %v545 = vunpack.c.h.b16 %v466
      %v546 = vunpack.c.l.b16 %v467
      %v547 = vunpack.c.l.b16 %v468
      %v548 = vunpack.c.h.b16 %v468
      %v549 = vunpack.c.l.b16 %v469
      %v550 = vpack.c.b16 %v505, %v502
      %v551 = vpack.c.b16 %v506, %v503
      %v552 = vpack.c.b16 %v507, %v504
      %v553 = vpack.c.b16 %v511, %v508
      %v554 = vpack.c.b16 %v512, %v509
      %v555 = vpack.c.b16 %v513, %v510
      %v556 = vpack.c.b16 %v517, %v514
      %v557 = vpack.c.b16 %v518, %v515
      %v558 = vpack.c.b16 %v519, %v516
      %v559 = vpack.c.b16 %v523, %v520
      %v560 = vpack.c.b16 %v524, %v521
      %v561 = vpack.c.b16 %v525, %v522
      %v562 = vpack.c.b16 %v529, %v526
      %v563 = vpack.c.b16 %v530, %v527
      %v564 = vpack.c.b16 %v531, %v528
      %v565 = vpack.c.b16 %v535, %v532
      %v566 = vpack.c.b16 %v536, %v533
      %v567 = vpack.c.b16 %v537, %v534
      %v568 = vpack.c.b16 %v541, %v538
      %v569 = vpack.c.b16 %v542, %v539
      %v570 = vpack.c.b16 %v543, %v540
      %v571 = vpack.c.b16 %v547, %v544
      %v572 = vpack.c.b16 %v548, %v545
      %v573 = vpack.c.b16 %v549, %v546
      %598 = vmatprep.subr.bf16.mxu0 %v572
      %599 = vmatpush1.bf16.msra.mxu0 %v571
      %600 = vmatprep.subr.bf16.mxu0 %v569
      %601 = vmatpush1.bf16.msra.mxu0 %v568
      %602 = vmatprep.subr.bf16.mxu0 %v566
      %603 = vmatpush1.bf16.msra.mxu0 %v565
      %604 = vmatprep.subr.bf16.mxu0 %v563
      %605 = vmatpush1.bf16.msra.mxu0 %v562
      %606 = vmatprep.subr.bf16.mxu0 %v560
      %607 = vmatpush1.bf16.msra.mxu0 %v559
      %608 = vmatprep.subr.bf16.mxu0 %v557
      %609 = vmatpush1.bf16.msra.mxu0 %v556
      %610 = vmatprep.subr.bf16.mxu0 %v554
      %611 = vmatpush1.bf16.msra.mxu0 %v553
      %612 = vmatprep.subr.bf16.mxu0 %v551
      %613 = vmatpush1.bf16.msra.mxu0 %v550
      %614 = vmatprep.subr.bf16.mxu0 0
      %615 = vmatpush2.bf16.msra.mxu0 0
      %616 = vmatprep.subr.bf16.mxu0 0
      %617 = vmatpush2.bf16.msra.mxu0 0
      %618 = vmatprep.subr.bf16.mxu0 0
      %619 = vmatpush2.bf16.msra.mxu0 0
      %620 = vmatprep.subr.bf16.mxu0 0
      %621 = vmatpush2.bf16.msra.mxu0 0
      %622 = vmatprep.subr.bf16.mxu0 0
      %623 = vmatpush2.bf16.msra.mxu0 0
      %624 = vmatprep.subr.bf16.mxu0 0
      %625 = vmatpush2.bf16.msra.mxu0 0
      %626 = vmatprep.subr.bf16.mxu0 0
      %627 = vmatpush2.bf16.msra.mxu0 0
      %628 = vmatprep.subr.bf16.mxu0 0
      %629 = vmatpush2.bf16.msra.mxu0 0
      %630 = vmatprep.mubr.bf16.mxu0 0
      %631 = vmatmul.mubr.bf16.gmra.mxu0 %v437
      %v632 = vpop.f32.mrf.mxu0
      %v633 = vadd.f32 0.0, %v632
      %v634 = vpop.f32.mrf.mxu0
      %v635 = vadd.f32 0.0, %v634
      %v636 = vpop.f32.mrf.mxu0
      %v637 = vpop.f32.mrf.mxu0
      %638 = vdwg.mxu0
      %639 = vmatprep.subr.bf16.mxu0 0
      %640 = vmatpush1.bf16.msra.mxu0 %v573
      %641 = vmatprep.subr.bf16.mxu0 0
      %642 = vmatpush1.bf16.msra.mxu0 %v570
      %643 = vmatprep.subr.bf16.mxu0 0
      %644 = vmatpush1.bf16.msra.mxu0 %v567
      %645 = vmatprep.subr.bf16.mxu0 0
      %646 = vmatpush1.bf16.msra.mxu0 %v564
      %647 = vmatprep.subr.bf16.mxu0 0
      %648 = vmatpush1.bf16.msra.mxu0 %v561
      %649 = vmatprep.subr.bf16.mxu0 0
      %650 = vmatpush1.bf16.msra.mxu0 %v558
      %651 = vmatprep.subr.bf16.mxu0 0
      %652 = vmatpush1.bf16.msra.mxu0 %v555
      %653 = vmatprep.subr.bf16.mxu0 0
      %654 = vmatpush1.bf16.msra.mxu0 %v552
      %655 = vmatprep.subr.bf16.mxu0 0
      %656 = vmatpush2.bf16.msra.mxu0 0
      %657 = vmatprep.subr.bf16.mxu0 0
      %658 = vmatpush2.bf16.msra.mxu0 0
      %659 = vmatprep.subr.bf16.mxu0 0
      %660 = vmatpush2.bf16.msra.mxu0 0
      %661 = vmatprep.subr.bf16.mxu0 0
      %662 = vmatpush2.bf16.msra.mxu0 0
      %663 = vmatprep.subr.bf16.mxu0 0
      %664 = vmatpush2.bf16.msra.mxu0 0
      %665 = vmatprep.subr.bf16.mxu0 0
      %666 = vmatpush2.bf16.msra.mxu0 0
      %667 = vmatprep.subr.bf16.mxu0 0
      %668 = vmatpush2.bf16.msra.mxu0 0
      %669 = vmatprep.subr.bf16.mxu0 0
      %670 = vmatpush2.bf16.msra.mxu0 0
      %671 = vmatprep.mubr.bf16.mxu0 0
      %672 = vmatmul.mubr.bf16.gmra.mxu0 %v437
      %v673 = vpop.f32.mrf.mxu0
      %v674 = vadd.f32 0.0, %v673
      %v675 = vpop.f32.mrf.mxu0
      %v676 = vpop.f32.mrf.mxu0
      %v677 = vpop.f32.mrf.mxu0
      %678 = vdwg.mxu0
      %v679 = vld [vmem:[%s2] sm:$0x7]
      %v681 = vlaneseq
      %v682 = vshrl.u32 %v681, 7
      %v683 = vsub.s32 0, %v682
      %v684 = vrot.slane %v679, %v683
      %v685 = vlaneseq
      %v686 = vshrl.u32 %v685, 7
      %v687 = vsub.s32 1, %v686
      %v688 = vrot.slane %v679, %v687
      %v689 = vlaneseq
      %v690 = vshrl.u32 %v689, 7
      %v691 = vsub.s32 2, %v690
      %v692 = vrot.slane %v679, %v691
      %v696 = vmul.f32 %v633, %v684
      %v697 = vmul.f32 %v635, %v688
      %v698 = vmul.f32 %v674, %v692
      %v699 = vld [vmem:[%s3] sm:$0x7]
      %v701 = vlaneseq
      %v702 = vshrl.u32 %v701, 7
      %v703 = vsub.s32 0, %v702
      %v704 = vrot.slane %v699, %v703
      %v705 = vlaneseq
      %v706 = vshrl.u32 %v705, 7
      %v707 = vsub.s32 1, %v706
      %v708 = vrot.slane %v699, %v707
      %v709 = vlaneseq
      %v710 = vshrl.u32 %v709, 7
      %v711 = vsub.s32 2, %v710
      %v712 = vrot.slane %v699, %v711
      %v716 = vadd.f32 %v696, %v704
      %v717 = vadd.f32 %v697, %v708
      %v718 = vadd.f32 %v698, %v712
      %v719 = vxor.u32 %v716, 2147483648
      %v720 = vxor.u32 %v717, 2147483648
      %v721 = vxor.u32 %v718, 2147483648
      %v722 = vmul.f32 %v719, 1.442695
      %v723 = vpow.pop %v722
      %v724 = vmul.f32 %v720, 1.442695
      %v725 = vpow.pop %v724
      %v726 = vmul.f32 %v721, 1.442695
      %v727 = vpow.pop %v726
      %v728 = vadd.f32 %v723, 1.0
      %v729 = vadd.f32 %v725, 1.0
      %v730 = vadd.f32 %v727, 1.0
      %v731 = vrcp.pop %v728
      %v732 = vmul.f32 1.0, %v731
      %v733 = vrcp.pop %v729
      %v734 = vmul.f32 1.0, %v733
      %v735 = vrcp.pop %v730
      %v736 = vmul.f32 1.0, %v735
      %v737 = vmul.f32 %v716, %v732
      %v738 = vmul.f32 %v717, %v734
      %v739 = vmul.f32 %v718, %v736
      %740 = vst [vmem:[#allocation2] sm:$0xff] 0.0
      %741 = vst [vmem:[#allocation2 + $0x8] sm:$0xff] 0.0
      %742 = vst [vmem:[#allocation2 + $0x10] sm:$0xff] 0.0
      %743 = vst [vmem:[#allocation2 + $0x18] sm:$0xff] 0.0
      %744 = vst [vmem:[#allocation2 + $0x20] sm:$0xff] 0.0
      %745 = vst [vmem:[#allocation2 + $0x28] sm:$0xff] 0.0
      %746 = vst [vmem:[#allocation2 + $0x30] sm:$0xff] 0.0
      %747 = vst [vmem:[#allocation2 + $0x38] sm:$0xff] 0.0
      %748 = vst [vmem:[#allocation2 + $0x40] sm:$0xff] 0.0
      %749 = vst [vmem:[#allocation2 + $0x48] sm:$0xf] 0.0
      %750 = vst [vmem:[#allocation2 + $0x50] sm:$0xf] 0.0
      %751 = vst [vmem:[#allocation2 + $0x58] sm:$0xf] 0.0
      %v755 = vrot.slane %v737, 4
      %v756 = vrot.slane %v738, 4
      %v757 = vrot.slane %v739, 4
      %761 = vst [vmem:[#allocation2 + $0x18] sm:$0xf0] %v755
      %762 = vst [vmem:[#allocation2 + $0x20] sm:$0xf0] %v756
      %763 = vst [vmem:[#allocation2 + $0x28] sm:$0xf0] %v757
      %v764 = vlaneseq
      %v765 = vshrl.u32 %v764, 7
      %vm766 = vcmp.lt.s32.totalorder %v765, 0
      %v767 = vsub.s32 0, %v765
      %v768 = vsel %vm766, %v767, %v765
      %v769 = vshrl.u32 %v768, 1
      %v770 = vand.u32 %v768, 1
      %v771 = vsub.s32 0, %v770
      %v772 = vsel %vm766, %v771, %v770
      %vm773 = vcmp.ne.s32.totalorder %v772, 0
      %vm774 = vcmp.lt.s32.totalorder %v772, 0
      %vm775 = vmand %vm774, %vm773
      %v776 = vadd.s32 %v772, 2
      %v777 = vsel %vm775, %v776, %v772
      %v778 = vld [vmem:[%s4] sm:$0x7]
      %v779 = vld [vmem:[%s4 + $0x3] sm:$0x7]
      %v780 = vld [vmem:[%s4 + $0x6] sm:$0x7]
      %v781 = vld [vmem:[%s4 + $0x9] sm:$0x7]
      %v782 = vld [vmem:[%s4 + $0xc] sm:$0x7]
      %v783 = vld [vmem:[%s4 + $0xf] sm:$0x7]
      %v784 = vld [vmem:[%s4 + $0x12] sm:$0x7]
      %v785 = vld [vmem:[%s4 + $0x15] sm:$0x7]
      %v786 = vld [vmem:[%s4 + $0x18] sm:$0x7]
      %v787 = vld [vmem:[%s4 + $0x1b] sm:$0x7]
      %v788 = vld [vmem:[%s4 + $0x1e] sm:$0x7]
      %v789 = vld [vmem:[%s4 + $0x21] sm:$0x7]
      %v790 = vld [vmem:[%s4 + $0x24] sm:$0x7]
      %v791 = vld [vmem:[%s4 + $0x27] sm:$0x7]
      %v792 = vld [vmem:[%s4 + $0x2a] sm:$0x7]
      %v793 = vld [vmem:[%s4 + $0x2d] sm:$0x7]
      %v794 = vld [vmem:[%s4 + $0x30] sm:$0x7]
      %v795 = vld [vmem:[%s4 + $0x33] sm:$0x7]
      %v796 = vld [vmem:[%s4 + $0x36] sm:$0x7]
      %v797 = vld [vmem:[%s4 + $0x39] sm:$0x7]
      %v798 = vld [vmem:[%s4 + $0x3c] sm:$0x7]
      %v799 = vld [vmem:[%s4 + $0x3f] sm:$0x7]
      %v800 = vld [vmem:[%s4 + $0x42] sm:$0x7]
      %v801 = vld [vmem:[%s4 + $0x45] sm:$0x7]
      %v802 = vld [vmem:[%s4 + $0x48] sm:$0x7]
      %v803 = vld [vmem:[#allocation2] sm:$0xc0]
      %v804 = vld [vmem:[#allocation2 + $0x8] sm:$0xc0]
      %v805 = vld [vmem:[#allocation2 + $0x10] sm:$0xc0]
      %v806 = vld [vmem:[#allocation2 + $0x18] sm:$0x3]
      %v807 = vld [vmem:[#allocation2 + $0x20] sm:$0x3]
      %v808 = vld [vmem:[#allocation2 + $0x28] sm:$0x3]
      %vm809 = vcmp.ge.s32.totalorder %v777, 2
      %vm810 = vcmp.lt.s32.totalorder %v777, 4
      %vm811 = vmand %vm809, %vm810
      %v812 = vsel %vm811, 1, 0
      %vm813 = vcmp.eq.s32.totalorder %v812, 1
      %vm820 = vcmask 1041408
      %v821 = vrot.slane %v803, 6
      %v822 = vrot.slane %v806, 6
      %v823 = vsel %vm820, %v821, %v822
      %v824 = vrot.slane %v804, 6
      %v825 = vrot.slane %v807, 6
      %v826 = vsel %vm820, %v824, %v825
      %v827 = vrot.slane %v805, 6
      %v828 = vrot.slane %v808, 6
      %v829 = vsel %vm820, %v827, %v828
      %v833 = vsel %vm813, %v823, 0.0
      %v834 = vsel %vm813, %v826, 0.0
      %v835 = vsel %vm813, %v829, 0.0
      %v837 = vlaneseq
      %v838 = vshrl.u32 %v837, 7
      %v839 = vsub.s32 0, %v838
      %v840 = vrot.slane %v778, %v839
      %v841 = vlaneseq
      %v842 = vshrl.u32 %v841, 7
      %v843 = vsub.s32 1, %v842
      %v844 = vrot.slane %v778, %v843
      %v845 = vlaneseq
      %v846 = vshrl.u32 %v845, 7
      %v847 = vsub.s32 2, %v846
      %v848 = vrot.slane %v778, %v847
      %v852 = vmul.f32 %v833, %v840
      %v853 = vmul.f32 %v834, %v844
      %v854 = vmul.f32 %v835, %v848
      %v855 = vadd.f32 %v852, 0.0
      %v856 = vadd.f32 %v853, 0.0
      %v857 = vadd.f32 %v854, 0.0
      %v858 = vld [vmem:[#allocation2] sm:$0x80]
      %v859 = vld [vmem:[#allocation2 + $0x8] sm:$0x80]
      %v860 = vld [vmem:[#allocation2 + $0x10] sm:$0x80]
      %v861 = vld [vmem:[#allocation2 + $0x18] sm:$0x7]
      %v862 = vld [vmem:[#allocation2 + $0x20] sm:$0x7]
      %v863 = vld [vmem:[#allocation2 + $0x28] sm:$0x7]
      %vm864 = vcmp.ge.s32.totalorder %v777, 1
      %vm865 = vcmp.lt.s32.totalorder %v777, 3
      %vm866 = vmand %vm864, %vm865
      %v867 = vsel %vm866, 1, 0
      %vm868 = vcmp.eq.s32.totalorder %v867, 1
      %vm875 = vcmask 1040384
      %v876 = vrot.slane %v858, 7
      %v877 = vrot.slane %v861, 7
      %v878 = vsel %vm875, %v876, %v877
      %v879 = vrot.slane %v859, 7
      %v880 = vrot.slane %v862, 7
      %v881 = vsel %vm875, %v879, %v880
      %v882 = vrot.slane %v860, 7
      %v883 = vrot.slane %v863, 7
      %v884 = vsel %vm875, %v882, %v883
      %v888 = vsel %vm868, %v878, 0.0
      %v889 = vsel %vm868, %v881, 0.0
      %v890 = vsel %vm868, %v884, 0.0
      %v892 = vlaneseq
      %v893 = vshrl.u32 %v892, 7
      %v894 = vsub.s32 0, %v893
      %v895 = vrot.slane %v779, %v894
      %v896 = vlaneseq
      %v897 = vshrl.u32 %v896, 7
      %v898 = vsub.s32 1, %v897
      %v899 = vrot.slane %v779, %v898
      %v900 = vlaneseq
      %v901 = vshrl.u32 %v900, 7
      %v902 = vsub.s32 2, %v901
      %v903 = vrot.slane %v779, %v902
      %v907 = vmul.f32 %v888, %v895
      %v908 = vmul.f32 %v889, %v899
      %v909 = vmul.f32 %v890, %v903
      %v910 = vadd.f32 %v855, %v907
      %v911 = vadd.f32 %v856, %v908
      %v912 = vadd.f32 %v857, %v909
      %v913 = vld [vmem:[#allocation2 + $0x18] sm:$0xf]
      %v914 = vld [vmem:[#allocation2 + $0x20] sm:$0xf]
      %v915 = vld [vmem:[#allocation2 + $0x28] sm:$0xf]
      %v917 = vlaneseq
      %v918 = vshrl.u32 %v917, 7
      %v919 = vsub.s32 0, %v918
      %v920 = vrot.slane %v780, %v919
      %v921 = vlaneseq
      %v922 = vshrl.u32 %v921, 7
      %v923 = vsub.s32 1, %v922
      %v924 = vrot.slane %v780, %v923
      %v925 = vlaneseq
      %v926 = vshrl.u32 %v925, 7
      %v927 = vsub.s32 2, %v926
      %v928 = vrot.slane %v780, %v927
      %v932 = vmul.f32 %v913, %v920
      %v933 = vmul.f32 %v914, %v924
      %v934 = vmul.f32 %v915, %v928
      %v935 = vadd.f32 %v910, %v932
      %v936 = vadd.f32 %v911, %v933
      %v937 = vadd.f32 %v912, %v934
      %v938 = vld [vmem:[#allocation2 + $0x18] sm:$0x1e]
      %v939 = vld [vmem:[#allocation2 + $0x20] sm:$0x1e]
      %v940 = vld [vmem:[#allocation2 + $0x28] sm:$0x1e]
      %vm941 = vcmp.ge.s32.totalorder %v777, 4294967295
      %vm942 = vcmp.lt.s32.totalorder %v777, 1
      %vm943 = vmand %vm941, %vm942
      %v944 = vsel %vm943, 1, 0
      %vm945 = vcmp.eq.s32.totalorder %v944, 1
      %v949 = vrot.slane %v938, 1
      %v950 = vrot.slane %v939, 1
      %v951 = vrot.slane %v940, 1
      %v955 = vsel %vm945, %v949, 0.0
      %v956 = vsel %vm945, %v950, 0.0
      %v957 = vsel %vm945, %v951, 0.0
      %v959 = vlaneseq
      %v960 = vshrl.u32 %v959, 7
      %v961 = vsub.s32 0, %v960
      %v962 = vrot.slane %v781, %v961
      %v963 = vlaneseq
      %v964 = vshrl.u32 %v963, 7
      %v965 = vsub.s32 1, %v964
      %v966 = vrot.slane %v781, %v965
      %v967 = vlaneseq
      %v968 = vshrl.u32 %v967, 7
      %v969 = vsub.s32 2, %v968
      %v970 = vrot.slane %v781, %v969
      %v974 = vmul.f32 %v955, %v962
      %v975 = vmul.f32 %v956, %v966
      %v976 = vmul.f32 %v957, %v970
      %v977 = vadd.f32 %v935, %v974
      %v978 = vadd.f32 %v936, %v975
      %v979 = vadd.f32 %v937, %v976
      %v980 = vld [vmem:[#allocation2 + $0x18] sm:$0x3c]
      %v981 = vld [vmem:[#allocation2 + $0x20] sm:$0x3c]
      %v982 = vld [vmem:[#allocation2 + $0x28] sm:$0x3c]
      %vm983 = vcmp.ge.s32.totalorder %v777, 4294967294
      %vm984 = vcmp.lt.s32.totalorder %v777, 0
      %vm985 = vmand %vm983, %vm984
      %v986 = vsel %vm985, 1, 0
      %vm987 = vcmp.eq.s32.totalorder %v986, 1
      %v991 = vrot.slane %v980, 2
      %v992 = vrot.slane %v981, 2
      %v993 = vrot.slane %v982, 2
      %v997 = vsel %vm987, %v991, 0.0
      %v998 = vsel %vm987, %v992, 0.0
      %v999 = vsel %vm987, %v993, 0.0
      %v1001 = vlaneseq
      %v1002 = vshrl.u32 %v1001, 7
      %v1003 = vsub.s32 0, %v1002
      %v1004 = vrot.slane %v782, %v1003
      %v1005 = vlaneseq
      %v1006 = vshrl.u32 %v1005, 7
      %v1007 = vsub.s32 1, %v1006
      %v1008 = vrot.slane %v782, %v1007
      %v1009 = vlaneseq
      %v1010 = vshrl.u32 %v1009, 7
      %v1011 = vsub.s32 2, %v1010
      %v1012 = vrot.slane %v782, %v1011
      %v1016 = vmul.f32 %v997, %v1004
      %v1017 = vmul.f32 %v998, %v1008
      %v1018 = vmul.f32 %v999, %v1012
      %v1019 = vadd.f32 %v977, %v1016
      %v1020 = vadd.f32 %v978, %v1017
      %v1021 = vadd.f32 %v979, %v1018
      %v1022 = vsel %vm813, %v913, 0.0
      %v1023 = vsel %vm813, %v914, 0.0
      %v1024 = vsel %vm813, %v915, 0.0
      %v1026 = vlaneseq
      %v1027 = vshrl.u32 %v1026, 7
      %v1028 = vsub.s32 0, %v1027
      %v1029 = vrot.slane %v783, %v1028
      %v1030 = vlaneseq
      %v1031 = vshrl.u32 %v1030, 7
      %v1032 = vsub.s32 1, %v1031
      %v1033 = vrot.slane %v783, %v1032
      %v1034 = vlaneseq
      %v1035 = vshrl.u32 %v1034, 7
      %v1036 = vsub.s32 2, %v1035
      %v1037 = vrot.slane %v783, %v1036
      %v1041 = vmul.f32 %v1022, %v1029
      %v1042 = vmul.f32 %v1023, %v1033
      %v1043 = vmul.f32 %v1024, %v1037
      %v1044 = vadd.f32 %v1019, %v1041
      %v1045 = vadd.f32 %v1020, %v1042
      %v1046 = vadd.f32 %v1021, %v1043
      %v1047 = vsel %vm868, %v949, 0.0
      %v1048 = vsel %vm868, %v950, 0.0
      %v1049 = vsel %vm868, %v951, 0.0
      %v1051 = vlaneseq
      %v1052 = vshrl.u32 %v1051, 7
      %v1053 = vsub.s32 0, %v1052
      %v1054 = vrot.slane %v784, %v1053
      %v1055 = vlaneseq
      %v1056 = vshrl.u32 %v1055, 7
      %v1057 = vsub.s32 1, %v1056
      %v1058 = vrot.slane %v784, %v1057
      %v1059 = vlaneseq
      %v1060 = vshrl.u32 %v1059, 7
      %v1061 = vsub.s32 2, %v1060
      %v1062 = vrot.slane %v784, %v1061
      %v1066 = vmul.f32 %v1047, %v1054
      %v1067 = vmul.f32 %v1048, %v1058
      %v1068 = vmul.f32 %v1049, %v1062
      %v1069 = vadd.f32 %v1044, %v1066
      %v1070 = vadd.f32 %v1045, %v1067
      %v1071 = vadd.f32 %v1046, %v1068
      %v1073 = vlaneseq
      %v1074 = vshrl.u32 %v1073, 7
      %v1075 = vsub.s32 0, %v1074
      %v1076 = vrot.slane %v785, %v1075
      %v1077 = vlaneseq
      %v1078 = vshrl.u32 %v1077, 7
      %v1079 = vsub.s32 1, %v1078
      %v1080 = vrot.slane %v785, %v1079
      %v1081 = vlaneseq
      %v1082 = vshrl.u32 %v1081, 7
      %v1083 = vsub.s32 2, %v1082
      %v1084 = vrot.slane %v785, %v1083
      %v1088 = vmul.f32 %v980, %v1076
      %v1089 = vmul.f32 %v981, %v1080
      %v1090 = vmul.f32 %v982, %v1084
      %v1094 = vrot.slane %v1088, 2
      %v1095 = vrot.slane %v1089, 2
      %v1096 = vrot.slane %v1090, 2
      %v1100 = vadd.f32 %v1069, %v1094
      %v1101 = vadd.f32 %v1070, %v1095
      %v1102 = vadd.f32 %v1071, %v1096
      %v1103 = vld [vmem:[#allocation2 + $0x18] sm:$0x78]
      %v1104 = vld [vmem:[#allocation2 + $0x20] sm:$0x78]
      %v1105 = vld [vmem:[#allocation2 + $0x28] sm:$0x78]
      %v1109 = vrot.slane %v1103, 3
      %v1110 = vrot.slane %v1104, 3
      %v1111 = vrot.slane %v1105, 3
      %v1115 = vsel %vm945, %v1109, 0.0
      %v1116 = vsel %vm945, %v1110, 0.0
      %v1117 = vsel %vm945, %v1111, 0.0
      %v1119 = vlaneseq
      %v1120 = vshrl.u32 %v1119, 7
      %v1121 = vsub.s32 0, %v1120
      %v1122 = vrot.slane %v786, %v1121
      %v1123 = vlaneseq
      %v1124 = vshrl.u32 %v1123, 7
      %v1125 = vsub.s32 1, %v1124
      %v1126 = vrot.slane %v786, %v1125
      %v1127 = vlaneseq
      %v1128 = vshrl.u32 %v1127, 7
      %v1129 = vsub.s32 2, %v1128
      %v1130 = vrot.slane %v786, %v1129
      %v1134 = vmul.f32 %v1115, %v1122
      %v1135 = vmul.f32 %v1116, %v1126
      %v1136 = vmul.f32 %v1117, %v1130
      %v1137 = vadd.f32 %v1100, %v1134
      %v1138 = vadd.f32 %v1101, %v1135
      %v1139 = vadd.f32 %v1102, %v1136
      %v1140 = vld [vmem:[#allocation2 + $0x18] sm:$0xf0]
      %v1141 = vld [vmem:[#allocation2 + $0x20] sm:$0xf0]
      %v1142 = vld [vmem:[#allocation2 + $0x28] sm:$0xf0]
      %v1146 = vrot.slane %v1140, 4
      %v1147 = vrot.slane %v1141, 4
      %v1148 = vrot.slane %v1142, 4
      %v1152 = vsel %vm987, %v1146, 0.0
      %v1153 = vsel %vm987, %v1147, 0.0
      %v1154 = vsel %vm987, %v1148, 0.0
      %v1156 = vlaneseq
      %v1157 = vshrl.u32 %v1156, 7
      %v1158 = vsub.s32 0, %v1157
      %v1159 = vrot.slane %v787, %v1158
      %v1160 = vlaneseq
      %v1161 = vshrl.u32 %v1160, 7
      %v1162 = vsub.s32 1, %v1161
      %v1163 = vrot.slane %v787, %v1162
      %v1164 = vlaneseq
      %v1165 = vshrl.u32 %v1164, 7
      %v1166 = vsub.s32 2, %v1165
      %v1167 = vrot.slane %v787, %v1166
      %v1171 = vmul.f32 %v1152, %v1159
      %v1172 = vmul.f32 %v1153, %v1163
      %v1173 = vmul.f32 %v1154, %v1167
      %v1174 = vadd.f32 %v1137, %v1171
      %v1175 = vadd.f32 %v1138, %v1172
      %v1176 = vadd.f32 %v1139, %v1173
      %v1177 = vsel %vm813, %v991, 0.0
      %v1178 = vsel %vm813, %v992, 0.0
      %v1179 = vsel %vm813, %v993, 0.0
      %v1181 = vlaneseq
      %v1182 = vshrl.u32 %v1181, 7
      %v1183 = vsub.s32 0, %v1182
      %v1184 = vrot.slane %v788, %v1183
      %v1185 = vlaneseq
      %v1186 = vshrl.u32 %v1185, 7
      %v1187 = vsub.s32 1, %v1186
      %v1188 = vrot.slane %v788, %v1187
      %v1189 = vlaneseq
      %v1190 = vshrl.u32 %v1189, 7
      %v1191 = vsub.s32 2, %v1190
      %v1192 = vrot.slane %v788, %v1191
      %v1196 = vmul.f32 %v1177, %v1184
      %v1197 = vmul.f32 %v1178, %v1188
      %v1198 = vmul.f32 %v1179, %v1192
      %v1199 = vadd.f32 %v1174, %v1196
      %v1200 = vadd.f32 %v1175, %v1197
      %v1201 = vadd.f32 %v1176, %v1198
      %v1202 = vsel %vm868, %v1109, 0.0
      %v1203 = vsel %vm868, %v1110, 0.0
      %v1204 = vsel %vm868, %v1111, 0.0
      %v1206 = vlaneseq
      %v1207 = vshrl.u32 %v1206, 7
      %v1208 = vsub.s32 0, %v1207
      %v1209 = vrot.slane %v789, %v1208
      %v1210 = vlaneseq
      %v1211 = vshrl.u32 %v1210, 7
      %v1212 = vsub.s32 1, %v1211
      %v1213 = vrot.slane %v789, %v1212
      %v1214 = vlaneseq
      %v1215 = vshrl.u32 %v1214, 7
      %v1216 = vsub.s32 2, %v1215
      %v1217 = vrot.slane %v789, %v1216
      %v1221 = vmul.f32 %v1202, %v1209
      %v1222 = vmul.f32 %v1203, %v1213
      %v1223 = vmul.f32 %v1204, %v1217
      %v1224 = vadd.f32 %v1199, %v1221
      %v1225 = vadd.f32 %v1200, %v1222
      %v1226 = vadd.f32 %v1201, %v1223
      %v1228 = vlaneseq
      %v1229 = vshrl.u32 %v1228, 7
      %v1230 = vsub.s32 0, %v1229
      %v1231 = vrot.slane %v790, %v1230
      %v1232 = vlaneseq
      %v1233 = vshrl.u32 %v1232, 7
      %v1234 = vsub.s32 1, %v1233
      %v1235 = vrot.slane %v790, %v1234
      %v1236 = vlaneseq
      %v1237 = vshrl.u32 %v1236, 7
      %v1238 = vsub.s32 2, %v1237
      %v1239 = vrot.slane %v790, %v1238
      %v1243 = vmul.f32 %v1140, %v1231
      %v1244 = vmul.f32 %v1141, %v1235
      %v1245 = vmul.f32 %v1142, %v1239
      %v1249 = vrot.slane %v1243, 4
      %v1250 = vrot.slane %v1244, 4
      %v1251 = vrot.slane %v1245, 4
      %v1255 = vadd.f32 %v1224, %v1249
      %v1256 = vadd.f32 %v1225, %v1250
      %v1257 = vadd.f32 %v1226, %v1251
      %v1258 = vld [vmem:[#allocation2 + $0x18] sm:$0xe0]
      %v1259 = vld [vmem:[#allocation2 + $0x20] sm:$0xe0]
      %v1260 = vld [vmem:[#allocation2 + $0x28] sm:$0xe0]
      %v1261 = vld [vmem:[#allocation2 + $0x30] sm:$0x1]
      %v1262 = vld [vmem:[#allocation2 + $0x38] sm:$0x1]
      %v1263 = vld [vmem:[#allocation2 + $0x40] sm:$0x1]
      %vm1270 = vcmask 1042432
      %v1271 = vrot.slane %v1258, 5
      %v1272 = vrot.slane %v1261, 5
      %v1273 = vsel %vm1270, %v1271, %v1272
      %v1274 = vrot.slane %v1259, 5
      %v1275 = vrot.slane %v1262, 5
      %v1276 = vsel %vm1270, %v1274, %v1275
      %v1277 = vrot.slane %v1260, 5
      %v1278 = vrot.slane %v1263, 5
      %v1279 = vsel %vm1270, %v1277, %v1278
      %v1283 = vsel %vm945, %v1273, 0.0
      %v1284 = vsel %vm945, %v1276, 0.0
      %v1285 = vsel %vm945, %v1279, 0.0
      %v1287 = vlaneseq
      %v1288 = vshrl.u32 %v1287, 7
      %v1289 = vsub.s32 0, %v1288
      %v1290 = vrot.slane %v791, %v1289
      %v1291 = vlaneseq
      %v1292 = vshrl.u32 %v1291, 7
      %v1293 = vsub.s32 1, %v1292
      %v1294 = vrot.slane %v791, %v1293
      %v1295 = vlaneseq
      %v1296 = vshrl.u32 %v1295, 7
      %v1297 = vsub.s32 2, %v1296
      %v1298 = vrot.slane %v791, %v1297
      %v1302 = vmul.f32 %v1283, %v1290
      %v1303 = vmul.f32 %v1284, %v1294
      %v1304 = vmul.f32 %v1285, %v1298
      %v1305 = vadd.f32 %v1255, %v1302
      %v1306 = vadd.f32 %v1256, %v1303
      %v1307 = vadd.f32 %v1257, %v1304
      %v1308 = vld [vmem:[#allocation2 + $0x18] sm:$0xc0]
      %v1309 = vld [vmem:[#allocation2 + $0x20] sm:$0xc0]
      %v1310 = vld [vmem:[#allocation2 + $0x28] sm:$0xc0]
      %v1311 = vld [vmem:[#allocation2 + $0x30] sm:$0x3]
      %v1312 = vld [vmem:[#allocation2 + $0x38] sm:$0x3]
      %v1313 = vld [vmem:[#allocation2 + $0x40] sm:$0x3]
      %v1320 = vrot.slane %v1308, 6
      %v1321 = vrot.slane %v1311, 6
      %v1322 = vsel %vm820, %v1320, %v1321
      %v1323 = vrot.slane %v1309, 6
      %v1324 = vrot.slane %v1312, 6
      %v1325 = vsel %vm820, %v1323, %v1324
      %v1326 = vrot.slane %v1310, 6
      %v1327 = vrot.slane %v1313, 6
      %v1328 = vsel %vm820, %v1326, %v1327
      %v1332 = vsel %vm987, %v1322, 0.0
      %v1333 = vsel %vm987, %v1325, 0.0
      %v1334 = vsel %vm987, %v1328, 0.0
      %v1336 = vlaneseq
      %v1337 = vshrl.u32 %v1336, 7
      %v1338 = vsub.s32 0, %v1337
      %v1339 = vrot.slane %v792, %v1338
      %v1340 = vlaneseq
      %v1341 = vshrl.u32 %v1340, 7
      %v1342 = vsub.s32 1, %v1341
      %v1343 = vrot.slane %v792, %v1342
      %v1344 = vlaneseq
      %v1345 = vshrl.u32 %v1344, 7
      %v1346 = vsub.s32 2, %v1345
      %v1347 = vrot.slane %v792, %v1346
      %v1351 = vmul.f32 %v1332, %v1339
      %v1352 = vmul.f32 %v1333, %v1343
      %v1353 = vmul.f32 %v1334, %v1347
      %v1354 = vadd.f32 %v1305, %v1351
      %v1355 = vadd.f32 %v1306, %v1352
      %v1356 = vadd.f32 %v1307, %v1353
      %v1357 = vsel %vm813, %v1146, 0.0
      %v1358 = vsel %vm813, %v1147, 0.0
      %v1359 = vsel %vm813, %v1148, 0.0
      %v1361 = vlaneseq
      %v1362 = vshrl.u32 %v1361, 7
      %v1363 = vsub.s32 0, %v1362
      %v1364 = vrot.slane %v793, %v1363
      %v1365 = vlaneseq
      %v1366 = vshrl.u32 %v1365, 7
      %v1367 = vsub.s32 1, %v1366
      %v1368 = vrot.slane %v793, %v1367
      %v1369 = vlaneseq
      %v1370 = vshrl.u32 %v1369, 7
      %v1371 = vsub.s32 2, %v1370
      %v1372 = vrot.slane %v793, %v1371
      %v1376 = vmul.f32 %v1357, %v1364
      %v1377 = vmul.f32 %v1358, %v1368
      %v1378 = vmul.f32 %v1359, %v1372
      %v1379 = vadd.f32 %v1354, %v1376
      %v1380 = vadd.f32 %v1355, %v1377
      %v1381 = vadd.f32 %v1356, %v1378
      %v1382 = vsel %vm868, %v1273, 0.0
      %v1383 = vsel %vm868, %v1276, 0.0
      %v1384 = vsel %vm868, %v1279, 0.0
      %v1386 = vlaneseq
      %v1387 = vshrl.u32 %v1386, 7
      %v1388 = vsub.s32 0, %v1387
      %v1389 = vrot.slane %v794, %v1388
      %v1390 = vlaneseq
      %v1391 = vshrl.u32 %v1390, 7
      %v1392 = vsub.s32 1, %v1391
      %v1393 = vrot.slane %v794, %v1392
      %v1394 = vlaneseq
      %v1395 = vshrl.u32 %v1394, 7
      %v1396 = vsub.s32 2, %v1395
      %v1397 = vrot.slane %v794, %v1396
      %v1401 = vmul.f32 %v1382, %v1389
      %v1402 = vmul.f32 %v1383, %v1393
      %v1403 = vmul.f32 %v1384, %v1397
      %v1404 = vadd.f32 %v1379, %v1401
      %v1405 = vadd.f32 %v1380, %v1402
      %v1406 = vadd.f32 %v1381, %v1403
      %v1408 = vlaneseq
      %v1409 = vshrl.u32 %v1408, 7
      %v1410 = vsub.s32 0, %v1409
      %v1411 = vrot.slane %v795, %v1410
      %v1412 = vlaneseq
      %v1413 = vshrl.u32 %v1412, 7
      %v1414 = vsub.s32 1, %v1413
      %v1415 = vrot.slane %v795, %v1414
      %v1416 = vlaneseq
      %v1417 = vshrl.u32 %v1416, 7
      %v1418 = vsub.s32 2, %v1417
      %v1419 = vrot.slane %v795, %v1418
      %v1423 = vmul.f32 %v1308, %v1411
      %v1424 = vmul.f32 %v1309, %v1415
      %v1425 = vmul.f32 %v1310, %v1419
      %v1426 = vmul.f32 %v1311, %v1411
      %v1427 = vmul.f32 %v1312, %v1415
      %v1428 = vmul.f32 %v1313, %v1419
      %v1435 = vrot.slane %v1423, 6
      %v1436 = vrot.slane %v1426, 6
      %v1437 = vsel %vm820, %v1435, %v1436
      %v1438 = vrot.slane %v1424, 6
      %v1439 = vrot.slane %v1427, 6
      %v1440 = vsel %vm820, %v1438, %v1439
      %v1441 = vrot.slane %v1425, 6
      %v1442 = vrot.slane %v1428, 6
      %v1443 = vsel %vm820, %v1441, %v1442
      %v1447 = vadd.f32 %v1404, %v1437
      %v1448 = vadd.f32 %v1405, %v1440
      %v1449 = vadd.f32 %v1406, %v1443
      %v1450 = vld [vmem:[#allocation2 + $0x18] sm:$0x80]
      %v1451 = vld [vmem:[#allocation2 + $0x20] sm:$0x80]
      %v1452 = vld [vmem:[#allocation2 + $0x28] sm:$0x80]
      %v1453 = vld [vmem:[#allocation2 + $0x30] sm:$0x7]
      %v1454 = vld [vmem:[#allocation2 + $0x38] sm:$0x7]
      %v1455 = vld [vmem:[#allocation2 + $0x40] sm:$0x7]
      %v1462 = vrot.slane %v1450, 7
      %v1463 = vrot.slane %v1453, 7
      %v1464 = vsel %vm875, %v1462, %v1463
      %v1465 = vrot.slane %v1451, 7
      %v1466 = vrot.slane %v1454, 7
      %v1467 = vsel %vm875, %v1465, %v1466
      %v1468 = vrot.slane %v1452, 7
      %v1469 = vrot.slane %v1455, 7
      %v1470 = vsel %vm875, %v1468, %v1469
      %v1474 = vsel %vm945, %v1464, 0.0
      %v1475 = vsel %vm945, %v1467, 0.0
      %v1476 = vsel %vm945, %v1470, 0.0
      %v1478 = vlaneseq
      %v1479 = vshrl.u32 %v1478, 7
      %v1480 = vsub.s32 0, %v1479
      %v1481 = vrot.slane %v796, %v1480
      %v1482 = vlaneseq
      %v1483 = vshrl.u32 %v1482, 7
      %v1484 = vsub.s32 1, %v1483
      %v1485 = vrot.slane %v796, %v1484
      %v1486 = vlaneseq
      %v1487 = vshrl.u32 %v1486, 7
      %v1488 = vsub.s32 2, %v1487
      %v1489 = vrot.slane %v796, %v1488
      %v1493 = vmul.f32 %v1474, %v1481
      %v1494 = vmul.f32 %v1475, %v1485
      %v1495 = vmul.f32 %v1476, %v1489
      %v1496 = vadd.f32 %v1447, %v1493
      %v1497 = vadd.f32 %v1448, %v1494
      %v1498 = vadd.f32 %v1449, %v1495
      %v1499 = vld [vmem:[#allocation2 + $0x30] sm:$0xf]
      %v1500 = vld [vmem:[#allocation2 + $0x38] sm:$0xf]
      %v1501 = vld [vmem:[#allocation2 + $0x40] sm:$0xf]
      %v1502 = vsel %vm987, %v1499, 0.0
      %v1503 = vsel %vm987, %v1500, 0.0
      %v1504 = vsel %vm987, %v1501, 0.0
      %v1506 = vlaneseq
      %v1507 = vshrl.u32 %v1506, 7
      %v1508 = vsub.s32 0, %v1507
      %v1509 = vrot.slane %v797, %v1508
      %v1510 = vlaneseq
      %v1511 = vshrl.u32 %v1510, 7
      %v1512 = vsub.s32 1, %v1511
      %v1513 = vrot.slane %v797, %v1512
      %v1514 = vlaneseq
      %v1515 = vshrl.u32 %v1514, 7
      %v1516 = vsub.s32 2, %v1515
      %v1517 = vrot.slane %v797, %v1516
      %v1521 = vmul.f32 %v1502, %v1509
      %v1522 = vmul.f32 %v1503, %v1513
      %v1523 = vmul.f32 %v1504, %v1517
      %v1524 = vadd.f32 %v1496, %v1521
      %v1525 = vadd.f32 %v1497, %v1522
      %v1526 = vadd.f32 %v1498, %v1523
      %v1527 = vsel %vm813, %v1322, 0.0
      %v1528 = vsel %vm813, %v1325, 0.0
      %v1529 = vsel %vm813, %v1328, 0.0
      %v1531 = vlaneseq
      %v1532 = vshrl.u32 %v1531, 7
      %v1533 = vsub.s32 0, %v1532
      %v1534 = vrot.slane %v798, %v1533
      %v1535 = vlaneseq
      %v1536 = vshrl.u32 %v1535, 7
      %v1537 = vsub.s32 1, %v1536
      %v1538 = vrot.slane %v798, %v1537
      %v1539 = vlaneseq
      %v1540 = vshrl.u32 %v1539, 7
      %v1541 = vsub.s32 2, %v1540
      %v1542 = vrot.slane %v798, %v1541
      %v1546 = vmul.f32 %v1527, %v1534
      %v1547 = vmul.f32 %v1528, %v1538
      %v1548 = vmul.f32 %v1529, %v1542
      %v1549 = vadd.f32 %v1524, %v1546
      %v1550 = vadd.f32 %v1525, %v1547
      %v1551 = vadd.f32 %v1526, %v1548
      %v1552 = vsel %vm868, %v1464, 0.0
      %v1553 = vsel %vm868, %v1467, 0.0
      %v1554 = vsel %vm868, %v1470, 0.0
      %v1556 = vlaneseq
      %v1557 = vshrl.u32 %v1556, 7
      %v1558 = vsub.s32 0, %v1557
      %v1559 = vrot.slane %v799, %v1558
      %v1560 = vlaneseq
      %v1561 = vshrl.u32 %v1560, 7
      %v1562 = vsub.s32 1, %v1561
      %v1563 = vrot.slane %v799, %v1562
      %v1564 = vlaneseq
      %v1565 = vshrl.u32 %v1564, 7
      %v1566 = vsub.s32 2, %v1565
      %v1567 = vrot.slane %v799, %v1566
      %v1571 = vmul.f32 %v1552, %v1559
      %v1572 = vmul.f32 %v1553, %v1563
      %v1573 = vmul.f32 %v1554, %v1567
      %v1574 = vadd.f32 %v1549, %v1571
      %v1575 = vadd.f32 %v1550, %v1572
      %v1576 = vadd.f32 %v1551, %v1573
      %v1578 = vlaneseq
      %v1579 = vshrl.u32 %v1578, 7
      %v1580 = vsub.s32 0, %v1579
      %v1581 = vrot.slane %v800, %v1580
      %v1582 = vlaneseq
      %v1583 = vshrl.u32 %v1582, 7
      %v1584 = vsub.s32 1, %v1583
      %v1585 = vrot.slane %v800, %v1584
      %v1586 = vlaneseq
      %v1587 = vshrl.u32 %v1586, 7
      %v1588 = vsub.s32 2, %v1587
      %v1589 = vrot.slane %v800, %v1588
      %v1593 = vmul.f32 %v1499, %v1581
      %v1594 = vmul.f32 %v1500, %v1585
      %v1595 = vmul.f32 %v1501, %v1589
      %v1596 = vadd.f32 %v1574, %v1593
      %v1597 = vadd.f32 %v1575, %v1594
      %v1598 = vadd.f32 %v1576, %v1595
      %v1599 = vld [vmem:[#allocation2 + $0x30] sm:$0x1e]
      %v1600 = vld [vmem:[#allocation2 + $0x38] sm:$0x1e]
      %v1601 = vld [vmem:[#allocation2 + $0x40] sm:$0x1e]
      %v1605 = vrot.slane %v1599, 1
      %v1606 = vrot.slane %v1600, 1
      %v1607 = vrot.slane %v1601, 1
      %v1611 = vsel %vm945, %v1605, 0.0
      %v1612 = vsel %vm945, %v1606, 0.0
      %v1613 = vsel %vm945, %v1607, 0.0
      %v1615 = vlaneseq
      %v1616 = vshrl.u32 %v1615, 7
      %v1617 = vsub.s32 0, %v1616
      %v1618 = vrot.slane %v801, %v1617
      %v1619 = vlaneseq
      %v1620 = vshrl.u32 %v1619, 7
      %v1621 = vsub.s32 1, %v1620
      %v1622 = vrot.slane %v801, %v1621
      %v1623 = vlaneseq
      %v1624 = vshrl.u32 %v1623, 7
      %v1625 = vsub.s32 2, %v1624
      %v1626 = vrot.slane %v801, %v1625
      %v1630 = vmul.f32 %v1611, %v1618
      %v1631 = vmul.f32 %v1612, %v1622
      %v1632 = vmul.f32 %v1613, %v1626
      %v1633 = vadd.f32 %v1596, %v1630
      %v1634 = vadd.f32 %v1597, %v1631
      %v1635 = vadd.f32 %v1598, %v1632
      %v1636 = vld [vmem:[#allocation2 + $0x30] sm:$0x3c]
      %v1637 = vld [vmem:[#allocation2 + $0x38] sm:$0x3c]
      %v1638 = vld [vmem:[#allocation2 + $0x40] sm:$0x3c]
      %v1642 = vrot.slane %v1636, 2
      %v1643 = vrot.slane %v1637, 2
      %v1644 = vrot.slane %v1638, 2
      %v1648 = vsel %vm987, %v1642, 0.0
      %v1649 = vsel %vm987, %v1643, 0.0
      %v1650 = vsel %vm987, %v1644, 0.0
      %v1652 = vlaneseq
      %v1653 = vshrl.u32 %v1652, 7
      %v1654 = vsub.s32 0, %v1653
      %v1655 = vrot.slane %v802, %v1654
      %v1656 = vlaneseq
      %v1657 = vshrl.u32 %v1656, 7
      %v1658 = vsub.s32 1, %v1657
      %v1659 = vrot.slane %v802, %v1658
      %v1660 = vlaneseq
      %v1661 = vshrl.u32 %v1660, 7
      %v1662 = vsub.s32 2, %v1661
      %v1663 = vrot.slane %v802, %v1662
      %v1667 = vmul.f32 %v1648, %v1655
      %v1668 = vmul.f32 %v1649, %v1659
      %v1669 = vmul.f32 %v1650, %v1663
      %v1670 = vadd.f32 %v1633, %v1667
      %v1671 = vadd.f32 %v1634, %v1668
      %v1672 = vadd.f32 %v1635, %v1669
      %v1673 = vld [vmem:[%s5] sm:$0x7]
      %v1675 = vlaneseq
      %v1676 = vshrl.u32 %v1675, 7
      %v1677 = vsub.s32 0, %v1676
      %v1678 = vrot.slane %v1673, %v1677
      %v1679 = vlaneseq
      %v1680 = vshrl.u32 %v1679, 7
      %v1681 = vsub.s32 1, %v1680
      %v1682 = vrot.slane %v1673, %v1681
      %v1683 = vlaneseq
      %v1684 = vshrl.u32 %v1683, 7
      %v1685 = vsub.s32 2, %v1684
      %v1686 = vrot.slane %v1673, %v1685
      %v1690 = vadd.f32 %v1670, %v1678
      %v1691 = vadd.f32 %v1671, %v1682
      %v1692 = vadd.f32 %v1672, %v1686
      %v1693 = vxor.u32 %v1690, 2147483648
      %v1694 = vxor.u32 %v1691, 2147483648
      %v1695 = vxor.u32 %v1692, 2147483648
      %v1696 = vmul.f32 %v1693, 1.442695
      %v1697 = vpow.pop %v1696
      %v1698 = vmul.f32 %v1694, 1.442695
      %v1699 = vpow.pop %v1698
      %v1700 = vmul.f32 %v1695, 1.442695
      %v1701 = vpow.pop %v1700
      %v1702 = vadd.f32 %v1697, 1.0
      %v1703 = vadd.f32 %v1699, 1.0
      %v1704 = vadd.f32 %v1701, 1.0
      %v1705 = vrcp.pop %v1702
      %v1706 = vmul.f32 1.0, %v1705
      %v1707 = vrcp.pop %v1703
      %v1708 = vmul.f32 1.0, %v1707
      %v1709 = vrcp.pop %v1704
      %v1710 = vmul.f32 1.0, %v1709
      %v1711 = vmul.f32 %v1690, %v1706
      %v1712 = vmul.f32 %v1691, %v1708
      %v1713 = vmul.f32 %v1692, %v1710
      %vm1714 = vcmask 1043456
      %v1715 = vsel %vm1714, %v1711, 0.0
      %v1716 = vrot.slane %v1715, 4
      %v1717 = vadd.f32 %v1715, %v1716
      %v1718 = vrot.slane %v1717, 2
      %v1719 = vadd.f32 %v1717, %v1718
      %v1720 = vrot.slane %v1719, 1
      %v1721 = vadd.f32 %v1719, %v1720
      %v1722 = vsel %vm1714, %v1712, 0.0
      %v1723 = vrot.slane %v1722, 4
      %v1724 = vadd.f32 %v1722, %v1723
      %v1725 = vrot.slane %v1724, 2
      %v1726 = vadd.f32 %v1724, %v1725
      %v1727 = vrot.slane %v1726, 1
      %v1728 = vadd.f32 %v1726, %v1727
      %v1729 = vsel %vm1714, %v1713, 0.0
      %v1730 = vrot.slane %v1729, 4
      %v1731 = vadd.f32 %v1729, %v1730
      %v1732 = vrot.slane %v1731, 2
      %v1733 = vadd.f32 %v1731, %v1732
      %v1734 = vrot.slane %v1733, 1
      %v1735 = vadd.f32 %v1733, %v1734
      %v1736 = vrcp.pop 4.0
      %v1737 = vmul.f32 %v1721, %v1736
      %v1738 = vmul.f32 %v1728, %v1736
      %v1739 = vmul.f32 %v1735, %v1736
      %v1740 = vpack.c.bf16 %v1737, %v1737
      %v1741 = vpack.c.bf16 %v1738, %v1738
      %v1742 = vpack.c.bf16 %v1739, %v1739
      %v1743 = vld [vmem:[%s6] sm:$0xf]
      %v1744 = vld [vmem:[%s6 + $0x4] sm:$0xf]
      %v1745 = vld [vmem:[%s6 + $0x8] sm:$0xf]
      %v1746 = vld [vmem:[%s6 + $0xc] sm:$0xf]
      %v1747 = vld [vmem:[%s6 + $0x10] sm:$0xf]
      %v1748 = vld [vmem:[%s6 + $0x14] sm:$0xf]
      %v1749 = vld [vmem:[%s6 + $0x18] sm:$0xf]
      %v1750 = vld [vmem:[%s6 + $0x1c] sm:$0xf]
      %v1751 = vld [vmem:[%s6 + $0x20] sm:$0xf]
      %v1752 = vld [vmem:[%s6 + $0x24] sm:$0xf]
      %v1753 = vld [vmem:[%s6 + $0x28] sm:$0xf]
      %v1754 = vld [vmem:[%s6 + $0x2c] sm:$0xf]
      %v1755 = vld [vmem:[%s6 + $0x30] sm:$0xf]
      %v1756 = vld [vmem:[%s6 + $0x34] sm:$0xf]
      %v1757 = vld [vmem:[%s6 + $0x38] sm:$0xf]
      %v1758 = vld [vmem:[%s6 + $0x3c] sm:$0xf]
      %v1759 = vld [vmem:[%s6 + $0x40] sm:$0xf]
      %v1760 = vld [vmem:[%s6 + $0x44] sm:$0xf]
      %v1761 = vld [vmem:[%s6 + $0x48] sm:$0xf]
      %v1762 = vld [vmem:[%s6 + $0x4c] sm:$0xf]
      %v1763 = vld [vmem:[%s6 + $0x50] sm:$0xf]
      %v1764 = vld [vmem:[%s6 + $0x54] sm:$0xf]
      %v1765 = vld [vmem:[%s6 + $0x58] sm:$0xf]
      %v1766 = vld [vmem:[%s6 + $0x5c] sm:$0xf]
      %v1767 = vld [vmem:[%s6 + $0x60] sm:$0xf]
      %v1768 = vld [vmem:[%s6 + $0x64] sm:$0xf]
      %v1769 = vld [vmem:[%s6 + $0x68] sm:$0xf]
      %v1770 = vld [vmem:[%s6 + $0x6c] sm:$0xf]
      %v1771 = vld [vmem:[%s6 + $0x70] sm:$0xf]
      %v1772 = vld [vmem:[%s6 + $0x74] sm:$0xf]
      %v1773 = vld [vmem:[%s6 + $0x78] sm:$0xf]
      %v1774 = vld [vmem:[%s6 + $0x7c] sm:$0xf]
      %v1775 = vld [vmem:[%s6 + $0x80] sm:$0xf]
      %v1776 = vld [vmem:[%s6 + $0x84] sm:$0xf]
      %v1777 = vld [vmem:[%s6 + $0x88] sm:$0xf]
      %v1778 = vld [vmem:[%s6 + $0x8c] sm:$0xf]
      %v1779 = vld [vmem:[%s6 + $0x90] sm:$0xf]
      %v1780 = vld [vmem:[%s6 + $0x94] sm:$0xf]
      %v1781 = vld [vmem:[%s6 + $0x98] sm:$0xf]
      %v1782 = vld [vmem:[%s6 + $0x9c] sm:$0xf]
      %v1783 = vld [vmem:[%s6 + $0xa0] sm:$0xf]
      %v1784 = vld [vmem:[%s6 + $0xa4] sm:$0xf]
      %v1785 = vld [vmem:[%s6 + $0xa8] sm:$0xf]
      %v1786 = vld [vmem:[%s6 + $0xac] sm:$0xf]
      %v1787 = vld [vmem:[%s6 + $0xb0] sm:$0xf]
      %v1788 = vld [vmem:[%s6 + $0xb4] sm:$0xf]
      %v1789 = vld [vmem:[%s6 + $0xb8] sm:$0xf]
      %v1790 = vld [vmem:[%s6 + $0xbc] sm:$0xf]
      %v1839 = vunpack.c.l.b16 %v1743
      %v1840 = vunpack.c.l.b16 %v1744
      %v1841 = vunpack.c.l.b16 %v1745
      %v1842 = vunpack.c.l.b16 %v1746
      %v1843 = vunpack.c.l.b16 %v1747
      %v1844 = vunpack.c.l.b16 %v1748
      %v1845 = vunpack.c.l.b16 %v1749
      %v1846 = vunpack.c.l.b16 %v1750
      %v1847 = vunpack.c.l.b16 %v1751
      %v1848 = vunpack.c.l.b16 %v1752
      %v1849 = vunpack.c.l.b16 %v1753
      %v1850 = vunpack.c.l.b16 %v1754
      %v1851 = vunpack.c.l.b16 %v1755
      %v1852 = vunpack.c.l.b16 %v1756
      %v1853 = vunpack.c.l.b16 %v1757
      %v1854 = vunpack.c.l.b16 %v1758
      %v1855 = vunpack.c.l.b16 %v1759
      %v1856 = vunpack.c.l.b16 %v1760
      %v1857 = vunpack.c.l.b16 %v1761
      %v1858 = vunpack.c.l.b16 %v1762
      %v1859 = vunpack.c.l.b16 %v1763
      %v1860 = vunpack.c.l.b16 %v1764
      %v1861 = vunpack.c.l.b16 %v1765
      %v1862 = vunpack.c.l.b16 %v1766
      %v1863 = vunpack.c.l.b16 %v1767
      %v1864 = vunpack.c.l.b16 %v1768
      %v1865 = vunpack.c.l.b16 %v1769
      %v1866 = vunpack.c.l.b16 %v1770
      %v1867 = vunpack.c.l.b16 %v1771
      %v1868 = vunpack.c.l.b16 %v1772
      %v1869 = vunpack.c.l.b16 %v1773
      %v1870 = vunpack.c.l.b16 %v1774
      %v1871 = vunpack.c.l.b16 %v1775
      %v1872 = vunpack.c.l.b16 %v1776
      %v1873 = vunpack.c.l.b16 %v1777
      %v1874 = vunpack.c.l.b16 %v1778
      %v1875 = vunpack.c.l.b16 %v1779
      %v1876 = vunpack.c.l.b16 %v1780
      %v1877 = vunpack.c.l.b16 %v1781
      %v1878 = vunpack.c.l.b16 %v1782
      %v1879 = vunpack.c.l.b16 %v1783
      %v1880 = vunpack.c.l.b16 %v1784
      %v1881 = vunpack.c.l.b16 %v1785
      %v1882 = vunpack.c.l.b16 %v1786
      %v1883 = vunpack.c.l.b16 %v1787
      %v1884 = vunpack.c.l.b16 %v1788
      %v1885 = vunpack.c.l.b16 %v1789
      %v1886 = vunpack.c.l.b16 %v1790
      %v1887 = vpack.c.b16 %v1840, %v1839
      %v1888 = vpack.c.b16 %v1842, %v1841
      %v1889 = vpack.c.b16 %v1844, %v1843
      %v1890 = vpack.c.b16 %v1846, %v1845
      %v1891 = vpack.c.b16 %v1848, %v1847
      %v1892 = vpack.c.b16 %v1850, %v1849
      %v1893 = vpack.c.b16 %v1852, %v1851
      %v1894 = vpack.c.b16 %v1854, %v1853
      %v1895 = vpack.c.b16 %v1856, %v1855
      %v1896 = vpack.c.b16 %v1858, %v1857
      %v1897 = vpack.c.b16 %v1860, %v1859
      %v1898 = vpack.c.b16 %v1862, %v1861
      %v1899 = vpack.c.b16 %v1864, %v1863
      %v1900 = vpack.c.b16 %v1866, %v1865
      %v1901 = vpack.c.b16 %v1868, %v1867
      %v1902 = vpack.c.b16 %v1870, %v1869
      %v1903 = vpack.c.b16 %v1872, %v1871
      %v1904 = vpack.c.b16 %v1874, %v1873
      %v1905 = vpack.c.b16 %v1876, %v1875
      %v1906 = vpack.c.b16 %v1878, %v1877
      %v1907 = vpack.c.b16 %v1880, %v1879
      %v1908 = vpack.c.b16 %v1882, %v1881
      %v1909 = vpack.c.b16 %v1884, %v1883
      %v1910 = vpack.c.b16 %v1886, %v1885
      %1935 = vmatprep.subr.bf16.mxu0 0
      %1936 = vmatpush1.bf16.msra.mxu0 %v1894
      %1937 = vmatprep.subr.bf16.mxu0 0
      %1938 = vmatpush1.bf16.msra.mxu0 %v1893
      %1939 = vmatprep.subr.bf16.mxu0 0
      %1940 = vmatpush1.bf16.msra.mxu0 %v1892
      %1941 = vmatprep.subr.bf16.mxu0 0
      %1942 = vmatpush1.bf16.msra.mxu0 %v1891
      %1943 = vmatprep.subr.bf16.mxu0 0
      %1944 = vmatpush1.bf16.msra.mxu0 %v1890
      %1945 = vmatprep.subr.bf16.mxu0 0
      %1946 = vmatpush1.bf16.msra.mxu0 %v1889
      %1947 = vmatprep.subr.bf16.mxu0 0
      %1948 = vmatpush1.bf16.msra.mxu0 %v1888
      %1949 = vmatprep.subr.bf16.mxu0 0
      %1950 = vmatpush1.bf16.msra.mxu0 %v1887
      %1951 = vmatprep.subr.bf16.mxu0 0
      %1952 = vmatpush2.bf16.msra.mxu0 %v1902
      %1953 = vmatprep.subr.bf16.mxu0 0
      %1954 = vmatpush2.bf16.msra.mxu0 %v1901
      %1955 = vmatprep.subr.bf16.mxu0 0
      %1956 = vmatpush2.bf16.msra.mxu0 %v1900
      %1957 = vmatprep.subr.bf16.mxu0 0
      %1958 = vmatpush2.bf16.msra.mxu0 %v1899
      %1959 = vmatprep.subr.bf16.mxu0 0
      %1960 = vmatpush2.bf16.msra.mxu0 %v1898
      %1961 = vmatprep.subr.bf16.mxu0 0
      %1962 = vmatpush2.bf16.msra.mxu0 %v1897
      %1963 = vmatprep.subr.bf16.mxu0 0
      %1964 = vmatpush2.bf16.msra.mxu0 %v1896
      %1965 = vmatprep.subr.bf16.mxu0 0
      %1966 = vmatpush2.bf16.msra.mxu0 %v1895
      %1967 = vmatprep.mubr.bf16.mxu0 %v1741
      %1968 = vmatmul.mubr.bf16.gmra.mxu0 %v1740
      %v1969 = vpop.f32.mrf.mxu0
      %v1970 = vadd.f32 0.0, %v1969
      %v1971 = vpop.f32.mrf.mxu0
      %v1972 = vpop.f32.mrf.mxu0
      %v1973 = vpop.f32.mrf.mxu0
      %1974 = vdwg.mxu0
      %1975 = vmatprep.subr.bf16.mxu0 0
      %1976 = vmatpush1.bf16.msra.mxu0 %v1910
      %1977 = vmatprep.subr.bf16.mxu0 0
      %1978 = vmatpush1.bf16.msra.mxu0 %v1909
      %1979 = vmatprep.subr.bf16.mxu0 0
      %1980 = vmatpush1.bf16.msra.mxu0 %v1908
      %1981 = vmatprep.subr.bf16.mxu0 0
      %1982 = vmatpush1.bf16.msra.mxu0 %v1907
      %1983 = vmatprep.subr.bf16.mxu0 0
      %1984 = vmatpush1.bf16.msra.mxu0 %v1906
      %1985 = vmatprep.subr.bf16.mxu0 0
      %1986 = vmatpush1.bf16.msra.mxu0 %v1905
      %1987 = vmatprep.subr.bf16.mxu0 0
      %1988 = vmatpush1.bf16.msra.mxu0 %v1904
      %1989 = vmatprep.subr.bf16.mxu0 0
      %1990 = vmatpush1.bf16.msra.mxu0 %v1903
      %1991 = vmatprep.subr.bf16.mxu0 0
      %1992 = vmatpush2.bf16.msra.mxu0 0
      %1993 = vmatprep.subr.bf16.mxu0 0
      %1994 = vmatpush2.bf16.msra.mxu0 0
      %1995 = vmatprep.subr.bf16.mxu0 0
      %1996 = vmatpush2.bf16.msra.mxu0 0
      %1997 = vmatprep.subr.bf16.mxu0 0
      %1998 = vmatpush2.bf16.msra.mxu0 0
      %1999 = vmatprep.subr.bf16.mxu0 0
      %2000 = vmatpush2.bf16.msra.mxu0 0
      %2001 = vmatprep.subr.bf16.mxu0 0
      %2002 = vmatpush2.bf16.msra.mxu0 0
      %2003 = vmatprep.subr.bf16.mxu0 0
      %2004 = vmatpush2.bf16.msra.mxu0 0
      %2005 = vmatprep.subr.bf16.mxu0 0
      %2006 = vmatpush2.bf16.msra.mxu0 0
      %2007 = vmatprep.mubr.bf16.mxu0 0
      %2008 = vmatmul.mubr.bf16.gmra.mxu0 %v1742
      %v2009 = vpop.f32.mrf.mxu0
      %v2010 = vadd.f32 %v1970, %v2009
      %v2011 = vpop.f32.mrf.mxu0
      %v2012 = vpop.f32.mrf.mxu0
      %v2013 = vpop.f32.mrf.mxu0
      %2014 = vdwg.mxu0
      %v2015 = vld [vmem:[%s7] sm:$0x1]
      %v2016 = vmul.f32 %v2010, %v2015
      %v2017 = vld [vmem:[%s8] sm:$0x1]
      %v2018 = vadd.f32 %v2016, %v2017
      %v2019 = vmax.f32 %v2018, 0.0
      %v2020 = vpack.c.bf16 %v2019, %v2019
      %v2021 = vld [vmem:[%s9] sm:$0xff]
      %v2022 = vld [vmem:[%s9 + $0x8] sm:$0xf]
      %v2023 = vld [vmem:[%s9 + $0xc] sm:$0xff]
      %v2024 = vld [vmem:[%s9 + $0x14] sm:$0xf]
      %v2025 = vld [vmem:[%s9 + $0x18] sm:$0xff]
      %v2026 = vld [vmem:[%s9 + $0x20] sm:$0xf]
      %v2027 = vld [vmem:[%s9 + $0x24] sm:$0xff]
      %v2028 = vld [vmem:[%s9 + $0x2c] sm:$0xf]
      %v2029 = vld [vmem:[%s9 + $0x30] sm:$0xff]
      %v2030 = vld [vmem:[%s9 + $0x38] sm:$0xf]
      %v2031 = vld [vmem:[%s9 + $0x3c] sm:$0xff]
      %v2032 = vld [vmem:[%s9 + $0x44] sm:$0xf]
      %v2033 = vld [vmem:[%s9 + $0x48] sm:$0xff]
      %v2034 = vld [vmem:[%s9 + $0x50] sm:$0xf]
      %v2035 = vld [vmem:[%s9 + $0x54] sm:$0xff]
      %v2036 = vld [vmem:[%s9 + $0x5c] sm:$0xf]
      %v2037 = vld [vmem:[%s9 + $0x60] sm:$0xff]
      %v2038 = vld [vmem:[%s9 + $0x68] sm:$0xf]
      %v2039 = vld [vmem:[%s9 + $0x6c] sm:$0xff]
      %v2040 = vld [vmem:[%s9 + $0x74] sm:$0xf]
      %v2041 = vld [vmem:[%s9 + $0x78] sm:$0xff]
      %v2042 = vld [vmem:[%s9 + $0x80] sm:$0xf]
      %v2043 = vld [vmem:[%s9 + $0x84] sm:$0xff]
      %v2044 = vld [vmem:[%s9 + $0x8c] sm:$0xf]
      %v2045 = vld [vmem:[%s9 + $0x90] sm:$0xff]
      %v2046 = vld [vmem:[%s9 + $0x98] sm:$0xf]
      %v2047 = vld [vmem:[%s9 + $0x9c] sm:$0xff]
      %v2048 = vld [vmem:[%s9 + $0xa4] sm:$0xf]
      %v2049 = vld [vmem:[%s9 + $0xa8] sm:$0xff]
      %v2050 = vld [vmem:[%s9 + $0xb0] sm:$0xf]
      %v2051 = vld [vmem:[%s9 + $0xb4] sm:$0xff]
      %v2052 = vld [vmem:[%s9 + $0xbc] sm:$0xf]
      %v2085 = vunpack.c.l.b16 %v2021
      %v2086 = vunpack.c.h.b16 %v2021
      %v2087 = vunpack.c.l.b16 %v2022
      %v2088 = vunpack.c.l.b16 %v2023
      %v2089 = vunpack.c.h.b16 %v2023
      %v2090 = vunpack.c.l.b16 %v2024
      %v2091 = vunpack.c.l.b16 %v2025
      %v2092 = vunpack.c.h.b16 %v2025
      %v2093 = vunpack.c.l.b16 %v2026
      %v2094 = vunpack.c.l.b16 %v2027
      %v2095 = vunpack.c.h.b16 %v2027
      %v2096 = vunpack.c.l.b16 %v2028
      %v2097 = vunpack.c.l.b16 %v2029
      %v2098 = vunpack.c.h.b16 %v2029
      %v2099 = vunpack.c.l.b16 %v2030
      %v2100 = vunpack.c.l.b16 %v2031
      %v2101 = vunpack.c.h.b16 %v2031
      %v2102 = vunpack.c.l.b16 %v2032
      %v2103 = vunpack.c.l.b16 %v2033
      %v2104 = vunpack.c.h.b16 %v2033
      %v2105 = vunpack.c.l.b16 %v2034
      %v2106 = vunpack.c.l.b16 %v2035
      %v2107 = vunpack.c.h.b16 %v2035
      %v2108 = vunpack.c.l.b16 %v2036
      %v2109 = vunpack.c.l.b16 %v2037
      %v2110 = vunpack.c.h.b16 %v2037
      %v2111 = vunpack.c.l.b16 %v2038
      %v2112 = vunpack.c.l.b16 %v2039
      %v2113 = vunpack.c.h.b16 %v2039
      %v2114 = vunpack.c.l.b16 %v2040
      %v2115 = vunpack.c.l.b16 %v2041
      %v2116 = vunpack.c.h.b16 %v2041
      %v2117 = vunpack.c.l.b16 %v2042
      %v2118 = vunpack.c.l.b16 %v2043
      %v2119 = vunpack.c.h.b16 %v2043
      %v2120 = vunpack.c.l.b16 %v2044
      %v2121 = vunpack.c.l.b16 %v2045
      %v2122 = vunpack.c.h.b16 %v2045
      %v2123 = vunpack.c.l.b16 %v2046
      %v2124 = vunpack.c.l.b16 %v2047
      %v2125 = vunpack.c.h.b16 %v2047
      %v2126 = vunpack.c.l.b16 %v2048
      %v2127 = vunpack.c.l.b16 %v2049
      %v2128 = vunpack.c.h.b16 %v2049
      %v2129 = vunpack.c.l.b16 %v2050
      %v2130 = vunpack.c.l.b16 %v2051
      %v2131 = vunpack.c.h.b16 %v2051
      %v2132 = vunpack.c.l.b16 %v2052
      %v2133 = vpack.c.b16 %v2088, %v2085
      %v2134 = vpack.c.b16 %v2089, %v2086
      %v2135 = vpack.c.b16 %v2090, %v2087
      %v2136 = vpack.c.b16 %v2094, %v2091
      %v2137 = vpack.c.b16 %v2095, %v2092
      %v2138 = vpack.c.b16 %v2096, %v2093
      %v2139 = vpack.c.b16 %v2100, %v2097
      %v2140 = vpack.c.b16 %v2101, %v2098
      %v2141 = vpack.c.b16 %v2102, %v2099
      %v2142 = vpack.c.b16 %v2106, %v2103
      %v2143 = vpack.c.b16 %v2107, %v2104
      %v2144 = vpack.c.b16 %v2108, %v2105
      %v2145 = vpack.c.b16 %v2112, %v2109
      %v2146 = vpack.c.b16 %v2113, %v2110
      %v2147 = vpack.c.b16 %v2114, %v2111
      %v2148 = vpack.c.b16 %v2118, %v2115
      %v2149 = vpack.c.b16 %v2119, %v2116
      %v2150 = vpack.c.b16 %v2120, %v2117
      %v2151 = vpack.c.b16 %v2124, %v2121
      %v2152 = vpack.c.b16 %v2125, %v2122
      %v2153 = vpack.c.b16 %v2126, %v2123
      %v2154 = vpack.c.b16 %v2130, %v2127
      %v2155 = vpack.c.b16 %v2131, %v2128
      %v2156 = vpack.c.b16 %v2132, %v2129
      %2181 = vmatprep.subr.bf16.mxu0 %v2155
      %2182 = vmatpush1.bf16.msra.mxu0 %v2154
      %2183 = vmatprep.subr.bf16.mxu0 %v2152
      %2184 = vmatpush1.bf16.msra.mxu0 %v2151
      %2185 = vmatprep.subr.bf16.mxu0 %v2149
      %2186 = vmatpush1.bf16.msra.mxu0 %v2148
      %2187 = vmatprep.subr.bf16.mxu0 %v2146
      %2188 = vmatpush1.bf16.msra.mxu0 %v2145
      %2189 = vmatprep.subr.bf16.mxu0 %v2143
      %2190 = vmatpush1.bf16.msra.mxu0 %v2142
      %2191 = vmatprep.subr.bf16.mxu0 %v2140
      %2192 = vmatpush1.bf16.msra.mxu0 %v2139
      %2193 = vmatprep.subr.bf16.mxu0 %v2137
      %2194 = vmatpush1.bf16.msra.mxu0 %v2136
      %2195 = vmatprep.subr.bf16.mxu0 %v2134
      %2196 = vmatpush1.bf16.msra.mxu0 %v2133
      %2197 = vmatprep.subr.bf16.mxu0 0
      %2198 = vmatpush2.bf16.msra.mxu0 0
      %2199 = vmatprep.subr.bf16.mxu0 0
      %2200 = vmatpush2.bf16.msra.mxu0 0
      %2201 = vmatprep.subr.bf16.mxu0 0
      %2202 = vmatpush2.bf16.msra.mxu0 0
      %2203 = vmatprep.subr.bf16.mxu0 0
      %2204 = vmatpush2.bf16.msra.mxu0 0
      %2205 = vmatprep.subr.bf16.mxu0 0
      %2206 = vmatpush2.bf16.msra.mxu0 0
      %2207 = vmatprep.subr.bf16.mxu0 0
      %2208 = vmatpush2.bf16.msra.mxu0 0
      %2209 = vmatprep.subr.bf16.mxu0 0
      %2210 = vmatpush2.bf16.msra.mxu0 0
      %2211 = vmatprep.subr.bf16.mxu0 0
      %2212 = vmatpush2.bf16.msra.mxu0 0
      %2213 = vmatprep.mubr.bf16.mxu0 0
      %2214 = vmatmul.mubr.bf16.gmra.mxu0 %v2020
      %v2215 = vpop.f32.mrf.mxu0
      %v2216 = vadd.f32 0.0, %v2215
      %v2217 = vpop.f32.mrf.mxu0
      %v2218 = vadd.f32 0.0, %v2217
      %v2219 = vpop.f32.mrf.mxu0
      %v2220 = vpop.f32.mrf.mxu0
      %2221 = vdwg.mxu0
      %2222 = vmatprep.subr.bf16.mxu0 0
      %2223 = vmatpush1.bf16.msra.mxu0 %v2156
      %2224 = vmatprep.subr.bf16.mxu0 0
      %2225 = vmatpush1.bf16.msra.mxu0 %v2153
      %2226 = vmatprep.subr.bf16.mxu0 0
      %2227 = vmatpush1.bf16.msra.mxu0 %v2150
      %2228 = vmatprep.subr.bf16.mxu0 0
      %2229 = vmatpush1.bf16.msra.mxu0 %v2147
      %2230 = vmatprep.subr.bf16.mxu0 0
      %2231 = vmatpush1.bf16.msra.mxu0 %v2144
      %2232 = vmatprep.subr.bf16.mxu0 0
      %2233 = vmatpush1.bf16.msra.mxu0 %v2141
      %2234 = vmatprep.subr.bf16.mxu0 0
      %2235 = vmatpush1.bf16.msra.mxu0 %v2138
      %2236 = vmatprep.subr.bf16.mxu0 0
      %2237 = vmatpush1.bf16.msra.mxu0 %v2135
      %2238 = vmatprep.subr.bf16.mxu0 0
      %2239 = vmatpush2.bf16.msra.mxu0 0
      %2240 = vmatprep.subr.bf16.mxu0 0
      %2241 = vmatpush2.bf16.msra.mxu0 0
      %2242 = vmatprep.subr.bf16.mxu0 0
      %2243 = vmatpush2.bf16.msra.mxu0 0
      %2244 = vmatprep.subr.bf16.mxu0 0
      %2245 = vmatpush2.bf16.msra.mxu0 0
      %2246 = vmatprep.subr.bf16.mxu0 0
      %2247 = vmatpush2.bf16.msra.mxu0 0
      %2248 = vmatprep.subr.bf16.mxu0 0
      %2249 = vmatpush2.bf16.msra.mxu0 0
      %2250 = vmatprep.subr.bf16.mxu0 0
      %2251 = vmatpush2.bf16.msra.mxu0 0
      %2252 = vmatprep.subr.bf16.mxu0 0
      %2253 = vmatpush2.bf16.msra.mxu0 0
      %2254 = vmatprep.mubr.bf16.mxu0 0
      %2255 = vmatmul.mubr.bf16.gmra.mxu0 %v2020
      %v2256 = vpop.f32.mrf.mxu0
      %v2257 = vadd.f32 0.0, %v2256
      %v2258 = vpop.f32.mrf.mxu0
      %v2259 = vpop.f32.mrf.mxu0
      %v2260 = vpop.f32.mrf.mxu0
      %2261 = vdwg.mxu0
      %v2262 = vrcp.pop 6.0
      %v2263 = vmul.f32 %v2216, %v2262
      %v2264 = vmul.f32 %v2218, %v2262
      %v2265 = vmul.f32 %v2257, %v2262
      %v2266 = vadd.f32 %v2263, 0.5
      %v2267 = vadd.f32 %v2264, 0.5
      %v2268 = vadd.f32 %v2265, 0.5
      %v2269 = vmax.f32 %v2266, 0.0
      %v2270 = vmax.f32 %v2267, 0.0
      %v2271 = vmax.f32 %v2268, 0.0
      %v2272 = vmin.f32 %v2269, 1.0
      %v2273 = vmin.f32 %v2270, 1.0
      %v2274 = vmin.f32 %v2271, 1.0
      %v2275 = vlaneseq
      %v2276 = vshrl.u32 %v2275, 7
      %v2277 = vsub.s32 0, %v2276
      %v2278 = vrot.slane %v2272, %v2277
      %v2279 = vlaneseq
      %v2280 = vshrl.u32 %v2279, 7
      %v2281 = vsub.s32 0, %v2280
      %v2282 = vrot.slane %v2273, %v2281
      %v2283 = vlaneseq
      %v2284 = vshrl.u32 %v2283, 7
      %v2285 = vsub.s32 0, %v2284
      %v2286 = vrot.slane %v2274, %v2285
      %v2287 = vmul.f32 %v1711, %v2278
      %v2288 = vmul.f32 %v1712, %v2282
      %v2289 = vmul.f32 %v1713, %v2286
      %v2290 = vpack.c.bf16 %v2287, %v2287
      %v2291 = vpack.c.bf16 %v2288, %v2288
      %v2292 = vpack.c.bf16 %v2289, %v2289
      %v2293 = vld [vmem:[%s10] sm:$0xf]
      %v2294 = vld [vmem:[%s10 + $0x4] sm:$0xf]
      %v2295 = vld [vmem:[%s10 + $0x8] sm:$0xf]
      %v2296 = vld [vmem:[%s10 + $0xc] sm:$0xf]
      %v2297 = vld [vmem:[%s10 + $0x10] sm:$0xf]
      %v2298 = vld [vmem:[%s10 + $0x14] sm:$0xf]
      %v2299 = vld [vmem:[%s10 + $0x18] sm:$0xf]
      %v2300 = vld [vmem:[%s10 + $0x1c] sm:$0xf]
      %v2301 = vld [vmem:[%s10 + $0x20] sm:$0xf]
      %v2302 = vld [vmem:[%s10 + $0x24] sm:$0xf]
      %v2303 = vld [vmem:[%s10 + $0x28] sm:$0xf]
      %v2304 = vld [vmem:[%s10 + $0x2c] sm:$0xf]
      %v2305 = vld [vmem:[%s10 + $0x30] sm:$0xf]
      %v2306 = vld [vmem:[%s10 + $0x34] sm:$0xf]
      %v2307 = vld [vmem:[%s10 + $0x38] sm:$0xf]
      %v2308 = vld [vmem:[%s10 + $0x3c] sm:$0xf]
      %v2309 = vld [vmem:[%s10 + $0x40] sm:$0xf]
      %v2310 = vld [vmem:[%s10 + $0x44] sm:$0xf]
      %v2311 = vld [vmem:[%s10 + $0x48] sm:$0xf]
      %v2312 = vld [vmem:[%s10 + $0x4c] sm:$0xf]
      %v2313 = vld [vmem:[%s10 + $0x50] sm:$0xf]
      %v2314 = vld [vmem:[%s10 + $0x54] sm:$0xf]
      %v2315 = vld [vmem:[%s10 + $0x58] sm:$0xf]
      %v2316 = vld [vmem:[%s10 + $0x5c] sm:$0xf]
      %v2317 = vld [vmem:[%s10 + $0x60] sm:$0xf]
      %v2318 = vld [vmem:[%s10 + $0x64] sm:$0xf]
      %v2319 = vld [vmem:[%s10 + $0x68] sm:$0xf]
      %v2320 = vld [vmem:[%s10 + $0x6c] sm:$0xf]
      %v2321 = vld [vmem:[%s10 + $0x70] sm:$0xf]
      %v2322 = vld [vmem:[%s10 + $0x74] sm:$0xf]
      %v2323 = vld [vmem:[%s10 + $0x78] sm:$0xf]
      %v2324 = vld [vmem:[%s10 + $0x7c] sm:$0xf]
      %v2325 = vld [vmem:[%s10 + $0x80] sm:$0xf]
      %v2326 = vld [vmem:[%s10 + $0x84] sm:$0xf]
      %v2327 = vld [vmem:[%s10 + $0x88] sm:$0xf]
      %v2328 = vld [vmem:[%s10 + $0x8c] sm:$0xf]
      %v2329 = vld [vmem:[%s10 + $0x90] sm:$0xf]
      %v2330 = vld [vmem:[%s10 + $0x94] sm:$0xf]
      %v2331 = vld [vmem:[%s10 + $0x98] sm:$0xf]
      %v2332 = vld [vmem:[%s10 + $0x9c] sm:$0xf]
      %v2333 = vld [vmem:[%s10 + $0xa0] sm:$0xf]
      %v2334 = vld [vmem:[%s10 + $0xa4] sm:$0xf]
      %v2335 = vld [vmem:[%s10 + $0xa8] sm:$0xf]
      %v2336 = vld [vmem:[%s10 + $0xac] sm:$0xf]
      %v2337 = vld [vmem:[%s10 + $0xb0] sm:$0xf]
      %v2338 = vld [vmem:[%s10 + $0xb4] sm:$0xf]
      %v2339 = vld [vmem:[%s10 + $0xb8] sm:$0xf]
      %v2340 = vld [vmem:[%s10 + $0xbc] sm:$0xf]
      %v2389 = vunpack.c.l.b16 %v2293
      %v2390 = vunpack.c.l.b16 %v2294
      %v2391 = vunpack.c.l.b16 %v2295
      %v2392 = vunpack.c.l.b16 %v2296
      %v2393 = vunpack.c.l.b16 %v2297
      %v2394 = vunpack.c.l.b16 %v2298
      %v2395 = vunpack.c.l.b16 %v2299
      %v2396 = vunpack.c.l.b16 %v2300
      %v2397 = vunpack.c.l.b16 %v2301
      %v2398 = vunpack.c.l.b16 %v2302
      %v2399 = vunpack.c.l.b16 %v2303
      %v2400 = vunpack.c.l.b16 %v2304
      %v2401 = vunpack.c.l.b16 %v2305
      %v2402 = vunpack.c.l.b16 %v2306
      %v2403 = vunpack.c.l.b16 %v2307
      %v2404 = vunpack.c.l.b16 %v2308
      %v2405 = vunpack.c.l.b16 %v2309
      %v2406 = vunpack.c.l.b16 %v2310
      %v2407 = vunpack.c.l.b16 %v2311
      %v2408 = vunpack.c.l.b16 %v2312
      %v2409 = vunpack.c.l.b16 %v2313
      %v2410 = vunpack.c.l.b16 %v2314
      %v2411 = vunpack.c.l.b16 %v2315
      %v2412 = vunpack.c.l.b16 %v2316
      %v2413 = vunpack.c.l.b16 %v2317
      %v2414 = vunpack.c.l.b16 %v2318
      %v2415 = vunpack.c.l.b16 %v2319
      %v2416 = vunpack.c.l.b16 %v2320
      %v2417 = vunpack.c.l.b16 %v2321
      %v2418 = vunpack.c.l.b16 %v2322
      %v2419 = vunpack.c.l.b16 %v2323
      %v2420 = vunpack.c.l.b16 %v2324
      %v2421 = vunpack.c.l.b16 %v2325
      %v2422 = vunpack.c.l.b16 %v2326
      %v2423 = vunpack.c.l.b16 %v2327
      %v2424 = vunpack.c.l.b16 %v2328
      %v2425 = vunpack.c.l.b16 %v2329
      %v2426 = vunpack.c.l.b16 %v2330
      %v2427 = vunpack.c.l.b16 %v2331
      %v2428 = vunpack.c.l.b16 %v2332
      %v2429 = vunpack.c.l.b16 %v2333
      %v2430 = vunpack.c.l.b16 %v2334
      %v2431 = vunpack.c.l.b16 %v2335
      %v2432 = vunpack.c.l.b16 %v2336
      %v2433 = vunpack.c.l.b16 %v2337
      %v2434 = vunpack.c.l.b16 %v2338
      %v2435 = vunpack.c.l.b16 %v2339
      %v2436 = vunpack.c.l.b16 %v2340
      %v2437 = vpack.c.b16 %v2390, %v2389
      %v2438 = vpack.c.b16 %v2392, %v2391
      %v2439 = vpack.c.b16 %v2394, %v2393
      %v2440 = vpack.c.b16 %v2396, %v2395
      %v2441 = vpack.c.b16 %v2398, %v2397
      %v2442 = vpack.c.b16 %v2400, %v2399
      %v2443 = vpack.c.b16 %v2402, %v2401
      %v2444 = vpack.c.b16 %v2404, %v2403
      %v2445 = vpack.c.b16 %v2406, %v2405
      %v2446 = vpack.c.b16 %v2408, %v2407
      %v2447 = vpack.c.b16 %v2410, %v2409
      %v2448 = vpack.c.b16 %v2412, %v2411
      %v2449 = vpack.c.b16 %v2414, %v2413
      %v2450 = vpack.c.b16 %v2416, %v2415
      %v2451 = vpack.c.b16 %v2418, %v2417
      %v2452 = vpack.c.b16 %v2420, %v2419
      %v2453 = vpack.c.b16 %v2422, %v2421
      %v2454 = vpack.c.b16 %v2424, %v2423
      %v2455 = vpack.c.b16 %v2426, %v2425
      %v2456 = vpack.c.b16 %v2428, %v2427
      %v2457 = vpack.c.b16 %v2430, %v2429
      %v2458 = vpack.c.b16 %v2432, %v2431
      %v2459 = vpack.c.b16 %v2434, %v2433
      %v2460 = vpack.c.b16 %v2436, %v2435
      %2485 = vmatprep.subr.bf16.mxu0 0
      %2486 = vmatpush1.bf16.msra.mxu0 %v2444
      %2487 = vmatprep.subr.bf16.mxu0 0
      %2488 = vmatpush1.bf16.msra.mxu0 %v2443
      %2489 = vmatprep.subr.bf16.mxu0 0
      %2490 = vmatpush1.bf16.msra.mxu0 %v2442
      %2491 = vmatprep.subr.bf16.mxu0 0
      %2492 = vmatpush1.bf16.msra.mxu0 %v2441
      %2493 = vmatprep.subr.bf16.mxu0 0
      %2494 = vmatpush1.bf16.msra.mxu0 %v2440
      %2495 = vmatprep.subr.bf16.mxu0 0
      %2496 = vmatpush1.bf16.msra.mxu0 %v2439
      %2497 = vmatprep.subr.bf16.mxu0 0
      %2498 = vmatpush1.bf16.msra.mxu0 %v2438
      %2499 = vmatprep.subr.bf16.mxu0 0
      %2500 = vmatpush1.bf16.msra.mxu0 %v2437
      %2501 = vmatprep.subr.bf16.mxu0 0
      %2502 = vmatpush2.bf16.msra.mxu0 %v2452
      %2503 = vmatprep.subr.bf16.mxu0 0
      %2504 = vmatpush2.bf16.msra.mxu0 %v2451
      %2505 = vmatprep.subr.bf16.mxu0 0
      %2506 = vmatpush2.bf16.msra.mxu0 %v2450
      %2507 = vmatprep.subr.bf16.mxu0 0
      %2508 = vmatpush2.bf16.msra.mxu0 %v2449
      %2509 = vmatprep.subr.bf16.mxu0 0
      %2510 = vmatpush2.bf16.msra.mxu0 %v2448
      %2511 = vmatprep.subr.bf16.mxu0 0
      %2512 = vmatpush2.bf16.msra.mxu0 %v2447
      %2513 = vmatprep.subr.bf16.mxu0 0
      %2514 = vmatpush2.bf16.msra.mxu0 %v2446
      %2515 = vmatprep.subr.bf16.mxu0 0
      %2516 = vmatpush2.bf16.msra.mxu0 %v2445
      %2517 = vmatprep.mubr.bf16.mxu0 %v2291
      %2518 = vmatmul.mubr.bf16.gmra.mxu0 %v2290
      %v2519 = vpop.f32.mrf.mxu0
      %v2520 = vadd.f32 0.0, %v2519
      %v2521 = vpop.f32.mrf.mxu0
      %v2522 = vpop.f32.mrf.mxu0
      %v2523 = vpop.f32.mrf.mxu0
      %2524 = vdwg.mxu0
      %2525 = vmatprep.subr.bf16.mxu0 0
      %2526 = vmatpush1.bf16.msra.mxu0 %v2460
      %2527 = vmatprep.subr.bf16.mxu0 0
      %2528 = vmatpush1.bf16.msra.mxu0 %v2459
      %2529 = vmatprep.subr.bf16.mxu0 0
      %2530 = vmatpush1.bf16.msra.mxu0 %v2458
      %2531 = vmatprep.subr.bf16.mxu0 0
      %2532 = vmatpush1.bf16.msra.mxu0 %v2457
      %2533 = vmatprep.subr.bf16.mxu0 0
      %2534 = vmatpush1.bf16.msra.mxu0 %v2456
      %2535 = vmatprep.subr.bf16.mxu0 0
      %2536 = vmatpush1.bf16.msra.mxu0 %v2455
      %2537 = vmatprep.subr.bf16.mxu0 0
      %2538 = vmatpush1.bf16.msra.mxu0 %v2454
      %2539 = vmatprep.subr.bf16.mxu0 0
      %2540 = vmatpush1.bf16.msra.mxu0 %v2453
      %2541 = vmatprep.subr.bf16.mxu0 0
      %2542 = vmatpush2.bf16.msra.mxu0 0
      %2543 = vmatprep.subr.bf16.mxu0 0
      %2544 = vmatpush2.bf16.msra.mxu0 0
      %2545 = vmatprep.subr.bf16.mxu0 0
      %2546 = vmatpush2.bf16.msra.mxu0 0
      %2547 = vmatprep.subr.bf16.mxu0 0
      %2548 = vmatpush2.bf16.msra.mxu0 0
      %2549 = vmatprep.subr.bf16.mxu0 0
      %2550 = vmatpush2.bf16.msra.mxu0 0
      %2551 = vmatprep.subr.bf16.mxu0 0
      %2552 = vmatpush2.bf16.msra.mxu0 0
      %2553 = vmatprep.subr.bf16.mxu0 0
      %2554 = vmatpush2.bf16.msra.mxu0 0
      %2555 = vmatprep.subr.bf16.mxu0 0
      %2556 = vmatpush2.bf16.msra.mxu0 0
      %2557 = vmatprep.mubr.bf16.mxu0 0
      %2558 = vmatmul.mubr.bf16.gmra.mxu0 %v2292
      %v2559 = vpop.f32.mrf.mxu0
      %v2560 = vadd.f32 %v2520, %v2559
      %v2561 = vpop.f32.mrf.mxu0
      %v2562 = vpop.f32.mrf.mxu0
      %v2563 = vpop.f32.mrf.mxu0
      %2564 = vdwg.mxu0
      %v2565 = vld [vmem:[%s11] sm:$0x1]
      %v2567 = vlaneseq
      %v2568 = vshrl.u32 %v2567, 7
      %v2569 = vsub.s32 0, %v2568
      %v2570 = vrot.slane %v2565, %v2569
      %v2572 = vmul.f32 %v2560, %v2570
      %v2573 = vld [vmem:[%s12] sm:$0x1]
      %v2575 = vlaneseq
      %v2576 = vshrl.u32 %v2575, 7
      %v2577 = vsub.s32 0, %v2576
      %v2578 = vrot.slane %v2573, %v2577
      %v2580 = vadd.f32 %v2572, %v2578
      %v2581 = vunpack.c.l.bf16 %v437
      %v2582 = vadd.f32 %v2580, %v2581
      %v2583 = vxor.u32 %v2582, 2147483648
      %v2584 = vmul.f32 %v2583, 1.442695
      %v2585 = vpow.pop %v2584
      %v2586 = vadd.f32 %v2585, 1.0
      %v2587 = vrcp.pop %v2586
      %v2588 = vmul.f32 1.0, %v2587
      %v2589 = vmul.f32 %v2582, %v2588
      %v2590 = vpack.c.bf16 %v2589, %v2589
      %2591 = vst [vmem:[%s435] sm:$0x3] %v2590
      %p2592 = scmp.lt.s32.totalorder %s24, 1
      %s2593 = scalar_select %p2592, %s24, 1
      %s2594 = smul.addr %s2593, 2
      %s2595 = scalar_lea.vmem %s13, %s2594
      // Predicated region
      $region73: #{forward.12} parent=71 // pred_check
        %p2596 = pneg %p320
      $region74: #{forward.12} parent=71 // pred_check_branch
        %2598 = sbr.rel (%p2596) target = $region76
      $region75: #{forward.12} parent=71 // pred_region
        _
      $region76: #{forward.12} parent=71 // pred_fallthru
        _
    $region72: #{forward.12} parent=5 // pred_fallthru
      _
    %p2599 = scmp.le.s32.totalorder 2, %s19
    // Predicated region
    $region77: #{forward.12} parent=5 // pred_check
      %p2600 = pneg %p2599
    $region78: #{forward.12} parent=5 // pred_check_branch
      %2602 = sbr.rel (%p2600) target = $region80
    $region79: #{forward.12} parent=5 // pred_region
      %s2603 = ssub.s32 %s19, 2
      // Predicated region
      $region81: #{forward.12} parent=79 // pred_check
        %p2604 = pneg %p326
      $region82: #{forward.12} parent=79 // pred_check_branch
        %2606 = sbr.rel (%p2604) target = $region84
      $region83: #{forward.12} parent=79 // pred_region
        %p2607 = scmp.lt.s32.totalorder %s25, 1
        %s2608 = scalar_select %p2607, %s25, 1
        %s2609 = smul.addr %s2608, 2
        %s2610 = scalar_lea.vmem %s13, %s2609
      $region84: #{forward.12} parent=79 // pred_fallthru
        _
    $region80: #{forward.12} parent=5 // pred_fallthru
      _
  $region6: #{forward.12} parent=0 // loop_footer
    %s23 = sadd.s32 1, %s19
  $region7: #{forward.12} parent=0 // loop_footer_branch
    %18 = sbr.rel target = $region3
  $region8: #{forward.12} parent=0 // loop_exit
    _

</llo_original>
